<compile_context>
chip_gen: v6e
topology: v6e:2x2x1
jax: 0.10.0
libtpu: 0.0.40
codegen_flags: <defaults>
</compile_context>

<pallas_src>
import jax
import jax.numpy as jnp
from jax.experimental import pallas as pl
from jax.experimental.pallas import tpu as pltpu

# ----- model config (small, consistent with the module: hidden % heads == 0) -----
HIDDEN = 32
MLP_DIM = 64
NUM_HEADS = 4
NUM_LAYERS = 3
HEAD_DIM = HIDDEN // NUM_HEADS
LN_EPS = 1e-5          # torch nn.LayerNorm default eps
_INV_SQRT2 = 0.7071067811865476


def _layernorm(x, gamma, beta):
    mu = jnp.mean(x, axis=-1, keepdims=True)
    var = jnp.mean(jnp.square(x - mu), axis=-1, keepdims=True)
    return (x - mu) * jax.lax.rsqrt(var + LN_EPS) * gamma + beta


def _gelu_exact(x):
    # torch nn.GELU() default = exact erf formulation
    return 0.5 * x * (1.0 + jax.lax.erf(x * _INV_SQRT2))


# ---------------- fused ViT kernel: all layers + final LayerNorm, one batch chunk per step
def vit_kernel(x_ref, wqkv_ref, wo_ref, bo_ref, g1_ref, b1_ref, g2_ref, b2_ref,
               w1_ref, bb1_ref, w2_ref, bb2_ref, gf_ref, bf_ref,
               hid_ref, out_ref):
    BB, S, H = x_ref.shape
    x = x_ref[...].reshape(BB * S, H)          # fold batch into the row/sublane dim

    for l in range(NUM_LAYERS):                # unrolled at trace time (L is small)
        # --- x = x + SelfAttention(LayerNorm1(x)) ---
        xn = _layernorm(x, g1_ref[l], b1_ref[l])
        # ONE lane-dense GEMM produces Q|K|V for every head: (BB*S, H) @ (H, 3H).
        qkv = jnp.dot(xn, wqkv_ref[l], preferred_element_type=jnp.float32)
        qkv = qkv.reshape(BB, S, 3 * H)        # leading-dim split only (layout no-op)

        ctx_heads = []
        for h in range(NUM_HEADS):             # per-head lane slices of the single GEMM result
            q_h = qkv[:, :, h * HEAD_DIM:(h + 1) * HEAD_DIM]            # scale pre-folded
            k_h = qkv[:, :, H + h * HEAD_DIM:H + (h + 1) * HEAD_DIM]
            v_h = qkv[:, :, 2 * H + h * HEAD_DIM:2 * H + (h + 1) * HEAD_DIM]
            s = jnp.einsum('bqd,bkd->bqk', q_h, k_h,
                           preferred_element_type=jnp.float32)
            s = s - jnp.max(s, axis=-1, keepdims=True)
            p = jnp.exp(s)
            p = p * pl.reciprocal(jnp.sum(p, axis=-1, keepdims=True), approx=True)
            ctx_heads.append(jnp.einsum('bqk,bkd->bqd', p, v_h,
                                        preferred_element_type=jnp.float32))

        # Head-concat (lane concat) -> ONE (BB*S, H) @ (H, H) output projection.
        ctx = jnp.concatenate(ctx_heads, axis=-1).reshape(BB * S, H)
        x = x + jnp.dot(ctx, wo_ref[l], preferred_element_type=jnp.float32) + bo_ref[l]

        # --- x = x + MLP(LayerNorm2(x)) ---
        xn2 = _layernorm(x, g2_ref[l], b2_ref[l])
        h1 = _gelu_exact(jnp.dot(xn2, w1_ref[l],
                                 preferred_element_type=jnp.float32) + bb1_ref[l])
        x = x + jnp.dot(h1, w2_ref[l], preferred_element_type=jnp.float32) + bb2_ref[l]

        # hidden_states_out[l]; (B, L, S, H) layout -> contiguous slab per grid step.
        hid_ref[:, l, :, :] = x.reshape(BB, S, H).astype(hid_ref.dtype)

    out_ref[...] = _layernorm(x, gf_ref[...], bf_ref[...]).reshape(BB, S, H).astype(out_ref.dtype)


def _const_spec(shape):
    n = len(shape)
    return pl.BlockSpec(shape, lambda b, _n=n: (0,) * _n)


def _grid_steps(batch):
    # v7x has 2 TensorCores/chip: keep a 2-way "parallel" batch split there.
    # Single-TC parts (v5e/v6e): fold the whole batch into one grid step.
    kind = ""
    try:
        kind = (jax.devices()[0].device_kind or "").lower()
    except Exception:
        pass
    if "v7" in kind and batch % 2 == 0:
        return 2
    return 1


def vit_forward(x, packed, norm):
    """x: (B, S, H) token embeddings. Returns (final, [hidden_state_l, ...])."""
    B, S, H = x.shape
    L = NUM_LAYERS
    steps = _grid_steps(B)
    BB = B // steps

    weights = [packed["wqkv"], packed["wo"], packed["bo"],
               packed["g1"], packed["b1"], packed["g2"], packed["b2"],
               packed["w1"], packed["bb1"], packed["w2"], packed["bb2"],
               norm["g"], norm["b"]]
    in_specs = [pl.BlockSpec((BB, S, H), lambda b: (b, 0, 0))]
    # TODO(synk): at production dims single-buffer these constant operands
    # (pipeline_mode=pl.Buffered(1)) or switch to a per-layer streaming grid axis.
    in_specs += [_const_spec(w.shape) for w in weights]

    hid, out = pl.pallas_call(
        vit_kernel,
        out_shape=(jax.ShapeDtypeStruct((B, L, S, H), x.dtype),
                   jax.ShapeDtypeStruct((B, S, H), x.dtype)),
        grid=(steps,),
        in_specs=in_specs,
        out_specs=(pl.BlockSpec((BB, L, S, H), lambda b: (b, 0, 0, 0)),
                   pl.BlockSpec((BB, S, H), lambda b: (b, 0, 0))),
        compiler_params=pltpu.CompilerParams(dimension_semantics=("parallel",)),
    )(x, *weights)

    hidden_states_out = [hid[:, l] for l in range(L)]   # each (B, S, H)
    return out, hidden_states_out


# ---------------- parameter packing: stack layers, lane-dense Wqkv, fold scale -------------
def pack_params(layer_params, norm_params):
    scale = HEAD_DIM ** -0.5

    def prep_qkv(w):
        # Columns are packed as (qkv, heads, head_dim) -- same as MONAI's
        # Rearrange("b h (qkv l d) -> qkv b l h d") convention.
        w = w.reshape(HIDDEN, 3, NUM_HEADS, HEAD_DIM)
        w = w.at[:, 0].multiply(scale)          # fold 1/sqrt(d) into the Q projection
        return w.reshape(HIDDEN, 3 * HIDDEN)    # lane-dense (H, 3H)

    packed = dict(
        wqkv=jnp.stack([prep_qkv(p["wqkv"]) for p in layer_params]),   # (L, H, 3H)
        wo=jnp.stack([p["wo"] for p in layer_params]),                  # (L, H, H)
        bo=jnp.stack([p["bo"] for p in layer_params]),
        g1=jnp.stack([p["g1"] for p in layer_params]),
        b1=jnp.stack([p["b1"] for p in layer_params]),
        g2=jnp.stack([p["g2"] for p in layer_params]),
        b2=jnp.stack([p["b2"] for p in layer_params]),
        w1=jnp.stack([p["w1"] for p in layer_params]),
        bb1=jnp.stack([p["bb1"] for p in layer_params]),
        w2=jnp.stack([p["w2"] for p in layer_params]),
        bb2=jnp.stack([p["bb2"] for p in layer_params]),
    )
    return packed, norm_params


# ---------------- deterministic parameter init (synthetic, per module __init__ shapes) -----
def init_params(key):
    layers = []
    for _ in range(NUM_LAYERS):
        key, k0, k1, k2, k3, k4, k5 = jax.random.split(key, 7)
        layers.append(dict(
            # SABlock: qkv Linear (qkv_bias=False), output Linear (with bias)
            wqkv=0.02 * jax.random.normal(k0, (HIDDEN, 3 * HIDDEN), jnp.float32),
            wo=0.02 * jax.random.normal(k1, (HIDDEN, HIDDEN), jnp.float32),
            bo=jnp.zeros((1, HIDDEN), jnp.float32),
            # LayerNorms (torch default init: ones / zeros)
            g1=jnp.ones((1, HIDDEN), jnp.float32), b1=jnp.zeros((1, HIDDEN), jnp.float32),
            g2=jnp.ones((1, HIDDEN), jnp.float32), b2=jnp.zeros((1, HIDDEN), jnp.float32),
            # MLPBlock: Linear(hidden, mlp_dim) -> GELU -> Linear(mlp_dim, hidden)
            w1=0.02 * jax.random.normal(k2, (HIDDEN, MLP_DIM), jnp.float32),
            bb1=0.02 * jax.random.normal(k3, (1, MLP_DIM), jnp.float32),
            w2=0.02 * jax.random.normal(k4, (MLP_DIM, HIDDEN), jnp.float32),
            bb2=0.02 * jax.random.normal(k5, (1, HIDDEN), jnp.float32),
        ))
    norm = dict(g=jnp.ones((1, HIDDEN), jnp.float32),
                b=jnp.zeros((1, HIDDEN), jnp.float32))
    return layers, norm


if __name__ == "__main__":
    key = jax.random.PRNGKey(0)
    key, kx, kp = jax.random.split(key, 3)
    B, S = 2, 8
    x = jax.random.normal(kx, (B, S, HIDDEN), jnp.float32)   # [B, S, H] token embeddings
    layer_params, norm_params = init_params(kp)
    packed, norm = pack_params(layer_params, norm_params)

    out, hidden_states = vit_forward(x, packed, norm)
    jax.block_until_ready(out)
    for h in hidden_states:
        jax.block_until_ready(h)

    assert out.shape == (B, S, HIDDEN)
    assert len(hidden_states) == NUM_LAYERS
    assert all(h.shape == (B, S, HIDDEN) for h in hidden_states)
    print("KERNEL_OK")
</pallas_src>

<mosaic_0001>
module attributes {stable_mosaic.version = 11 : i64} {
  func.func @vit_kernel(%arg0: i32, %arg1: memref<2x8x32xf32, #tpu.memory_space<vmem>>, %arg2: memref<3x32x96xf32, #tpu.memory_space<vmem>>, %arg3: memref<3x32x32xf32, #tpu.memory_space<vmem>>, %arg4: memref<3x1x32xf32, #tpu.memory_space<vmem>>, %arg5: memref<3x1x32xf32, #tpu.memory_space<vmem>>, %arg6: memref<3x1x32xf32, #tpu.memory_space<vmem>>, %arg7: memref<3x1x32xf32, #tpu.memory_space<vmem>>, %arg8: memref<3x1x32xf32, #tpu.memory_space<vmem>>, %arg9: memref<3x32x64xf32, #tpu.memory_space<vmem>>, %arg10: memref<3x1x64xf32, #tpu.memory_space<vmem>>, %arg11: memref<3x64x32xf32, #tpu.memory_space<vmem>>, %arg12: memref<3x1x32xf32, #tpu.memory_space<vmem>>, %arg13: memref<1x32xf32, #tpu.memory_space<vmem>>, %arg14: memref<1x32xf32, #tpu.memory_space<vmem>>, %arg15: memref<2x3x8x32xf32, #tpu.memory_space<vmem>>, %arg16: memref<2x8x32xf32, #tpu.memory_space<vmem>>) attributes {dimension_semantics = [#tpu.dimension_semantics<parallel>], iteration_bounds = array<i64: 1>, scalar_prefetch = 0 : i64, scratch_operands = 0 : i64, tpu.core_type = #tpu.core_type<tc>, window_params = [{transform_indices = @transform_0, window_bounds = array<i64: 2, 8, 32>}, {pipeline_mode = #tpu.pipeline_mode<synchronous>, transform_indices = @transform_1, window_bounds = array<i64: 3, 32, 96>}, {pipeline_mode = #tpu.pipeline_mode<synchronous>, transform_indices = @transform_2, window_bounds = array<i64: 3, 32, 32>}, {pipeline_mode = #tpu.pipeline_mode<synchronous>, transform_indices = @transform_3, window_bounds = array<i64: 3, 1, 32>}, {pipeline_mode = #tpu.pipeline_mode<synchronous>, transform_indices = @transform_4, window_bounds = array<i64: 3, 1, 32>}, {pipeline_mode = #tpu.pipeline_mode<synchronous>, transform_indices = @transform_5, window_bounds = array<i64: 3, 1, 32>}, {pipeline_mode = #tpu.pipeline_mode<synchronous>, transform_indices = @transform_6, window_bounds = array<i64: 3, 1, 32>}, {pipeline_mode = #tpu.pipeline_mode<synchronous>, transform_indices = @transform_7, window_bounds = array<i64: 3, 1, 32>}, {pipeline_mode = #tpu.pipeline_mode<synchronous>, transform_indices = @transform_8, window_bounds = array<i64: 3, 32, 64>}, {pipeline_mode = #tpu.pipeline_mode<synchronous>, transform_indices = @transform_9, window_bounds = array<i64: 3, 1, 64>}, {pipeline_mode = #tpu.pipeline_mode<synchronous>, transform_indices = @transform_10, window_bounds = array<i64: 3, 64, 32>}, {pipeline_mode = #tpu.pipeline_mode<synchronous>, transform_indices = @transform_11, window_bounds = array<i64: 3, 1, 32>}, {pipeline_mode = #tpu.pipeline_mode<synchronous>, transform_indices = @transform_12, window_bounds = array<i64: 1, 32>}, {pipeline_mode = #tpu.pipeline_mode<synchronous>, transform_indices = @transform_13, window_bounds = array<i64: 1, 32>}, {transform_indices = @transform_14, window_bounds = array<i64: 2, 3, 8, 32>}, {transform_indices = @transform_15, window_bounds = array<i64: 2, 8, 32>}]} {
    %c0 = arith.constant 0 : index
    %c0_0 = arith.constant 0 : index
    %c0_1 = arith.constant 0 : index
    %0 = vector.load %arg1[%c0, %c0_0, %c0_1] : memref<2x8x32xf32, #tpu.memory_space<vmem>>, vector<2x8x32xf32>
    %1 = vector.shape_cast %0 : vector<2x8x32xf32> to vector<16x32xf32>
    %c0_2 = arith.constant 0 : index
    %c0_3 = arith.constant 0 : index
    %c0_4 = arith.constant 0 : index
    %2 = vector.load %arg5[%c0_2, %c0_3, %c0_4] : memref<3x1x32xf32, #tpu.memory_space<vmem>>, vector<1x1x32xf32>
    %3 = vector.shape_cast %2 : vector<1x1x32xf32> to vector<1x32xf32>
    %c0_5 = arith.constant 0 : index
    %c0_6 = arith.constant 0 : index
    %c0_7 = arith.constant 0 : index
    %4 = vector.load %arg6[%c0_5, %c0_6, %c0_7] : memref<3x1x32xf32, #tpu.memory_space<vmem>>, vector<1x1x32xf32>
    %5 = vector.shape_cast %4 : vector<1x1x32xf32> to vector<1x32xf32>
    %cst = arith.constant dense<0.000000e+00> : vector<16xf32>
    %6 = vector.multi_reduction <add>, %1, %cst [1] : vector<16x32xf32> to vector<16xf32>
    %7 = vector.shape_cast %6 : vector<16xf32> to vector<16x1xf32>
    %cst_8 = arith.constant 3.200000e+01 : f32
    %8 = vector.broadcast %cst_8 : f32 to vector<16x1xf32>
    %9 = arith.divf %7, %8 : vector<16x1xf32>
    %10 = vector.broadcast %9 : vector<16x1xf32> to vector<16x32xf32>
    %11 = arith.subf %1, %10 : vector<16x32xf32>
    %12 = arith.mulf %11, %11 : vector<16x32xf32>
    %cst_9 = arith.constant dense<0.000000e+00> : vector<16xf32>
    %13 = vector.multi_reduction <add>, %12, %cst_9 [1] : vector<16x32xf32> to vector<16xf32>
    %14 = vector.shape_cast %13 : vector<16xf32> to vector<16x1xf32>
    %cst_10 = arith.constant 3.200000e+01 : f32
    %15 = vector.broadcast %cst_10 : f32 to vector<16x1xf32>
    %16 = arith.divf %14, %15 : vector<16x1xf32>
    %17 = vector.broadcast %9 : vector<16x1xf32> to vector<16x32xf32>
    %18 = arith.subf %1, %17 : vector<16x32xf32>
    %cst_11 = arith.constant 9.99999974E-6 : f32
    %19 = vector.broadcast %cst_11 : f32 to vector<16x1xf32>
    %20 = arith.addf %16, %19 : vector<16x1xf32>
    %21 = math.rsqrt %20 : vector<16x1xf32>
    %22 = vector.broadcast %21 : vector<16x1xf32> to vector<16x32xf32>
    %23 = arith.mulf %18, %22 : vector<16x32xf32>
    %24 = vector.broadcast %3 : vector<1x32xf32> to vector<16x32xf32>
    %25 = arith.mulf %23, %24 : vector<16x32xf32>
    %26 = vector.broadcast %5 : vector<1x32xf32> to vector<16x32xf32>
    %27 = arith.addf %25, %26 : vector<16x32xf32>
    %c0_12 = arith.constant 0 : index
    %c0_13 = arith.constant 0 : index
    %c0_14 = arith.constant 0 : index
    %28 = vector.load %arg2[%c0_12, %c0_13, %c0_14] : memref<3x32x96xf32, #tpu.memory_space<vmem>>, vector<1x32x96xf32>
    %29 = vector.shape_cast %28 : vector<1x32x96xf32> to vector<32x96xf32>
    %cst_15 = arith.constant dense<0.000000e+00> : vector<16x96xf32>
    %30 = tpu.matmul %27, %29, %cst_15 {dimension_numbers = #tpu.dot_dimension_numbers<[1], [0], [0], [1], [0, 0, 1, 1], [], []>} : vector<16x32xf32>, vector<32x96xf32>, vector<16x96xf32> -> vector<16x96xf32>
    %31 = vector.shape_cast %30 : vector<16x96xf32> to vector<2x8x96xf32>
    %32 = vector.extract_strided_slice %31 {offsets = [0, 0, 0], sizes = [2, 8, 8], strides = [1, 1, 1]} : vector<2x8x96xf32> to vector<2x8x8xf32>
    %33 = vector.extract_strided_slice %31 {offsets = [0, 0, 32], sizes = [2, 8, 8], strides = [1, 1, 1]} : vector<2x8x96xf32> to vector<2x8x8xf32>
    %34 = vector.extract_strided_slice %31 {offsets = [0, 0, 64], sizes = [2, 8, 8], strides = [1, 1, 1]} : vector<2x8x96xf32> to vector<2x8x8xf32>
    "tpu.trace_start"() <{level = 10 : i32, message = "bqd,bkd->bqk"}> : () -> ()
    %cst_16 = arith.constant dense<0.000000e+00> : vector<2x8x8xf32>
    %35 = tpu.matmul %32, %33, %cst_16 {dimension_numbers = #tpu.dot_dimension_numbers<[2], [2], [1], [1], [0, 0, 0, 1, 1, 1], [0], [0]>} : vector<2x8x8xf32>, vector<2x8x8xf32>, vector<2x8x8xf32> -> vector<2x8x8xf32>
    "tpu.trace_stop"() : () -> ()
    %cst_17 = arith.constant dense<0xFF800000> : vector<2x8xf32>
    %36 = vector.multi_reduction <maximumf>, %35, %cst_17 [2] : vector<2x8x8xf32> to vector<2x8xf32>
    %37 = vector.shape_cast %36 : vector<2x8xf32> to vector<2x8x1xf32>
    %38 = vector.broadcast %37 : vector<2x8x1xf32> to vector<2x8x8xf32>
    %39 = arith.subf %35, %38 : vector<2x8x8xf32>
    %40 = math.exp %39 : vector<2x8x8xf32>
    %cst_18 = arith.constant dense<0.000000e+00> : vector<2x8xf32>
    %41 = vector.multi_reduction <add>, %40, %cst_18 [2] : vector<2x8x8xf32> to vector<2x8xf32>
    %42 = vector.shape_cast %41 : vector<2x8xf32> to vector<2x8x1xf32>
    %43 = tpu.reciprocal %42 {approx = true} : vector<2x8x1xf32> -> vector<2x8x1xf32>
    %44 = vector.broadcast %43 : vector<2x8x1xf32> to vector<2x8x8xf32>
    %45 = arith.mulf %40, %44 : vector<2x8x8xf32>
    "tpu.trace_start"() <{level = 10 : i32, message = "bqk,bkd->bqd"}> : () -> ()
    %cst_19 = arith.constant dense<0.000000e+00> : vector<2x8x8xf32>
    %46 = tpu.matmul %45, %34, %cst_19 {dimension_numbers = #tpu.dot_dimension_numbers<[2], [1], [1], [2], [0, 0, 0, 1, 1, 2], [0], [0]>} : vector<2x8x8xf32>, vector<2x8x8xf32>, vector<2x8x8xf32> -> vector<2x8x8xf32>
    "tpu.trace_stop"() : () -> ()
    %47 = vector.extract_strided_slice %31 {offsets = [0, 0, 8], sizes = [2, 8, 8], strides = [1, 1, 1]} : vector<2x8x96xf32> to vector<2x8x8xf32>
    %48 = vector.extract_strided_slice %31 {offsets = [0, 0, 40], sizes = [2, 8, 8], strides = [1, 1, 1]} : vector<2x8x96xf32> to vector<2x8x8xf32>
    %49 = vector.extract_strided_slice %31 {offsets = [0, 0, 72], sizes = [2, 8, 8], strides = [1, 1, 1]} : vector<2x8x96xf32> to vector<2x8x8xf32>
    "tpu.trace_start"() <{level = 10 : i32, message = "bqd,bkd->bqk"}> : () -> ()
    %cst_20 = arith.constant dense<0.000000e+00> : vector<2x8x8xf32>
    %50 = tpu.matmul %47, %48, %cst_20 {dimension_numbers = #tpu.dot_dimension_numbers<[2], [2], [1], [1], [0, 0, 0, 1, 1, 1], [0], [0]>} : vector<2x8x8xf32>, vector<2x8x8xf32>, vector<2x8x8xf32> -> vector<2x8x8xf32>
    "tpu.trace_stop"() : () -> ()
    %cst_21 = arith.constant dense<0xFF800000> : vector<2x8xf32>
    %51 = vector.multi_reduction <maximumf>, %50, %cst_21 [2] : vector<2x8x8xf32> to vector<2x8xf32>
    %52 = vector.shape_cast %51 : vector<2x8xf32> to vector<2x8x1xf32>
    %53 = vector.broadcast %52 : vector<2x8x1xf32> to vector<2x8x8xf32>
    %54 = arith.subf %50, %53 : vector<2x8x8xf32>
    %55 = math.exp %54 : vector<2x8x8xf32>
    %cst_22 = arith.constant dense<0.000000e+00> : vector<2x8xf32>
    %56 = vector.multi_reduction <add>, %55, %cst_22 [2] : vector<2x8x8xf32> to vector<2x8xf32>
    %57 = vector.shape_cast %56 : vector<2x8xf32> to vector<2x8x1xf32>
    %58 = tpu.reciprocal %57 {approx = true} : vector<2x8x1xf32> -> vector<2x8x1xf32>
    %59 = vector.broadcast %58 : vector<2x8x1xf32> to vector<2x8x8xf32>
    %60 = arith.mulf %55, %59 : vector<2x8x8xf32>
    "tpu.trace_start"() <{level = 10 : i32, message = "bqk,bkd->bqd"}> : () -> ()
    %cst_23 = arith.constant dense<0.000000e+00> : vector<2x8x8xf32>
    %61 = tpu.matmul %60, %49, %cst_23 {dimension_numbers = #tpu.dot_dimension_numbers<[2], [1], [1], [2], [0, 0, 0, 1, 1, 2], [0], [0]>} : vector<2x8x8xf32>, vector<2x8x8xf32>, vector<2x8x8xf32> -> vector<2x8x8xf32>
    "tpu.trace_stop"() : () -> ()
    %62 = vector.extract_strided_slice %31 {offsets = [0, 0, 16], sizes = [2, 8, 8], strides = [1, 1, 1]} : vector<2x8x96xf32> to vector<2x8x8xf32>
    %63 = vector.extract_strided_slice %31 {offsets = [0, 0, 48], sizes = [2, 8, 8], strides = [1, 1, 1]} : vector<2x8x96xf32> to vector<2x8x8xf32>
    %64 = vector.extract_strided_slice %31 {offsets = [0, 0, 80], sizes = [2, 8, 8], strides = [1, 1, 1]} : vector<2x8x96xf32> to vector<2x8x8xf32>
    "tpu.trace_start"() <{level = 10 : i32, message = "bqd,bkd->bqk"}> : () -> ()
    %cst_24 = arith.constant dense<0.000000e+00> : vector<2x8x8xf32>
    %65 = tpu.matmul %62, %63, %cst_24 {dimension_numbers = #tpu.dot_dimension_numbers<[2], [2], [1], [1], [0, 0, 0, 1, 1, 1], [0], [0]>} : vector<2x8x8xf32>, vector<2x8x8xf32>, vector<2x8x8xf32> -> vector<2x8x8xf32>
    "tpu.trace_stop"() : () -> ()
    %cst_25 = arith.constant dense<0xFF800000> : vector<2x8xf32>
    %66 = vector.multi_reduction <maximumf>, %65, %cst_25 [2] : vector<2x8x8xf32> to vector<2x8xf32>
    %67 = vector.shape_cast %66 : vector<2x8xf32> to vector<2x8x1xf32>
    %68 = vector.broadcast %67 : vector<2x8x1xf32> to vector<2x8x8xf32>
    %69 = arith.subf %65, %68 : vector<2x8x8xf32>
    %70 = math.exp %69 : vector<2x8x8xf32>
    %cst_26 = arith.constant dense<0.000000e+00> : vector<2x8xf32>
    %71 = vector.multi_reduction <add>, %70, %cst_26 [2] : vector<2x8x8xf32> to vector<2x8xf32>
    %72 = vector.shape_cast %71 : vector<2x8xf32> to vector<2x8x1xf32>
    %73 = tpu.reciprocal %72 {approx = true} : vector<2x8x1xf32> -> vector<2x8x1xf32>
    %74 = vector.broadcast %73 : vector<2x8x1xf32> to vector<2x8x8xf32>
    %75 = arith.mulf %70, %74 : vector<2x8x8xf32>
    "tpu.trace_start"() <{level = 10 : i32, message = "bqk,bkd->bqd"}> : () -> ()
    %cst_27 = arith.constant dense<0.000000e+00> : vector<2x8x8xf32>
    %76 = tpu.matmul %75, %64, %cst_27 {dimension_numbers = #tpu.dot_dimension_numbers<[2], [1], [1], [2], [0, 0, 0, 1, 1, 2], [0], [0]>} : vector<2x8x8xf32>, vector<2x8x8xf32>, vector<2x8x8xf32> -> vector<2x8x8xf32>
    "tpu.trace_stop"() : () -> ()
    %77 = vector.extract_strided_slice %31 {offsets = [0, 0, 24], sizes = [2, 8, 8], strides = [1, 1, 1]} : vector<2x8x96xf32> to vector<2x8x8xf32>
    %78 = vector.extract_strided_slice %31 {offsets = [0, 0, 56], sizes = [2, 8, 8], strides = [1, 1, 1]} : vector<2x8x96xf32> to vector<2x8x8xf32>
    %79 = vector.extract_strided_slice %31 {offsets = [0, 0, 88], sizes = [2, 8, 8], strides = [1, 1, 1]} : vector<2x8x96xf32> to vector<2x8x8xf32>
    "tpu.trace_start"() <{level = 10 : i32, message = "bqd,bkd->bqk"}> : () -> ()
    %cst_28 = arith.constant dense<0.000000e+00> : vector<2x8x8xf32>
    %80 = tpu.matmul %77, %78, %cst_28 {dimension_numbers = #tpu.dot_dimension_numbers<[2], [2], [1], [1], [0, 0, 0, 1, 1, 1], [0], [0]>} : vector<2x8x8xf32>, vector<2x8x8xf32>, vector<2x8x8xf32> -> vector<2x8x8xf32>
    "tpu.trace_stop"() : () -> ()
    %cst_29 = arith.constant dense<0xFF800000> : vector<2x8xf32>
    %81 = vector.multi_reduction <maximumf>, %80, %cst_29 [2] : vector<2x8x8xf32> to vector<2x8xf32>
    %82 = vector.shape_cast %81 : vector<2x8xf32> to vector<2x8x1xf32>
    %83 = vector.broadcast %82 : vector<2x8x1xf32> to vector<2x8x8xf32>
    %84 = arith.subf %80, %83 : vector<2x8x8xf32>
    %85 = math.exp %84 : vector<2x8x8xf32>
    %cst_30 = arith.constant dense<0.000000e+00> : vector<2x8xf32>
    %86 = vector.multi_reduction <add>, %85, %cst_30 [2] : vector<2x8x8xf32> to vector<2x8xf32>
    %87 = vector.shape_cast %86 : vector<2x8xf32> to vector<2x8x1xf32>
    %88 = tpu.reciprocal %87 {approx = true} : vector<2x8x1xf32> -> vector<2x8x1xf32>
    %89 = vector.broadcast %88 : vector<2x8x1xf32> to vector<2x8x8xf32>
    %90 = arith.mulf %85, %89 : vector<2x8x8xf32>
    "tpu.trace_start"() <{level = 10 : i32, message = "bqk,bkd->bqd"}> : () -> ()
    %cst_31 = arith.constant dense<0.000000e+00> : vector<2x8x8xf32>
    %91 = tpu.matmul %90, %79, %cst_31 {dimension_numbers = #tpu.dot_dimension_numbers<[2], [1], [1], [2], [0, 0, 0, 1, 1, 2], [0], [0]>} : vector<2x8x8xf32>, vector<2x8x8xf32>, vector<2x8x8xf32> -> vector<2x8x8xf32>
    "tpu.trace_stop"() : () -> ()
    %92 = tpu.concatenate %46, %61, %76, %91 in 2 : vector<2x8x8xf32>, vector<2x8x8xf32>, vector<2x8x8xf32>, vector<2x8x8xf32> -> vector<2x8x32xf32>
    %93 = vector.shape_cast %92 : vector<2x8x32xf32> to vector<16x32xf32>
    %c0_32 = arith.constant 0 : index
    %c0_33 = arith.constant 0 : index
    %c0_34 = arith.constant 0 : index
    %94 = vector.load %arg3[%c0_32, %c0_33, %c0_34] : memref<3x32x32xf32, #tpu.memory_space<vmem>>, vector<1x32x32xf32>
    %95 = vector.shape_cast %94 : vector<1x32x32xf32> to vector<32x32xf32>
    %cst_35 = arith.constant dense<0.000000e+00> : vector<16x32xf32>
    %96 = tpu.matmul %93, %95, %cst_35 {dimension_numbers = #tpu.dot_dimension_numbers<[1], [0], [0], [1], [0, 0, 1, 1], [], []>} : vector<16x32xf32>, vector<32x32xf32>, vector<16x32xf32> -> vector<16x32xf32>
    %97 = arith.addf %1, %96 : vector<16x32xf32>
    %c0_36 = arith.constant 0 : index
    %c0_37 = arith.constant 0 : index
    %c0_38 = arith.constant 0 : index
    %98 = vector.load %arg4[%c0_36, %c0_37, %c0_38] : memref<3x1x32xf32, #tpu.memory_space<vmem>>, vector<1x1x32xf32>
    %99 = vector.shape_cast %98 : vector<1x1x32xf32> to vector<1x32xf32>
    %100 = vector.broadcast %99 : vector<1x32xf32> to vector<16x32xf32>
    %101 = arith.addf %97, %100 : vector<16x32xf32>
    %c0_39 = arith.constant 0 : index
    %c0_40 = arith.constant 0 : index
    %c0_41 = arith.constant 0 : index
    %102 = vector.load %arg7[%c0_39, %c0_40, %c0_41] : memref<3x1x32xf32, #tpu.memory_space<vmem>>, vector<1x1x32xf32>
    %103 = vector.shape_cast %102 : vector<1x1x32xf32> to vector<1x32xf32>
    %c0_42 = arith.constant 0 : index
    %c0_43 = arith.constant 0 : index
    %c0_44 = arith.constant 0 : index
    %104 = vector.load %arg8[%c0_42, %c0_43, %c0_44] : memref<3x1x32xf32, #tpu.memory_space<vmem>>, vector<1x1x32xf32>
    %105 = vector.shape_cast %104 : vector<1x1x32xf32> to vector<1x32xf32>
    %cst_45 = arith.constant dense<0.000000e+00> : vector<16xf32>
    %106 = vector.multi_reduction <add>, %101, %cst_45 [1] : vector<16x32xf32> to vector<16xf32>
    %107 = vector.shape_cast %106 : vector<16xf32> to vector<16x1xf32>
    %cst_46 = arith.constant 3.200000e+01 : f32
    %108 = vector.broadcast %cst_46 : f32 to vector<16x1xf32>
    %109 = arith.divf %107, %108 : vector<16x1xf32>
    %110 = vector.broadcast %109 : vector<16x1xf32> to vector<16x32xf32>
    %111 = arith.subf %101, %110 : vector<16x32xf32>
    %112 = arith.mulf %111, %111 : vector<16x32xf32>
    %cst_47 = arith.constant dense<0.000000e+00> : vector<16xf32>
    %113 = vector.multi_reduction <add>, %112, %cst_47 [1] : vector<16x32xf32> to vector<16xf32>
    %114 = vector.shape_cast %113 : vector<16xf32> to vector<16x1xf32>
    %cst_48 = arith.constant 3.200000e+01 : f32
    %115 = vector.broadcast %cst_48 : f32 to vector<16x1xf32>
    %116 = arith.divf %114, %115 : vector<16x1xf32>
    %117 = vector.broadcast %109 : vector<16x1xf32> to vector<16x32xf32>
    %118 = arith.subf %101, %117 : vector<16x32xf32>
    %cst_49 = arith.constant 9.99999974E-6 : f32
    %119 = vector.broadcast %cst_49 : f32 to vector<16x1xf32>
    %120 = arith.addf %116, %119 : vector<16x1xf32>
    %121 = math.rsqrt %120 : vector<16x1xf32>
    %122 = vector.broadcast %121 : vector<16x1xf32> to vector<16x32xf32>
    %123 = arith.mulf %118, %122 : vector<16x32xf32>
    %124 = vector.broadcast %103 : vector<1x32xf32> to vector<16x32xf32>
    %125 = arith.mulf %123, %124 : vector<16x32xf32>
    %126 = vector.broadcast %105 : vector<1x32xf32> to vector<16x32xf32>
    %127 = arith.addf %125, %126 : vector<16x32xf32>
    %c0_50 = arith.constant 0 : index
    %c0_51 = arith.constant 0 : index
    %c0_52 = arith.constant 0 : index
    %128 = vector.load %arg9[%c0_50, %c0_51, %c0_52] : memref<3x32x64xf32, #tpu.memory_space<vmem>>, vector<1x32x64xf32>
    %129 = vector.shape_cast %128 : vector<1x32x64xf32> to vector<32x64xf32>
    %cst_53 = arith.constant dense<0.000000e+00> : vector<16x64xf32>
    %130 = tpu.matmul %127, %129, %cst_53 {dimension_numbers = #tpu.dot_dimension_numbers<[1], [0], [0], [1], [0, 0, 1, 1], [], []>} : vector<16x32xf32>, vector<32x64xf32>, vector<16x64xf32> -> vector<16x64xf32>
    %c0_54 = arith.constant 0 : index
    %c0_55 = arith.constant 0 : index
    %c0_56 = arith.constant 0 : index
    %131 = vector.load %arg10[%c0_54, %c0_55, %c0_56] : memref<3x1x64xf32, #tpu.memory_space<vmem>>, vector<1x1x64xf32>
    %132 = vector.shape_cast %131 : vector<1x1x64xf32> to vector<1x64xf32>
    %133 = vector.broadcast %132 : vector<1x64xf32> to vector<16x64xf32>
    %134 = arith.addf %130, %133 : vector<16x64xf32>
    %cst_57 = arith.constant 5.000000e-01 : f32
    %135 = vector.broadcast %cst_57 : f32 to vector<16x64xf32>
    %136 = arith.mulf %135, %134 : vector<16x64xf32>
    %cst_58 = arith.constant 0.707106769 : f32
    %137 = vector.broadcast %cst_58 : f32 to vector<16x64xf32>
    %138 = arith.mulf %134, %137 : vector<16x64xf32>
    %139 = math.erf %138 : vector<16x64xf32>
    %cst_59 = arith.constant 1.000000e+00 : f32
    %140 = vector.broadcast %cst_59 : f32 to vector<16x64xf32>
    %141 = arith.addf %140, %139 : vector<16x64xf32>
    %142 = arith.mulf %136, %141 : vector<16x64xf32>
    %c0_60 = arith.constant 0 : index
    %c0_61 = arith.constant 0 : index
    %c0_62 = arith.constant 0 : index
    %143 = vector.load %arg11[%c0_60, %c0_61, %c0_62] : memref<3x64x32xf32, #tpu.memory_space<vmem>>, vector<1x64x32xf32>
    %144 = vector.shape_cast %143 : vector<1x64x32xf32> to vector<64x32xf32>
    %cst_63 = arith.constant dense<0.000000e+00> : vector<16x32xf32>
    %145 = tpu.matmul %142, %144, %cst_63 {dimension_numbers = #tpu.dot_dimension_numbers<[1], [0], [0], [1], [0, 0, 1, 1], [], []>} : vector<16x64xf32>, vector<64x32xf32>, vector<16x32xf32> -> vector<16x32xf32>
    %146 = arith.addf %101, %145 : vector<16x32xf32>
    %c0_64 = arith.constant 0 : index
    %c0_65 = arith.constant 0 : index
    %c0_66 = arith.constant 0 : index
    %147 = vector.load %arg12[%c0_64, %c0_65, %c0_66] : memref<3x1x32xf32, #tpu.memory_space<vmem>>, vector<1x1x32xf32>
    %148 = vector.shape_cast %147 : vector<1x1x32xf32> to vector<1x32xf32>
    %149 = vector.broadcast %148 : vector<1x32xf32> to vector<16x32xf32>
    %150 = arith.addf %146, %149 : vector<16x32xf32>
    %151 = vector.shape_cast %150 : vector<16x32xf32> to vector<2x8x32xf32>
    %c0_67 = arith.constant 0 : index
    %c0_68 = arith.constant 0 : index
    %c0_69 = arith.constant 0 : index
    %c0_70 = arith.constant 0 : index
    %152 = vector.load %arg15[%c0_67, %c0_68, %c0_69, %c0_70] : memref<2x3x8x32xf32, #tpu.memory_space<vmem>>, vector<2x1x8x32xf32>
    %153 = vector.shape_cast %152 : vector<2x1x8x32xf32> to vector<2x8x32xf32>
    %154 = vector.shape_cast %151 : vector<2x8x32xf32> to vector<2x1x8x32xf32>
    tpu.vector_store %arg15[%c0_67, %c0_68, %c0_69, %c0_70], %154 {strides = array<i32>} : memref<2x3x8x32xf32, #tpu.memory_space<vmem>>, vector<2x1x8x32xf32>,
    %c1 = arith.constant 1 : index
    %c0_71 = arith.constant 0 : index
    %c0_72 = arith.constant 0 : index
    %155 = vector.load %arg5[%c1, %c0_71, %c0_72] : memref<3x1x32xf32, #tpu.memory_space<vmem>>, vector<1x1x32xf32>
    %156 = vector.shape_cast %155 : vector<1x1x32xf32> to vector<1x32xf32>
    %c1_73 = arith.constant 1 : index
    %c0_74 = arith.constant 0 : index
    %c0_75 = arith.constant 0 : index
    %157 = vector.load %arg6[%c1_73, %c0_74, %c0_75] : memref<3x1x32xf32, #tpu.memory_space<vmem>>, vector<1x1x32xf32>
    %158 = vector.shape_cast %157 : vector<1x1x32xf32> to vector<1x32xf32>
    %cst_76 = arith.constant dense<0.000000e+00> : vector<16xf32>
    %159 = vector.multi_reduction <add>, %150, %cst_76 [1] : vector<16x32xf32> to vector<16xf32>
    %160 = vector.shape_cast %159 : vector<16xf32> to vector<16x1xf32>
    %cst_77 = arith.constant 3.200000e+01 : f32
    %161 = vector.broadcast %cst_77 : f32 to vector<16x1xf32>
    %162 = arith.divf %160, %161 : vector<16x1xf32>
    %163 = vector.broadcast %162 : vector<16x1xf32> to vector<16x32xf32>
    %164 = arith.subf %150, %163 : vector<16x32xf32>
    %165 = arith.mulf %164, %164 : vector<16x32xf32>
    %cst_78 = arith.constant dense<0.000000e+00> : vector<16xf32>
    %166 = vector.multi_reduction <add>, %165, %cst_78 [1] : vector<16x32xf32> to vector<16xf32>
    %167 = vector.shape_cast %166 : vector<16xf32> to vector<16x1xf32>
    %cst_79 = arith.constant 3.200000e+01 : f32
    %168 = vector.broadcast %cst_79 : f32 to vector<16x1xf32>
    %169 = arith.divf %167, %168 : vector<16x1xf32>
    %170 = vector.broadcast %162 : vector<16x1xf32> to vector<16x32xf32>
    %171 = arith.subf %150, %170 : vector<16x32xf32>
    %cst_80 = arith.constant 9.99999974E-6 : f32
    %172 = vector.broadcast %cst_80 : f32 to vector<16x1xf32>
    %173 = arith.addf %169, %172 : vector<16x1xf32>
    %174 = math.rsqrt %173 : vector<16x1xf32>
    %175 = vector.broadcast %174 : vector<16x1xf32> to vector<16x32xf32>
    %176 = arith.mulf %171, %175 : vector<16x32xf32>
    %177 = vector.broadcast %156 : vector<1x32xf32> to vector<16x32xf32>
    %178 = arith.mulf %176, %177 : vector<16x32xf32>
    %179 = vector.broadcast %158 : vector<1x32xf32> to vector<16x32xf32>
    %180 = arith.addf %178, %179 : vector<16x32xf32>
    %c1_81 = arith.constant 1 : index
    %c0_82 = arith.constant 0 : index
    %c0_83 = arith.constant 0 : index
    %181 = vector.load %arg2[%c1_81, %c0_82, %c0_83] : memref<3x32x96xf32, #tpu.memory_space<vmem>>, vector<1x32x96xf32>
    %182 = vector.shape_cast %181 : vector<1x32x96xf32> to vector<32x96xf32>
    %cst_84 = arith.constant dense<0.000000e+00> : vector<16x96xf32>
    %183 = tpu.matmul %180, %182, %cst_84 {dimension_numbers = #tpu.dot_dimension_numbers<[1], [0], [0], [1], [0, 0, 1, 1], [], []>} : vector<16x32xf32>, vector<32x96xf32>, vector<16x96xf32> -> vector<16x96xf32>
    %184 = vector.shape_cast %183 : vector<16x96xf32> to vector<2x8x96xf32>
    %185 = vector.extract_strided_slice %184 {offsets = [0, 0, 0], sizes = [2, 8, 8], strides = [1, 1, 1]} : vector<2x8x96xf32> to vector<2x8x8xf32>
    %186 = vector.extract_strided_slice %184 {offsets = [0, 0, 32], sizes = [2, 8, 8], strides = [1, 1, 1]} : vector<2x8x96xf32> to vector<2x8x8xf32>
    %187 = vector.extract_strided_slice %184 {offsets = [0, 0, 64], sizes = [2, 8, 8], strides = [1, 1, 1]} : vector<2x8x96xf32> to vector<2x8x8xf32>
    "tpu.trace_start"() <{level = 10 : i32, message = "bqd,bkd->bqk"}> : () -> ()
    %cst_85 = arith.constant dense<0.000000e+00> : vector<2x8x8xf32>
    %188 = tpu.matmul %185, %186, %cst_85 {dimension_numbers = #tpu.dot_dimension_numbers<[2], [2], [1], [1], [0, 0, 0, 1, 1, 1], [0], [0]>} : vector<2x8x8xf32>, vector<2x8x8xf32>, vector<2x8x8xf32> -> vector<2x8x8xf32>
    "tpu.trace_stop"() : () -> ()
    %cst_86 = arith.constant dense<0xFF800000> : vector<2x8xf32>
    %189 = vector.multi_reduction <maximumf>, %188, %cst_86 [2] : vector<2x8x8xf32> to vector<2x8xf32>
    %190 = vector.shape_cast %189 : vector<2x8xf32> to vector<2x8x1xf32>
    %191 = vector.broadcast %190 : vector<2x8x1xf32> to vector<2x8x8xf32>
    %192 = arith.subf %188, %191 : vector<2x8x8xf32>
    %193 = math.exp %192 : vector<2x8x8xf32>
    %cst_87 = arith.constant dense<0.000000e+00> : vector<2x8xf32>
    %194 = vector.multi_reduction <add>, %193, %cst_87 [2] : vector<2x8x8xf32> to vector<2x8xf32>
    %195 = vector.shape_cast %194 : vector<2x8xf32> to vector<2x8x1xf32>
    %196 = tpu.reciprocal %195 {approx = true} : vector<2x8x1xf32> -> vector<2x8x1xf32>
    %197 = vector.broadcast %196 : vector<2x8x1xf32> to vector<2x8x8xf32>
    %198 = arith.mulf %193, %197 : vector<2x8x8xf32>
    "tpu.trace_start"() <{level = 10 : i32, message = "bqk,bkd->bqd"}> : () -> ()
    %cst_88 = arith.constant dense<0.000000e+00> : vector<2x8x8xf32>
    %199 = tpu.matmul %198, %187, %cst_88 {dimension_numbers = #tpu.dot_dimension_numbers<[2], [1], [1], [2], [0, 0, 0, 1, 1, 2], [0], [0]>} : vector<2x8x8xf32>, vector<2x8x8xf32>, vector<2x8x8xf32> -> vector<2x8x8xf32>
    "tpu.trace_stop"() : () -> ()
    %200 = vector.extract_strided_slice %184 {offsets = [0, 0, 8], sizes = [2, 8, 8], strides = [1, 1, 1]} : vector<2x8x96xf32> to vector<2x8x8xf32>
    %201 = vector.extract_strided_slice %184 {offsets = [0, 0, 40], sizes = [2, 8, 8], strides = [1, 1, 1]} : vector<2x8x96xf32> to vector<2x8x8xf32>
    %202 = vector.extract_strided_slice %184 {offsets = [0, 0, 72], sizes = [2, 8, 8], strides = [1, 1, 1]} : vector<2x8x96xf32> to vector<2x8x8xf32>
    "tpu.trace_start"() <{level = 10 : i32, message = "bqd,bkd->bqk"}> : () -> ()
    %cst_89 = arith.constant dense<0.000000e+00> : vector<2x8x8xf32>
    %203 = tpu.matmul %200, %201, %cst_89 {dimension_numbers = #tpu.dot_dimension_numbers<[2], [2], [1], [1], [0, 0, 0, 1, 1, 1], [0], [0]>} : vector<2x8x8xf32>, vector<2x8x8xf32>, vector<2x8x8xf32> -> vector<2x8x8xf32>
    "tpu.trace_stop"() : () -> ()
    %cst_90 = arith.constant dense<0xFF800000> : vector<2x8xf32>
    %204 = vector.multi_reduction <maximumf>, %203, %cst_90 [2] : vector<2x8x8xf32> to vector<2x8xf32>
    %205 = vector.shape_cast %204 : vector<2x8xf32> to vector<2x8x1xf32>
    %206 = vector.broadcast %205 : vector<2x8x1xf32> to vector<2x8x8xf32>
    %207 = arith.subf %203, %206 : vector<2x8x8xf32>
    %208 = math.exp %207 : vector<2x8x8xf32>
    %cst_91 = arith.constant dense<0.000000e+00> : vector<2x8xf32>
    %209 = vector.multi_reduction <add>, %208, %cst_91 [2] : vector<2x8x8xf32> to vector<2x8xf32>
    %210 = vector.shape_cast %209 : vector<2x8xf32> to vector<2x8x1xf32>
    %211 = tpu.reciprocal %210 {approx = true} : vector<2x8x1xf32> -> vector<2x8x1xf32>
    %212 = vector.broadcast %211 : vector<2x8x1xf32> to vector<2x8x8xf32>
    %213 = arith.mulf %208, %212 : vector<2x8x8xf32>
    "tpu.trace_start"() <{level = 10 : i32, message = "bqk,bkd->bqd"}> : () -> ()
    %cst_92 = arith.constant dense<0.000000e+00> : vector<2x8x8xf32>
    %214 = tpu.matmul %213, %202, %cst_92 {dimension_numbers = #tpu.dot_dimension_numbers<[2], [1], [1], [2], [0, 0, 0, 1, 1, 2], [0], [0]>} : vector<2x8x8xf32>, vector<2x8x8xf32>, vector<2x8x8xf32> -> vector<2x8x8xf32>
    "tpu.trace_stop"() : () -> ()
    %215 = vector.extract_strided_slice %184 {offsets = [0, 0, 16], sizes = [2, 8, 8], strides = [1, 1, 1]} : vector<2x8x96xf32> to vector<2x8x8xf32>
    %216 = vector.extract_strided_slice %184 {offsets = [0, 0, 48], sizes = [2, 8, 8], strides = [1, 1, 1]} : vector<2x8x96xf32> to vector<2x8x8xf32>
    %217 = vector.extract_strided_slice %184 {offsets = [0, 0, 80], sizes = [2, 8, 8], strides = [1, 1, 1]} : vector<2x8x96xf32> to vector<2x8x8xf32>
    "tpu.trace_start"() <{level = 10 : i32, message = "bqd,bkd->bqk"}> : () -> ()
    %cst_93 = arith.constant dense<0.000000e+00> : vector<2x8x8xf32>
    %218 = tpu.matmul %215, %216, %cst_93 {dimension_numbers = #tpu.dot_dimension_numbers<[2], [2], [1], [1], [0, 0, 0, 1, 1, 1], [0], [0]>} : vector<2x8x8xf32>, vector<2x8x8xf32>, vector<2x8x8xf32> -> vector<2x8x8xf32>
    "tpu.trace_stop"() : () -> ()
    %cst_94 = arith.constant dense<0xFF800000> : vector<2x8xf32>
    %219 = vector.multi_reduction <maximumf>, %218, %cst_94 [2] : vector<2x8x8xf32> to vector<2x8xf32>
    %220 = vector.shape_cast %219 : vector<2x8xf32> to vector<2x8x1xf32>
    %221 = vector.broadcast %220 : vector<2x8x1xf32> to vector<2x8x8xf32>
    %222 = arith.subf %218, %221 : vector<2x8x8xf32>
    %223 = math.exp %222 : vector<2x8x8xf32>
    %cst_95 = arith.constant dense<0.000000e+00> : vector<2x8xf32>
    %224 = vector.multi_reduction <add>, %223, %cst_95 [2] : vector<2x8x8xf32> to vector<2x8xf32>
    %225 = vector.shape_cast %224 : vector<2x8xf32> to vector<2x8x1xf32>
    %226 = tpu.reciprocal %225 {approx = true} : vector<2x8x1xf32> -> vector<2x8x1xf32>
    %227 = vector.broadcast %226 : vector<2x8x1xf32> to vector<2x8x8xf32>
    %228 = arith.mulf %223, %227 : vector<2x8x8xf32>
    "tpu.trace_start"() <{level = 10 : i32, message = "bqk,bkd->bqd"}> : () -> ()
    %cst_96 = arith.constant dense<0.000000e+00> : vector<2x8x8xf32>
    %229 = tpu.matmul %228, %217, %cst_96 {dimension_numbers = #tpu.dot_dimension_numbers<[2], [1], [1], [2], [0, 0, 0, 1, 1, 2], [0], [0]>} : vector<2x8x8xf32>, vector<2x8x8xf32>, vector<2x8x8xf32> -> vector<2x8x8xf32>
    "tpu.trace_stop"() : () -> ()
    %230 = vector.extract_strided_slice %184 {offsets = [0, 0, 24], sizes = [2, 8, 8], strides = [1, 1, 1]} : vector<2x8x96xf32> to vector<2x8x8xf32>
    %231 = vector.extract_strided_slice %184 {offsets = [0, 0, 56], sizes = [2, 8, 8], strides = [1, 1, 1]} : vector<2x8x96xf32> to vector<2x8x8xf32>
    %232 = vector.extract_strided_slice %184 {offsets = [0, 0, 88], sizes = [2, 8, 8], strides = [1, 1, 1]} : vector<2x8x96xf32> to vector<2x8x8xf32>
    "tpu.trace_start"() <{level = 10 : i32, message = "bqd,bkd->bqk"}> : () -> ()
    %cst_97 = arith.constant dense<0.000000e+00> : vector<2x8x8xf32>
    %233 = tpu.matmul %230, %231, %cst_97 {dimension_numbers = #tpu.dot_dimension_numbers<[2], [2], [1], [1], [0, 0, 0, 1, 1, 1], [0], [0]>} : vector<2x8x8xf32>, vector<2x8x8xf32>, vector<2x8x8xf32> -> vector<2x8x8xf32>
    "tpu.trace_stop"() : () -> ()
    %cst_98 = arith.constant dense<0xFF800000> : vector<2x8xf32>
    %234 = vector.multi_reduction <maximumf>, %233, %cst_98 [2] : vector<2x8x8xf32> to vector<2x8xf32>
    %235 = vector.shape_cast %234 : vector<2x8xf32> to vector<2x8x1xf32>
    %236 = vector.broadcast %235 : vector<2x8x1xf32> to vector<2x8x8xf32>
    %237 = arith.subf %233, %236 : vector<2x8x8xf32>
    %238 = math.exp %237 : vector<2x8x8xf32>
    %cst_99 = arith.constant dense<0.000000e+00> : vector<2x8xf32>
    %239 = vector.multi_reduction <add>, %238, %cst_99 [2] : vector<2x8x8xf32> to vector<2x8xf32>
    %240 = vector.shape_cast %239 : vector<2x8xf32> to vector<2x8x1xf32>
    %241 = tpu.reciprocal %240 {approx = true} : vector<2x8x1xf32> -> vector<2x8x1xf32>
    %242 = vector.broadcast %241 : vector<2x8x1xf32> to vector<2x8x8xf32>
    %243 = arith.mulf %238, %242 : vector<2x8x8xf32>
    "tpu.trace_start"() <{level = 10 : i32, message = "bqk,bkd->bqd"}> : () -> ()
    %cst_100 = arith.constant dense<0.000000e+00> : vector<2x8x8xf32>
    %244 = tpu.matmul %243, %232, %cst_100 {dimension_numbers = #tpu.dot_dimension_numbers<[2], [1], [1], [2], [0, 0, 0, 1, 1, 2], [0], [0]>} : vector<2x8x8xf32>, vector<2x8x8xf32>, vector<2x8x8xf32> -> vector<2x8x8xf32>
    "tpu.trace_stop"() : () -> ()
    %245 = tpu.concatenate %199, %214, %229, %244 in 2 : vector<2x8x8xf32>, vector<2x8x8xf32>, vector<2x8x8xf32>, vector<2x8x8xf32> -> vector<2x8x32xf32>
    %246 = vector.shape_cast %245 : vector<2x8x32xf32> to vector<16x32xf32>
    %c1_101 = arith.constant 1 : index
    %c0_102 = arith.constant 0 : index
    %c0_103 = arith.constant 0 : index
    %247 = vector.load %arg3[%c1_101, %c0_102, %c0_103] : memref<3x32x32xf32, #tpu.memory_space<vmem>>, vector<1x32x32xf32>
    %248 = vector.shape_cast %247 : vector<1x32x32xf32> to vector<32x32xf32>
    %cst_104 = arith.constant dense<0.000000e+00> : vector<16x32xf32>
    %249 = tpu.matmul %246, %248, %cst_104 {dimension_numbers = #tpu.dot_dimension_numbers<[1], [0], [0], [1], [0, 0, 1, 1], [], []>} : vector<16x32xf32>, vector<32x32xf32>, vector<16x32xf32> -> vector<16x32xf32>
    %250 = arith.addf %150, %249 : vector<16x32xf32>
    %c1_105 = arith.constant 1 : index
    %c0_106 = arith.constant 0 : index
    %c0_107 = arith.constant 0 : index
    %251 = vector.load %arg4[%c1_105, %c0_106, %c0_107] : memref<3x1x32xf32, #tpu.memory_space<vmem>>, vector<1x1x32xf32>
    %252 = vector.shape_cast %251 : vector<1x1x32xf32> to vector<1x32xf32>
    %253 = vector.broadcast %252 : vector<1x32xf32> to vector<16x32xf32>
    %254 = arith.addf %250, %253 : vector<16x32xf32>
    %c1_108 = arith.constant 1 : index
    %c0_109 = arith.constant 0 : index
    %c0_110 = arith.constant 0 : index
    %255 = vector.load %arg7[%c1_108, %c0_109, %c0_110] : memref<3x1x32xf32, #tpu.memory_space<vmem>>, vector<1x1x32xf32>
    %256 = vector.shape_cast %255 : vector<1x1x32xf32> to vector<1x32xf32>
    %c1_111 = arith.constant 1 : index
    %c0_112 = arith.constant 0 : index
    %c0_113 = arith.constant 0 : index
    %257 = vector.load %arg8[%c1_111, %c0_112, %c0_113] : memref<3x1x32xf32, #tpu.memory_space<vmem>>, vector<1x1x32xf32>
    %258 = vector.shape_cast %257 : vector<1x1x32xf32> to vector<1x32xf32>
    %cst_114 = arith.constant dense<0.000000e+00> : vector<16xf32>
    %259 = vector.multi_reduction <add>, %254, %cst_114 [1] : vector<16x32xf32> to vector<16xf32>
    %260 = vector.shape_cast %259 : vector<16xf32> to vector<16x1xf32>
    %cst_115 = arith.constant 3.200000e+01 : f32
    %261 = vector.broadcast %cst_115 : f32 to vector<16x1xf32>
    %262 = arith.divf %260, %261 : vector<16x1xf32>
    %263 = vector.broadcast %262 : vector<16x1xf32> to vector<16x32xf32>
    %264 = arith.subf %254, %263 : vector<16x32xf32>
    %265 = arith.mulf %264, %264 : vector<16x32xf32>
    %cst_116 = arith.constant dense<0.000000e+00> : vector<16xf32>
    %266 = vector.multi_reduction <add>, %265, %cst_116 [1] : vector<16x32xf32> to vector<16xf32>
    %267 = vector.shape_cast %266 : vector<16xf32> to vector<16x1xf32>
    %cst_117 = arith.constant 3.200000e+01 : f32
    %268 = vector.broadcast %cst_117 : f32 to vector<16x1xf32>
    %269 = arith.divf %267, %268 : vector<16x1xf32>
    %270 = vector.broadcast %262 : vector<16x1xf32> to vector<16x32xf32>
    %271 = arith.subf %254, %270 : vector<16x32xf32>
    %cst_118 = arith.constant 9.99999974E-6 : f32
    %272 = vector.broadcast %cst_118 : f32 to vector<16x1xf32>
    %273 = arith.addf %269, %272 : vector<16x1xf32>
    %274 = math.rsqrt %273 : vector<16x1xf32>
    %275 = vector.broadcast %274 : vector<16x1xf32> to vector<16x32xf32>
    %276 = arith.mulf %271, %275 : vector<16x32xf32>
    %277 = vector.broadcast %256 : vector<1x32xf32> to vector<16x32xf32>
    %278 = arith.mulf %276, %277 : vector<16x32xf32>
    %279 = vector.broadcast %258 : vector<1x32xf32> to vector<16x32xf32>
    %280 = arith.addf %278, %279 : vector<16x32xf32>
    %c1_119 = arith.constant 1 : index
    %c0_120 = arith.constant 0 : index
    %c0_121 = arith.constant 0 : index
    %281 = vector.load %arg9[%c1_119, %c0_120, %c0_121] : memref<3x32x64xf32, #tpu.memory_space<vmem>>, vector<1x32x64xf32>
    %282 = vector.shape_cast %281 : vector<1x32x64xf32> to vector<32x64xf32>
    %cst_122 = arith.constant dense<0.000000e+00> : vector<16x64xf32>
    %283 = tpu.matmul %280, %282, %cst_122 {dimension_numbers = #tpu.dot_dimension_numbers<[1], [0], [0], [1], [0, 0, 1, 1], [], []>} : vector<16x32xf32>, vector<32x64xf32>, vector<16x64xf32> -> vector<16x64xf32>
    %c1_123 = arith.constant 1 : index
    %c0_124 = arith.constant 0 : index
    %c0_125 = arith.constant 0 : index
    %284 = vector.load %arg10[%c1_123, %c0_124, %c0_125] : memref<3x1x64xf32, #tpu.memory_space<vmem>>, vector<1x1x64xf32>
    %285 = vector.shape_cast %284 : vector<1x1x64xf32> to vector<1x64xf32>
    %286 = vector.broadcast %285 : vector<1x64xf32> to vector<16x64xf32>
    %287 = arith.addf %283, %286 : vector<16x64xf32>
    %cst_126 = arith.constant 5.000000e-01 : f32
    %288 = vector.broadcast %cst_126 : f32 to vector<16x64xf32>
    %289 = arith.mulf %288, %287 : vector<16x64xf32>
    %cst_127 = arith.constant 0.707106769 : f32
    %290 = vector.broadcast %cst_127 : f32 to vector<16x64xf32>
    %291 = arith.mulf %287, %290 : vector<16x64xf32>
    %292 = math.erf %291 : vector<16x64xf32>
    %cst_128 = arith.constant 1.000000e+00 : f32
    %293 = vector.broadcast %cst_128 : f32 to vector<16x64xf32>
    %294 = arith.addf %293, %292 : vector<16x64xf32>
    %295 = arith.mulf %289, %294 : vector<16x64xf32>
    %c1_129 = arith.constant 1 : index
    %c0_130 = arith.constant 0 : index
    %c0_131 = arith.constant 0 : index
    %296 = vector.load %arg11[%c1_129, %c0_130, %c0_131] : memref<3x64x32xf32, #tpu.memory_space<vmem>>, vector<1x64x32xf32>
    %297 = vector.shape_cast %296 : vector<1x64x32xf32> to vector<64x32xf32>
    %cst_132 = arith.constant dense<0.000000e+00> : vector<16x32xf32>
    %298 = tpu.matmul %295, %297, %cst_132 {dimension_numbers = #tpu.dot_dimension_numbers<[1], [0], [0], [1], [0, 0, 1, 1], [], []>} : vector<16x64xf32>, vector<64x32xf32>, vector<16x32xf32> -> vector<16x32xf32>
    %299 = arith.addf %254, %298 : vector<16x32xf32>
    %c1_133 = arith.constant 1 : index
    %c0_134 = arith.constant 0 : index
    %c0_135 = arith.constant 0 : index
    %300 = vector.load %arg12[%c1_133, %c0_134, %c0_135] : memref<3x1x32xf32, #tpu.memory_space<vmem>>, vector<1x1x32xf32>
    %301 = vector.shape_cast %300 : vector<1x1x32xf32> to vector<1x32xf32>
    %302 = vector.broadcast %301 : vector<1x32xf32> to vector<16x32xf32>
    %303 = arith.addf %299, %302 : vector<16x32xf32>
    %304 = vector.shape_cast %303 : vector<16x32xf32> to vector<2x8x32xf32>
    %c0_136 = arith.constant 0 : index
    %c1_137 = arith.constant 1 : index
    %c0_138 = arith.constant 0 : index
    %c0_139 = arith.constant 0 : index
    %305 = vector.load %arg15[%c0_136, %c1_137, %c0_138, %c0_139] : memref<2x3x8x32xf32, #tpu.memory_space<vmem>>, vector<2x1x8x32xf32>
    %306 = vector.shape_cast %305 : vector<2x1x8x32xf32> to vector<2x8x32xf32>
    %307 = vector.shape_cast %304 : vector<2x8x32xf32> to vector<2x1x8x32xf32>
    tpu.vector_store %arg15[%c0_136, %c1_137, %c0_138, %c0_139], %307 {strides = array<i32>} : memref<2x3x8x32xf32, #tpu.memory_space<vmem>>, vector<2x1x8x32xf32>,
    %c2 = arith.constant 2 : index
    %c0_140 = arith.constant 0 : index
    %c0_141 = arith.constant 0 : index
    %308 = vector.load %arg5[%c2, %c0_140, %c0_141] : memref<3x1x32xf32, #tpu.memory_space<vmem>>, vector<1x1x32xf32>
    %309 = vector.shape_cast %308 : vector<1x1x32xf32> to vector<1x32xf32>
    %c2_142 = arith.constant 2 : index
    %c0_143 = arith.constant 0 : index
    %c0_144 = arith.constant 0 : index
    %310 = vector.load %arg6[%c2_142, %c0_143, %c0_144] : memref<3x1x32xf32, #tpu.memory_space<vmem>>, vector<1x1x32xf32>
    %311 = vector.shape_cast %310 : vector<1x1x32xf32> to vector<1x32xf32>
    %cst_145 = arith.constant dense<0.000000e+00> : vector<16xf32>
    %312 = vector.multi_reduction <add>, %303, %cst_145 [1] : vector<16x32xf32> to vector<16xf32>
    %313 = vector.shape_cast %312 : vector<16xf32> to vector<16x1xf32>
    %cst_146 = arith.constant 3.200000e+01 : f32
    %314 = vector.broadcast %cst_146 : f32 to vector<16x1xf32>
    %315 = arith.divf %313, %314 : vector<16x1xf32>
    %316 = vector.broadcast %315 : vector<16x1xf32> to vector<16x32xf32>
    %317 = arith.subf %303, %316 : vector<16x32xf32>
    %318 = arith.mulf %317, %317 : vector<16x32xf32>
    %cst_147 = arith.constant dense<0.000000e+00> : vector<16xf32>
    %319 = vector.multi_reduction <add>, %318, %cst_147 [1] : vector<16x32xf32> to vector<16xf32>
    %320 = vector.shape_cast %319 : vector<16xf32> to vector<16x1xf32>
    %cst_148 = arith.constant 3.200000e+01 : f32
    %321 = vector.broadcast %cst_148 : f32 to vector<16x1xf32>
    %322 = arith.divf %320, %321 : vector<16x1xf32>
    %323 = vector.broadcast %315 : vector<16x1xf32> to vector<16x32xf32>
    %324 = arith.subf %303, %323 : vector<16x32xf32>
    %cst_149 = arith.constant 9.99999974E-6 : f32
    %325 = vector.broadcast %cst_149 : f32 to vector<16x1xf32>
    %326 = arith.addf %322, %325 : vector<16x1xf32>
    %327 = math.rsqrt %326 : vector<16x1xf32>
    %328 = vector.broadcast %327 : vector<16x1xf32> to vector<16x32xf32>
    %329 = arith.mulf %324, %328 : vector<16x32xf32>
    %330 = vector.broadcast %309 : vector<1x32xf32> to vector<16x32xf32>
    %331 = arith.mulf %329, %330 : vector<16x32xf32>
    %332 = vector.broadcast %311 : vector<1x32xf32> to vector<16x32xf32>
    %333 = arith.addf %331, %332 : vector<16x32xf32>
    %c2_150 = arith.constant 2 : index
    %c0_151 = arith.constant 0 : index
    %c0_152 = arith.constant 0 : index
    %334 = vector.load %arg2[%c2_150, %c0_151, %c0_152] : memref<3x32x96xf32, #tpu.memory_space<vmem>>, vector<1x32x96xf32>
    %335 = vector.shape_cast %334 : vector<1x32x96xf32> to vector<32x96xf32>
    %cst_153 = arith.constant dense<0.000000e+00> : vector<16x96xf32>
    %336 = tpu.matmul %333, %335, %cst_153 {dimension_numbers = #tpu.dot_dimension_numbers<[1], [0], [0], [1], [0, 0, 1, 1], [], []>} : vector<16x32xf32>, vector<32x96xf32>, vector<16x96xf32> -> vector<16x96xf32>
    %337 = vector.shape_cast %336 : vector<16x96xf32> to vector<2x8x96xf32>
    %338 = vector.extract_strided_slice %337 {offsets = [0, 0, 0], sizes = [2, 8, 8], strides = [1, 1, 1]} : vector<2x8x96xf32> to vector<2x8x8xf32>
    %339 = vector.extract_strided_slice %337 {offsets = [0, 0, 32], sizes = [2, 8, 8], strides = [1, 1, 1]} : vector<2x8x96xf32> to vector<2x8x8xf32>
    %340 = vector.extract_strided_slice %337 {offsets = [0, 0, 64], sizes = [2, 8, 8], strides = [1, 1, 1]} : vector<2x8x96xf32> to vector<2x8x8xf32>
    "tpu.trace_start"() <{level = 10 : i32, message = "bqd,bkd->bqk"}> : () -> ()
    %cst_154 = arith.constant dense<0.000000e+00> : vector<2x8x8xf32>
    %341 = tpu.matmul %338, %339, %cst_154 {dimension_numbers = #tpu.dot_dimension_numbers<[2], [2], [1], [1], [0, 0, 0, 1, 1, 1], [0], [0]>} : vector<2x8x8xf32>, vector<2x8x8xf32>, vector<2x8x8xf32> -> vector<2x8x8xf32>
    "tpu.trace_stop"() : () -> ()
    %cst_155 = arith.constant dense<0xFF800000> : vector<2x8xf32>
    %342 = vector.multi_reduction <maximumf>, %341, %cst_155 [2] : vector<2x8x8xf32> to vector<2x8xf32>
    %343 = vector.shape_cast %342 : vector<2x8xf32> to vector<2x8x1xf32>
    %344 = vector.broadcast %343 : vector<2x8x1xf32> to vector<2x8x8xf32>
    %345 = arith.subf %341, %344 : vector<2x8x8xf32>
    %346 = math.exp %345 : vector<2x8x8xf32>
    %cst_156 = arith.constant dense<0.000000e+00> : vector<2x8xf32>
    %347 = vector.multi_reduction <add>, %346, %cst_156 [2] : vector<2x8x8xf32> to vector<2x8xf32>
    %348 = vector.shape_cast %347 : vector<2x8xf32> to vector<2x8x1xf32>
    %349 = tpu.reciprocal %348 {approx = true} : vector<2x8x1xf32> -> vector<2x8x1xf32>
    %350 = vector.broadcast %349 : vector<2x8x1xf32> to vector<2x8x8xf32>
    %351 = arith.mulf %346, %350 : vector<2x8x8xf32>
    "tpu.trace_start"() <{level = 10 : i32, message = "bqk,bkd->bqd"}> : () -> ()
    %cst_157 = arith.constant dense<0.000000e+00> : vector<2x8x8xf32>
    %352 = tpu.matmul %351, %340, %cst_157 {dimension_numbers = #tpu.dot_dimension_numbers<[2], [1], [1], [2], [0, 0, 0, 1, 1, 2], [0], [0]>} : vector<2x8x8xf32>, vector<2x8x8xf32>, vector<2x8x8xf32> -> vector<2x8x8xf32>
    "tpu.trace_stop"() : () -> ()
    %353 = vector.extract_strided_slice %337 {offsets = [0, 0, 8], sizes = [2, 8, 8], strides = [1, 1, 1]} : vector<2x8x96xf32> to vector<2x8x8xf32>
    %354 = vector.extract_strided_slice %337 {offsets = [0, 0, 40], sizes = [2, 8, 8], strides = [1, 1, 1]} : vector<2x8x96xf32> to vector<2x8x8xf32>
    %355 = vector.extract_strided_slice %337 {offsets = [0, 0, 72], sizes = [2, 8, 8], strides = [1, 1, 1]} : vector<2x8x96xf32> to vector<2x8x8xf32>
    "tpu.trace_start"() <{level = 10 : i32, message = "bqd,bkd->bqk"}> : () -> ()
    %cst_158 = arith.constant dense<0.000000e+00> : vector<2x8x8xf32>
    %356 = tpu.matmul %353, %354, %cst_158 {dimension_numbers = #tpu.dot_dimension_numbers<[2], [2], [1], [1], [0, 0, 0, 1, 1, 1], [0], [0]>} : vector<2x8x8xf32>, vector<2x8x8xf32>, vector<2x8x8xf32> -> vector<2x8x8xf32>
    "tpu.trace_stop"() : () -> ()
    %cst_159 = arith.constant dense<0xFF800000> : vector<2x8xf32>
    %357 = vector.multi_reduction <maximumf>, %356, %cst_159 [2] : vector<2x8x8xf32> to vector<2x8xf32>
    %358 = vector.shape_cast %357 : vector<2x8xf32> to vector<2x8x1xf32>
    %359 = vector.broadcast %358 : vector<2x8x1xf32> to vector<2x8x8xf32>
    %360 = arith.subf %356, %359 : vector<2x8x8xf32>
    %361 = math.exp %360 : vector<2x8x8xf32>
    %cst_160 = arith.constant dense<0.000000e+00> : vector<2x8xf32>
    %362 = vector.multi_reduction <add>, %361, %cst_160 [2] : vector<2x8x8xf32> to vector<2x8xf32>
    %363 = vector.shape_cast %362 : vector<2x8xf32> to vector<2x8x1xf32>
    %364 = tpu.reciprocal %363 {approx = true} : vector<2x8x1xf32> -> vector<2x8x1xf32>
    %365 = vector.broadcast %364 : vector<2x8x1xf32> to vector<2x8x8xf32>
    %366 = arith.mulf %361, %365 : vector<2x8x8xf32>
    "tpu.trace_start"() <{level = 10 : i32, message = "bqk,bkd->bqd"}> : () -> ()
    %cst_161 = arith.constant dense<0.000000e+00> : vector<2x8x8xf32>
    %367 = tpu.matmul %366, %355, %cst_161 {dimension_numbers = #tpu.dot_dimension_numbers<[2], [1], [1], [2], [0, 0, 0, 1, 1, 2], [0], [0]>} : vector<2x8x8xf32>, vector<2x8x8xf32>, vector<2x8x8xf32> -> vector<2x8x8xf32>
    "tpu.trace_stop"() : () -> ()
    %368 = vector.extract_strided_slice %337 {offsets = [0, 0, 16], sizes = [2, 8, 8], strides = [1, 1, 1]} : vector<2x8x96xf32> to vector<2x8x8xf32>
    %369 = vector.extract_strided_slice %337 {offsets = [0, 0, 48], sizes = [2, 8, 8], strides = [1, 1, 1]} : vector<2x8x96xf32> to vector<2x8x8xf32>
    %370 = vector.extract_strided_slice %337 {offsets = [0, 0, 80], sizes = [2, 8, 8], strides = [1, 1, 1]} : vector<2x8x96xf32> to vector<2x8x8xf32>
    "tpu.trace_start"() <{level = 10 : i32, message = "bqd,bkd->bqk"}> : () -> ()
    %cst_162 = arith.constant dense<0.000000e+00> : vector<2x8x8xf32>
    %371 = tpu.matmul %368, %369, %cst_162 {dimension_numbers = #tpu.dot_dimension_numbers<[2], [2], [1], [1], [0, 0, 0, 1, 1, 1], [0], [0]>} : vector<2x8x8xf32>, vector<2x8x8xf32>, vector<2x8x8xf32> -> vector<2x8x8xf32>
    "tpu.trace_stop"() : () -> ()
    %cst_163 = arith.constant dense<0xFF800000> : vector<2x8xf32>
    %372 = vector.multi_reduction <maximumf>, %371, %cst_163 [2] : vector<2x8x8xf32> to vector<2x8xf32>
    %373 = vector.shape_cast %372 : vector<2x8xf32> to vector<2x8x1xf32>
    %374 = vector.broadcast %373 : vector<2x8x1xf32> to vector<2x8x8xf32>
    %375 = arith.subf %371, %374 : vector<2x8x8xf32>
    %376 = math.exp %375 : vector<2x8x8xf32>
    %cst_164 = arith.constant dense<0.000000e+00> : vector<2x8xf32>
    %377 = vector.multi_reduction <add>, %376, %cst_164 [2] : vector<2x8x8xf32> to vector<2x8xf32>
    %378 = vector.shape_cast %377 : vector<2x8xf32> to vector<2x8x1xf32>
    %379 = tpu.reciprocal %378 {approx = true} : vector<2x8x1xf32> -> vector<2x8x1xf32>
    %380 = vector.broadcast %379 : vector<2x8x1xf32> to vector<2x8x8xf32>
    %381 = arith.mulf %376, %380 : vector<2x8x8xf32>
    "tpu.trace_start"() <{level = 10 : i32, message = "bqk,bkd->bqd"}> : () -> ()
    %cst_165 = arith.constant dense<0.000000e+00> : vector<2x8x8xf32>
    %382 = tpu.matmul %381, %370, %cst_165 {dimension_numbers = #tpu.dot_dimension_numbers<[2], [1], [1], [2], [0, 0, 0, 1, 1, 2], [0], [0]>} : vector<2x8x8xf32>, vector<2x8x8xf32>, vector<2x8x8xf32> -> vector<2x8x8xf32>
    "tpu.trace_stop"() : () -> ()
    %383 = vector.extract_strided_slice %337 {offsets = [0, 0, 24], sizes = [2, 8, 8], strides = [1, 1, 1]} : vector<2x8x96xf32> to vector<2x8x8xf32>
    %384 = vector.extract_strided_slice %337 {offsets = [0, 0, 56], sizes = [2, 8, 8], strides = [1, 1, 1]} : vector<2x8x96xf32> to vector<2x8x8xf32>
    %385 = vector.extract_strided_slice %337 {offsets = [0, 0, 88], sizes = [2, 8, 8], strides = [1, 1, 1]} : vector<2x8x96xf32> to vector<2x8x8xf32>
    "tpu.trace_start"() <{level = 10 : i32, message = "bqd,bkd->bqk"}> : () -> ()
    %cst_166 = arith.constant dense<0.000000e+00> : vector<2x8x8xf32>
    %386 = tpu.matmul %383, %384, %cst_166 {dimension_numbers = #tpu.dot_dimension_numbers<[2], [2], [1], [1], [0, 0, 0, 1, 1, 1], [0], [0]>} : vector<2x8x8xf32>, vector<2x8x8xf32>, vector<2x8x8xf32> -> vector<2x8x8xf32>
    "tpu.trace_stop"() : () -> ()
    %cst_167 = arith.constant dense<0xFF800000> : vector<2x8xf32>
    %387 = vector.multi_reduction <maximumf>, %386, %cst_167 [2] : vector<2x8x8xf32> to vector<2x8xf32>
    %388 = vector.shape_cast %387 : vector<2x8xf32> to vector<2x8x1xf32>
    %389 = vector.broadcast %388 : vector<2x8x1xf32> to vector<2x8x8xf32>
    %390 = arith.subf %386, %389 : vector<2x8x8xf32>
    %391 = math.exp %390 : vector<2x8x8xf32>
    %cst_168 = arith.constant dense<0.000000e+00> : vector<2x8xf32>
    %392 = vector.multi_reduction <add>, %391, %cst_168 [2] : vector<2x8x8xf32> to vector<2x8xf32>
    %393 = vector.shape_cast %392 : vector<2x8xf32> to vector<2x8x1xf32>
    %394 = tpu.reciprocal %393 {approx = true} : vector<2x8x1xf32> -> vector<2x8x1xf32>
    %395 = vector.broadcast %394 : vector<2x8x1xf32> to vector<2x8x8xf32>
    %396 = arith.mulf %391, %395 : vector<2x8x8xf32>
    "tpu.trace_start"() <{level = 10 : i32, message = "bqk,bkd->bqd"}> : () -> ()
    %cst_169 = arith.constant dense<0.000000e+00> : vector<2x8x8xf32>
    %397 = tpu.matmul %396, %385, %cst_169 {dimension_numbers = #tpu.dot_dimension_numbers<[2], [1], [1], [2], [0, 0, 0, 1, 1, 2], [0], [0]>} : vector<2x8x8xf32>, vector<2x8x8xf32>, vector<2x8x8xf32> -> vector<2x8x8xf32>
    "tpu.trace_stop"() : () -> ()
    %398 = tpu.concatenate %352, %367, %382, %397 in 2 : vector<2x8x8xf32>, vector<2x8x8xf32>, vector<2x8x8xf32>, vector<2x8x8xf32> -> vector<2x8x32xf32>
    %399 = vector.shape_cast %398 : vector<2x8x32xf32> to vector<16x32xf32>
    %c2_170 = arith.constant 2 : index
    %c0_171 = arith.constant 0 : index
    %c0_172 = arith.constant 0 : index
    %400 = vector.load %arg3[%c2_170, %c0_171, %c0_172] : memref<3x32x32xf32, #tpu.memory_space<vmem>>, vector<1x32x32xf32>
    %401 = vector.shape_cast %400 : vector<1x32x32xf32> to vector<32x32xf32>
    %cst_173 = arith.constant dense<0.000000e+00> : vector<16x32xf32>
    %402 = tpu.matmul %399, %401, %cst_173 {dimension_numbers = #tpu.dot_dimension_numbers<[1], [0], [0], [1], [0, 0, 1, 1], [], []>} : vector<16x32xf32>, vector<32x32xf32>, vector<16x32xf32> -> vector<16x32xf32>
    %403 = arith.addf %303, %402 : vector<16x32xf32>
    %c2_174 = arith.constant 2 : index
    %c0_175 = arith.constant 0 : index
    %c0_176 = arith.constant 0 : index
    %404 = vector.load %arg4[%c2_174, %c0_175, %c0_176] : memref<3x1x32xf32, #tpu.memory_space<vmem>>, vector<1x1x32xf32>
    %405 = vector.shape_cast %404 : vector<1x1x32xf32> to vector<1x32xf32>
    %406 = vector.broadcast %405 : vector<1x32xf32> to vector<16x32xf32>
    %407 = arith.addf %403, %406 : vector<16x32xf32>
    %c2_177 = arith.constant 2 : index
    %c0_178 = arith.constant 0 : index
    %c0_179 = arith.constant 0 : index
    %408 = vector.load %arg7[%c2_177, %c0_178, %c0_179] : memref<3x1x32xf32, #tpu.memory_space<vmem>>, vector<1x1x32xf32>
    %409 = vector.shape_cast %408 : vector<1x1x32xf32> to vector<1x32xf32>
    %c2_180 = arith.constant 2 : index
    %c0_181 = arith.constant 0 : index
    %c0_182 = arith.constant 0 : index
    %410 = vector.load %arg8[%c2_180, %c0_181, %c0_182] : memref<3x1x32xf32, #tpu.memory_space<vmem>>, vector<1x1x32xf32>
    %411 = vector.shape_cast %410 : vector<1x1x32xf32> to vector<1x32xf32>
    %cst_183 = arith.constant dense<0.000000e+00> : vector<16xf32>
    %412 = vector.multi_reduction <add>, %407, %cst_183 [1] : vector<16x32xf32> to vector<16xf32>
    %413 = vector.shape_cast %412 : vector<16xf32> to vector<16x1xf32>
    %cst_184 = arith.constant 3.200000e+01 : f32
    %414 = vector.broadcast %cst_184 : f32 to vector<16x1xf32>
    %415 = arith.divf %413, %414 : vector<16x1xf32>
    %416 = vector.broadcast %415 : vector<16x1xf32> to vector<16x32xf32>
    %417 = arith.subf %407, %416 : vector<16x32xf32>
    %418 = arith.mulf %417, %417 : vector<16x32xf32>
    %cst_185 = arith.constant dense<0.000000e+00> : vector<16xf32>
    %419 = vector.multi_reduction <add>, %418, %cst_185 [1] : vector<16x32xf32> to vector<16xf32>
    %420 = vector.shape_cast %419 : vector<16xf32> to vector<16x1xf32>
    %cst_186 = arith.constant 3.200000e+01 : f32
    %421 = vector.broadcast %cst_186 : f32 to vector<16x1xf32>
    %422 = arith.divf %420, %421 : vector<16x1xf32>
    %423 = vector.broadcast %415 : vector<16x1xf32> to vector<16x32xf32>
    %424 = arith.subf %407, %423 : vector<16x32xf32>
    %cst_187 = arith.constant 9.99999974E-6 : f32
    %425 = vector.broadcast %cst_187 : f32 to vector<16x1xf32>
    %426 = arith.addf %422, %425 : vector<16x1xf32>
    %427 = math.rsqrt %426 : vector<16x1xf32>
    %428 = vector.broadcast %427 : vector<16x1xf32> to vector<16x32xf32>
    %429 = arith.mulf %424, %428 : vector<16x32xf32>
    %430 = vector.broadcast %409 : vector<1x32xf32> to vector<16x32xf32>
    %431 = arith.mulf %429, %430 : vector<16x32xf32>
    %432 = vector.broadcast %411 : vector<1x32xf32> to vector<16x32xf32>
    %433 = arith.addf %431, %432 : vector<16x32xf32>
    %c2_188 = arith.constant 2 : index
    %c0_189 = arith.constant 0 : index
    %c0_190 = arith.constant 0 : index
    %434 = vector.load %arg9[%c2_188, %c0_189, %c0_190] : memref<3x32x64xf32, #tpu.memory_space<vmem>>, vector<1x32x64xf32>
    %435 = vector.shape_cast %434 : vector<1x32x64xf32> to vector<32x64xf32>
    %cst_191 = arith.constant dense<0.000000e+00> : vector<16x64xf32>
    %436 = tpu.matmul %433, %435, %cst_191 {dimension_numbers = #tpu.dot_dimension_numbers<[1], [0], [0], [1], [0, 0, 1, 1], [], []>} : vector<16x32xf32>, vector<32x64xf32>, vector<16x64xf32> -> vector<16x64xf32>
    %c2_192 = arith.constant 2 : index
    %c0_193 = arith.constant 0 : index
    %c0_194 = arith.constant 0 : index
    %437 = vector.load %arg10[%c2_192, %c0_193, %c0_194] : memref<3x1x64xf32, #tpu.memory_space<vmem>>, vector<1x1x64xf32>
    %438 = vector.shape_cast %437 : vector<1x1x64xf32> to vector<1x64xf32>
    %439 = vector.broadcast %438 : vector<1x64xf32> to vector<16x64xf32>
    %440 = arith.addf %436, %439 : vector<16x64xf32>
    %cst_195 = arith.constant 5.000000e-01 : f32
    %441 = vector.broadcast %cst_195 : f32 to vector<16x64xf32>
    %442 = arith.mulf %441, %440 : vector<16x64xf32>
    %cst_196 = arith.constant 0.707106769 : f32
    %443 = vector.broadcast %cst_196 : f32 to vector<16x64xf32>
    %444 = arith.mulf %440, %443 : vector<16x64xf32>
    %445 = math.erf %444 : vector<16x64xf32>
    %cst_197 = arith.constant 1.000000e+00 : f32
    %446 = vector.broadcast %cst_197 : f32 to vector<16x64xf32>
    %447 = arith.addf %446, %445 : vector<16x64xf32>
    %448 = arith.mulf %442, %447 : vector<16x64xf32>
    %c2_198 = arith.constant 2 : index
    %c0_199 = arith.constant 0 : index
    %c0_200 = arith.constant 0 : index
    %449 = vector.load %arg11[%c2_198, %c0_199, %c0_200] : memref<3x64x32xf32, #tpu.memory_space<vmem>>, vector<1x64x32xf32>
    %450 = vector.shape_cast %449 : vector<1x64x32xf32> to vector<64x32xf32>
    %cst_201 = arith.constant dense<0.000000e+00> : vector<16x32xf32>
    %451 = tpu.matmul %448, %450, %cst_201 {dimension_numbers = #tpu.dot_dimension_numbers<[1], [0], [0], [1], [0, 0, 1, 1], [], []>} : vector<16x64xf32>, vector<64x32xf32>, vector<16x32xf32> -> vector<16x32xf32>
    %452 = arith.addf %407, %451 : vector<16x32xf32>
    %c2_202 = arith.constant 2 : index
    %c0_203 = arith.constant 0 : index
    %c0_204 = arith.constant 0 : index
    %453 = vector.load %arg12[%c2_202, %c0_203, %c0_204] : memref<3x1x32xf32, #tpu.memory_space<vmem>>, vector<1x1x32xf32>
    %454 = vector.shape_cast %453 : vector<1x1x32xf32> to vector<1x32xf32>
    %455 = vector.broadcast %454 : vector<1x32xf32> to vector<16x32xf32>
    %456 = arith.addf %452, %455 : vector<16x32xf32>
    %457 = vector.shape_cast %456 : vector<16x32xf32> to vector<2x8x32xf32>
    %c0_205 = arith.constant 0 : index
    %c2_206 = arith.constant 2 : index
    %c0_207 = arith.constant 0 : index
    %c0_208 = arith.constant 0 : index
    %458 = vector.load %arg15[%c0_205, %c2_206, %c0_207, %c0_208] : memref<2x3x8x32xf32, #tpu.memory_space<vmem>>, vector<2x1x8x32xf32>
    %459 = vector.shape_cast %458 : vector<2x1x8x32xf32> to vector<2x8x32xf32>
    %460 = vector.shape_cast %457 : vector<2x8x32xf32> to vector<2x1x8x32xf32>
    tpu.vector_store %arg15[%c0_205, %c2_206, %c0_207, %c0_208], %460 {strides = array<i32>} : memref<2x3x8x32xf32, #tpu.memory_space<vmem>>, vector<2x1x8x32xf32>,
    %c0_209 = arith.constant 0 : index
    %c0_210 = arith.constant 0 : index
    %461 = vector.load %arg13[%c0_209, %c0_210] : memref<1x32xf32, #tpu.memory_space<vmem>>, vector<1x32xf32>
    %c0_211 = arith.constant 0 : index
    %c0_212 = arith.constant 0 : index
    %462 = vector.load %arg14[%c0_211, %c0_212] : memref<1x32xf32, #tpu.memory_space<vmem>>, vector<1x32xf32>
    %cst_213 = arith.constant dense<0.000000e+00> : vector<16xf32>
    %463 = vector.multi_reduction <add>, %456, %cst_213 [1] : vector<16x32xf32> to vector<16xf32>
    %464 = vector.shape_cast %463 : vector<16xf32> to vector<16x1xf32>
    %cst_214 = arith.constant 3.200000e+01 : f32
    %465 = vector.broadcast %cst_214 : f32 to vector<16x1xf32>
    %466 = arith.divf %464, %465 : vector<16x1xf32>
    %467 = vector.broadcast %466 : vector<16x1xf32> to vector<16x32xf32>
    %468 = arith.subf %456, %467 : vector<16x32xf32>
    %469 = arith.mulf %468, %468 : vector<16x32xf32>
    %cst_215 = arith.constant dense<0.000000e+00> : vector<16xf32>
    %470 = vector.multi_reduction <add>, %469, %cst_215 [1] : vector<16x32xf32> to vector<16xf32>
    %471 = vector.shape_cast %470 : vector<16xf32> to vector<16x1xf32>
    %cst_216 = arith.constant 3.200000e+01 : f32
    %472 = vector.broadcast %cst_216 : f32 to vector<16x1xf32>
    %473 = arith.divf %471, %472 : vector<16x1xf32>
    %474 = vector.broadcast %466 : vector<16x1xf32> to vector<16x32xf32>
    %475 = arith.subf %456, %474 : vector<16x32xf32>
    %cst_217 = arith.constant 9.99999974E-6 : f32
    %476 = vector.broadcast %cst_217 : f32 to vector<16x1xf32>
    %477 = arith.addf %473, %476 : vector<16x1xf32>
    %478 = math.rsqrt %477 : vector<16x1xf32>
    %479 = vector.broadcast %478 : vector<16x1xf32> to vector<16x32xf32>
    %480 = arith.mulf %475, %479 : vector<16x32xf32>
    %481 = vector.broadcast %461 : vector<1x32xf32> to vector<16x32xf32>
    %482 = arith.mulf %480, %481 : vector<16x32xf32>
    %483 = vector.broadcast %462 : vector<1x32xf32> to vector<16x32xf32>
    %484 = arith.addf %482, %483 : vector<16x32xf32>
    %485 = vector.shape_cast %484 : vector<16x32xf32> to vector<2x8x32xf32>
    %c0_218 = arith.constant 0 : index
    %c0_219 = arith.constant 0 : index
    %c0_220 = arith.constant 0 : index
    %486 = vector.load %arg16[%c0_218, %c0_219, %c0_220] : memref<2x8x32xf32, #tpu.memory_space<vmem>>, vector<2x8x32xf32>
    tpu.vector_store %arg16[%c0_218, %c0_219, %c0_220], %485 {strides = array<i32>} : memref<2x8x32xf32, #tpu.memory_space<vmem>>, vector<2x8x32xf32>,
    return
  }
  func.func @transform_0(%arg0: i32) -> (i32, i32, i32) {
    %c0_i32 = arith.constant 0 : i32
    %c0_i32_0 = arith.constant 0 : i32
    %c0_i32_1 = arith.constant 0 : i32
    return %arg0, %c0_i32, %c0_i32_0 : i32, i32, i32
  }
  func.func @transform_1(%arg0: i32) -> (i32, i32, i32) {
    %c0_i32 = arith.constant 0 : i32
    %c0_i32_0 = arith.constant 0 : i32
    %c0_i32_1 = arith.constant 0 : i32
    %c0_i32_2 = arith.constant 0 : i32
    return %c0_i32, %c0_i32_0, %c0_i32_1 : i32, i32, i32
  }
  func.func @transform_2(%arg0: i32) -> (i32, i32, i32) {
    %c0_i32 = arith.constant 0 : i32
    %c0_i32_0 = arith.constant 0 : i32
    %c0_i32_1 = arith.constant 0 : i32
    %c0_i32_2 = arith.constant 0 : i32
    return %c0_i32, %c0_i32_0, %c0_i32_1 : i32, i32, i32
  }
  func.func @transform_3(%arg0: i32) -> (i32, i32, i32) {
    %c0_i32 = arith.constant 0 : i32
    %c0_i32_0 = arith.constant 0 : i32
    %c0_i32_1 = arith.constant 0 : i32
    %c0_i32_2 = arith.constant 0 : i32
    return %c0_i32, %c0_i32_0, %c0_i32_1 : i32, i32, i32
  }
  func.func @transform_4(%arg0: i32) -> (i32, i32, i32) {
    %c0_i32 = arith.constant 0 : i32
    %c0_i32_0 = arith.constant 0 : i32
    %c0_i32_1 = arith.constant 0 : i32
    %c0_i32_2 = arith.constant 0 : i32
    return %c0_i32, %c0_i32_0, %c0_i32_1 : i32, i32, i32
  }
  func.func @transform_5(%arg0: i32) -> (i32, i32, i32) {
    %c0_i32 = arith.constant 0 : i32
    %c0_i32_0 = arith.constant 0 : i32
    %c0_i32_1 = arith.constant 0 : i32
    %c0_i32_2 = arith.constant 0 : i32
    return %c0_i32, %c0_i32_0, %c0_i32_1 : i32, i32, i32
  }
  func.func @transform_6(%arg0: i32) -> (i32, i32, i32) {
    %c0_i32 = arith.constant 0 : i32
    %c0_i32_0 = arith.constant 0 : i32
    %c0_i32_1 = arith.constant 0 : i32
    %c0_i32_2 = arith.constant 0 : i32
    return %c0_i32, %c0_i32_0, %c0_i32_1 : i32, i32, i32
  }
  func.func @transform_7(%arg0: i32) -> (i32, i32, i32) {
    %c0_i32 = arith.constant 0 : i32
    %c0_i32_0 = arith.constant 0 : i32
    %c0_i32_1 = arith.constant 0 : i32
    %c0_i32_2 = arith.constant 0 : i32
    return %c0_i32, %c0_i32_0, %c0_i32_1 : i32, i32, i32
  }
  func.func @transform_8(%arg0: i32) -> (i32, i32, i32) {
    %c0_i32 = arith.constant 0 : i32
    %c0_i32_0 = arith.constant 0 : i32
    %c0_i32_1 = arith.constant 0 : i32
    %c0_i32_2 = arith.constant 0 : i32
    return %c0_i32, %c0_i32_0, %c0_i32_1 : i32, i32, i32
  }
  func.func @transform_9(%arg0: i32) -> (i32, i32, i32) {
    %c0_i32 = arith.constant 0 : i32
    %c0_i32_0 = arith.constant 0 : i32
    %c0_i32_1 = arith.constant 0 : i32
    %c0_i32_2 = arith.constant 0 : i32
    return %c0_i32, %c0_i32_0, %c0_i32_1 : i32, i32, i32
  }
  func.func @transform_10(%arg0: i32) -> (i32, i32, i32) {
    %c0_i32 = arith.constant 0 : i32
    %c0_i32_0 = arith.constant 0 : i32
    %c0_i32_1 = arith.constant 0 : i32
    %c0_i32_2 = arith.constant 0 : i32
    return %c0_i32, %c0_i32_0, %c0_i32_1 : i32, i32, i32
  }
  func.func @transform_11(%arg0: i32) -> (i32, i32, i32) {
    %c0_i32 = arith.constant 0 : i32
    %c0_i32_0 = arith.constant 0 : i32
    %c0_i32_1 = arith.constant 0 : i32
    %c0_i32_2 = arith.constant 0 : i32
    return %c0_i32, %c0_i32_0, %c0_i32_1 : i32, i32, i32
  }
  func.func @transform_12(%arg0: i32) -> (i32, i32) {
    %c0_i32 = arith.constant 0 : i32
    %c0_i32_0 = arith.constant 0 : i32
    %c0_i32_1 = arith.constant 0 : i32
    return %c0_i32, %c0_i32_0 : i32, i32
  }
  func.func @transform_13(%arg0: i32) -> (i32, i32) {
    %c0_i32 = arith.constant 0 : i32
    %c0_i32_0 = arith.constant 0 : i32
    %c0_i32_1 = arith.constant 0 : i32
    return %c0_i32, %c0_i32_0 : i32, i32
  }
  func.func @transform_14(%arg0: i32) -> (i32, i32, i32, i32) {
    %c0_i32 = arith.constant 0 : i32
    %c0_i32_0 = arith.constant 0 : i32
    %c0_i32_1 = arith.constant 0 : i32
    %c0_i32_2 = arith.constant 0 : i32
    return %arg0, %c0_i32, %c0_i32_0, %c0_i32_1 : i32, i32, i32, i32
  }
  func.func @transform_15(%arg0: i32) -> (i32, i32, i32) {
    %c0_i32 = arith.constant 0 : i32
    %c0_i32_0 = arith.constant 0 : i32
    %c0_i32_1 = arith.constant 0 : i32
    return %arg0, %c0_i32, %c0_i32_0 : i32, i32, i32
  }
}

</mosaic_0001>

<llo_original>
// kernel: tpu_custom_call.1
$region0: #{tpu_custom_call.1}
  #allocation0 [shape = 'u32[]', space=smem, size = 0x4, offset = 0x4, fixed_abs, tag = 'smem constant byte address 0x4 - core index']
  #allocation1 [shape = 'u32[144,128]{1,0:T(1,128)}', space=vmem, size = 0x12000, scoped, tag = 'internal scratch']
  %s0 = inlined_call_operand.hbm [shape: f32[2,8,32], index: 0, kind: input, shape index: {}]
  %s1 = inlined_call_operand.vmem [shape: f32[3,32,96], index: 1, kind: input, shape index: {}]
  %s2 = inlined_call_operand.vmem [shape: f32[3,32,32], index: 2, kind: input, shape index: {}]
  %s3 = inlined_call_operand.vmem [shape: f32[3,1,32], index: 3, kind: input, shape index: {}]
  %s4 = inlined_call_operand.vmem [shape: f32[3,1,32], index: 4, kind: input, shape index: {}]
  %s5 = inlined_call_operand.hbm [shape: f32[3,1,32], index: 5, kind: input, shape index: {}]
  %s6 = inlined_call_operand.vmem [shape: f32[3,1,32], index: 6, kind: input, shape index: {}]
  %s7 = inlined_call_operand.hbm [shape: f32[3,1,32], index: 7, kind: input, shape index: {}]
  %s8 = inlined_call_operand.vmem [shape: f32[3,32,64], index: 8, kind: input, shape index: {}]
  %s9 = inlined_call_operand.vmem [shape: f32[3,1,64], index: 9, kind: input, shape index: {}]
  %s10 = inlined_call_operand.vmem [shape: f32[3,64,32], index: 10, kind: input, shape index: {}]
  %s11 = inlined_call_operand.vmem [shape: f32[3,1,32], index: 11, kind: input, shape index: {}]
  %s12 = inlined_call_operand.vmem [shape: f32[1,32], index: 12, kind: input, shape index: {}]
  %s13 = inlined_call_operand.vmem [shape: f32[1,32], index: 13, kind: input, shape index: {}]
  %s14 = inlined_call_operand.hbm [shape: f32[2,3,8,32], index: 14, kind: output, shape index: {0}]
  %s15 = inlined_call_operand.hbm [shape: f32[2,8,32], index: 15, kind: output, shape index: {1}]
  %16 = xla_tuple %s14, %s15
  %s17 = sld [smem:[#allocation0]]
  $region86: #{tpu_custom_call.1} parent=0
    _
  %s19 = ssub.s32 1, %s17
  %s20 = scalar_select 0, %s19, %s17
  $region1: #{tpu_custom_call.1} parent=0
    #allocation2 [shape = 'u8[8192]{0}', space=vmem, size = 0x2000, scoped, tag = 'input window, operand 0, single buffered']
    #allocation3 [shape = 's32[1]{0}', space=sflag, size = 0x4, scoped, tag = 'scoped memory for tpu_custom_call.1']
    #allocation4 [shape = 's32[1]{0}', space=sflag, size = 0x4, scoped, tag = 'scoped memory for tpu_custom_call.1']
    #allocation5 [shape = 'u8[1536]{0}', space=vmem, size = 0x800, scoped, tag = 'input window, operand 5, single buffered']
    #allocation6 [shape = 's32[1]{0}', space=sflag, size = 0x4, scoped, tag = 'scoped memory for tpu_custom_call.1']
    #allocation7 [shape = 'u8[1536]{0}', space=vmem, size = 0x800, scoped, tag = 'input window, operand 7, single buffered']
    #allocation8 [shape = 'u8[24576]{0}', space=vmem, size = 0x6000, scoped, tag = 'output window, operand 0, single buffered']
    #allocation9 [shape = 'u8[8192]{0}', space=vmem, size = 0x2000, scoped, tag = 'output window, operand 1, single buffered']
    #allocation10 [shape = 's32[1]{0}', space=sflag, size = 0x4, scoped, tag = 'scoped memory for tpu_custom_call.1']
    %21 = vsyncpa [#allocation3], 0
    %22 = vsyncpa [#allocation6], 0
    %23 = vsyncpa [#allocation4], 0
    %24 = vsyncpa [#allocation10], 0
    // Predicated region
    $region2: #{tpu_custom_call.1} parent=1 // pred_check
      _
    $region3: #{tpu_custom_call.1} parent=1 // pred_check_branch
      %26 = sbr.rel (0) target = $region5
    $region4: #{tpu_custom_call.1} parent=1 // pred_region
      %s28 = ssub.s32 256, 256
      %29 = vsyncadd [#allocation3], %s28
      %s30 = sshll.u32 [#allocation2], 4
      %s31 = int_to_ptr.vmem [resolvable:$true] %s30
      %36 = dma.hbm_to_vmem [thread:$0]  %s0, 256, %s31, [#allocation3], 128, 128, 8
    $region5: #{tpu_custom_call.1} parent=1 // pred_fallthru
      _
    // Predicated region
    $region6: #{tpu_custom_call.1} parent=1 // pred_check
      _
    $region7: #{tpu_custom_call.1} parent=1 // pred_check_branch
      %38 = sbr.rel (0) target = $region9
    $region8: #{tpu_custom_call.1} parent=1 // pred_region
      _
    $region9: #{tpu_custom_call.1} parent=1 // pred_fallthru
      _
    // Predicated region
    $region10: #{tpu_custom_call.1} parent=1 // pred_check
      _
    $region11: #{tpu_custom_call.1} parent=1 // pred_check_branch
      %40 = sbr.rel (0) target = $region13
    $region12: #{tpu_custom_call.1} parent=1 // pred_region
      _
    $region13: #{tpu_custom_call.1} parent=1 // pred_fallthru
      _
    // Predicated region
    $region14: #{tpu_custom_call.1} parent=1 // pred_check
      _
    $region15: #{tpu_custom_call.1} parent=1 // pred_check_branch
      %42 = sbr.rel (0) target = $region17
    $region16: #{tpu_custom_call.1} parent=1 // pred_region
      _
    $region17: #{tpu_custom_call.1} parent=1 // pred_fallthru
      _
    // Predicated region
    $region18: #{tpu_custom_call.1} parent=1 // pred_check
      _
    $region19: #{tpu_custom_call.1} parent=1 // pred_check_branch
      %44 = sbr.rel (0) target = $region21
    $region20: #{tpu_custom_call.1} parent=1 // pred_region
      _
    $region21: #{tpu_custom_call.1} parent=1 // pred_fallthru
      _
    // Predicated region
    $region22: #{tpu_custom_call.1} parent=1 // pred_check
      _
    $region23: #{tpu_custom_call.1} parent=1 // pred_check_branch
      %46 = sbr.rel (0) target = $region25
    $region24: #{tpu_custom_call.1} parent=1 // pred_region
      %s48 = ssub.s32 48, 48
      %49 = vsyncadd [#allocation6], %s48
      %s50 = sshll.u32 [#allocation5], 4
      %s51 = int_to_ptr.vmem [resolvable:$true] %s50
      %56 = dma.hbm_to_vmem [thread:$0]  %s5, 48, %s51, [#allocation6], 16, 16, 1
    $region25: #{tpu_custom_call.1} parent=1 // pred_fallthru
      _
    // Predicated region
    $region26: #{tpu_custom_call.1} parent=1 // pred_check
      _
    $region27: #{tpu_custom_call.1} parent=1 // pred_check_branch
      %58 = sbr.rel (0) target = $region29
    $region28: #{tpu_custom_call.1} parent=1 // pred_region
      _
    $region29: #{tpu_custom_call.1} parent=1 // pred_fallthru
      _
    // Predicated region
    $region30: #{tpu_custom_call.1} parent=1 // pred_check
      _
    $region31: #{tpu_custom_call.1} parent=1 // pred_check_branch
      %60 = sbr.rel (0) target = $region33
    $region32: #{tpu_custom_call.1} parent=1 // pred_region
      %s62 = ssub.s32 48, 48
      %63 = vsyncadd [#allocation6], %s62
      %s64 = sshll.u32 [#allocation7], 4
      %s65 = int_to_ptr.vmem [resolvable:$true] %s64
      %70 = dma.hbm_to_vmem [thread:$0]  %s7, 48, %s65, [#allocation6], 16, 16, 1
    $region33: #{tpu_custom_call.1} parent=1 // pred_fallthru
      _
    // Predicated region
    $region34: #{tpu_custom_call.1} parent=1 // pred_check
      _
    $region35: #{tpu_custom_call.1} parent=1 // pred_check_branch
      %72 = sbr.rel (0) target = $region37
    $region36: #{tpu_custom_call.1} parent=1 // pred_region
      _
    $region37: #{tpu_custom_call.1} parent=1 // pred_fallthru
      _
    // Predicated region
    $region38: #{tpu_custom_call.1} parent=1 // pred_check
      _
    $region39: #{tpu_custom_call.1} parent=1 // pred_check_branch
      %74 = sbr.rel (0) target = $region41
    $region40: #{tpu_custom_call.1} parent=1 // pred_region
      _
    $region41: #{tpu_custom_call.1} parent=1 // pred_fallthru
      _
    // Predicated region
    $region42: #{tpu_custom_call.1} parent=1 // pred_check
      _
    $region43: #{tpu_custom_call.1} parent=1 // pred_check_branch
      %76 = sbr.rel (0) target = $region45
    $region44: #{tpu_custom_call.1} parent=1 // pred_region
      _
    $region45: #{tpu_custom_call.1} parent=1 // pred_fallthru
      _
    // Predicated region
    $region46: #{tpu_custom_call.1} parent=1 // pred_check
      _
    $region47: #{tpu_custom_call.1} parent=1 // pred_check_branch
      %78 = sbr.rel (0) target = $region49
    $region48: #{tpu_custom_call.1} parent=1 // pred_region
      _
    $region49: #{tpu_custom_call.1} parent=1 // pred_fallthru
      _
    // Predicated region
    $region50: #{tpu_custom_call.1} parent=1 // pred_check
      _
    $region51: #{tpu_custom_call.1} parent=1 // pred_check_branch
      %80 = sbr.rel (0) target = $region53
    $region52: #{tpu_custom_call.1} parent=1 // pred_region
      _
    $region53: #{tpu_custom_call.1} parent=1 // pred_fallthru
      _
    // Predicated region
    $region54: #{tpu_custom_call.1} parent=1 // pred_check
      _
    $region55: #{tpu_custom_call.1} parent=1 // pred_check_branch
      %82 = sbr.rel (0) target = $region57
    $region56: #{tpu_custom_call.1} parent=1 // pred_region
      _
    $region57: #{tpu_custom_call.1} parent=1 // pred_fallthru
      _
    // Predicated region
    $region58: #{tpu_custom_call.1} parent=1 // pred_check
      _
    $region59: #{tpu_custom_call.1} parent=1 // pred_check_branch
      %84 = sbr.rel (0) target = $region61
    $region60: #{tpu_custom_call.1} parent=1 // pred_region
      %85 = dma.done [#allocation3], 256
    $region61: #{tpu_custom_call.1} parent=1 // pred_fallthru
      _
    // Predicated region
    $region62: #{tpu_custom_call.1} parent=1 // pred_check
      _
    $region63: #{tpu_custom_call.1} parent=1 // pred_check_branch
      %87 = sbr.rel (0) target = $region65
    $region64: #{tpu_custom_call.1} parent=1 // pred_region
      %88 = dma.done [#allocation6], 48
    $region65: #{tpu_custom_call.1} parent=1 // pred_fallthru
      _
    // Predicated region
    $region66: #{tpu_custom_call.1} parent=1 // pred_check
      _
    $region67: #{tpu_custom_call.1} parent=1 // pred_check_branch
      %90 = sbr.rel (0) target = $region69
    $region68: #{tpu_custom_call.1} parent=1 // pred_region
      %91 = dma.done [#allocation6], 48
    $region69: #{tpu_custom_call.1} parent=1 // pred_fallthru
      _
    %v92 = vld [vmem:[#allocation2] sm:$0xff]
    %v93 = vld [vmem:[#allocation2 + $0x8] sm:$0xff]
    %v94 = vld [vmem:[%s4] sm:$0x1]
    %v95 = vld [vmem:[#allocation5] sm:$0x1]
    %vm96 = vcmask 261120
    %v97 = vsel %vm96, %v92, 0.0
    %98 = vadd.xlane.f32.xlu0 %v97
    %v99 = vpop.xlane.xlu0 %98
    %v100 = vsel %vm96, %v93, 0.0
    %101 = vadd.xlane.f32.xlu0 %v100
    %v102 = vpop.xlane.xlu0 %101
    %v103 = vrcp.pop 32.0
    %v104 = vmul.f32 %v99, %v103
    %v105 = vmul.f32 %v102, %v103
    %v106 = vsub.f32 %v92, %v104
    %v107 = vsub.f32 %v93, %v105
    %v108 = vmul.f32 %v106, %v106
    %v109 = vmul.f32 %v107, %v107
    %v110 = vsel %vm96, %v108, 0.0
    %111 = vadd.xlane.f32.xlu0 %v110
    %v112 = vpop.xlane.xlu0 %111
    %v113 = vsel %vm96, %v109, 0.0
    %114 = vadd.xlane.f32.xlu0 %v113
    %v115 = vpop.xlane.xlu0 %114
    %v116 = vmul.f32 %v112, %v103
    %v117 = vmul.f32 %v115, %v103
    %v118 = vadd.f32 %v116, 1e-05
    %v119 = vadd.f32 %v117, 1e-05
    %v120 = vrsqrt.pop %v118
    %v121 = vrsqrt.pop %v119
    %v122 = vmul.f32 %v106, %v120
    %v123 = vmul.f32 %v107, %v121
    %v125 = vlaneseq
    %v126 = vshrl.u32 %v125, 7
    %v127 = vsub.s32 0, %v126
    %v128 = vrot.slane %v94, %v127
    %v130 = vmul.f32 %v122, %v128
    %v131 = vmul.f32 %v123, %v128
    %v133 = vlaneseq
    %v134 = vshrl.u32 %v133, 7
    %v135 = vsub.s32 0, %v134
    %v136 = vrot.slane %v95, %v135
    %v138 = vadd.f32 %v130, %v136
    %v139 = vadd.f32 %v131, %v136
    %v140 = vld [vmem:[%s1] sm:$0xff]
    %v141 = vld [vmem:[%s1 + $0x8] sm:$0xff]
    %v142 = vld [vmem:[%s1 + $0x10] sm:$0xff]
    %v143 = vld [vmem:[%s1 + $0x18] sm:$0xff]
    %v145 = vsel %vm96, %v138, 0
    %v148 = vsel %vm96, %v139, 0
    %150 = vmatprep.subr.mxu0 0.0
    %151 = vmatpush1.msra.mxu0 0.0
    %152 = vmatprep.subr.mxu0 0.0
    %153 = vmatpush1.msra.mxu0 0.0
    %154 = vmatprep.subr.mxu0 0.0
    %155 = vmatpush1.msra.mxu0 0.0
    %156 = vmatprep.subr.mxu0 0.0
    %157 = vmatpush1.msra.mxu0 0.0
    %158 = vmatprep.subr.mxu0 0.0
    %159 = vmatpush1.msra.mxu0 0.0
    %160 = vmatprep.subr.mxu0 0.0
    %161 = vmatpush1.msra.mxu0 0.0
    %162 = vmatprep.subr.mxu0 0.0
    %163 = vmatpush1.msra.mxu0 0.0
    %164 = vmatprep.subr.mxu0 0.0
    %165 = vmatpush1.msra.mxu0 0.0
    %166 = vmatprep.subr.mxu0 0.0
    %167 = vmatpush1.msra.mxu0 0.0
    %168 = vmatprep.subr.mxu0 0.0
    %169 = vmatpush1.msra.mxu0 0.0
    %170 = vmatprep.subr.mxu0 0.0
    %171 = vmatpush1.msra.mxu0 0.0
    %172 = vmatprep.subr.mxu0 0.0
    %173 = vmatpush1.msra.mxu0 0.0
    %174 = vmatprep.subr.mxu0 0.0
    %175 = vmatpush1.msra.mxu0 %v143
    %176 = vmatprep.subr.mxu0 0.0
    %177 = vmatpush1.msra.mxu0 %v142
    %178 = vmatprep.subr.mxu0 0.0
    %179 = vmatpush1.msra.mxu0 %v141
    %180 = vmatprep.subr.mxu0 0.0
    %181 = vmatpush1.msra.mxu0 %v140
    %182 = vmatprep.subr.mxu0 0.0
    %183 = vmatpush2.msra.mxu0 0.0
    %184 = vmatprep.subr.mxu0 0.0
    %185 = vmatpush2.msra.mxu0 0.0
    %186 = vmatprep.subr.mxu0 0.0
    %187 = vmatpush2.msra.mxu0 0.0
    %188 = vmatprep.subr.mxu0 0.0
    %189 = vmatpush2.msra.mxu0 0.0
    %190 = vmatprep.subr.mxu0 0.0
    %191 = vmatpush2.msra.mxu0 0.0
    %192 = vmatprep.subr.mxu0 0.0
    %193 = vmatpush2.msra.mxu0 0.0
    %194 = vmatprep.subr.mxu0 0.0
    %195 = vmatpush2.msra.mxu0 0.0
    %196 = vmatprep.subr.mxu0 0.0
    %197 = vmatpush2.msra.mxu0 0.0
    %198 = vmatprep.subr.mxu0 0.0
    %199 = vmatpush2.msra.mxu0 0.0
    %200 = vmatprep.subr.mxu0 0.0
    %201 = vmatpush2.msra.mxu0 0.0
    %202 = vmatprep.subr.mxu0 0.0
    %203 = vmatpush2.msra.mxu0 0.0
    %204 = vmatprep.subr.mxu0 0.0
    %205 = vmatpush2.msra.mxu0 0.0
    %206 = vmatprep.subr.mxu0 0.0
    %207 = vmatpush2.msra.mxu0 0.0
    %208 = vmatprep.subr.mxu0 0.0
    %209 = vmatpush2.msra.mxu0 0.0
    %210 = vmatprep.subr.mxu0 0.0
    %211 = vmatpush2.msra.mxu0 0.0
    %212 = vmatprep.subr.mxu0 0.0
    %213 = vmatpush2.msra.mxu0 0.0
    %214 = vmatprep.mubr.f32.mxu0 0.0
    %215 = vmatmul.mubr.f32.gmra.mxu0 %v145
    %v216 = vpop.f32.mrf.mxu0
    %v217 = vadd.f32 0.0, %v216
    %v218 = vpop.f32.mrf.mxu0
    %219 = vmatprep.mubr.f32.mxu0 0.0
    %220 = vmatmul.mubr.f32.gmra.mxu0 %v148
    %v221 = vpop.f32.mrf.mxu0
    %v222 = vadd.f32 0.0, %v221
    %v223 = vpop.f32.mrf.mxu0
    %224 = vdwg.mxu0
    %226 = vrot.lane.b32.xlu0 %v217, 96
    %v227 = vpop.permute.xlu0 %226
    %vm228 = vcmask 64512
    %v229 = vsel %vm228, %v217, 0
    %v231 = vsel %vm228, %v227, 0
    %233 = vmatprep.subr.mxu0 0.0
    %234 = vmatpush1.xpose.msra.mxu0 0.0
    %235 = vmatprep.subr.mxu0 0.0
    %236 = vmatpush1.xpose.msra.mxu0 0.0
    %237 = vmatprep.subr.mxu0 0.0
    %238 = vmatpush1.xpose.msra.mxu0 0.0
    %239 = vmatprep.subr.mxu0 0.0
    %240 = vmatpush1.xpose.msra.mxu0 0.0
    %241 = vmatprep.subr.mxu0 0.0
    %242 = vmatpush1.xpose.msra.mxu0 0.0
    %243 = vmatprep.subr.mxu0 0.0
    %244 = vmatpush1.xpose.msra.mxu0 0.0
    %245 = vmatprep.subr.mxu0 0.0
    %246 = vmatpush1.xpose.msra.mxu0 0.0
    %247 = vmatprep.subr.mxu0 0.0
    %248 = vmatpush1.xpose.msra.mxu0 0.0
    %249 = vmatprep.subr.mxu0 0.0
    %250 = vmatpush1.xpose.msra.mxu0 0.0
    %251 = vmatprep.subr.mxu0 0.0
    %252 = vmatpush1.xpose.msra.mxu0 0.0
    %253 = vmatprep.subr.mxu0 0.0
    %254 = vmatpush1.xpose.msra.mxu0 0.0
    %255 = vmatprep.subr.mxu0 0.0
    %256 = vmatpush1.xpose.msra.mxu0 0.0
    %257 = vmatprep.subr.mxu0 0.0
    %258 = vmatpush1.xpose.msra.mxu0 0.0
    %259 = vmatprep.subr.mxu0 0.0
    %260 = vmatpush1.xpose.msra.mxu0 0.0
    %261 = vmatprep.subr.mxu0 0.0
    %262 = vmatpush1.xpose.msra.mxu0 0.0
    %263 = vmatprep.subr.mxu0 0.0
    %264 = vmatpush1.xpose.msra.mxu0 %v231
    %265 = vmatprep.subr.mxu0 0.0
    %266 = vmatpush2.xpose.msra.mxu0 0.0
    %267 = vmatprep.subr.mxu0 0.0
    %268 = vmatpush2.xpose.msra.mxu0 0.0
    %269 = vmatprep.subr.mxu0 0.0
    %270 = vmatpush2.xpose.msra.mxu0 0.0
    %271 = vmatprep.subr.mxu0 0.0
    %272 = vmatpush2.xpose.msra.mxu0 0.0
    %273 = vmatprep.subr.mxu0 0.0
    %274 = vmatpush2.xpose.msra.mxu0 0.0
    %275 = vmatprep.subr.mxu0 0.0
    %276 = vmatpush2.xpose.msra.mxu0 0.0
    %277 = vmatprep.subr.mxu0 0.0
    %278 = vmatpush2.xpose.msra.mxu0 0.0
    %279 = vmatprep.subr.mxu0 0.0
    %280 = vmatpush2.xpose.msra.mxu0 0.0
    %281 = vmatprep.subr.mxu0 0.0
    %282 = vmatpush2.xpose.msra.mxu0 0.0
    %283 = vmatprep.subr.mxu0 0.0
    %284 = vmatpush2.xpose.msra.mxu0 0.0
    %285 = vmatprep.subr.mxu0 0.0
    %286 = vmatpush2.xpose.msra.mxu0 0.0
    %287 = vmatprep.subr.mxu0 0.0
    %288 = vmatpush2.xpose.msra.mxu0 0.0
    %289 = vmatprep.subr.mxu0 0.0
    %290 = vmatpush2.xpose.msra.mxu0 0.0
    %291 = vmatprep.subr.mxu0 0.0
    %292 = vmatpush2.xpose.msra.mxu0 0.0
    %293 = vmatprep.subr.mxu0 0.0
    %294 = vmatpush2.xpose.msra.mxu0 0.0
    %295 = vmatprep.subr.mxu0 0.0
    %296 = vmatpush2.xpose.msra.mxu0 0.0
    %297 = vmatprep.mubr.f32.mxu0 0.0
    %298 = vmatmul.mubr.f32.gmra.mxu0 %v229
    %v299 = vpop.f32.mrf.mxu0
    %v300 = vadd.f32 0.0, %v299
    %v301 = vpop.f32.mrf.mxu0
    %302 = vdwg.mxu0
    %304 = vrot.lane.b32.xlu0 %v222, 96
    %v305 = vpop.permute.xlu0 %304
    %v306 = vsel %vm228, %v222, 0
    %v308 = vsel %vm228, %v305, 0
    %310 = vmatprep.subr.mxu0 0.0
    %311 = vmatpush1.xpose.msra.mxu0 0.0
    %312 = vmatprep.subr.mxu0 0.0
    %313 = vmatpush1.xpose.msra.mxu0 0.0
    %314 = vmatprep.subr.mxu0 0.0
    %315 = vmatpush1.xpose.msra.mxu0 0.0
    %316 = vmatprep.subr.mxu0 0.0
    %317 = vmatpush1.xpose.msra.mxu0 0.0
    %318 = vmatprep.subr.mxu0 0.0
    %319 = vmatpush1.xpose.msra.mxu0 0.0
    %320 = vmatprep.subr.mxu0 0.0
    %321 = vmatpush1.xpose.msra.mxu0 0.0
    %322 = vmatprep.subr.mxu0 0.0
    %323 = vmatpush1.xpose.msra.mxu0 0.0
    %324 = vmatprep.subr.mxu0 0.0
    %325 = vmatpush1.xpose.msra.mxu0 0.0
    %326 = vmatprep.subr.mxu0 0.0
    %327 = vmatpush1.xpose.msra.mxu0 0.0
    %328 = vmatprep.subr.mxu0 0.0
    %329 = vmatpush1.xpose.msra.mxu0 0.0
    %330 = vmatprep.subr.mxu0 0.0
    %331 = vmatpush1.xpose.msra.mxu0 0.0
    %332 = vmatprep.subr.mxu0 0.0
    %333 = vmatpush1.xpose.msra.mxu0 0.0
    %334 = vmatprep.subr.mxu0 0.0
    %335 = vmatpush1.xpose.msra.mxu0 0.0
    %336 = vmatprep.subr.mxu0 0.0
    %337 = vmatpush1.xpose.msra.mxu0 0.0
    %338 = vmatprep.subr.mxu0 0.0
    %339 = vmatpush1.xpose.msra.mxu0 0.0
    %340 = vmatprep.subr.mxu0 0.0
    %341 = vmatpush1.xpose.msra.mxu0 %v308
    %342 = vmatprep.subr.mxu0 0.0
    %343 = vmatpush2.xpose.msra.mxu0 0.0
    %344 = vmatprep.subr.mxu0 0.0
    %345 = vmatpush2.xpose.msra.mxu0 0.0
    %346 = vmatprep.subr.mxu0 0.0
    %347 = vmatpush2.xpose.msra.mxu0 0.0
    %348 = vmatprep.subr.mxu0 0.0
    %349 = vmatpush2.xpose.msra.mxu0 0.0
    %350 = vmatprep.subr.mxu0 0.0
    %351 = vmatpush2.xpose.msra.mxu0 0.0
    %352 = vmatprep.subr.mxu0 0.0
    %353 = vmatpush2.xpose.msra.mxu0 0.0
    %354 = vmatprep.subr.mxu0 0.0
    %355 = vmatpush2.xpose.msra.mxu0 0.0
    %356 = vmatprep.subr.mxu0 0.0
    %357 = vmatpush2.xpose.msra.mxu0 0.0
    %358 = vmatprep.subr.mxu0 0.0
    %359 = vmatpush2.xpose.msra.mxu0 0.0
    %360 = vmatprep.subr.mxu0 0.0
    %361 = vmatpush2.xpose.msra.mxu0 0.0
    %362 = vmatprep.subr.mxu0 0.0
    %363 = vmatpush2.xpose.msra.mxu0 0.0
    %364 = vmatprep.subr.mxu0 0.0
    %365 = vmatpush2.xpose.msra.mxu0 0.0
    %366 = vmatprep.subr.mxu0 0.0
    %367 = vmatpush2.xpose.msra.mxu0 0.0
    %368 = vmatprep.subr.mxu0 0.0
    %369 = vmatpush2.xpose.msra.mxu0 0.0
    %370 = vmatprep.subr.mxu0 0.0
    %371 = vmatpush2.xpose.msra.mxu0 0.0
    %372 = vmatprep.subr.mxu0 0.0
    %373 = vmatpush2.xpose.msra.mxu0 0.0
    %374 = vmatprep.mubr.f32.mxu0 0.0
    %375 = vmatmul.mubr.f32.gmra.mxu0 %v306
    %v376 = vpop.f32.mrf.mxu0
    %v377 = vadd.f32 0.0, %v376
    %v378 = vpop.f32.mrf.mxu0
    %379 = vdwg.mxu0
    %v380 = vsel %vm228, %v300, -inf
    %381 = vmax.xlane.f32.xlu0 %v380
    %v382 = vpop.xlane.xlu0 %381
    %v383 = vsel %vm228, %v377, -inf
    %384 = vmax.xlane.f32.xlu0 %v383
    %v385 = vpop.xlane.xlu0 %384
    %v386 = vsub.f32 %v300, %v382
    %v387 = vsub.f32 %v377, %v385
    %v388 = vmul.f32 %v386, 1.442695
    %v389 = vpow.pop %v388
    %v390 = vmul.f32 %v387, 1.442695
    %v391 = vpow.pop %v390
    %v392 = vsel %vm228, %v389, 0.0
    %393 = vadd.xlane.f32.xlu0 %v392
    %v394 = vpop.xlane.xlu0 %393
    %v395 = vsel %vm228, %v391, 0.0
    %396 = vadd.xlane.f32.xlu0 %v395
    %v397 = vpop.xlane.xlu0 %396
    %v398 = vrcp.pop %v394
    %v399 = vrcp.pop %v397
    %v400 = vmul.f32 %v389, %v398
    %v401 = vmul.f32 %v391, %v399
    %402 = vrot.lane.b32.xlu0 %v217, 64
    %v403 = vpop.permute.xlu0 %402
    %v406 = vsel %vm228, %v400, 0
    %408 = vmatprep.subr.mxu0 0.0
    %409 = vmatpush1.msra.mxu0 0.0
    %410 = vmatprep.subr.mxu0 0.0
    %411 = vmatpush1.msra.mxu0 0.0
    %412 = vmatprep.subr.mxu0 0.0
    %413 = vmatpush1.msra.mxu0 0.0
    %414 = vmatprep.subr.mxu0 0.0
    %415 = vmatpush1.msra.mxu0 0.0
    %416 = vmatprep.subr.mxu0 0.0
    %417 = vmatpush1.msra.mxu0 0.0
    %418 = vmatprep.subr.mxu0 0.0
    %419 = vmatpush1.msra.mxu0 0.0
    %420 = vmatprep.subr.mxu0 0.0
    %421 = vmatpush1.msra.mxu0 0.0
    %422 = vmatprep.subr.mxu0 0.0
    %423 = vmatpush1.msra.mxu0 0.0
    %424 = vmatprep.subr.mxu0 0.0
    %425 = vmatpush1.msra.mxu0 0.0
    %426 = vmatprep.subr.mxu0 0.0
    %427 = vmatpush1.msra.mxu0 0.0
    %428 = vmatprep.subr.mxu0 0.0
    %429 = vmatpush1.msra.mxu0 0.0
    %430 = vmatprep.subr.mxu0 0.0
    %431 = vmatpush1.msra.mxu0 0.0
    %432 = vmatprep.subr.mxu0 0.0
    %433 = vmatpush1.msra.mxu0 0.0
    %434 = vmatprep.subr.mxu0 0.0
    %435 = vmatpush1.msra.mxu0 0.0
    %436 = vmatprep.subr.mxu0 0.0
    %437 = vmatpush1.msra.mxu0 0.0
    %438 = vmatprep.subr.mxu0 0.0
    %439 = vmatpush1.msra.mxu0 %v403
    %440 = vmatprep.subr.mxu0 0.0
    %441 = vmatpush2.msra.mxu0 0.0
    %442 = vmatprep.subr.mxu0 0.0
    %443 = vmatpush2.msra.mxu0 0.0
    %444 = vmatprep.subr.mxu0 0.0
    %445 = vmatpush2.msra.mxu0 0.0
    %446 = vmatprep.subr.mxu0 0.0
    %447 = vmatpush2.msra.mxu0 0.0
    %448 = vmatprep.subr.mxu0 0.0
    %449 = vmatpush2.msra.mxu0 0.0
    %450 = vmatprep.subr.mxu0 0.0
    %451 = vmatpush2.msra.mxu0 0.0
    %452 = vmatprep.subr.mxu0 0.0
    %453 = vmatpush2.msra.mxu0 0.0
    %454 = vmatprep.subr.mxu0 0.0
    %455 = vmatpush2.msra.mxu0 0.0
    %456 = vmatprep.subr.mxu0 0.0
    %457 = vmatpush2.msra.mxu0 0.0
    %458 = vmatprep.subr.mxu0 0.0
    %459 = vmatpush2.msra.mxu0 0.0
    %460 = vmatprep.subr.mxu0 0.0
    %461 = vmatpush2.msra.mxu0 0.0
    %462 = vmatprep.subr.mxu0 0.0
    %463 = vmatpush2.msra.mxu0 0.0
    %464 = vmatprep.subr.mxu0 0.0
    %465 = vmatpush2.msra.mxu0 0.0
    %466 = vmatprep.subr.mxu0 0.0
    %467 = vmatpush2.msra.mxu0 0.0
    %468 = vmatprep.subr.mxu0 0.0
    %469 = vmatpush2.msra.mxu0 0.0
    %470 = vmatprep.subr.mxu0 0.0
    %471 = vmatpush2.msra.mxu0 0.0
    %472 = vmatprep.mubr.f32.mxu0 0.0
    %473 = vmatmul.mubr.f32.gmra.mxu0 %v406
    %v474 = vpop.f32.mrf.mxu0
    %v475 = vadd.f32 0.0, %v474
    %v476 = vpop.f32.mrf.mxu0
    %477 = vdwg.mxu0
    %478 = vrot.lane.b32.xlu0 %v222, 64
    %v479 = vpop.permute.xlu0 %478
    %v482 = vsel %vm228, %v401, 0
    %484 = vmatprep.subr.mxu0 0.0
    %485 = vmatpush1.msra.mxu0 0.0
    %486 = vmatprep.subr.mxu0 0.0
    %487 = vmatpush1.msra.mxu0 0.0
    %488 = vmatprep.subr.mxu0 0.0
    %489 = vmatpush1.msra.mxu0 0.0
    %490 = vmatprep.subr.mxu0 0.0
    %491 = vmatpush1.msra.mxu0 0.0
    %492 = vmatprep.subr.mxu0 0.0
    %493 = vmatpush1.msra.mxu0 0.0
    %494 = vmatprep.subr.mxu0 0.0
    %495 = vmatpush1.msra.mxu0 0.0
    %496 = vmatprep.subr.mxu0 0.0
    %497 = vmatpush1.msra.mxu0 0.0
    %498 = vmatprep.subr.mxu0 0.0
    %499 = vmatpush1.msra.mxu0 0.0
    %500 = vmatprep.subr.mxu0 0.0
    %501 = vmatpush1.msra.mxu0 0.0
    %502 = vmatprep.subr.mxu0 0.0
    %503 = vmatpush1.msra.mxu0 0.0
    %504 = vmatprep.subr.mxu0 0.0
    %505 = vmatpush1.msra.mxu0 0.0
    %506 = vmatprep.subr.mxu0 0.0
    %507 = vmatpush1.msra.mxu0 0.0
    %508 = vmatprep.subr.mxu0 0.0
    %509 = vmatpush1.msra.mxu0 0.0
    %510 = vmatprep.subr.mxu0 0.0
    %511 = vmatpush1.msra.mxu0 0.0
    %512 = vmatprep.subr.mxu0 0.0
    %513 = vmatpush1.msra.mxu0 0.0
    %514 = vmatprep.subr.mxu0 0.0
    %515 = vmatpush1.msra.mxu0 %v479
    %516 = vmatprep.subr.mxu0 0.0
    %517 = vmatpush2.msra.mxu0 0.0
    %518 = vmatprep.subr.mxu0 0.0
    %519 = vmatpush2.msra.mxu0 0.0
    %520 = vmatprep.subr.mxu0 0.0
    %521 = vmatpush2.msra.mxu0 0.0
    %522 = vmatprep.subr.mxu0 0.0
    %523 = vmatpush2.msra.mxu0 0.0
    %524 = vmatprep.subr.mxu0 0.0
    %525 = vmatpush2.msra.mxu0 0.0
    %526 = vmatprep.subr.mxu0 0.0
    %527 = vmatpush2.msra.mxu0 0.0
    %528 = vmatprep.subr.mxu0 0.0
    %529 = vmatpush2.msra.mxu0 0.0
    %530 = vmatprep.subr.mxu0 0.0
    %531 = vmatpush2.msra.mxu0 0.0
    %532 = vmatprep.subr.mxu0 0.0
    %533 = vmatpush2.msra.mxu0 0.0
    %534 = vmatprep.subr.mxu0 0.0
    %535 = vmatpush2.msra.mxu0 0.0
    %536 = vmatprep.subr.mxu0 0.0
    %537 = vmatpush2.msra.mxu0 0.0
    %538 = vmatprep.subr.mxu0 0.0
    %539 = vmatpush2.msra.mxu0 0.0
    %540 = vmatprep.subr.mxu0 0.0
    %541 = vmatpush2.msra.mxu0 0.0
    %542 = vmatprep.subr.mxu0 0.0
    %543 = vmatpush2.msra.mxu0 0.0
    %544 = vmatprep.subr.mxu0 0.0
    %545 = vmatpush2.msra.mxu0 0.0
    %546 = vmatprep.subr.mxu0 0.0
    %547 = vmatpush2.msra.mxu0 0.0
    %548 = vmatprep.mubr.f32.mxu0 0.0
    %549 = vmatmul.mubr.f32.gmra.mxu0 %v482
    %v550 = vpop.f32.mrf.mxu0
    %v551 = vadd.f32 0.0, %v550
    %v552 = vpop.f32.mrf.mxu0
    %553 = vdwg.mxu0
    %554 = vrot.lane.b32.xlu0 %v217, 120
    %v555 = vpop.permute.xlu0 %554
    %556 = vrot.lane.b32.xlu0 %v217, 88
    %v557 = vpop.permute.xlu0 %556
    %v558 = vsel %vm228, %v555, 0
    %v560 = vsel %vm228, %v557, 0
    %562 = vmatprep.subr.mxu0 0.0
    %563 = vmatpush1.xpose.msra.mxu0 0.0
    %564 = vmatprep.subr.mxu0 0.0
    %565 = vmatpush1.xpose.msra.mxu0 0.0
    %566 = vmatprep.subr.mxu0 0.0
    %567 = vmatpush1.xpose.msra.mxu0 0.0
    %568 = vmatprep.subr.mxu0 0.0
    %569 = vmatpush1.xpose.msra.mxu0 0.0
    %570 = vmatprep.subr.mxu0 0.0
    %571 = vmatpush1.xpose.msra.mxu0 0.0
    %572 = vmatprep.subr.mxu0 0.0
    %573 = vmatpush1.xpose.msra.mxu0 0.0
    %574 = vmatprep.subr.mxu0 0.0
    %575 = vmatpush1.xpose.msra.mxu0 0.0
    %576 = vmatprep.subr.mxu0 0.0
    %577 = vmatpush1.xpose.msra.mxu0 0.0
    %578 = vmatprep.subr.mxu0 0.0
    %579 = vmatpush1.xpose.msra.mxu0 0.0
    %580 = vmatprep.subr.mxu0 0.0
    %581 = vmatpush1.xpose.msra.mxu0 0.0
    %582 = vmatprep.subr.mxu0 0.0
    %583 = vmatpush1.xpose.msra.mxu0 0.0
    %584 = vmatprep.subr.mxu0 0.0
    %585 = vmatpush1.xpose.msra.mxu0 0.0
    %586 = vmatprep.subr.mxu0 0.0
    %587 = vmatpush1.xpose.msra.mxu0 0.0
    %588 = vmatprep.subr.mxu0 0.0
    %589 = vmatpush1.xpose.msra.mxu0 0.0
    %590 = vmatprep.subr.mxu0 0.0
    %591 = vmatpush1.xpose.msra.mxu0 0.0
    %592 = vmatprep.subr.mxu0 0.0
    %593 = vmatpush1.xpose.msra.mxu0 %v560
    %594 = vmatprep.subr.mxu0 0.0
    %595 = vmatpush2.xpose.msra.mxu0 0.0
    %596 = vmatprep.subr.mxu0 0.0
    %597 = vmatpush2.xpose.msra.mxu0 0.0
    %598 = vmatprep.subr.mxu0 0.0
    %599 = vmatpush2.xpose.msra.mxu0 0.0
    %600 = vmatprep.subr.mxu0 0.0
    %601 = vmatpush2.xpose.msra.mxu0 0.0
    %602 = vmatprep.subr.mxu0 0.0
    %603 = vmatpush2.xpose.msra.mxu0 0.0
    %604 = vmatprep.subr.mxu0 0.0
    %605 = vmatpush2.xpose.msra.mxu0 0.0
    %606 = vmatprep.subr.mxu0 0.0
    %607 = vmatpush2.xpose.msra.mxu0 0.0
    %608 = vmatprep.subr.mxu0 0.0
    %609 = vmatpush2.xpose.msra.mxu0 0.0
    %610 = vmatprep.subr.mxu0 0.0
    %611 = vmatpush2.xpose.msra.mxu0 0.0
    %612 = vmatprep.subr.mxu0 0.0
    %613 = vmatpush2.xpose.msra.mxu0 0.0
    %614 = vmatprep.subr.mxu0 0.0
    %615 = vmatpush2.xpose.msra.mxu0 0.0
    %616 = vmatprep.subr.mxu0 0.0
    %617 = vmatpush2.xpose.msra.mxu0 0.0
    %618 = vmatprep.subr.mxu0 0.0
    %619 = vmatpush2.xpose.msra.mxu0 0.0
    %620 = vmatprep.subr.mxu0 0.0
    %621 = vmatpush2.xpose.msra.mxu0 0.0
    %622 = vmatprep.subr.mxu0 0.0
    %623 = vmatpush2.xpose.msra.mxu0 0.0
    %624 = vmatprep.subr.mxu0 0.0
    %625 = vmatpush2.xpose.msra.mxu0 0.0
    %626 = vmatprep.mubr.f32.mxu0 0.0
    %627 = vmatmul.mubr.f32.gmra.mxu0 %v558
    %v628 = vpop.f32.mrf.mxu0
    %v629 = vadd.f32 0.0, %v628
    %v630 = vpop.f32.mrf.mxu0
    %631 = vdwg.mxu0
    %632 = vrot.lane.b32.xlu0 %v222, 120
    %v633 = vpop.permute.xlu0 %632
    %634 = vrot.lane.b32.xlu0 %v222, 88
    %v635 = vpop.permute.xlu0 %634
    %v636 = vsel %vm228, %v633, 0
    %v638 = vsel %vm228, %v635, 0
    %640 = vmatprep.subr.mxu0 0.0
    %641 = vmatpush1.xpose.msra.mxu0 0.0
    %642 = vmatprep.subr.mxu0 0.0
    %643 = vmatpush1.xpose.msra.mxu0 0.0
    %644 = vmatprep.subr.mxu0 0.0
    %645 = vmatpush1.xpose.msra.mxu0 0.0
    %646 = vmatprep.subr.mxu0 0.0
    %647 = vmatpush1.xpose.msra.mxu0 0.0
    %648 = vmatprep.subr.mxu0 0.0
    %649 = vmatpush1.xpose.msra.mxu0 0.0
    %650 = vmatprep.subr.mxu0 0.0
    %651 = vmatpush1.xpose.msra.mxu0 0.0
    %652 = vmatprep.subr.mxu0 0.0
    %653 = vmatpush1.xpose.msra.mxu0 0.0
    %654 = vmatprep.subr.mxu0 0.0
    %655 = vmatpush1.xpose.msra.mxu0 0.0
    %656 = vmatprep.subr.mxu0 0.0
    %657 = vmatpush1.xpose.msra.mxu0 0.0
    %658 = vmatprep.subr.mxu0 0.0
    %659 = vmatpush1.xpose.msra.mxu0 0.0
    %660 = vmatprep.subr.mxu0 0.0
    %661 = vmatpush1.xpose.msra.mxu0 0.0
    %662 = vmatprep.subr.mxu0 0.0
    %663 = vmatpush1.xpose.msra.mxu0 0.0
    %664 = vmatprep.subr.mxu0 0.0
    %665 = vmatpush1.xpose.msra.mxu0 0.0
    %666 = vmatprep.subr.mxu0 0.0
    %667 = vmatpush1.xpose.msra.mxu0 0.0
    %668 = vmatprep.subr.mxu0 0.0
    %669 = vmatpush1.xpose.msra.mxu0 0.0
    %670 = vmatprep.subr.mxu0 0.0
    %671 = vmatpush1.xpose.msra.mxu0 %v638
    %672 = vmatprep.subr.mxu0 0.0
    %673 = vmatpush2.xpose.msra.mxu0 0.0
    %674 = vmatprep.subr.mxu0 0.0
    %675 = vmatpush2.xpose.msra.mxu0 0.0
    %676 = vmatprep.subr.mxu0 0.0
    %677 = vmatpush2.xpose.msra.mxu0 0.0
    %678 = vmatprep.subr.mxu0 0.0
    %679 = vmatpush2.xpose.msra.mxu0 0.0
    %680 = vmatprep.subr.mxu0 0.0
    %681 = vmatpush2.xpose.msra.mxu0 0.0
    %682 = vmatprep.subr.mxu0 0.0
    %683 = vmatpush2.xpose.msra.mxu0 0.0
    %684 = vmatprep.subr.mxu0 0.0
    %685 = vmatpush2.xpose.msra.mxu0 0.0
    %686 = vmatprep.subr.mxu0 0.0
    %687 = vmatpush2.xpose.msra.mxu0 0.0
    %688 = vmatprep.subr.mxu0 0.0
    %689 = vmatpush2.xpose.msra.mxu0 0.0
    %690 = vmatprep.subr.mxu0 0.0
    %691 = vmatpush2.xpose.msra.mxu0 0.0
    %692 = vmatprep.subr.mxu0 0.0
    %693 = vmatpush2.xpose.msra.mxu0 0.0
    %694 = vmatprep.subr.mxu0 0.0
    %695 = vmatpush2.xpose.msra.mxu0 0.0
    %696 = vmatprep.subr.mxu0 0.0
    %697 = vmatpush2.xpose.msra.mxu0 0.0
    %698 = vmatprep.subr.mxu0 0.0
    %699 = vmatpush2.xpose.msra.mxu0 0.0
    %700 = vmatprep.subr.mxu0 0.0
    %701 = vmatpush2.xpose.msra.mxu0 0.0
    %702 = vmatprep.subr.mxu0 0.0
    %703 = vmatpush2.xpose.msra.mxu0 0.0
    %704 = vmatprep.mubr.f32.mxu0 0.0
    %705 = vmatmul.mubr.f32.gmra.mxu0 %v636
    %v706 = vpop.f32.mrf.mxu0
    %v707 = vadd.f32 0.0, %v706
    %v708 = vpop.f32.mrf.mxu0
    %709 = vdwg.mxu0
    %v710 = vsel %vm228, %v629, -inf
    %711 = vmax.xlane.f32.xlu0 %v710
    %v712 = vpop.xlane.xlu0 %711
    %v713 = vsel %vm228, %v707, -inf
    %714 = vmax.xlane.f32.xlu0 %v713
    %v715 = vpop.xlane.xlu0 %714
    %v716 = vsub.f32 %v629, %v712
    %v717 = vsub.f32 %v707, %v715
    %v718 = vmul.f32 %v716, 1.442695
    %v719 = vpow.pop %v718
    %v720 = vmul.f32 %v717, 1.442695
    %v721 = vpow.pop %v720
    %v722 = vsel %vm228, %v719, 0.0
    %723 = vadd.xlane.f32.xlu0 %v722
    %v724 = vpop.xlane.xlu0 %723
    %v725 = vsel %vm228, %v721, 0.0
    %726 = vadd.xlane.f32.xlu0 %v725
    %v727 = vpop.xlane.xlu0 %726
    %v728 = vrcp.pop %v724
    %v729 = vrcp.pop %v727
    %v730 = vmul.f32 %v719, %v728
    %v731 = vmul.f32 %v721, %v729
    %732 = vrot.lane.b32.xlu0 %v217, 56
    %v733 = vpop.permute.xlu0 %732
    %v736 = vsel %vm228, %v730, 0
    %738 = vmatprep.subr.mxu0 0.0
    %739 = vmatpush1.msra.mxu0 0.0
    %740 = vmatprep.subr.mxu0 0.0
    %741 = vmatpush1.msra.mxu0 0.0
    %742 = vmatprep.subr.mxu0 0.0
    %743 = vmatpush1.msra.mxu0 0.0
    %744 = vmatprep.subr.mxu0 0.0
    %745 = vmatpush1.msra.mxu0 0.0
    %746 = vmatprep.subr.mxu0 0.0
    %747 = vmatpush1.msra.mxu0 0.0
    %748 = vmatprep.subr.mxu0 0.0
    %749 = vmatpush1.msra.mxu0 0.0
    %750 = vmatprep.subr.mxu0 0.0
    %751 = vmatpush1.msra.mxu0 0.0
    %752 = vmatprep.subr.mxu0 0.0
    %753 = vmatpush1.msra.mxu0 0.0
    %754 = vmatprep.subr.mxu0 0.0
    %755 = vmatpush1.msra.mxu0 0.0
    %756 = vmatprep.subr.mxu0 0.0
    %757 = vmatpush1.msra.mxu0 0.0
    %758 = vmatprep.subr.mxu0 0.0
    %759 = vmatpush1.msra.mxu0 0.0
    %760 = vmatprep.subr.mxu0 0.0
    %761 = vmatpush1.msra.mxu0 0.0
    %762 = vmatprep.subr.mxu0 0.0
    %763 = vmatpush1.msra.mxu0 0.0
    %764 = vmatprep.subr.mxu0 0.0
    %765 = vmatpush1.msra.mxu0 0.0
    %766 = vmatprep.subr.mxu0 0.0
    %767 = vmatpush1.msra.mxu0 0.0
    %768 = vmatprep.subr.mxu0 0.0
    %769 = vmatpush1.msra.mxu0 %v733
    %770 = vmatprep.subr.mxu0 0.0
    %771 = vmatpush2.msra.mxu0 0.0
    %772 = vmatprep.subr.mxu0 0.0
    %773 = vmatpush2.msra.mxu0 0.0
    %774 = vmatprep.subr.mxu0 0.0
    %775 = vmatpush2.msra.mxu0 0.0
    %776 = vmatprep.subr.mxu0 0.0
    %777 = vmatpush2.msra.mxu0 0.0
    %778 = vmatprep.subr.mxu0 0.0
    %779 = vmatpush2.msra.mxu0 0.0
    %780 = vmatprep.subr.mxu0 0.0
    %781 = vmatpush2.msra.mxu0 0.0
    %782 = vmatprep.subr.mxu0 0.0
    %783 = vmatpush2.msra.mxu0 0.0
    %784 = vmatprep.subr.mxu0 0.0
    %785 = vmatpush2.msra.mxu0 0.0
    %786 = vmatprep.subr.mxu0 0.0
    %787 = vmatpush2.msra.mxu0 0.0
    %788 = vmatprep.subr.mxu0 0.0
    %789 = vmatpush2.msra.mxu0 0.0
    %790 = vmatprep.subr.mxu0 0.0
    %791 = vmatpush2.msra.mxu0 0.0
    %792 = vmatprep.subr.mxu0 0.0
    %793 = vmatpush2.msra.mxu0 0.0
    %794 = vmatprep.subr.mxu0 0.0
    %795 = vmatpush2.msra.mxu0 0.0
    %796 = vmatprep.subr.mxu0 0.0
    %797 = vmatpush2.msra.mxu0 0.0
    %798 = vmatprep.subr.mxu0 0.0
    %799 = vmatpush2.msra.mxu0 0.0
    %800 = vmatprep.subr.mxu0 0.0
    %801 = vmatpush2.msra.mxu0 0.0
    %802 = vmatprep.mubr.f32.mxu0 0.0
    %803 = vmatmul.mubr.f32.gmra.mxu0 %v736
    %v804 = vpop.f32.mrf.mxu0
    %v805 = vadd.f32 0.0, %v804
    %v806 = vpop.f32.mrf.mxu0
    %807 = vdwg.mxu0
    %808 = vrot.lane.b32.xlu0 %v222, 56
    %v809 = vpop.permute.xlu0 %808
    %v812 = vsel %vm228, %v731, 0
    %814 = vmatprep.subr.mxu0 0.0
    %815 = vmatpush1.msra.mxu0 0.0
    %816 = vmatprep.subr.mxu0 0.0
    %817 = vmatpush1.msra.mxu0 0.0
    %818 = vmatprep.subr.mxu0 0.0
    %819 = vmatpush1.msra.mxu0 0.0
    %820 = vmatprep.subr.mxu0 0.0
    %821 = vmatpush1.msra.mxu0 0.0
    %822 = vmatprep.subr.mxu0 0.0
    %823 = vmatpush1.msra.mxu0 0.0
    %824 = vmatprep.subr.mxu0 0.0
    %825 = vmatpush1.msra.mxu0 0.0
    %826 = vmatprep.subr.mxu0 0.0
    %827 = vmatpush1.msra.mxu0 0.0
    %828 = vmatprep.subr.mxu0 0.0
    %829 = vmatpush1.msra.mxu0 0.0
    %830 = vmatprep.subr.mxu0 0.0
    %831 = vmatpush1.msra.mxu0 0.0
    %832 = vmatprep.subr.mxu0 0.0
    %833 = vmatpush1.msra.mxu0 0.0
    %834 = vmatprep.subr.mxu0 0.0
    %835 = vmatpush1.msra.mxu0 0.0
    %836 = vmatprep.subr.mxu0 0.0
    %837 = vmatpush1.msra.mxu0 0.0
    %838 = vmatprep.subr.mxu0 0.0
    %839 = vmatpush1.msra.mxu0 0.0
    %840 = vmatprep.subr.mxu0 0.0
    %841 = vmatpush1.msra.mxu0 0.0
    %842 = vmatprep.subr.mxu0 0.0
    %843 = vmatpush1.msra.mxu0 0.0
    %844 = vmatprep.subr.mxu0 0.0
    %845 = vmatpush1.msra.mxu0 %v809
    %846 = vmatprep.subr.mxu0 0.0
    %847 = vmatpush2.msra.mxu0 0.0
    %848 = vmatprep.subr.mxu0 0.0
    %849 = vmatpush2.msra.mxu0 0.0
    %850 = vmatprep.subr.mxu0 0.0
    %851 = vmatpush2.msra.mxu0 0.0
    %852 = vmatprep.subr.mxu0 0.0
    %853 = vmatpush2.msra.mxu0 0.0
    %854 = vmatprep.subr.mxu0 0.0
    %855 = vmatpush2.msra.mxu0 0.0
    %856 = vmatprep.subr.mxu0 0.0
    %857 = vmatpush2.msra.mxu0 0.0
    %858 = vmatprep.subr.mxu0 0.0
    %859 = vmatpush2.msra.mxu0 0.0
    %860 = vmatprep.subr.mxu0 0.0
    %861 = vmatpush2.msra.mxu0 0.0
    %862 = vmatprep.subr.mxu0 0.0
    %863 = vmatpush2.msra.mxu0 0.0
    %864 = vmatprep.subr.mxu0 0.0
    %865 = vmatpush2.msra.mxu0 0.0
    %866 = vmatprep.subr.mxu0 0.0
    %867 = vmatpush2.msra.mxu0 0.0
    %868 = vmatprep.subr.mxu0 0.0
    %869 = vmatpush2.msra.mxu0 0.0
    %870 = vmatprep.subr.mxu0 0.0
    %871 = vmatpush2.msra.mxu0 0.0
    %872 = vmatprep.subr.mxu0 0.0
    %873 = vmatpush2.msra.mxu0 0.0
    %874 = vmatprep.subr.mxu0 0.0
    %875 = vmatpush2.msra.mxu0 0.0
    %876 = vmatprep.subr.mxu0 0.0
    %877 = vmatpush2.msra.mxu0 0.0
    %878 = vmatprep.mubr.f32.mxu0 0.0
    %879 = vmatmul.mubr.f32.gmra.mxu0 %v812
    %v880 = vpop.f32.mrf.mxu0
    %v881 = vadd.f32 0.0, %v880
    %v882 = vpop.f32.mrf.mxu0
    %883 = vdwg.mxu0
    %884 = vrot.lane.b32.xlu0 %v217, 112
    %v885 = vpop.permute.xlu0 %884
    %886 = vrot.lane.b32.xlu0 %v217, 80
    %v887 = vpop.permute.xlu0 %886
    %v888 = vsel %vm228, %v885, 0
    %v890 = vsel %vm228, %v887, 0
    %892 = vmatprep.subr.mxu0 0.0
    %893 = vmatpush1.xpose.msra.mxu0 0.0
    %894 = vmatprep.subr.mxu0 0.0
    %895 = vmatpush1.xpose.msra.mxu0 0.0
    %896 = vmatprep.subr.mxu0 0.0
    %897 = vmatpush1.xpose.msra.mxu0 0.0
    %898 = vmatprep.subr.mxu0 0.0
    %899 = vmatpush1.xpose.msra.mxu0 0.0
    %900 = vmatprep.subr.mxu0 0.0
    %901 = vmatpush1.xpose.msra.mxu0 0.0
    %902 = vmatprep.subr.mxu0 0.0
    %903 = vmatpush1.xpose.msra.mxu0 0.0
    %904 = vmatprep.subr.mxu0 0.0
    %905 = vmatpush1.xpose.msra.mxu0 0.0
    %906 = vmatprep.subr.mxu0 0.0
    %907 = vmatpush1.xpose.msra.mxu0 0.0
    %908 = vmatprep.subr.mxu0 0.0
    %909 = vmatpush1.xpose.msra.mxu0 0.0
    %910 = vmatprep.subr.mxu0 0.0
    %911 = vmatpush1.xpose.msra.mxu0 0.0
    %912 = vmatprep.subr.mxu0 0.0
    %913 = vmatpush1.xpose.msra.mxu0 0.0
    %914 = vmatprep.subr.mxu0 0.0
    %915 = vmatpush1.xpose.msra.mxu0 0.0
    %916 = vmatprep.subr.mxu0 0.0
    %917 = vmatpush1.xpose.msra.mxu0 0.0
    %918 = vmatprep.subr.mxu0 0.0
    %919 = vmatpush1.xpose.msra.mxu0 0.0
    %920 = vmatprep.subr.mxu0 0.0
    %921 = vmatpush1.xpose.msra.mxu0 0.0
    %922 = vmatprep.subr.mxu0 0.0
    %923 = vmatpush1.xpose.msra.mxu0 %v890
    %924 = vmatprep.subr.mxu0 0.0
    %925 = vmatpush2.xpose.msra.mxu0 0.0
    %926 = vmatprep.subr.mxu0 0.0
    %927 = vmatpush2.xpose.msra.mxu0 0.0
    %928 = vmatprep.subr.mxu0 0.0
    %929 = vmatpush2.xpose.msra.mxu0 0.0
    %930 = vmatprep.subr.mxu0 0.0
    %931 = vmatpush2.xpose.msra.mxu0 0.0
    %932 = vmatprep.subr.mxu0 0.0
    %933 = vmatpush2.xpose.msra.mxu0 0.0
    %934 = vmatprep.subr.mxu0 0.0
    %935 = vmatpush2.xpose.msra.mxu0 0.0
    %936 = vmatprep.subr.mxu0 0.0
    %937 = vmatpush2.xpose.msra.mxu0 0.0
    %938 = vmatprep.subr.mxu0 0.0
    %939 = vmatpush2.xpose.msra.mxu0 0.0
    %940 = vmatprep.subr.mxu0 0.0
    %941 = vmatpush2.xpose.msra.mxu0 0.0
    %942 = vmatprep.subr.mxu0 0.0
    %943 = vmatpush2.xpose.msra.mxu0 0.0
    %944 = vmatprep.subr.mxu0 0.0
    %945 = vmatpush2.xpose.msra.mxu0 0.0
    %946 = vmatprep.subr.mxu0 0.0
    %947 = vmatpush2.xpose.msra.mxu0 0.0
    %948 = vmatprep.subr.mxu0 0.0
    %949 = vmatpush2.xpose.msra.mxu0 0.0
    %950 = vmatprep.subr.mxu0 0.0
    %951 = vmatpush2.xpose.msra.mxu0 0.0
    %952 = vmatprep.subr.mxu0 0.0
    %953 = vmatpush2.xpose.msra.mxu0 0.0
    %954 = vmatprep.subr.mxu0 0.0
    %955 = vmatpush2.xpose.msra.mxu0 0.0
    %956 = vmatprep.mubr.f32.mxu0 0.0
    %957 = vmatmul.mubr.f32.gmra.mxu0 %v888
    %v958 = vpop.f32.mrf.mxu0
    %v959 = vadd.f32 0.0, %v958
    %v960 = vpop.f32.mrf.mxu0
    %961 = vdwg.mxu0
    %962 = vrot.lane.b32.xlu0 %v222, 112
    %v963 = vpop.permute.xlu0 %962
    %964 = vrot.lane.b32.xlu0 %v222, 80
    %v965 = vpop.permute.xlu0 %964
    %v966 = vsel %vm228, %v963, 0
    %v968 = vsel %vm228, %v965, 0
    %970 = vmatprep.subr.mxu0 0.0
    %971 = vmatpush1.xpose.msra.mxu0 0.0
    %972 = vmatprep.subr.mxu0 0.0
    %973 = vmatpush1.xpose.msra.mxu0 0.0
    %974 = vmatprep.subr.mxu0 0.0
    %975 = vmatpush1.xpose.msra.mxu0 0.0
    %976 = vmatprep.subr.mxu0 0.0
    %977 = vmatpush1.xpose.msra.mxu0 0.0
    %978 = vmatprep.subr.mxu0 0.0
    %979 = vmatpush1.xpose.msra.mxu0 0.0
    %980 = vmatprep.subr.mxu0 0.0
    %981 = vmatpush1.xpose.msra.mxu0 0.0
    %982 = vmatprep.subr.mxu0 0.0
    %983 = vmatpush1.xpose.msra.mxu0 0.0
    %984 = vmatprep.subr.mxu0 0.0
    %985 = vmatpush1.xpose.msra.mxu0 0.0
    %986 = vmatprep.subr.mxu0 0.0
    %987 = vmatpush1.xpose.msra.mxu0 0.0
    %988 = vmatprep.subr.mxu0 0.0
    %989 = vmatpush1.xpose.msra.mxu0 0.0
    %990 = vmatprep.subr.mxu0 0.0
    %991 = vmatpush1.xpose.msra.mxu0 0.0
    %992 = vmatprep.subr.mxu0 0.0
    %993 = vmatpush1.xpose.msra.mxu0 0.0
    %994 = vmatprep.subr.mxu0 0.0
    %995 = vmatpush1.xpose.msra.mxu0 0.0
    %996 = vmatprep.subr.mxu0 0.0
    %997 = vmatpush1.xpose.msra.mxu0 0.0
    %998 = vmatprep.subr.mxu0 0.0
    %999 = vmatpush1.xpose.msra.mxu0 0.0
    %1000 = vmatprep.subr.mxu0 0.0
    %1001 = vmatpush1.xpose.msra.mxu0 %v968
    %1002 = vmatprep.subr.mxu0 0.0
    %1003 = vmatpush2.xpose.msra.mxu0 0.0
    %1004 = vmatprep.subr.mxu0 0.0
    %1005 = vmatpush2.xpose.msra.mxu0 0.0
    %1006 = vmatprep.subr.mxu0 0.0
    %1007 = vmatpush2.xpose.msra.mxu0 0.0
    %1008 = vmatprep.subr.mxu0 0.0
    %1009 = vmatpush2.xpose.msra.mxu0 0.0
    %1010 = vmatprep.subr.mxu0 0.0
    %1011 = vmatpush2.xpose.msra.mxu0 0.0
    %1012 = vmatprep.subr.mxu0 0.0
    %1013 = vmatpush2.xpose.msra.mxu0 0.0
    %1014 = vmatprep.subr.mxu0 0.0
    %1015 = vmatpush2.xpose.msra.mxu0 0.0
    %1016 = vmatprep.subr.mxu0 0.0
    %1017 = vmatpush2.xpose.msra.mxu0 0.0
    %1018 = vmatprep.subr.mxu0 0.0
    %1019 = vmatpush2.xpose.msra.mxu0 0.0
    %1020 = vmatprep.subr.mxu0 0.0
    %1021 = vmatpush2.xpose.msra.mxu0 0.0
    %1022 = vmatprep.subr.mxu0 0.0
    %1023 = vmatpush2.xpose.msra.mxu0 0.0
    %1024 = vmatprep.subr.mxu0 0.0
    %1025 = vmatpush2.xpose.msra.mxu0 0.0
    %1026 = vmatprep.subr.mxu0 0.0
    %1027 = vmatpush2.xpose.msra.mxu0 0.0
    %1028 = vmatprep.subr.mxu0 0.0
    %1029 = vmatpush2.xpose.msra.mxu0 0.0
    %1030 = vmatprep.subr.mxu0 0.0
    %1031 = vmatpush2.xpose.msra.mxu0 0.0
    %1032 = vmatprep.subr.mxu0 0.0
    %1033 = vmatpush2.xpose.msra.mxu0 0.0
    %1034 = vmatprep.mubr.f32.mxu0 0.0
    %1035 = vmatmul.mubr.f32.gmra.mxu0 %v966
    %v1036 = vpop.f32.mrf.mxu0
    %v1037 = vadd.f32 0.0, %v1036
    %v1038 = vpop.f32.mrf.mxu0
    %1039 = vdwg.mxu0
    %v1040 = vsel %vm228, %v959, -inf
    %1041 = vmax.xlane.f32.xlu0 %v1040
    %v1042 = vpop.xlane.xlu0 %1041
    %v1043 = vsel %vm228, %v1037, -inf
    %1044 = vmax.xlane.f32.xlu0 %v1043
    %v1045 = vpop.xlane.xlu0 %1044
    %v1046 = vsub.f32 %v959, %v1042
    %v1047 = vsub.f32 %v1037, %v1045
    %v1048 = vmul.f32 %v1046, 1.442695
    %v1049 = vpow.pop %v1048
    %v1050 = vmul.f32 %v1047, 1.442695
    %v1051 = vpow.pop %v1050
    %v1052 = vsel %vm228, %v1049, 0.0
    %1053 = vadd.xlane.f32.xlu0 %v1052
    %v1054 = vpop.xlane.xlu0 %1053
    %v1055 = vsel %vm228, %v1051, 0.0
    %1056 = vadd.xlane.f32.xlu0 %v1055
    %v1057 = vpop.xlane.xlu0 %1056
    %v1058 = vrcp.pop %v1054
    %v1059 = vrcp.pop %v1057
    %v1060 = vmul.f32 %v1049, %v1058
    %v1061 = vmul.f32 %v1051, %v1059
    %1062 = vrot.lane.b32.xlu0 %v217, 48
    %v1063 = vpop.permute.xlu0 %1062
    %v1066 = vsel %vm228, %v1060, 0
    %1068 = vmatprep.subr.mxu0 0.0
    %1069 = vmatpush1.msra.mxu0 0.0
    %1070 = vmatprep.subr.mxu0 0.0
    %1071 = vmatpush1.msra.mxu0 0.0
    %1072 = vmatprep.subr.mxu0 0.0
    %1073 = vmatpush1.msra.mxu0 0.0
    %1074 = vmatprep.subr.mxu0 0.0
    %1075 = vmatpush1.msra.mxu0 0.0
    %1076 = vmatprep.subr.mxu0 0.0
    %1077 = vmatpush1.msra.mxu0 0.0
    %1078 = vmatprep.subr.mxu0 0.0
    %1079 = vmatpush1.msra.mxu0 0.0
    %1080 = vmatprep.subr.mxu0 0.0
    %1081 = vmatpush1.msra.mxu0 0.0
    %1082 = vmatprep.subr.mxu0 0.0
    %1083 = vmatpush1.msra.mxu0 0.0
    %1084 = vmatprep.subr.mxu0 0.0
    %1085 = vmatpush1.msra.mxu0 0.0
    %1086 = vmatprep.subr.mxu0 0.0
    %1087 = vmatpush1.msra.mxu0 0.0
    %1088 = vmatprep.subr.mxu0 0.0
    %1089 = vmatpush1.msra.mxu0 0.0
    %1090 = vmatprep.subr.mxu0 0.0
    %1091 = vmatpush1.msra.mxu0 0.0
    %1092 = vmatprep.subr.mxu0 0.0
    %1093 = vmatpush1.msra.mxu0 0.0
    %1094 = vmatprep.subr.mxu0 0.0
    %1095 = vmatpush1.msra.mxu0 0.0
    %1096 = vmatprep.subr.mxu0 0.0
    %1097 = vmatpush1.msra.mxu0 0.0
    %1098 = vmatprep.subr.mxu0 0.0
    %1099 = vmatpush1.msra.mxu0 %v1063
    %1100 = vmatprep.subr.mxu0 0.0
    %1101 = vmatpush2.msra.mxu0 0.0
    %1102 = vmatprep.subr.mxu0 0.0
    %1103 = vmatpush2.msra.mxu0 0.0
    %1104 = vmatprep.subr.mxu0 0.0
    %1105 = vmatpush2.msra.mxu0 0.0
    %1106 = vmatprep.subr.mxu0 0.0
    %1107 = vmatpush2.msra.mxu0 0.0
    %1108 = vmatprep.subr.mxu0 0.0
    %1109 = vmatpush2.msra.mxu0 0.0
    %1110 = vmatprep.subr.mxu0 0.0
    %1111 = vmatpush2.msra.mxu0 0.0
    %1112 = vmatprep.subr.mxu0 0.0
    %1113 = vmatpush2.msra.mxu0 0.0
    %1114 = vmatprep.subr.mxu0 0.0
    %1115 = vmatpush2.msra.mxu0 0.0
    %1116 = vmatprep.subr.mxu0 0.0
    %1117 = vmatpush2.msra.mxu0 0.0
    %1118 = vmatprep.subr.mxu0 0.0
    %1119 = vmatpush2.msra.mxu0 0.0
    %1120 = vmatprep.subr.mxu0 0.0
    %1121 = vmatpush2.msra.mxu0 0.0
    %1122 = vmatprep.subr.mxu0 0.0
    %1123 = vmatpush2.msra.mxu0 0.0
    %1124 = vmatprep.subr.mxu0 0.0
    %1125 = vmatpush2.msra.mxu0 0.0
    %1126 = vmatprep.subr.mxu0 0.0
    %1127 = vmatpush2.msra.mxu0 0.0
    %1128 = vmatprep.subr.mxu0 0.0
    %1129 = vmatpush2.msra.mxu0 0.0
    %1130 = vmatprep.subr.mxu0 0.0
    %1131 = vmatpush2.msra.mxu0 0.0
    %1132 = vmatprep.mubr.f32.mxu0 0.0
    %1133 = vmatmul.mubr.f32.gmra.mxu0 %v1066
    %v1134 = vpop.f32.mrf.mxu0
    %v1135 = vadd.f32 0.0, %v1134
    %v1136 = vpop.f32.mrf.mxu0
    %1137 = vdwg.mxu0
    %1138 = vrot.lane.b32.xlu0 %v222, 48
    %v1139 = vpop.permute.xlu0 %1138
    %v1142 = vsel %vm228, %v1061, 0
    %1144 = vmatprep.subr.mxu0 0.0
    %1145 = vmatpush1.msra.mxu0 0.0
    %1146 = vmatprep.subr.mxu0 0.0
    %1147 = vmatpush1.msra.mxu0 0.0
    %1148 = vmatprep.subr.mxu0 0.0
    %1149 = vmatpush1.msra.mxu0 0.0
    %1150 = vmatprep.subr.mxu0 0.0
    %1151 = vmatpush1.msra.mxu0 0.0
    %1152 = vmatprep.subr.mxu0 0.0
    %1153 = vmatpush1.msra.mxu0 0.0
    %1154 = vmatprep.subr.mxu0 0.0
    %1155 = vmatpush1.msra.mxu0 0.0
    %1156 = vmatprep.subr.mxu0 0.0
    %1157 = vmatpush1.msra.mxu0 0.0
    %1158 = vmatprep.subr.mxu0 0.0
    %1159 = vmatpush1.msra.mxu0 0.0
    %1160 = vmatprep.subr.mxu0 0.0
    %1161 = vmatpush1.msra.mxu0 0.0
    %1162 = vmatprep.subr.mxu0 0.0
    %1163 = vmatpush1.msra.mxu0 0.0
    %1164 = vmatprep.subr.mxu0 0.0
    %1165 = vmatpush1.msra.mxu0 0.0
    %1166 = vmatprep.subr.mxu0 0.0
    %1167 = vmatpush1.msra.mxu0 0.0
    %1168 = vmatprep.subr.mxu0 0.0
    %1169 = vmatpush1.msra.mxu0 0.0
    %1170 = vmatprep.subr.mxu0 0.0
    %1171 = vmatpush1.msra.mxu0 0.0
    %1172 = vmatprep.subr.mxu0 0.0
    %1173 = vmatpush1.msra.mxu0 0.0
    %1174 = vmatprep.subr.mxu0 0.0
    %1175 = vmatpush1.msra.mxu0 %v1139
    %1176 = vmatprep.subr.mxu0 0.0
    %1177 = vmatpush2.msra.mxu0 0.0
    %1178 = vmatprep.subr.mxu0 0.0
    %1179 = vmatpush2.msra.mxu0 0.0
    %1180 = vmatprep.subr.mxu0 0.0
    %1181 = vmatpush2.msra.mxu0 0.0
    %1182 = vmatprep.subr.mxu0 0.0
    %1183 = vmatpush2.msra.mxu0 0.0
    %1184 = vmatprep.subr.mxu0 0.0
    %1185 = vmatpush2.msra.mxu0 0.0
    %1186 = vmatprep.subr.mxu0 0.0
    %1187 = vmatpush2.msra.mxu0 0.0
    %1188 = vmatprep.subr.mxu0 0.0
    %1189 = vmatpush2.msra.mxu0 0.0
    %1190 = vmatprep.subr.mxu0 0.0
    %1191 = vmatpush2.msra.mxu0 0.0
    %1192 = vmatprep.subr.mxu0 0.0
    %1193 = vmatpush2.msra.mxu0 0.0
    %1194 = vmatprep.subr.mxu0 0.0
    %1195 = vmatpush2.msra.mxu0 0.0
    %1196 = vmatprep.subr.mxu0 0.0
    %1197 = vmatpush2.msra.mxu0 0.0
    %1198 = vmatprep.subr.mxu0 0.0
    %1199 = vmatpush2.msra.mxu0 0.0
    %1200 = vmatprep.subr.mxu0 0.0
    %1201 = vmatpush2.msra.mxu0 0.0
    %1202 = vmatprep.subr.mxu0 0.0
    %1203 = vmatpush2.msra.mxu0 0.0
    %1204 = vmatprep.subr.mxu0 0.0
    %1205 = vmatpush2.msra.mxu0 0.0
    %1206 = vmatprep.subr.mxu0 0.0
    %1207 = vmatpush2.msra.mxu0 0.0
    %1208 = vmatprep.mubr.f32.mxu0 0.0
    %1209 = vmatmul.mubr.f32.gmra.mxu0 %v1142
    %v1210 = vpop.f32.mrf.mxu0
    %v1211 = vadd.f32 0.0, %v1210
    %v1212 = vpop.f32.mrf.mxu0
    %1213 = vdwg.mxu0
    %1214 = vrot.lane.b32.xlu0 %v217, 104
    %v1215 = vpop.permute.xlu0 %1214
    %1216 = vrot.lane.b32.xlu0 %v217, 72
    %v1217 = vpop.permute.xlu0 %1216
    %v1218 = vsel %vm228, %v1215, 0
    %v1220 = vsel %vm228, %v1217, 0
    %1222 = vmatprep.subr.mxu0 0.0
    %1223 = vmatpush1.xpose.msra.mxu0 0.0
    %1224 = vmatprep.subr.mxu0 0.0
    %1225 = vmatpush1.xpose.msra.mxu0 0.0
    %1226 = vmatprep.subr.mxu0 0.0
    %1227 = vmatpush1.xpose.msra.mxu0 0.0
    %1228 = vmatprep.subr.mxu0 0.0
    %1229 = vmatpush1.xpose.msra.mxu0 0.0
    %1230 = vmatprep.subr.mxu0 0.0
    %1231 = vmatpush1.xpose.msra.mxu0 0.0
    %1232 = vmatprep.subr.mxu0 0.0
    %1233 = vmatpush1.xpose.msra.mxu0 0.0
    %1234 = vmatprep.subr.mxu0 0.0
    %1235 = vmatpush1.xpose.msra.mxu0 0.0
    %1236 = vmatprep.subr.mxu0 0.0
    %1237 = vmatpush1.xpose.msra.mxu0 0.0
    %1238 = vmatprep.subr.mxu0 0.0
    %1239 = vmatpush1.xpose.msra.mxu0 0.0
    %1240 = vmatprep.subr.mxu0 0.0
    %1241 = vmatpush1.xpose.msra.mxu0 0.0
    %1242 = vmatprep.subr.mxu0 0.0
    %1243 = vmatpush1.xpose.msra.mxu0 0.0
    %1244 = vmatprep.subr.mxu0 0.0
    %1245 = vmatpush1.xpose.msra.mxu0 0.0
    %1246 = vmatprep.subr.mxu0 0.0
    %1247 = vmatpush1.xpose.msra.mxu0 0.0
    %1248 = vmatprep.subr.mxu0 0.0
    %1249 = vmatpush1.xpose.msra.mxu0 0.0
    %1250 = vmatprep.subr.mxu0 0.0
    %1251 = vmatpush1.xpose.msra.mxu0 0.0
    %1252 = vmatprep.subr.mxu0 0.0
    %1253 = vmatpush1.xpose.msra.mxu0 %v1220
    %1254 = vmatprep.subr.mxu0 0.0
    %1255 = vmatpush2.xpose.msra.mxu0 0.0
    %1256 = vmatprep.subr.mxu0 0.0
    %1257 = vmatpush2.xpose.msra.mxu0 0.0
    %1258 = vmatprep.subr.mxu0 0.0
    %1259 = vmatpush2.xpose.msra.mxu0 0.0
    %1260 = vmatprep.subr.mxu0 0.0
    %1261 = vmatpush2.xpose.msra.mxu0 0.0
    %1262 = vmatprep.subr.mxu0 0.0
    %1263 = vmatpush2.xpose.msra.mxu0 0.0
    %1264 = vmatprep.subr.mxu0 0.0
    %1265 = vmatpush2.xpose.msra.mxu0 0.0
    %1266 = vmatprep.subr.mxu0 0.0
    %1267 = vmatpush2.xpose.msra.mxu0 0.0
    %1268 = vmatprep.subr.mxu0 0.0
    %1269 = vmatpush2.xpose.msra.mxu0 0.0
    %1270 = vmatprep.subr.mxu0 0.0
    %1271 = vmatpush2.xpose.msra.mxu0 0.0
    %1272 = vmatprep.subr.mxu0 0.0
    %1273 = vmatpush2.xpose.msra.mxu0 0.0
    %1274 = vmatprep.subr.mxu0 0.0
    %1275 = vmatpush2.xpose.msra.mxu0 0.0
    %1276 = vmatprep.subr.mxu0 0.0
    %1277 = vmatpush2.xpose.msra.mxu0 0.0
    %1278 = vmatprep.subr.mxu0 0.0
    %1279 = vmatpush2.xpose.msra.mxu0 0.0
    %1280 = vmatprep.subr.mxu0 0.0
    %1281 = vmatpush2.xpose.msra.mxu0 0.0
    %1282 = vmatprep.subr.mxu0 0.0
    %1283 = vmatpush2.xpose.msra.mxu0 0.0
    %1284 = vmatprep.subr.mxu0 0.0
    %1285 = vmatpush2.xpose.msra.mxu0 0.0
    %1286 = vmatprep.mubr.f32.mxu0 0.0
    %1287 = vmatmul.mubr.f32.gmra.mxu0 %v1218
    %v1288 = vpop.f32.mrf.mxu0
    %v1289 = vadd.f32 0.0, %v1288
    %v1290 = vpop.f32.mrf.mxu0
    %1291 = vdwg.mxu0
    %1292 = vrot.lane.b32.xlu0 %v222, 104
    %v1293 = vpop.permute.xlu0 %1292
    %1294 = vrot.lane.b32.xlu0 %v222, 72
    %v1295 = vpop.permute.xlu0 %1294
    %v1296 = vsel %vm228, %v1293, 0
    %v1298 = vsel %vm228, %v1295, 0
    %1300 = vmatprep.subr.mxu0 0.0
    %1301 = vmatpush1.xpose.msra.mxu0 0.0
    %1302 = vmatprep.subr.mxu0 0.0
    %1303 = vmatpush1.xpose.msra.mxu0 0.0
    %1304 = vmatprep.subr.mxu0 0.0
    %1305 = vmatpush1.xpose.msra.mxu0 0.0
    %1306 = vmatprep.subr.mxu0 0.0
    %1307 = vmatpush1.xpose.msra.mxu0 0.0
    %1308 = vmatprep.subr.mxu0 0.0
    %1309 = vmatpush1.xpose.msra.mxu0 0.0
    %1310 = vmatprep.subr.mxu0 0.0
    %1311 = vmatpush1.xpose.msra.mxu0 0.0
    %1312 = vmatprep.subr.mxu0 0.0
    %1313 = vmatpush1.xpose.msra.mxu0 0.0
    %1314 = vmatprep.subr.mxu0 0.0
    %1315 = vmatpush1.xpose.msra.mxu0 0.0
    %1316 = vmatprep.subr.mxu0 0.0
    %1317 = vmatpush1.xpose.msra.mxu0 0.0
    %1318 = vmatprep.subr.mxu0 0.0
    %1319 = vmatpush1.xpose.msra.mxu0 0.0
    %1320 = vmatprep.subr.mxu0 0.0
    %1321 = vmatpush1.xpose.msra.mxu0 0.0
    %1322 = vmatprep.subr.mxu0 0.0
    %1323 = vmatpush1.xpose.msra.mxu0 0.0
    %1324 = vmatprep.subr.mxu0 0.0
    %1325 = vmatpush1.xpose.msra.mxu0 0.0
    %1326 = vmatprep.subr.mxu0 0.0
    %1327 = vmatpush1.xpose.msra.mxu0 0.0
    %1328 = vmatprep.subr.mxu0 0.0
    %1329 = vmatpush1.xpose.msra.mxu0 0.0
    %1330 = vmatprep.subr.mxu0 0.0
    %1331 = vmatpush1.xpose.msra.mxu0 %v1298
    %1332 = vmatprep.subr.mxu0 0.0
    %1333 = vmatpush2.xpose.msra.mxu0 0.0
    %1334 = vmatprep.subr.mxu0 0.0
    %1335 = vmatpush2.xpose.msra.mxu0 0.0
    %1336 = vmatprep.subr.mxu0 0.0
    %1337 = vmatpush2.xpose.msra.mxu0 0.0
    %1338 = vmatprep.subr.mxu0 0.0
    %1339 = vmatpush2.xpose.msra.mxu0 0.0
    %1340 = vmatprep.subr.mxu0 0.0
    %1341 = vmatpush2.xpose.msra.mxu0 0.0
    %1342 = vmatprep.subr.mxu0 0.0
    %1343 = vmatpush2.xpose.msra.mxu0 0.0
    %1344 = vmatprep.subr.mxu0 0.0
    %1345 = vmatpush2.xpose.msra.mxu0 0.0
    %1346 = vmatprep.subr.mxu0 0.0
    %1347 = vmatpush2.xpose.msra.mxu0 0.0
    %1348 = vmatprep.subr.mxu0 0.0
    %1349 = vmatpush2.xpose.msra.mxu0 0.0
    %1350 = vmatprep.subr.mxu0 0.0
    %1351 = vmatpush2.xpose.msra.mxu0 0.0
    %1352 = vmatprep.subr.mxu0 0.0
    %1353 = vmatpush2.xpose.msra.mxu0 0.0
    %1354 = vmatprep.subr.mxu0 0.0
    %1355 = vmatpush2.xpose.msra.mxu0 0.0
    %1356 = vmatprep.subr.mxu0 0.0
    %1357 = vmatpush2.xpose.msra.mxu0 0.0
    %1358 = vmatprep.subr.mxu0 0.0
    %1359 = vmatpush2.xpose.msra.mxu0 0.0
    %1360 = vmatprep.subr.mxu0 0.0
    %1361 = vmatpush2.xpose.msra.mxu0 0.0
    %1362 = vmatprep.subr.mxu0 0.0
    %1363 = vmatpush2.xpose.msra.mxu0 0.0
    %1364 = vmatprep.mubr.f32.mxu0 0.0
    %1365 = vmatmul.mubr.f32.gmra.mxu0 %v1296
    %v1366 = vpop.f32.mrf.mxu0
    %v1367 = vadd.f32 0.0, %v1366
    %v1368 = vpop.f32.mrf.mxu0
    %1369 = vdwg.mxu0
    %v1370 = vsel %vm228, %v1289, -inf
    %1371 = vmax.xlane.f32.xlu0 %v1370
    %v1372 = vpop.xlane.xlu0 %1371
    %v1373 = vsel %vm228, %v1367, -inf
    %1374 = vmax.xlane.f32.xlu0 %v1373
    %v1375 = vpop.xlane.xlu0 %1374
    %v1376 = vsub.f32 %v1289, %v1372
    %v1377 = vsub.f32 %v1367, %v1375
    %v1378 = vmul.f32 %v1376, 1.442695
    %v1379 = vpow.pop %v1378
    %v1380 = vmul.f32 %v1377, 1.442695
    %v1381 = vpow.pop %v1380
    %v1382 = vsel %vm228, %v1379, 0.0
    %1383 = vadd.xlane.f32.xlu0 %v1382
    %v1384 = vpop.xlane.xlu0 %1383
    %v1385 = vsel %vm228, %v1381, 0.0
    %1386 = vadd.xlane.f32.xlu0 %v1385
    %v1387 = vpop.xlane.xlu0 %1386
    %v1388 = vrcp.pop %v1384
    %v1389 = vrcp.pop %v1387
    %v1390 = vmul.f32 %v1379, %v1388
    %v1391 = vmul.f32 %v1381, %v1389
    %1392 = vrot.lane.b32.xlu0 %v217, 40
    %v1393 = vpop.permute.xlu0 %1392
    %v1396 = vsel %vm228, %v1390, 0
    %1398 = vmatprep.subr.mxu0 0.0
    %1399 = vmatpush1.msra.mxu0 0.0
    %1400 = vmatprep.subr.mxu0 0.0
    %1401 = vmatpush1.msra.mxu0 0.0
    %1402 = vmatprep.subr.mxu0 0.0
    %1403 = vmatpush1.msra.mxu0 0.0
    %1404 = vmatprep.subr.mxu0 0.0
    %1405 = vmatpush1.msra.mxu0 0.0
    %1406 = vmatprep.subr.mxu0 0.0
    %1407 = vmatpush1.msra.mxu0 0.0
    %1408 = vmatprep.subr.mxu0 0.0
    %1409 = vmatpush1.msra.mxu0 0.0
    %1410 = vmatprep.subr.mxu0 0.0
    %1411 = vmatpush1.msra.mxu0 0.0
    %1412 = vmatprep.subr.mxu0 0.0
    %1413 = vmatpush1.msra.mxu0 0.0
    %1414 = vmatprep.subr.mxu0 0.0
    %1415 = vmatpush1.msra.mxu0 0.0
    %1416 = vmatprep.subr.mxu0 0.0
    %1417 = vmatpush1.msra.mxu0 0.0
    %1418 = vmatprep.subr.mxu0 0.0
    %1419 = vmatpush1.msra.mxu0 0.0
    %1420 = vmatprep.subr.mxu0 0.0
    %1421 = vmatpush1.msra.mxu0 0.0
    %1422 = vmatprep.subr.mxu0 0.0
    %1423 = vmatpush1.msra.mxu0 0.0
    %1424 = vmatprep.subr.mxu0 0.0
    %1425 = vmatpush1.msra.mxu0 0.0
    %1426 = vmatprep.subr.mxu0 0.0
    %1427 = vmatpush1.msra.mxu0 0.0
    %1428 = vmatprep.subr.mxu0 0.0
    %1429 = vmatpush1.msra.mxu0 %v1393
    %1430 = vmatprep.subr.mxu0 0.0
    %1431 = vmatpush2.msra.mxu0 0.0
    %1432 = vmatprep.subr.mxu0 0.0
    %1433 = vmatpush2.msra.mxu0 0.0
    %1434 = vmatprep.subr.mxu0 0.0
    %1435 = vmatpush2.msra.mxu0 0.0
    %1436 = vmatprep.subr.mxu0 0.0
    %1437 = vmatpush2.msra.mxu0 0.0
    %1438 = vmatprep.subr.mxu0 0.0
    %1439 = vmatpush2.msra.mxu0 0.0
    %1440 = vmatprep.subr.mxu0 0.0
    %1441 = vmatpush2.msra.mxu0 0.0
    %1442 = vmatprep.subr.mxu0 0.0
    %1443 = vmatpush2.msra.mxu0 0.0
    %1444 = vmatprep.subr.mxu0 0.0
    %1445 = vmatpush2.msra.mxu0 0.0
    %1446 = vmatprep.subr.mxu0 0.0
    %1447 = vmatpush2.msra.mxu0 0.0
    %1448 = vmatprep.subr.mxu0 0.0
    %1449 = vmatpush2.msra.mxu0 0.0
    %1450 = vmatprep.subr.mxu0 0.0
    %1451 = vmatpush2.msra.mxu0 0.0
    %1452 = vmatprep.subr.mxu0 0.0
    %1453 = vmatpush2.msra.mxu0 0.0
    %1454 = vmatprep.subr.mxu0 0.0
    %1455 = vmatpush2.msra.mxu0 0.0
    %1456 = vmatprep.subr.mxu0 0.0
    %1457 = vmatpush2.msra.mxu0 0.0
    %1458 = vmatprep.subr.mxu0 0.0
    %1459 = vmatpush2.msra.mxu0 0.0
    %1460 = vmatprep.subr.mxu0 0.0
    %1461 = vmatpush2.msra.mxu0 0.0
    %1462 = vmatprep.mubr.f32.mxu0 0.0
    %1463 = vmatmul.mubr.f32.gmra.mxu0 %v1396
    %v1464 = vpop.f32.mrf.mxu0
    %v1465 = vadd.f32 0.0, %v1464
    %v1466 = vpop.f32.mrf.mxu0
    %1467 = vdwg.mxu0
    %1468 = vrot.lane.b32.xlu0 %v222, 40
    %v1469 = vpop.permute.xlu0 %1468
    %v1472 = vsel %vm228, %v1391, 0
    %1474 = vmatprep.subr.mxu0 0.0
    %1475 = vmatpush1.msra.mxu0 0.0
    %1476 = vmatprep.subr.mxu0 0.0
    %1477 = vmatpush1.msra.mxu0 0.0
    %1478 = vmatprep.subr.mxu0 0.0
    %1479 = vmatpush1.msra.mxu0 0.0
    %1480 = vmatprep.subr.mxu0 0.0
    %1481 = vmatpush1.msra.mxu0 0.0
    %1482 = vmatprep.subr.mxu0 0.0
    %1483 = vmatpush1.msra.mxu0 0.0
    %1484 = vmatprep.subr.mxu0 0.0
    %1485 = vmatpush1.msra.mxu0 0.0
    %1486 = vmatprep.subr.mxu0 0.0
    %1487 = vmatpush1.msra.mxu0 0.0
    %1488 = vmatprep.subr.mxu0 0.0
    %1489 = vmatpush1.msra.mxu0 0.0
    %1490 = vmatprep.subr.mxu0 0.0
    %1491 = vmatpush1.msra.mxu0 0.0
    %1492 = vmatprep.subr.mxu0 0.0
    %1493 = vmatpush1.msra.mxu0 0.0
    %1494 = vmatprep.subr.mxu0 0.0
    %1495 = vmatpush1.msra.mxu0 0.0
    %1496 = vmatprep.subr.mxu0 0.0
    %1497 = vmatpush1.msra.mxu0 0.0
    %1498 = vmatprep.subr.mxu0 0.0
    %1499 = vmatpush1.msra.mxu0 0.0
    %1500 = vmatprep.subr.mxu0 0.0
    %1501 = vmatpush1.msra.mxu0 0.0
    %1502 = vmatprep.subr.mxu0 0.0
    %1503 = vmatpush1.msra.mxu0 0.0
    %1504 = vmatprep.subr.mxu0 0.0
    %1505 = vmatpush1.msra.mxu0 %v1469
    %1506 = vmatprep.subr.mxu0 0.0
    %1507 = vmatpush2.msra.mxu0 0.0
    %1508 = vmatprep.subr.mxu0 0.0
    %1509 = vmatpush2.msra.mxu0 0.0
    %1510 = vmatprep.subr.mxu0 0.0
    %1511 = vmatpush2.msra.mxu0 0.0
    %1512 = vmatprep.subr.mxu0 0.0
    %1513 = vmatpush2.msra.mxu0 0.0
    %1514 = vmatprep.subr.mxu0 0.0
    %1515 = vmatpush2.msra.mxu0 0.0
    %1516 = vmatprep.subr.mxu0 0.0
    %1517 = vmatpush2.msra.mxu0 0.0
    %1518 = vmatprep.subr.mxu0 0.0
    %1519 = vmatpush2.msra.mxu0 0.0
    %1520 = vmatprep.subr.mxu0 0.0
    %1521 = vmatpush2.msra.mxu0 0.0
    %1522 = vmatprep.subr.mxu0 0.0
    %1523 = vmatpush2.msra.mxu0 0.0
    %1524 = vmatprep.subr.mxu0 0.0
    %1525 = vmatpush2.msra.mxu0 0.0
    %1526 = vmatprep.subr.mxu0 0.0
    %1527 = vmatpush2.msra.mxu0 0.0
    %1528 = vmatprep.subr.mxu0 0.0
    %1529 = vmatpush2.msra.mxu0 0.0
    %1530 = vmatprep.subr.mxu0 0.0
    %1531 = vmatpush2.msra.mxu0 0.0
    %1532 = vmatprep.subr.mxu0 0.0
    %1533 = vmatpush2.msra.mxu0 0.0
    %1534 = vmatprep.subr.mxu0 0.0
    %1535 = vmatpush2.msra.mxu0 0.0
    %1536 = vmatprep.subr.mxu0 0.0
    %1537 = vmatpush2.msra.mxu0 0.0
    %1538 = vmatprep.mubr.f32.mxu0 0.0
    %1539 = vmatmul.mubr.f32.gmra.mxu0 %v1472
    %v1540 = vpop.f32.mrf.mxu0
    %v1541 = vadd.f32 0.0, %v1540
    %v1542 = vpop.f32.mrf.mxu0
    %1543 = vdwg.mxu0
    %1546 = vrot.lane.b32.xlu0 %v805, 8
    %v1547 = vpop.permute.xlu0 %1546
    %1548 = vrot.lane.b32.xlu0 %v881, 8
    %v1549 = vpop.permute.xlu0 %1548
    %1554 = vrot.lane.b32.xlu0 %v1135, 16
    %v1555 = vpop.permute.xlu0 %1554
    %1556 = vrot.lane.b32.xlu0 %v1211, 16
    %v1557 = vpop.permute.xlu0 %1556
    %1562 = vrot.lane.b32.xlu0 %v1465, 24
    %v1563 = vpop.permute.xlu0 %1562
    %1564 = vrot.lane.b32.xlu0 %v1541, 24
    %v1565 = vpop.permute.xlu0 %1564
    %v1568 = vsel %vm228, %v475, %v1547
    %v1569 = vsel %vm228, %v551, %v1549
    %vm1570 = vcmask 130048
    %v1571 = vsel %vm1570, %v1568, %v1555
    %v1572 = vsel %vm1570, %v1569, %v1557
    %vm1573 = vcmask 195584
    %v1574 = vsel %vm1573, %v1571, %v1563
    %v1575 = vsel %vm1573, %v1572, %v1565
    %v1576 = vld [vmem:[%s2] sm:$0xff]
    %v1577 = vld [vmem:[%s2 + $0x8] sm:$0xff]
    %v1578 = vld [vmem:[%s2 + $0x10] sm:$0xff]
    %v1579 = vld [vmem:[%s2 + $0x18] sm:$0xff]
    %v1581 = vsel %vm96, %v1574, 0
    %v1584 = vsel %vm96, %v1575, 0
    %1586 = vmatprep.subr.mxu0 0.0
    %1587 = vmatpush1.msra.mxu0 0.0
    %1588 = vmatprep.subr.mxu0 0.0
    %1589 = vmatpush1.msra.mxu0 0.0
    %1590 = vmatprep.subr.mxu0 0.0
    %1591 = vmatpush1.msra.mxu0 0.0
    %1592 = vmatprep.subr.mxu0 0.0
    %1593 = vmatpush1.msra.mxu0 0.0
    %1594 = vmatprep.subr.mxu0 0.0
    %1595 = vmatpush1.msra.mxu0 0.0
    %1596 = vmatprep.subr.mxu0 0.0
    %1597 = vmatpush1.msra.mxu0 0.0
    %1598 = vmatprep.subr.mxu0 0.0
    %1599 = vmatpush1.msra.mxu0 0.0
    %1600 = vmatprep.subr.mxu0 0.0
    %1601 = vmatpush1.msra.mxu0 0.0
    %1602 = vmatprep.subr.mxu0 0.0
    %1603 = vmatpush1.msra.mxu0 0.0
    %1604 = vmatprep.subr.mxu0 0.0
    %1605 = vmatpush1.msra.mxu0 0.0
    %1606 = vmatprep.subr.mxu0 0.0
    %1607 = vmatpush1.msra.mxu0 0.0
    %1608 = vmatprep.subr.mxu0 0.0
    %1609 = vmatpush1.msra.mxu0 0.0
    %1610 = vmatprep.subr.mxu0 0.0
    %1611 = vmatpush1.msra.mxu0 %v1579
    %1612 = vmatprep.subr.mxu0 0.0
    %1613 = vmatpush1.msra.mxu0 %v1578
    %1614 = vmatprep.subr.mxu0 0.0
    %1615 = vmatpush1.msra.mxu0 %v1577
    %1616 = vmatprep.subr.mxu0 0.0
    %1617 = vmatpush1.msra.mxu0 %v1576
    %1618 = vmatprep.subr.mxu0 0.0
    %1619 = vmatpush2.msra.mxu0 0.0
    %1620 = vmatprep.subr.mxu0 0.0
    %1621 = vmatpush2.msra.mxu0 0.0
    %1622 = vmatprep.subr.mxu0 0.0
    %1623 = vmatpush2.msra.mxu0 0.0
    %1624 = vmatprep.subr.mxu0 0.0
    %1625 = vmatpush2.msra.mxu0 0.0
    %1626 = vmatprep.subr.mxu0 0.0
    %1627 = vmatpush2.msra.mxu0 0.0
    %1628 = vmatprep.subr.mxu0 0.0
    %1629 = vmatpush2.msra.mxu0 0.0
    %1630 = vmatprep.subr.mxu0 0.0
    %1631 = vmatpush2.msra.mxu0 0.0
    %1632 = vmatprep.subr.mxu0 0.0
    %1633 = vmatpush2.msra.mxu0 0.0
    %1634 = vmatprep.subr.mxu0 0.0
    %1635 = vmatpush2.msra.mxu0 0.0
    %1636 = vmatprep.subr.mxu0 0.0
    %1637 = vmatpush2.msra.mxu0 0.0
    %1638 = vmatprep.subr.mxu0 0.0
    %1639 = vmatpush2.msra.mxu0 0.0
    %1640 = vmatprep.subr.mxu0 0.0
    %1641 = vmatpush2.msra.mxu0 0.0
    %1642 = vmatprep.subr.mxu0 0.0
    %1643 = vmatpush2.msra.mxu0 0.0
    %1644 = vmatprep.subr.mxu0 0.0
    %1645 = vmatpush2.msra.mxu0 0.0
    %1646 = vmatprep.subr.mxu0 0.0
    %1647 = vmatpush2.msra.mxu0 0.0
    %1648 = vmatprep.subr.mxu0 0.0
    %1649 = vmatpush2.msra.mxu0 0.0
    %1650 = vmatprep.mubr.f32.mxu0 0.0
    %1651 = vmatmul.mubr.f32.gmra.mxu0 %v1581
    %v1652 = vpop.f32.mrf.mxu0
    %v1653 = vadd.f32 0.0, %v1652
    %v1654 = vpop.f32.mrf.mxu0
    %1655 = vmatprep.mubr.f32.mxu0 0.0
    %1656 = vmatmul.mubr.f32.gmra.mxu0 %v1584
    %v1657 = vpop.f32.mrf.mxu0
    %v1658 = vadd.f32 0.0, %v1657
    %v1659 = vpop.f32.mrf.mxu0
    %1660 = vdwg.mxu0
    %v1661 = vadd.f32 %v92, %v1653
    %v1662 = vadd.f32 %v93, %v1658
    %v1663 = vld [vmem:[%s3] sm:$0x1]
    %v1665 = vlaneseq
    %v1666 = vshrl.u32 %v1665, 7
    %v1667 = vsub.s32 0, %v1666
    %v1668 = vrot.slane %v1663, %v1667
    %v1670 = vadd.f32 %v1661, %v1668
    %v1671 = vadd.f32 %v1662, %v1668
    %v1672 = vld [vmem:[%s6] sm:$0x1]
    %v1673 = vld [vmem:[#allocation7] sm:$0x1]
    %v1674 = vsel %vm96, %v1670, 0.0
    %1675 = vadd.xlane.f32.xlu0 %v1674
    %v1676 = vpop.xlane.xlu0 %1675
    %v1677 = vsel %vm96, %v1671, 0.0
    %1678 = vadd.xlane.f32.xlu0 %v1677
    %v1679 = vpop.xlane.xlu0 %1678
    %v1680 = vmul.f32 %v1676, %v103
    %v1681 = vmul.f32 %v1679, %v103
    %v1682 = vsub.f32 %v1670, %v1680
    %v1683 = vsub.f32 %v1671, %v1681
    %v1684 = vmul.f32 %v1682, %v1682
    %v1685 = vmul.f32 %v1683, %v1683
    %v1686 = vsel %vm96, %v1684, 0.0
    %1687 = vadd.xlane.f32.xlu0 %v1686
    %v1688 = vpop.xlane.xlu0 %1687
    %v1689 = vsel %vm96, %v1685, 0.0
    %1690 = vadd.xlane.f32.xlu0 %v1689
    %v1691 = vpop.xlane.xlu0 %1690
    %v1692 = vmul.f32 %v1688, %v103
    %v1693 = vmul.f32 %v1691, %v103
    %v1694 = vadd.f32 %v1692, 1e-05
    %v1695 = vadd.f32 %v1693, 1e-05
    %v1696 = vrsqrt.pop %v1694
    %v1697 = vrsqrt.pop %v1695
    %v1698 = vmul.f32 %v1682, %v1696
    %v1699 = vmul.f32 %v1683, %v1697
    %v1701 = vlaneseq
    %v1702 = vshrl.u32 %v1701, 7
    %v1703 = vsub.s32 0, %v1702
    %v1704 = vrot.slane %v1672, %v1703
    %v1706 = vmul.f32 %v1698, %v1704
    %v1707 = vmul.f32 %v1699, %v1704
    %v1709 = vlaneseq
    %v1710 = vshrl.u32 %v1709, 7
    %v1711 = vsub.s32 0, %v1710
    %v1712 = vrot.slane %v1673, %v1711
    %v1714 = vadd.f32 %v1706, %v1712
    %v1715 = vadd.f32 %v1707, %v1712
    %v1716 = vld [vmem:[%s8] sm:$0xff]
    %v1717 = vld [vmem:[%s8 + $0x8] sm:$0xff]
    %v1718 = vld [vmem:[%s8 + $0x10] sm:$0xff]
    %v1719 = vld [vmem:[%s8 + $0x18] sm:$0xff]
    %v1720 = vld [vmem:[%s9] sm:$0x1]
    %v1722 = vlaneseq
    %v1723 = vshrl.u32 %v1722, 7
    %v1724 = vsub.s32 0, %v1723
    %v1725 = vrot.slane %v1720, %v1724
    %v1728 = vsel %vm96, %v1714, 0
    %v1731 = vsel %vm96, %v1715, 0
    %1733 = vmatprep.subr.mxu0 0.0
    %1734 = vmatpush1.msra.mxu0 0.0
    %1735 = vmatprep.subr.mxu0 0.0
    %1736 = vmatpush1.msra.mxu0 0.0
    %1737 = vmatprep.subr.mxu0 0.0
    %1738 = vmatpush1.msra.mxu0 0.0
    %1739 = vmatprep.subr.mxu0 0.0
    %1740 = vmatpush1.msra.mxu0 0.0
    %1741 = vmatprep.subr.mxu0 0.0
    %1742 = vmatpush1.msra.mxu0 0.0
    %1743 = vmatprep.subr.mxu0 0.0
    %1744 = vmatpush1.msra.mxu0 0.0
    %1745 = vmatprep.subr.mxu0 0.0
    %1746 = vmatpush1.msra.mxu0 0.0
    %1747 = vmatprep.subr.mxu0 0.0
    %1748 = vmatpush1.msra.mxu0 0.0
    %1749 = vmatprep.subr.mxu0 0.0
    %1750 = vmatpush1.msra.mxu0 0.0
    %1751 = vmatprep.subr.mxu0 0.0
    %1752 = vmatpush1.msra.mxu0 0.0
    %1753 = vmatprep.subr.mxu0 0.0
    %1754 = vmatpush1.msra.mxu0 0.0
    %1755 = vmatprep.subr.mxu0 0.0
    %1756 = vmatpush1.msra.mxu0 0.0
    %1757 = vmatprep.subr.mxu0 0.0
    %1758 = vmatpush1.msra.mxu0 %v1719
    %1759 = vmatprep.subr.mxu0 0.0
    %1760 = vmatpush1.msra.mxu0 %v1718
    %1761 = vmatprep.subr.mxu0 0.0
    %1762 = vmatpush1.msra.mxu0 %v1717
    %1763 = vmatprep.subr.mxu0 0.0
    %1764 = vmatpush1.msra.mxu0 %v1716
    %1765 = vmatprep.subr.mxu0 0.0
    %1766 = vmatpush2.msra.mxu0 0.0
    %1767 = vmatprep.subr.mxu0 0.0
    %1768 = vmatpush2.msra.mxu0 0.0
    %1769 = vmatprep.subr.mxu0 0.0
    %1770 = vmatpush2.msra.mxu0 0.0
    %1771 = vmatprep.subr.mxu0 0.0
    %1772 = vmatpush2.msra.mxu0 0.0
    %1773 = vmatprep.subr.mxu0 0.0
    %1774 = vmatpush2.msra.mxu0 0.0
    %1775 = vmatprep.subr.mxu0 0.0
    %1776 = vmatpush2.msra.mxu0 0.0
    %1777 = vmatprep.subr.mxu0 0.0
    %1778 = vmatpush2.msra.mxu0 0.0
    %1779 = vmatprep.subr.mxu0 0.0
    %1780 = vmatpush2.msra.mxu0 0.0
    %1781 = vmatprep.subr.mxu0 0.0
    %1782 = vmatpush2.msra.mxu0 0.0
    %1783 = vmatprep.subr.mxu0 0.0
    %1784 = vmatpush2.msra.mxu0 0.0
    %1785 = vmatprep.subr.mxu0 0.0
    %1786 = vmatpush2.msra.mxu0 0.0
    %1787 = vmatprep.subr.mxu0 0.0
    %1788 = vmatpush2.msra.mxu0 0.0
    %1789 = vmatprep.subr.mxu0 0.0
    %1790 = vmatpush2.msra.mxu0 0.0
    %1791 = vmatprep.subr.mxu0 0.0
    %1792 = vmatpush2.msra.mxu0 0.0
    %1793 = vmatprep.subr.mxu0 0.0
    %1794 = vmatpush2.msra.mxu0 0.0
    %1795 = vmatprep.subr.mxu0 0.0
    %1796 = vmatpush2.msra.mxu0 0.0
    %1797 = vmatprep.mubr.f32.mxu0 0.0
    %1798 = vmatmul.mubr.f32.gmra.mxu0 %v1728
    %v1799 = vpop.f32.mrf.mxu0
    %v1800 = vadd.f32 %v1725, %v1799
    %v1801 = vpop.f32.mrf.mxu0
    %1802 = vmatprep.mubr.f32.mxu0 0.0
    %1803 = vmatmul.mubr.f32.gmra.mxu0 %v1731
    %v1804 = vpop.f32.mrf.mxu0
    %v1805 = vadd.f32 %v1725, %v1804
    %v1806 = vpop.f32.mrf.mxu0
    %1807 = vdwg.mxu0
    %v1808 = vmul.f32 %v1800, 0.5
    %v1809 = vmul.f32 %v1805, 0.5
    %v1810 = vmul.f32 %v1800, 0.70710677
    %v1811 = vmul.f32 %v1805, 0.70710677
    %v1812 = verf.f32.pop %v1810
    %v1813 = verf.f32.pop %v1811
    %v1814 = vadd.f32 %v1812, 1.0
    %v1815 = vadd.f32 %v1813, 1.0
    %v1816 = vmul.f32 %v1808, %v1814
    %v1817 = vmul.f32 %v1809, %v1815
    %v1818 = vld [vmem:[%s10] sm:$0xff]
    %v1819 = vld [vmem:[%s10 + $0x8] sm:$0xff]
    %v1820 = vld [vmem:[%s10 + $0x10] sm:$0xff]
    %v1821 = vld [vmem:[%s10 + $0x18] sm:$0xff]
    %v1822 = vld [vmem:[%s10 + $0x20] sm:$0xff]
    %v1823 = vld [vmem:[%s10 + $0x28] sm:$0xff]
    %v1824 = vld [vmem:[%s10 + $0x30] sm:$0xff]
    %v1825 = vld [vmem:[%s10 + $0x38] sm:$0xff]
    %vm1826 = vcmask 523264
    %v1828 = vsel %vm1826, %v1816, 0
    %v1831 = vsel %vm1826, %v1817, 0
    %1833 = vmatprep.subr.mxu0 0.0
    %1834 = vmatpush1.msra.mxu0 0.0
    %1835 = vmatprep.subr.mxu0 0.0
    %1836 = vmatpush1.msra.mxu0 0.0
    %1837 = vmatprep.subr.mxu0 0.0
    %1838 = vmatpush1.msra.mxu0 0.0
    %1839 = vmatprep.subr.mxu0 0.0
    %1840 = vmatpush1.msra.mxu0 0.0
    %1841 = vmatprep.subr.mxu0 0.0
    %1842 = vmatpush1.msra.mxu0 0.0
    %1843 = vmatprep.subr.mxu0 0.0
    %1844 = vmatpush1.msra.mxu0 0.0
    %1845 = vmatprep.subr.mxu0 0.0
    %1846 = vmatpush1.msra.mxu0 0.0
    %1847 = vmatprep.subr.mxu0 0.0
    %1848 = vmatpush1.msra.mxu0 0.0
    %1849 = vmatprep.subr.mxu0 0.0
    %1850 = vmatpush1.msra.mxu0 %v1825
    %1851 = vmatprep.subr.mxu0 0.0
    %1852 = vmatpush1.msra.mxu0 %v1824
    %1853 = vmatprep.subr.mxu0 0.0
    %1854 = vmatpush1.msra.mxu0 %v1823
    %1855 = vmatprep.subr.mxu0 0.0
    %1856 = vmatpush1.msra.mxu0 %v1822
    %1857 = vmatprep.subr.mxu0 0.0
    %1858 = vmatpush1.msra.mxu0 %v1821
    %1859 = vmatprep.subr.mxu0 0.0
    %1860 = vmatpush1.msra.mxu0 %v1820
    %1861 = vmatprep.subr.mxu0 0.0
    %1862 = vmatpush1.msra.mxu0 %v1819
    %1863 = vmatprep.subr.mxu0 0.0
    %1864 = vmatpush1.msra.mxu0 %v1818
    %1865 = vmatprep.subr.mxu0 0.0
    %1866 = vmatpush2.msra.mxu0 0.0
    %1867 = vmatprep.subr.mxu0 0.0
    %1868 = vmatpush2.msra.mxu0 0.0
    %1869 = vmatprep.subr.mxu0 0.0
    %1870 = vmatpush2.msra.mxu0 0.0
    %1871 = vmatprep.subr.mxu0 0.0
    %1872 = vmatpush2.msra.mxu0 0.0
    %1873 = vmatprep.subr.mxu0 0.0
    %1874 = vmatpush2.msra.mxu0 0.0
    %1875 = vmatprep.subr.mxu0 0.0
    %1876 = vmatpush2.msra.mxu0 0.0
    %1877 = vmatprep.subr.mxu0 0.0
    %1878 = vmatpush2.msra.mxu0 0.0
    %1879 = vmatprep.subr.mxu0 0.0
    %1880 = vmatpush2.msra.mxu0 0.0
    %1881 = vmatprep.subr.mxu0 0.0
    %1882 = vmatpush2.msra.mxu0 0.0
    %1883 = vmatprep.subr.mxu0 0.0
    %1884 = vmatpush2.msra.mxu0 0.0
    %1885 = vmatprep.subr.mxu0 0.0
    %1886 = vmatpush2.msra.mxu0 0.0
    %1887 = vmatprep.subr.mxu0 0.0
    %1888 = vmatpush2.msra.mxu0 0.0
    %1889 = vmatprep.subr.mxu0 0.0
    %1890 = vmatpush2.msra.mxu0 0.0
    %1891 = vmatprep.subr.mxu0 0.0
    %1892 = vmatpush2.msra.mxu0 0.0
    %1893 = vmatprep.subr.mxu0 0.0
    %1894 = vmatpush2.msra.mxu0 0.0
    %1895 = vmatprep.subr.mxu0 0.0
    %1896 = vmatpush2.msra.mxu0 0.0
    %1897 = vmatprep.mubr.f32.mxu0 0.0
    %1898 = vmatmul.mubr.f32.gmra.mxu0 %v1828
    %v1899 = vpop.f32.mrf.mxu0
    %v1900 = vadd.f32 0.0, %v1899
    %v1901 = vpop.f32.mrf.mxu0
    %1902 = vmatprep.mubr.f32.mxu0 0.0
    %1903 = vmatmul.mubr.f32.gmra.mxu0 %v1831
    %v1904 = vpop.f32.mrf.mxu0
    %v1905 = vadd.f32 0.0, %v1904
    %v1906 = vpop.f32.mrf.mxu0
    %1907 = vdwg.mxu0
    %v1908 = vadd.f32 %v1670, %v1900
    %v1909 = vadd.f32 %v1671, %v1905
    %v1910 = vld [vmem:[%s11] sm:$0x1]
    %v1912 = vlaneseq
    %v1913 = vshrl.u32 %v1912, 7
    %v1914 = vsub.s32 0, %v1913
    %v1915 = vrot.slane %v1910, %v1914
    %v1917 = vadd.f32 %v1908, %v1915
    %v1918 = vadd.f32 %v1909, %v1915
    %1919 = vst.msk [vmem:[#allocation8] sm:$0xff] %vm96, %v1917
    %1920 = vst.msk [vmem:[#allocation8 + $0x18] sm:$0xff] %vm96, %v1918
    %s1921 = scalar_lea.vmem %s4, 1
    %v1922 = vld [vmem:[%s1921] sm:$0x1]
    %s1923 = scalar_lea.vmem [#allocation5], 1
    %v1924 = vld [vmem:[%s1923] sm:$0x1]
    %v1925 = vsel %vm96, %v1917, 0.0
    %1926 = vadd.xlane.f32.xlu0 %v1925
    %v1927 = vpop.xlane.xlu0 %1926
    %v1928 = vsel %vm96, %v1918, 0.0
    %1929 = vadd.xlane.f32.xlu0 %v1928
    %v1930 = vpop.xlane.xlu0 %1929
    %v1931 = vmul.f32 %v1927, %v103
    %v1932 = vmul.f32 %v1930, %v103
    %v1933 = vsub.f32 %v1917, %v1931
    %v1934 = vsub.f32 %v1918, %v1932
    %v1935 = vmul.f32 %v1933, %v1933
    %v1936 = vmul.f32 %v1934, %v1934
    %v1937 = vsel %vm96, %v1935, 0.0
    %1938 = vadd.xlane.f32.xlu0 %v1937
    %v1939 = vpop.xlane.xlu0 %1938
    %v1940 = vsel %vm96, %v1936, 0.0
    %1941 = vadd.xlane.f32.xlu0 %v1940
    %v1942 = vpop.xlane.xlu0 %1941
    %v1943 = vmul.f32 %v1939, %v103
    %v1944 = vmul.f32 %v1942, %v103
    %v1945 = vadd.f32 %v1943, 1e-05
    %v1946 = vadd.f32 %v1944, 1e-05
    %v1947 = vrsqrt.pop %v1945
    %v1948 = vrsqrt.pop %v1946
    %v1949 = vmul.f32 %v1933, %v1947
    %v1950 = vmul.f32 %v1934, %v1948
    %v1952 = vlaneseq
    %v1953 = vshrl.u32 %v1952, 7
    %v1954 = vsub.s32 0, %v1953
    %v1955 = vrot.slane %v1922, %v1954
    %v1957 = vmul.f32 %v1949, %v1955
    %v1958 = vmul.f32 %v1950, %v1955
    %v1960 = vlaneseq
    %v1961 = vshrl.u32 %v1960, 7
    %v1962 = vsub.s32 0, %v1961
    %v1963 = vrot.slane %v1924, %v1962
    %v1965 = vadd.f32 %v1957, %v1963
    %v1966 = vadd.f32 %v1958, %v1963
    %s1967 = scalar_lea.vmem %s1, 32
    %v1968 = vld [vmem:[%s1967] sm:$0xff]
    %v1969 = vld [vmem:[%s1967 + $0x8] sm:$0xff]
    %v1970 = vld [vmem:[%s1967 + $0x10] sm:$0xff]
    %v1971 = vld [vmem:[%s1967 + $0x18] sm:$0xff]
    %v1973 = vsel %vm96, %v1965, 0
    %v1976 = vsel %vm96, %v1966, 0
    %1978 = vmatprep.subr.mxu0 0.0
    %1979 = vmatpush1.msra.mxu0 0.0
    %1980 = vmatprep.subr.mxu0 0.0
    %1981 = vmatpush1.msra.mxu0 0.0
    %1982 = vmatprep.subr.mxu0 0.0
    %1983 = vmatpush1.msra.mxu0 0.0
    %1984 = vmatprep.subr.mxu0 0.0
    %1985 = vmatpush1.msra.mxu0 0.0
    %1986 = vmatprep.subr.mxu0 0.0
    %1987 = vmatpush1.msra.mxu0 0.0
    %1988 = vmatprep.subr.mxu0 0.0
    %1989 = vmatpush1.msra.mxu0 0.0
    %1990 = vmatprep.subr.mxu0 0.0
    %1991 = vmatpush1.msra.mxu0 0.0
    %1992 = vmatprep.subr.mxu0 0.0
    %1993 = vmatpush1.msra.mxu0 0.0
    %1994 = vmatprep.subr.mxu0 0.0
    %1995 = vmatpush1.msra.mxu0 0.0
    %1996 = vmatprep.subr.mxu0 0.0
    %1997 = vmatpush1.msra.mxu0 0.0
    %1998 = vmatprep.subr.mxu0 0.0
    %1999 = vmatpush1.msra.mxu0 0.0
    %2000 = vmatprep.subr.mxu0 0.0
    %2001 = vmatpush1.msra.mxu0 0.0
    %2002 = vmatprep.subr.mxu0 0.0
    %2003 = vmatpush1.msra.mxu0 %v1971
    %2004 = vmatprep.subr.mxu0 0.0
    %2005 = vmatpush1.msra.mxu0 %v1970
    %2006 = vmatprep.subr.mxu0 0.0
    %2007 = vmatpush1.msra.mxu0 %v1969
    %2008 = vmatprep.subr.mxu0 0.0
    %2009 = vmatpush1.msra.mxu0 %v1968
    %2010 = vmatprep.subr.mxu0 0.0
    %2011 = vmatpush2.msra.mxu0 0.0
    %2012 = vmatprep.subr.mxu0 0.0
    %2013 = vmatpush2.msra.mxu0 0.0
    %2014 = vmatprep.subr.mxu0 0.0
    %2015 = vmatpush2.msra.mxu0 0.0
    %2016 = vmatprep.subr.mxu0 0.0
    %2017 = vmatpush2.msra.mxu0 0.0
    %2018 = vmatprep.subr.mxu0 0.0
    %2019 = vmatpush2.msra.mxu0 0.0
    %2020 = vmatprep.subr.mxu0 0.0
    %2021 = vmatpush2.msra.mxu0 0.0
    %2022 = vmatprep.subr.mxu0 0.0
    %2023 = vmatpush2.msra.mxu0 0.0
    %2024 = vmatprep.subr.mxu0 0.0
    %2025 = vmatpush2.msra.mxu0 0.0
    %2026 = vmatprep.subr.mxu0 0.0
    %2027 = vmatpush2.msra.mxu0 0.0
    %2028 = vmatprep.subr.mxu0 0.0
    %2029 = vmatpush2.msra.mxu0 0.0
    %2030 = vmatprep.subr.mxu0 0.0
    %2031 = vmatpush2.msra.mxu0 0.0
    %2032 = vmatprep.subr.mxu0 0.0
    %2033 = vmatpush2.msra.mxu0 0.0
    %2034 = vmatprep.subr.mxu0 0.0
    %2035 = vmatpush2.msra.mxu0 0.0
    %2036 = vmatprep.subr.mxu0 0.0
    %2037 = vmatpush2.msra.mxu0 0.0
    %2038 = vmatprep.subr.mxu0 0.0
    %2039 = vmatpush2.msra.mxu0 0.0
    %2040 = vmatprep.subr.mxu0 0.0
    %2041 = vmatpush2.msra.mxu0 0.0
    %2042 = vmatprep.mubr.f32.mxu0 0.0
    %2043 = vmatmul.mubr.f32.gmra.mxu0 %v1973
    %v2044 = vpop.f32.mrf.mxu0
    %v2045 = vadd.f32 0.0, %v2044
    %v2046 = vpop.f32.mrf.mxu0
    %2047 = vmatprep.mubr.f32.mxu0 0.0
    %2048 = vmatmul.mubr.f32.gmra.mxu0 %v1976
    %v2049 = vpop.f32.mrf.mxu0
    %v2050 = vadd.f32 0.0, %v2049
    %v2051 = vpop.f32.mrf.mxu0
    %2052 = vdwg.mxu0
    %2054 = vrot.lane.b32.xlu0 %v2045, 96
    %v2055 = vpop.permute.xlu0 %2054
    %v2056 = vsel %vm228, %v2045, 0
    %v2058 = vsel %vm228, %v2055, 0
    %2060 = vmatprep.subr.mxu0 0.0
    %2061 = vmatpush1.xpose.msra.mxu0 0.0
    %2062 = vmatprep.subr.mxu0 0.0
    %2063 = vmatpush1.xpose.msra.mxu0 0.0
    %2064 = vmatprep.subr.mxu0 0.0
    %2065 = vmatpush1.xpose.msra.mxu0 0.0
    %2066 = vmatprep.subr.mxu0 0.0
    %2067 = vmatpush1.xpose.msra.mxu0 0.0
    %2068 = vmatprep.subr.mxu0 0.0
    %2069 = vmatpush1.xpose.msra.mxu0 0.0
    %2070 = vmatprep.subr.mxu0 0.0
    %2071 = vmatpush1.xpose.msra.mxu0 0.0
    %2072 = vmatprep.subr.mxu0 0.0
    %2073 = vmatpush1.xpose.msra.mxu0 0.0
    %2074 = vmatprep.subr.mxu0 0.0
    %2075 = vmatpush1.xpose.msra.mxu0 0.0
    %2076 = vmatprep.subr.mxu0 0.0
    %2077 = vmatpush1.xpose.msra.mxu0 0.0
    %2078 = vmatprep.subr.mxu0 0.0
    %2079 = vmatpush1.xpose.msra.mxu0 0.0
    %2080 = vmatprep.subr.mxu0 0.0
    %2081 = vmatpush1.xpose.msra.mxu0 0.0
    %2082 = vmatprep.subr.mxu0 0.0
    %2083 = vmatpush1.xpose.msra.mxu0 0.0
    %2084 = vmatprep.subr.mxu0 0.0
    %2085 = vmatpush1.xpose.msra.mxu0 0.0
    %2086 = vmatprep.subr.mxu0 0.0
    %2087 = vmatpush1.xpose.msra.mxu0 0.0
    %2088 = vmatprep.subr.mxu0 0.0
    %2089 = vmatpush1.xpose.msra.mxu0 0.0
    %2090 = vmatprep.subr.mxu0 0.0
    %2091 = vmatpush1.xpose.msra.mxu0 %v2058
    %2092 = vmatprep.subr.mxu0 0.0
    %2093 = vmatpush2.xpose.msra.mxu0 0.0
    %2094 = vmatprep.subr.mxu0 0.0
    %2095 = vmatpush2.xpose.msra.mxu0 0.0
    %2096 = vmatprep.subr.mxu0 0.0
    %2097 = vmatpush2.xpose.msra.mxu0 0.0
    %2098 = vmatprep.subr.mxu0 0.0
    %2099 = vmatpush2.xpose.msra.mxu0 0.0
    %2100 = vmatprep.subr.mxu0 0.0
    %2101 = vmatpush2.xpose.msra.mxu0 0.0
    %2102 = vmatprep.subr.mxu0 0.0
    %2103 = vmatpush2.xpose.msra.mxu0 0.0
    %2104 = vmatprep.subr.mxu0 0.0
    %2105 = vmatpush2.xpose.msra.mxu0 0.0
    %2106 = vmatprep.subr.mxu0 0.0
    %2107 = vmatpush2.xpose.msra.mxu0 0.0
    %2108 = vmatprep.subr.mxu0 0.0
    %2109 = vmatpush2.xpose.msra.mxu0 0.0
    %2110 = vmatprep.subr.mxu0 0.0
    %2111 = vmatpush2.xpose.msra.mxu0 0.0
    %2112 = vmatprep.subr.mxu0 0.0
    %2113 = vmatpush2.xpose.msra.mxu0 0.0
    %2114 = vmatprep.subr.mxu0 0.0
    %2115 = vmatpush2.xpose.msra.mxu0 0.0
    %2116 = vmatprep.subr.mxu0 0.0
    %2117 = vmatpush2.xpose.msra.mxu0 0.0
    %2118 = vmatprep.subr.mxu0 0.0
    %2119 = vmatpush2.xpose.msra.mxu0 0.0
    %2120 = vmatprep.subr.mxu0 0.0
    %2121 = vmatpush2.xpose.msra.mxu0 0.0
    %2122 = vmatprep.subr.mxu0 0.0
    %2123 = vmatpush2.xpose.msra.mxu0 0.0
    %2124 = vmatprep.mubr.f32.mxu0 0.0
    %2125 = vmatmul.mubr.f32.gmra.mxu0 %v2056
    %v2126 = vpop.f32.mrf.mxu0
    %v2127 = vadd.f32 0.0, %v2126
    %v2128 = vpop.f32.mrf.mxu0
    %2129 = vdwg.mxu0
    %2131 = vrot.lane.b32.xlu0 %v2050, 96
    %v2132 = vpop.permute.xlu0 %2131
    %v2133 = vsel %vm228, %v2050, 0
    %v2135 = vsel %vm228, %v2132, 0
    %2137 = vmatprep.subr.mxu0 0.0
    %2138 = vmatpush1.xpose.msra.mxu0 0.0
    %2139 = vmatprep.subr.mxu0 0.0
    %2140 = vmatpush1.xpose.msra.mxu0 0.0
    %2141 = vmatprep.subr.mxu0 0.0
    %2142 = vmatpush1.xpose.msra.mxu0 0.0
    %2143 = vmatprep.subr.mxu0 0.0
    %2144 = vmatpush1.xpose.msra.mxu0 0.0
    %2145 = vmatprep.subr.mxu0 0.0
    %2146 = vmatpush1.xpose.msra.mxu0 0.0
    %2147 = vmatprep.subr.mxu0 0.0
    %2148 = vmatpush1.xpose.msra.mxu0 0.0
    %2149 = vmatprep.subr.mxu0 0.0
    %2150 = vmatpush1.xpose.msra.mxu0 0.0
    %2151 = vmatprep.subr.mxu0 0.0
    %2152 = vmatpush1.xpose.msra.mxu0 0.0
    %2153 = vmatprep.subr.mxu0 0.0
    %2154 = vmatpush1.xpose.msra.mxu0 0.0
    %2155 = vmatprep.subr.mxu0 0.0
    %2156 = vmatpush1.xpose.msra.mxu0 0.0
    %2157 = vmatprep.subr.mxu0 0.0
    %2158 = vmatpush1.xpose.msra.mxu0 0.0
    %2159 = vmatprep.subr.mxu0 0.0
    %2160 = vmatpush1.xpose.msra.mxu0 0.0
    %2161 = vmatprep.subr.mxu0 0.0
    %2162 = vmatpush1.xpose.msra.mxu0 0.0
    %2163 = vmatprep.subr.mxu0 0.0
    %2164 = vmatpush1.xpose.msra.mxu0 0.0
    %2165 = vmatprep.subr.mxu0 0.0
    %2166 = vmatpush1.xpose.msra.mxu0 0.0
    %2167 = vmatprep.subr.mxu0 0.0
    %2168 = vmatpush1.xpose.msra.mxu0 %v2135
    %2169 = vmatprep.subr.mxu0 0.0
    %2170 = vmatpush2.xpose.msra.mxu0 0.0
    %2171 = vmatprep.subr.mxu0 0.0
    %2172 = vmatpush2.xpose.msra.mxu0 0.0
    %2173 = vmatprep.subr.mxu0 0.0
    %2174 = vmatpush2.xpose.msra.mxu0 0.0
    %2175 = vmatprep.subr.mxu0 0.0
    %2176 = vmatpush2.xpose.msra.mxu0 0.0
    %2177 = vmatprep.subr.mxu0 0.0
    %2178 = vmatpush2.xpose.msra.mxu0 0.0
    %2179 = vmatprep.subr.mxu0 0.0
    %2180 = vmatpush2.xpose.msra.mxu0 0.0
    %2181 = vmatprep.subr.mxu0 0.0
    %2182 = vmatpush2.xpose.msra.mxu0 0.0
    %2183 = vmatprep.subr.mxu0 0.0
    %2184 = vmatpush2.xpose.msra.mxu0 0.0
    %2185 = vmatprep.subr.mxu0 0.0
    %2186 = vmatpush2.xpose.msra.mxu0 0.0
    %2187 = vmatprep.subr.mxu0 0.0
    %2188 = vmatpush2.xpose.msra.mxu0 0.0
    %2189 = vmatprep.subr.mxu0 0.0
    %2190 = vmatpush2.xpose.msra.mxu0 0.0
    %2191 = vmatprep.subr.mxu0 0.0
    %2192 = vmatpush2.xpose.msra.mxu0 0.0
    %2193 = vmatprep.subr.mxu0 0.0
    %2194 = vmatpush2.xpose.msra.mxu0 0.0
    %2195 = vmatprep.subr.mxu0 0.0
    %2196 = vmatpush2.xpose.msra.mxu0 0.0
    %2197 = vmatprep.subr.mxu0 0.0
    %2198 = vmatpush2.xpose.msra.mxu0 0.0
    %2199 = vmatprep.subr.mxu0 0.0
    %2200 = vmatpush2.xpose.msra.mxu0 0.0
    %2201 = vmatprep.mubr.f32.mxu0 0.0
    %2202 = vmatmul.mubr.f32.gmra.mxu0 %v2133
    %v2203 = vpop.f32.mrf.mxu0
    %v2204 = vadd.f32 0.0, %v2203
    %v2205 = vpop.f32.mrf.mxu0
    %2206 = vdwg.mxu0
    %v2207 = vsel %vm228, %v2127, -inf
    %2208 = vmax.xlane.f32.xlu0 %v2207
    %v2209 = vpop.xlane.xlu0 %2208
    %v2210 = vsel %vm228, %v2204, -inf
    %2211 = vmax.xlane.f32.xlu0 %v2210
    %v2212 = vpop.xlane.xlu0 %2211
    %v2213 = vsub.f32 %v2127, %v2209
    %v2214 = vsub.f32 %v2204, %v2212
    %v2215 = vmul.f32 %v2213, 1.442695
    %v2216 = vpow.pop %v2215
    %v2217 = vmul.f32 %v2214, 1.442695
    %v2218 = vpow.pop %v2217
    %v2219 = vsel %vm228, %v2216, 0.0
    %2220 = vadd.xlane.f32.xlu0 %v2219
    %v2221 = vpop.xlane.xlu0 %2220
    %v2222 = vsel %vm228, %v2218, 0.0
    %2223 = vadd.xlane.f32.xlu0 %v2222
    %v2224 = vpop.xlane.xlu0 %2223
    %v2225 = vrcp.pop %v2221
    %v2226 = vrcp.pop %v2224
    %v2227 = vmul.f32 %v2216, %v2225
    %v2228 = vmul.f32 %v2218, %v2226
    %2229 = vrot.lane.b32.xlu0 %v2045, 64
    %v2230 = vpop.permute.xlu0 %2229
    %v2233 = vsel %vm228, %v2227, 0
    %2235 = vmatprep.subr.mxu0 0.0
    %2236 = vmatpush1.msra.mxu0 0.0
    %2237 = vmatprep.subr.mxu0 0.0
    %2238 = vmatpush1.msra.mxu0 0.0
    %2239 = vmatprep.subr.mxu0 0.0
    %2240 = vmatpush1.msra.mxu0 0.0
    %2241 = vmatprep.subr.mxu0 0.0
    %2242 = vmatpush1.msra.mxu0 0.0
    %2243 = vmatprep.subr.mxu0 0.0
    %2244 = vmatpush1.msra.mxu0 0.0
    %2245 = vmatprep.subr.mxu0 0.0
    %2246 = vmatpush1.msra.mxu0 0.0
    %2247 = vmatprep.subr.mxu0 0.0
    %2248 = vmatpush1.msra.mxu0 0.0
    %2249 = vmatprep.subr.mxu0 0.0
    %2250 = vmatpush1.msra.mxu0 0.0
    %2251 = vmatprep.subr.mxu0 0.0
    %2252 = vmatpush1.msra.mxu0 0.0
    %2253 = vmatprep.subr.mxu0 0.0
    %2254 = vmatpush1.msra.mxu0 0.0
    %2255 = vmatprep.subr.mxu0 0.0
    %2256 = vmatpush1.msra.mxu0 0.0
    %2257 = vmatprep.subr.mxu0 0.0
    %2258 = vmatpush1.msra.mxu0 0.0
    %2259 = vmatprep.subr.mxu0 0.0
    %2260 = vmatpush1.msra.mxu0 0.0
    %2261 = vmatprep.subr.mxu0 0.0
    %2262 = vmatpush1.msra.mxu0 0.0
    %2263 = vmatprep.subr.mxu0 0.0
    %2264 = vmatpush1.msra.mxu0 0.0
    %2265 = vmatprep.subr.mxu0 0.0
    %2266 = vmatpush1.msra.mxu0 %v2230
    %2267 = vmatprep.subr.mxu0 0.0
    %2268 = vmatpush2.msra.mxu0 0.0
    %2269 = vmatprep.subr.mxu0 0.0
    %2270 = vmatpush2.msra.mxu0 0.0
    %2271 = vmatprep.subr.mxu0 0.0
    %2272 = vmatpush2.msra.mxu0 0.0
    %2273 = vmatprep.subr.mxu0 0.0
    %2274 = vmatpush2.msra.mxu0 0.0
    %2275 = vmatprep.subr.mxu0 0.0
    %2276 = vmatpush2.msra.mxu0 0.0
    %2277 = vmatprep.subr.mxu0 0.0
    %2278 = vmatpush2.msra.mxu0 0.0
    %2279 = vmatprep.subr.mxu0 0.0
    %2280 = vmatpush2.msra.mxu0 0.0
    %2281 = vmatprep.subr.mxu0 0.0
    %2282 = vmatpush2.msra.mxu0 0.0
    %2283 = vmatprep.subr.mxu0 0.0
    %2284 = vmatpush2.msra.mxu0 0.0
    %2285 = vmatprep.subr.mxu0 0.0
    %2286 = vmatpush2.msra.mxu0 0.0
    %2287 = vmatprep.subr.mxu0 0.0
    %2288 = vmatpush2.msra.mxu0 0.0
    %2289 = vmatprep.subr.mxu0 0.0
    %2290 = vmatpush2.msra.mxu0 0.0
    %2291 = vmatprep.subr.mxu0 0.0
    %2292 = vmatpush2.msra.mxu0 0.0
    %2293 = vmatprep.subr.mxu0 0.0
    %2294 = vmatpush2.msra.mxu0 0.0
    %2295 = vmatprep.subr.mxu0 0.0
    %2296 = vmatpush2.msra.mxu0 0.0
    %2297 = vmatprep.subr.mxu0 0.0
    %2298 = vmatpush2.msra.mxu0 0.0
    %2299 = vmatprep.mubr.f32.mxu0 0.0
    %2300 = vmatmul.mubr.f32.gmra.mxu0 %v2233
    %v2301 = vpop.f32.mrf.mxu0
    %v2302 = vadd.f32 0.0, %v2301
    %v2303 = vpop.f32.mrf.mxu0
    %2304 = vdwg.mxu0
    %2305 = vrot.lane.b32.xlu0 %v2050, 64
    %v2306 = vpop.permute.xlu0 %2305
    %v2309 = vsel %vm228, %v2228, 0
    %2311 = vmatprep.subr.mxu0 0.0
    %2312 = vmatpush1.msra.mxu0 0.0
    %2313 = vmatprep.subr.mxu0 0.0
    %2314 = vmatpush1.msra.mxu0 0.0
    %2315 = vmatprep.subr.mxu0 0.0
    %2316 = vmatpush1.msra.mxu0 0.0
    %2317 = vmatprep.subr.mxu0 0.0
    %2318 = vmatpush1.msra.mxu0 0.0
    %2319 = vmatprep.subr.mxu0 0.0
    %2320 = vmatpush1.msra.mxu0 0.0
    %2321 = vmatprep.subr.mxu0 0.0
    %2322 = vmatpush1.msra.mxu0 0.0
    %2323 = vmatprep.subr.mxu0 0.0
    %2324 = vmatpush1.msra.mxu0 0.0
    %2325 = vmatprep.subr.mxu0 0.0
    %2326 = vmatpush1.msra.mxu0 0.0
    %2327 = vmatprep.subr.mxu0 0.0
    %2328 = vmatpush1.msra.mxu0 0.0
    %2329 = vmatprep.subr.mxu0 0.0
    %2330 = vmatpush1.msra.mxu0 0.0
    %2331 = vmatprep.subr.mxu0 0.0
    %2332 = vmatpush1.msra.mxu0 0.0
    %2333 = vmatprep.subr.mxu0 0.0
    %2334 = vmatpush1.msra.mxu0 0.0
    %2335 = vmatprep.subr.mxu0 0.0
    %2336 = vmatpush1.msra.mxu0 0.0
    %2337 = vmatprep.subr.mxu0 0.0
    %2338 = vmatpush1.msra.mxu0 0.0
    %2339 = vmatprep.subr.mxu0 0.0
    %2340 = vmatpush1.msra.mxu0 0.0
    %2341 = vmatprep.subr.mxu0 0.0
    %2342 = vmatpush1.msra.mxu0 %v2306
    %2343 = vmatprep.subr.mxu0 0.0
    %2344 = vmatpush2.msra.mxu0 0.0
    %2345 = vmatprep.subr.mxu0 0.0
    %2346 = vmatpush2.msra.mxu0 0.0
    %2347 = vmatprep.subr.mxu0 0.0
    %2348 = vmatpush2.msra.mxu0 0.0
    %2349 = vmatprep.subr.mxu0 0.0
    %2350 = vmatpush2.msra.mxu0 0.0
    %2351 = vmatprep.subr.mxu0 0.0
    %2352 = vmatpush2.msra.mxu0 0.0
    %2353 = vmatprep.subr.mxu0 0.0
    %2354 = vmatpush2.msra.mxu0 0.0
    %2355 = vmatprep.subr.mxu0 0.0
    %2356 = vmatpush2.msra.mxu0 0.0
    %2357 = vmatprep.subr.mxu0 0.0
    %2358 = vmatpush2.msra.mxu0 0.0
    %2359 = vmatprep.subr.mxu0 0.0
    %2360 = vmatpush2.msra.mxu0 0.0
    %2361 = vmatprep.subr.mxu0 0.0
    %2362 = vmatpush2.msra.mxu0 0.0
    %2363 = vmatprep.subr.mxu0 0.0
    %2364 = vmatpush2.msra.mxu0 0.0
    %2365 = vmatprep.subr.mxu0 0.0
    %2366 = vmatpush2.msra.mxu0 0.0
    %2367 = vmatprep.subr.mxu0 0.0
    %2368 = vmatpush2.msra.mxu0 0.0
    %2369 = vmatprep.subr.mxu0 0.0
    %2370 = vmatpush2.msra.mxu0 0.0
    %2371 = vmatprep.subr.mxu0 0.0
    %2372 = vmatpush2.msra.mxu0 0.0
    %2373 = vmatprep.subr.mxu0 0.0
    %2374 = vmatpush2.msra.mxu0 0.0
    %2375 = vmatprep.mubr.f32.mxu0 0.0
    %2376 = vmatmul.mubr.f32.gmra.mxu0 %v2309
    %v2377 = vpop.f32.mrf.mxu0
    %v2378 = vadd.f32 0.0, %v2377
    %v2379 = vpop.f32.mrf.mxu0
    %2380 = vdwg.mxu0
    %2381 = vrot.lane.b32.xlu0 %v2045, 120
    %v2382 = vpop.permute.xlu0 %2381
    %2383 = vrot.lane.b32.xlu0 %v2045, 88
    %v2384 = vpop.permute.xlu0 %2383
    %v2385 = vsel %vm228, %v2382, 0
    %v2387 = vsel %vm228, %v2384, 0
    %2389 = vmatprep.subr.mxu0 0.0
    %2390 = vmatpush1.xpose.msra.mxu0 0.0
    %2391 = vmatprep.subr.mxu0 0.0
    %2392 = vmatpush1.xpose.msra.mxu0 0.0
    %2393 = vmatprep.subr.mxu0 0.0
    %2394 = vmatpush1.xpose.msra.mxu0 0.0
    %2395 = vmatprep.subr.mxu0 0.0
    %2396 = vmatpush1.xpose.msra.mxu0 0.0
    %2397 = vmatprep.subr.mxu0 0.0
    %2398 = vmatpush1.xpose.msra.mxu0 0.0
    %2399 = vmatprep.subr.mxu0 0.0
    %2400 = vmatpush1.xpose.msra.mxu0 0.0
    %2401 = vmatprep.subr.mxu0 0.0
    %2402 = vmatpush1.xpose.msra.mxu0 0.0
    %2403 = vmatprep.subr.mxu0 0.0
    %2404 = vmatpush1.xpose.msra.mxu0 0.0
    %2405 = vmatprep.subr.mxu0 0.0
    %2406 = vmatpush1.xpose.msra.mxu0 0.0
    %2407 = vmatprep.subr.mxu0 0.0
    %2408 = vmatpush1.xpose.msra.mxu0 0.0
    %2409 = vmatprep.subr.mxu0 0.0
    %2410 = vmatpush1.xpose.msra.mxu0 0.0
    %2411 = vmatprep.subr.mxu0 0.0
    %2412 = vmatpush1.xpose.msra.mxu0 0.0
    %2413 = vmatprep.subr.mxu0 0.0
    %2414 = vmatpush1.xpose.msra.mxu0 0.0
    %2415 = vmatprep.subr.mxu0 0.0
    %2416 = vmatpush1.xpose.msra.mxu0 0.0
    %2417 = vmatprep.subr.mxu0 0.0
    %2418 = vmatpush1.xpose.msra.mxu0 0.0
    %2419 = vmatprep.subr.mxu0 0.0
    %2420 = vmatpush1.xpose.msra.mxu0 %v2387
    %2421 = vmatprep.subr.mxu0 0.0
    %2422 = vmatpush2.xpose.msra.mxu0 0.0
    %2423 = vmatprep.subr.mxu0 0.0
    %2424 = vmatpush2.xpose.msra.mxu0 0.0
    %2425 = vmatprep.subr.mxu0 0.0
    %2426 = vmatpush2.xpose.msra.mxu0 0.0
    %2427 = vmatprep.subr.mxu0 0.0
    %2428 = vmatpush2.xpose.msra.mxu0 0.0
    %2429 = vmatprep.subr.mxu0 0.0
    %2430 = vmatpush2.xpose.msra.mxu0 0.0
    %2431 = vmatprep.subr.mxu0 0.0
    %2432 = vmatpush2.xpose.msra.mxu0 0.0
    %2433 = vmatprep.subr.mxu0 0.0
    %2434 = vmatpush2.xpose.msra.mxu0 0.0
    %2435 = vmatprep.subr.mxu0 0.0
    %2436 = vmatpush2.xpose.msra.mxu0 0.0
    %2437 = vmatprep.subr.mxu0 0.0
    %2438 = vmatpush2.xpose.msra.mxu0 0.0
    %2439 = vmatprep.subr.mxu0 0.0
    %2440 = vmatpush2.xpose.msra.mxu0 0.0
    %2441 = vmatprep.subr.mxu0 0.0
    %2442 = vmatpush2.xpose.msra.mxu0 0.0
    %2443 = vmatprep.subr.mxu0 0.0
    %2444 = vmatpush2.xpose.msra.mxu0 0.0
    %2445 = vmatprep.subr.mxu0 0.0
    %2446 = vmatpush2.xpose.msra.mxu0 0.0
    %2447 = vmatprep.subr.mxu0 0.0
    %2448 = vmatpush2.xpose.msra.mxu0 0.0
    %2449 = vmatprep.subr.mxu0 0.0
    %2450 = vmatpush2.xpose.msra.mxu0 0.0
    %2451 = vmatprep.subr.mxu0 0.0
    %2452 = vmatpush2.xpose.msra.mxu0 0.0
    %2453 = vmatprep.mubr.f32.mxu0 0.0
    %2454 = vmatmul.mubr.f32.gmra.mxu0 %v2385
    %v2455 = vpop.f32.mrf.mxu0
    %v2456 = vadd.f32 0.0, %v2455
    %v2457 = vpop.f32.mrf.mxu0
    %2458 = vdwg.mxu0
    %2459 = vrot.lane.b32.xlu0 %v2050, 120
    %v2460 = vpop.permute.xlu0 %2459
    %2461 = vrot.lane.b32.xlu0 %v2050, 88
    %v2462 = vpop.permute.xlu0 %2461
    %v2463 = vsel %vm228, %v2460, 0
    %v2465 = vsel %vm228, %v2462, 0
    %2467 = vmatprep.subr.mxu0 0.0
    %2468 = vmatpush1.xpose.msra.mxu0 0.0
    %2469 = vmatprep.subr.mxu0 0.0
    %2470 = vmatpush1.xpose.msra.mxu0 0.0
    %2471 = vmatprep.subr.mxu0 0.0
    %2472 = vmatpush1.xpose.msra.mxu0 0.0
    %2473 = vmatprep.subr.mxu0 0.0
    %2474 = vmatpush1.xpose.msra.mxu0 0.0
    %2475 = vmatprep.subr.mxu0 0.0
    %2476 = vmatpush1.xpose.msra.mxu0 0.0
    %2477 = vmatprep.subr.mxu0 0.0
    %2478 = vmatpush1.xpose.msra.mxu0 0.0
    %2479 = vmatprep.subr.mxu0 0.0
    %2480 = vmatpush1.xpose.msra.mxu0 0.0
    %2481 = vmatprep.subr.mxu0 0.0
    %2482 = vmatpush1.xpose.msra.mxu0 0.0
    %2483 = vmatprep.subr.mxu0 0.0
    %2484 = vmatpush1.xpose.msra.mxu0 0.0
    %2485 = vmatprep.subr.mxu0 0.0
    %2486 = vmatpush1.xpose.msra.mxu0 0.0
    %2487 = vmatprep.subr.mxu0 0.0
    %2488 = vmatpush1.xpose.msra.mxu0 0.0
    %2489 = vmatprep.subr.mxu0 0.0
    %2490 = vmatpush1.xpose.msra.mxu0 0.0
    %2491 = vmatprep.subr.mxu0 0.0
    %2492 = vmatpush1.xpose.msra.mxu0 0.0
    %2493 = vmatprep.subr.mxu0 0.0
    %2494 = vmatpush1.xpose.msra.mxu0 0.0
    %2495 = vmatprep.subr.mxu0 0.0
    %2496 = vmatpush1.xpose.msra.mxu0 0.0
    %2497 = vmatprep.subr.mxu0 0.0
    %2498 = vmatpush1.xpose.msra.mxu0 %v2465
    %2499 = vmatprep.subr.mxu0 0.0
    %2500 = vmatpush2.xpose.msra.mxu0 0.0
    %2501 = vmatprep.subr.mxu0 0.0
    %2502 = vmatpush2.xpose.msra.mxu0 0.0
    %2503 = vmatprep.subr.mxu0 0.0
    %2504 = vmatpush2.xpose.msra.mxu0 0.0
    %2505 = vmatprep.subr.mxu0 0.0
    %2506 = vmatpush2.xpose.msra.mxu0 0.0
    %2507 = vmatprep.subr.mxu0 0.0
    %2508 = vmatpush2.xpose.msra.mxu0 0.0
    %2509 = vmatprep.subr.mxu0 0.0
    %2510 = vmatpush2.xpose.msra.mxu0 0.0
    %2511 = vmatprep.subr.mxu0 0.0
    %2512 = vmatpush2.xpose.msra.mxu0 0.0
    %2513 = vmatprep.subr.mxu0 0.0
    %2514 = vmatpush2.xpose.msra.mxu0 0.0
    %2515 = vmatprep.subr.mxu0 0.0
    %2516 = vmatpush2.xpose.msra.mxu0 0.0
    %2517 = vmatprep.subr.mxu0 0.0
    %2518 = vmatpush2.xpose.msra.mxu0 0.0
    %2519 = vmatprep.subr.mxu0 0.0
    %2520 = vmatpush2.xpose.msra.mxu0 0.0
    %2521 = vmatprep.subr.mxu0 0.0
    %2522 = vmatpush2.xpose.msra.mxu0 0.0
    %2523 = vmatprep.subr.mxu0 0.0
    %2524 = vmatpush2.xpose.msra.mxu0 0.0
    %2525 = vmatprep.subr.mxu0 0.0
    %2526 = vmatpush2.xpose.msra.mxu0 0.0
    %2527 = vmatprep.subr.mxu0 0.0
    %2528 = vmatpush2.xpose.msra.mxu0 0.0
    %2529 = vmatprep.subr.mxu0 0.0
    %2530 = vmatpush2.xpose.msra.mxu0 0.0
    %2531 = vmatprep.mubr.f32.mxu0 0.0
    %2532 = vmatmul.mubr.f32.gmra.mxu0 %v2463
    %v2533 = vpop.f32.mrf.mxu0
    %v2534 = vadd.f32 0.0, %v2533
    %v2535 = vpop.f32.mrf.mxu0
    %2536 = vdwg.mxu0
    %v2537 = vsel %vm228, %v2456, -inf
    %2538 = vmax.xlane.f32.xlu0 %v2537
    %v2539 = vpop.xlane.xlu0 %2538
    %v2540 = vsel %vm228, %v2534, -inf
    %2541 = vmax.xlane.f32.xlu0 %v2540
    %v2542 = vpop.xlane.xlu0 %2541
    %v2543 = vsub.f32 %v2456, %v2539
    %v2544 = vsub.f32 %v2534, %v2542
    %v2545 = vmul.f32 %v2543, 1.442695
    %v2546 = vpow.pop %v2545
    %v2547 = vmul.f32 %v2544, 1.442695
    %v2548 = vpow.pop %v2547
    %v2549 = vsel %vm228, %v2546, 0.0
    %2550 = vadd.xlane.f32.xlu0 %v2549
    %v2551 = vpop.xlane.xlu0 %2550
    %v2552 = vsel %vm228, %v2548, 0.0
    %2553 = vadd.xlane.f32.xlu0 %v2552
    %v2554 = vpop.xlane.xlu0 %2553
    %v2555 = vrcp.pop %v2551
    %v2556 = vrcp.pop %v2554
    %v2557 = vmul.f32 %v2546, %v2555
    %v2558 = vmul.f32 %v2548, %v2556
    %2559 = vrot.lane.b32.xlu0 %v2045, 56
    %v2560 = vpop.permute.xlu0 %2559
    %v2563 = vsel %vm228, %v2557, 0
    %2565 = vmatprep.subr.mxu0 0.0
    %2566 = vmatpush1.msra.mxu0 0.0
    %2567 = vmatprep.subr.mxu0 0.0
    %2568 = vmatpush1.msra.mxu0 0.0
    %2569 = vmatprep.subr.mxu0 0.0
    %2570 = vmatpush1.msra.mxu0 0.0
    %2571 = vmatprep.subr.mxu0 0.0
    %2572 = vmatpush1.msra.mxu0 0.0
    %2573 = vmatprep.subr.mxu0 0.0
    %2574 = vmatpush1.msra.mxu0 0.0
    %2575 = vmatprep.subr.mxu0 0.0
    %2576 = vmatpush1.msra.mxu0 0.0
    %2577 = vmatprep.subr.mxu0 0.0
    %2578 = vmatpush1.msra.mxu0 0.0
    %2579 = vmatprep.subr.mxu0 0.0
    %2580 = vmatpush1.msra.mxu0 0.0
    %2581 = vmatprep.subr.mxu0 0.0
    %2582 = vmatpush1.msra.mxu0 0.0
    %2583 = vmatprep.subr.mxu0 0.0
    %2584 = vmatpush1.msra.mxu0 0.0
    %2585 = vmatprep.subr.mxu0 0.0
    %2586 = vmatpush1.msra.mxu0 0.0
    %2587 = vmatprep.subr.mxu0 0.0
    %2588 = vmatpush1.msra.mxu0 0.0
    %2589 = vmatprep.subr.mxu0 0.0
    %2590 = vmatpush1.msra.mxu0 0.0
    %2591 = vmatprep.subr.mxu0 0.0
    %2592 = vmatpush1.msra.mxu0 0.0
    %2593 = vmatprep.subr.mxu0 0.0
    %2594 = vmatpush1.msra.mxu0 0.0
    %2595 = vmatprep.subr.mxu0 0.0
    %2596 = vmatpush1.msra.mxu0 %v2560
    %2597 = vmatprep.subr.mxu0 0.0
    %2598 = vmatpush2.msra.mxu0 0.0
    %2599 = vmatprep.subr.mxu0 0.0
    %2600 = vmatpush2.msra.mxu0 0.0
    %2601 = vmatprep.subr.mxu0 0.0
    %2602 = vmatpush2.msra.mxu0 0.0
    %2603 = vmatprep.subr.mxu0 0.0
    %2604 = vmatpush2.msra.mxu0 0.0
    %2605 = vmatprep.subr.mxu0 0.0
    %2606 = vmatpush2.msra.mxu0 0.0
    %2607 = vmatprep.subr.mxu0 0.0
    %2608 = vmatpush2.msra.mxu0 0.0
    %2609 = vmatprep.subr.mxu0 0.0
    %2610 = vmatpush2.msra.mxu0 0.0
    %2611 = vmatprep.subr.mxu0 0.0
    %2612 = vmatpush2.msra.mxu0 0.0
    %2613 = vmatprep.subr.mxu0 0.0
    %2614 = vmatpush2.msra.mxu0 0.0
    %2615 = vmatprep.subr.mxu0 0.0
    %2616 = vmatpush2.msra.mxu0 0.0
    %2617 = vmatprep.subr.mxu0 0.0
    %2618 = vmatpush2.msra.mxu0 0.0
    %2619 = vmatprep.subr.mxu0 0.0
    %2620 = vmatpush2.msra.mxu0 0.0
    %2621 = vmatprep.subr.mxu0 0.0
    %2622 = vmatpush2.msra.mxu0 0.0
    %2623 = vmatprep.subr.mxu0 0.0
    %2624 = vmatpush2.msra.mxu0 0.0
    %2625 = vmatprep.subr.mxu0 0.0
    %2626 = vmatpush2.msra.mxu0 0.0
    %2627 = vmatprep.subr.mxu0 0.0
    %2628 = vmatpush2.msra.mxu0 0.0
    %2629 = vmatprep.mubr.f32.mxu0 0.0
    %2630 = vmatmul.mubr.f32.gmra.mxu0 %v2563
    %v2631 = vpop.f32.mrf.mxu0
    %v2632 = vadd.f32 0.0, %v2631
    %v2633 = vpop.f32.mrf.mxu0
    %2634 = vdwg.mxu0
    %2635 = vrot.lane.b32.xlu0 %v2050, 56
    %v2636 = vpop.permute.xlu0 %2635
    %v2639 = vsel %vm228, %v2558, 0
    %2641 = vmatprep.subr.mxu0 0.0
    %2642 = vmatpush1.msra.mxu0 0.0
    %2643 = vmatprep.subr.mxu0 0.0
    %2644 = vmatpush1.msra.mxu0 0.0
    %2645 = vmatprep.subr.mxu0 0.0
    %2646 = vmatpush1.msra.mxu0 0.0
    %2647 = vmatprep.subr.mxu0 0.0
    %2648 = vmatpush1.msra.mxu0 0.0
    %2649 = vmatprep.subr.mxu0 0.0
    %2650 = vmatpush1.msra.mxu0 0.0
    %2651 = vmatprep.subr.mxu0 0.0
    %2652 = vmatpush1.msra.mxu0 0.0
    %2653 = vmatprep.subr.mxu0 0.0
    %2654 = vmatpush1.msra.mxu0 0.0
    %2655 = vmatprep.subr.mxu0 0.0
    %2656 = vmatpush1.msra.mxu0 0.0
    %2657 = vmatprep.subr.mxu0 0.0
    %2658 = vmatpush1.msra.mxu0 0.0
    %2659 = vmatprep.subr.mxu0 0.0
    %2660 = vmatpush1.msra.mxu0 0.0
    %2661 = vmatprep.subr.mxu0 0.0
    %2662 = vmatpush1.msra.mxu0 0.0
    %2663 = vmatprep.subr.mxu0 0.0
    %2664 = vmatpush1.msra.mxu0 0.0
    %2665 = vmatprep.subr.mxu0 0.0
    %2666 = vmatpush1.msra.mxu0 0.0
    %2667 = vmatprep.subr.mxu0 0.0
    %2668 = vmatpush1.msra.mxu0 0.0
    %2669 = vmatprep.subr.mxu0 0.0
    %2670 = vmatpush1.msra.mxu0 0.0
    %2671 = vmatprep.subr.mxu0 0.0
    %2672 = vmatpush1.msra.mxu0 %v2636
    %2673 = vmatprep.subr.mxu0 0.0
    %2674 = vmatpush2.msra.mxu0 0.0
    %2675 = vmatprep.subr.mxu0 0.0
    %2676 = vmatpush2.msra.mxu0 0.0
    %2677 = vmatprep.subr.mxu0 0.0
    %2678 = vmatpush2.msra.mxu0 0.0
    %2679 = vmatprep.subr.mxu0 0.0
    %2680 = vmatpush2.msra.mxu0 0.0
    %2681 = vmatprep.subr.mxu0 0.0
    %2682 = vmatpush2.msra.mxu0 0.0
    %2683 = vmatprep.subr.mxu0 0.0
    %2684 = vmatpush2.msra.mxu0 0.0
    %2685 = vmatprep.subr.mxu0 0.0
    %2686 = vmatpush2.msra.mxu0 0.0
    %2687 = vmatprep.subr.mxu0 0.0
    %2688 = vmatpush2.msra.mxu0 0.0
    %2689 = vmatprep.subr.mxu0 0.0
    %2690 = vmatpush2.msra.mxu0 0.0
    %2691 = vmatprep.subr.mxu0 0.0
    %2692 = vmatpush2.msra.mxu0 0.0
    %2693 = vmatprep.subr.mxu0 0.0
    %2694 = vmatpush2.msra.mxu0 0.0
    %2695 = vmatprep.subr.mxu0 0.0
    %2696 = vmatpush2.msra.mxu0 0.0
    %2697 = vmatprep.subr.mxu0 0.0
    %2698 = vmatpush2.msra.mxu0 0.0
    %2699 = vmatprep.subr.mxu0 0.0
    %2700 = vmatpush2.msra.mxu0 0.0
    %2701 = vmatprep.subr.mxu0 0.0
    %2702 = vmatpush2.msra.mxu0 0.0
    %2703 = vmatprep.subr.mxu0 0.0
    %2704 = vmatpush2.msra.mxu0 0.0
    %2705 = vmatprep.mubr.f32.mxu0 0.0
    %2706 = vmatmul.mubr.f32.gmra.mxu0 %v2639
    %v2707 = vpop.f32.mrf.mxu0
    %v2708 = vadd.f32 0.0, %v2707
    %v2709 = vpop.f32.mrf.mxu0
    %2710 = vdwg.mxu0
    %2711 = vrot.lane.b32.xlu0 %v2045, 112
    %v2712 = vpop.permute.xlu0 %2711
    %2713 = vrot.lane.b32.xlu0 %v2045, 80
    %v2714 = vpop.permute.xlu0 %2713
    %v2715 = vsel %vm228, %v2712, 0
    %v2717 = vsel %vm228, %v2714, 0
    %2719 = vmatprep.subr.mxu0 0.0
    %2720 = vmatpush1.xpose.msra.mxu0 0.0
    %2721 = vmatprep.subr.mxu0 0.0
    %2722 = vmatpush1.xpose.msra.mxu0 0.0
    %2723 = vmatprep.subr.mxu0 0.0
    %2724 = vmatpush1.xpose.msra.mxu0 0.0
    %2725 = vmatprep.subr.mxu0 0.0
    %2726 = vmatpush1.xpose.msra.mxu0 0.0
    %2727 = vmatprep.subr.mxu0 0.0
    %2728 = vmatpush1.xpose.msra.mxu0 0.0
    %2729 = vmatprep.subr.mxu0 0.0
    %2730 = vmatpush1.xpose.msra.mxu0 0.0
    %2731 = vmatprep.subr.mxu0 0.0
    %2732 = vmatpush1.xpose.msra.mxu0 0.0
    %2733 = vmatprep.subr.mxu0 0.0
    %2734 = vmatpush1.xpose.msra.mxu0 0.0
    %2735 = vmatprep.subr.mxu0 0.0
    %2736 = vmatpush1.xpose.msra.mxu0 0.0
    %2737 = vmatprep.subr.mxu0 0.0
    %2738 = vmatpush1.xpose.msra.mxu0 0.0
    %2739 = vmatprep.subr.mxu0 0.0
    %2740 = vmatpush1.xpose.msra.mxu0 0.0
    %2741 = vmatprep.subr.mxu0 0.0
    %2742 = vmatpush1.xpose.msra.mxu0 0.0
    %2743 = vmatprep.subr.mxu0 0.0
    %2744 = vmatpush1.xpose.msra.mxu0 0.0
    %2745 = vmatprep.subr.mxu0 0.0
    %2746 = vmatpush1.xpose.msra.mxu0 0.0
    %2747 = vmatprep.subr.mxu0 0.0
    %2748 = vmatpush1.xpose.msra.mxu0 0.0
    %2749 = vmatprep.subr.mxu0 0.0
    %2750 = vmatpush1.xpose.msra.mxu0 %v2717
    %2751 = vmatprep.subr.mxu0 0.0
    %2752 = vmatpush2.xpose.msra.mxu0 0.0
    %2753 = vmatprep.subr.mxu0 0.0
    %2754 = vmatpush2.xpose.msra.mxu0 0.0
    %2755 = vmatprep.subr.mxu0 0.0
    %2756 = vmatpush2.xpose.msra.mxu0 0.0
    %2757 = vmatprep.subr.mxu0 0.0
    %2758 = vmatpush2.xpose.msra.mxu0 0.0
    %2759 = vmatprep.subr.mxu0 0.0
    %2760 = vmatpush2.xpose.msra.mxu0 0.0
    %2761 = vmatprep.subr.mxu0 0.0
    %2762 = vmatpush2.xpose.msra.mxu0 0.0
    %2763 = vmatprep.subr.mxu0 0.0
    %2764 = vmatpush2.xpose.msra.mxu0 0.0
    %2765 = vmatprep.subr.mxu0 0.0
    %2766 = vmatpush2.xpose.msra.mxu0 0.0
    %2767 = vmatprep.subr.mxu0 0.0
    %2768 = vmatpush2.xpose.msra.mxu0 0.0
    %2769 = vmatprep.subr.mxu0 0.0
    %2770 = vmatpush2.xpose.msra.mxu0 0.0
    %2771 = vmatprep.subr.mxu0 0.0
    %2772 = vmatpush2.xpose.msra.mxu0 0.0
    %2773 = vmatprep.subr.mxu0 0.0
    %2774 = vmatpush2.xpose.msra.mxu0 0.0
    %2775 = vmatprep.subr.mxu0 0.0
    %2776 = vmatpush2.xpose.msra.mxu0 0.0
    %2777 = vmatprep.subr.mxu0 0.0
    %2778 = vmatpush2.xpose.msra.mxu0 0.0
    %2779 = vmatprep.subr.mxu0 0.0
    %2780 = vmatpush2.xpose.msra.mxu0 0.0
    %2781 = vmatprep.subr.mxu0 0.0
    %2782 = vmatpush2.xpose.msra.mxu0 0.0
    %2783 = vmatprep.mubr.f32.mxu0 0.0
    %2784 = vmatmul.mubr.f32.gmra.mxu0 %v2715
    %v2785 = vpop.f32.mrf.mxu0
    %v2786 = vadd.f32 0.0, %v2785
    %v2787 = vpop.f32.mrf.mxu0
    %2788 = vdwg.mxu0
    %2789 = vrot.lane.b32.xlu0 %v2050, 112
    %v2790 = vpop.permute.xlu0 %2789
    %2791 = vrot.lane.b32.xlu0 %v2050, 80
    %v2792 = vpop.permute.xlu0 %2791
    %v2793 = vsel %vm228, %v2790, 0
    %v2795 = vsel %vm228, %v2792, 0
    %2797 = vmatprep.subr.mxu0 0.0
    %2798 = vmatpush1.xpose.msra.mxu0 0.0
    %2799 = vmatprep.subr.mxu0 0.0
    %2800 = vmatpush1.xpose.msra.mxu0 0.0
    %2801 = vmatprep.subr.mxu0 0.0
    %2802 = vmatpush1.xpose.msra.mxu0 0.0
    %2803 = vmatprep.subr.mxu0 0.0
    %2804 = vmatpush1.xpose.msra.mxu0 0.0
    %2805 = vmatprep.subr.mxu0 0.0
    %2806 = vmatpush1.xpose.msra.mxu0 0.0
    %2807 = vmatprep.subr.mxu0 0.0
    %2808 = vmatpush1.xpose.msra.mxu0 0.0
    %2809 = vmatprep.subr.mxu0 0.0
    %2810 = vmatpush1.xpose.msra.mxu0 0.0
    %2811 = vmatprep.subr.mxu0 0.0
    %2812 = vmatpush1.xpose.msra.mxu0 0.0
    %2813 = vmatprep.subr.mxu0 0.0
    %2814 = vmatpush1.xpose.msra.mxu0 0.0
    %2815 = vmatprep.subr.mxu0 0.0
    %2816 = vmatpush1.xpose.msra.mxu0 0.0
    %2817 = vmatprep.subr.mxu0 0.0
    %2818 = vmatpush1.xpose.msra.mxu0 0.0
    %2819 = vmatprep.subr.mxu0 0.0
    %2820 = vmatpush1.xpose.msra.mxu0 0.0
    %2821 = vmatprep.subr.mxu0 0.0
    %2822 = vmatpush1.xpose.msra.mxu0 0.0
    %2823 = vmatprep.subr.mxu0 0.0
    %2824 = vmatpush1.xpose.msra.mxu0 0.0
    %2825 = vmatprep.subr.mxu0 0.0
    %2826 = vmatpush1.xpose.msra.mxu0 0.0
    %2827 = vmatprep.subr.mxu0 0.0
    %2828 = vmatpush1.xpose.msra.mxu0 %v2795
    %2829 = vmatprep.subr.mxu0 0.0
    %2830 = vmatpush2.xpose.msra.mxu0 0.0
    %2831 = vmatprep.subr.mxu0 0.0
    %2832 = vmatpush2.xpose.msra.mxu0 0.0
    %2833 = vmatprep.subr.mxu0 0.0
    %2834 = vmatpush2.xpose.msra.mxu0 0.0
    %2835 = vmatprep.subr.mxu0 0.0
    %2836 = vmatpush2.xpose.msra.mxu0 0.0
    %2837 = vmatprep.subr.mxu0 0.0
    %2838 = vmatpush2.xpose.msra.mxu0 0.0
    %2839 = vmatprep.subr.mxu0 0.0
    %2840 = vmatpush2.xpose.msra.mxu0 0.0
    %2841 = vmatprep.subr.mxu0 0.0
    %2842 = vmatpush2.xpose.msra.mxu0 0.0
    %2843 = vmatprep.subr.mxu0 0.0
    %2844 = vmatpush2.xpose.msra.mxu0 0.0
    %2845 = vmatprep.subr.mxu0 0.0
    %2846 = vmatpush2.xpose.msra.mxu0 0.0
    %2847 = vmatprep.subr.mxu0 0.0
    %2848 = vmatpush2.xpose.msra.mxu0 0.0
    %2849 = vmatprep.subr.mxu0 0.0
    %2850 = vmatpush2.xpose.msra.mxu0 0.0
    %2851 = vmatprep.subr.mxu0 0.0
    %2852 = vmatpush2.xpose.msra.mxu0 0.0
    %2853 = vmatprep.subr.mxu0 0.0
    %2854 = vmatpush2.xpose.msra.mxu0 0.0
    %2855 = vmatprep.subr.mxu0 0.0
    %2856 = vmatpush2.xpose.msra.mxu0 0.0
    %2857 = vmatprep.subr.mxu0 0.0
    %2858 = vmatpush2.xpose.msra.mxu0 0.0
    %2859 = vmatprep.subr.mxu0 0.0
    %2860 = vmatpush2.xpose.msra.mxu0 0.0
    %2861 = vmatprep.mubr.f32.mxu0 0.0
    %2862 = vmatmul.mubr.f32.gmra.mxu0 %v2793
    %v2863 = vpop.f32.mrf.mxu0
    %v2864 = vadd.f32 0.0, %v2863
    %v2865 = vpop.f32.mrf.mxu0
    %2866 = vdwg.mxu0
    %v2867 = vsel %vm228, %v2786, -inf
    %2868 = vmax.xlane.f32.xlu0 %v2867
    %v2869 = vpop.xlane.xlu0 %2868
    %v2870 = vsel %vm228, %v2864, -inf
    %2871 = vmax.xlane.f32.xlu0 %v2870
    %v2872 = vpop.xlane.xlu0 %2871
    %v2873 = vsub.f32 %v2786, %v2869
    %v2874 = vsub.f32 %v2864, %v2872
    %v2875 = vmul.f32 %v2873, 1.442695
    %v2876 = vpow.pop %v2875
    %v2877 = vmul.f32 %v2874, 1.442695
    %v2878 = vpow.pop %v2877
    %v2879 = vsel %vm228, %v2876, 0.0
    %2880 = vadd.xlane.f32.xlu0 %v2879
    %v2881 = vpop.xlane.xlu0 %2880
    %v2882 = vsel %vm228, %v2878, 0.0
    %2883 = vadd.xlane.f32.xlu0 %v2882
    %v2884 = vpop.xlane.xlu0 %2883
    %v2885 = vrcp.pop %v2881
    %v2886 = vrcp.pop %v2884
    %v2887 = vmul.f32 %v2876, %v2885
    %v2888 = vmul.f32 %v2878, %v2886
    %2889 = vrot.lane.b32.xlu0 %v2045, 48
    %v2890 = vpop.permute.xlu0 %2889
    %v2893 = vsel %vm228, %v2887, 0
    %2895 = vmatprep.subr.mxu0 0.0
    %2896 = vmatpush1.msra.mxu0 0.0
    %2897 = vmatprep.subr.mxu0 0.0
    %2898 = vmatpush1.msra.mxu0 0.0
    %2899 = vmatprep.subr.mxu0 0.0
    %2900 = vmatpush1.msra.mxu0 0.0
    %2901 = vmatprep.subr.mxu0 0.0
    %2902 = vmatpush1.msra.mxu0 0.0
    %2903 = vmatprep.subr.mxu0 0.0
    %2904 = vmatpush1.msra.mxu0 0.0
    %2905 = vmatprep.subr.mxu0 0.0
    %2906 = vmatpush1.msra.mxu0 0.0
    %2907 = vmatprep.subr.mxu0 0.0
    %2908 = vmatpush1.msra.mxu0 0.0
    %2909 = vmatprep.subr.mxu0 0.0
    %2910 = vmatpush1.msra.mxu0 0.0
    %2911 = vmatprep.subr.mxu0 0.0
    %2912 = vmatpush1.msra.mxu0 0.0
    %2913 = vmatprep.subr.mxu0 0.0
    %2914 = vmatpush1.msra.mxu0 0.0
    %2915 = vmatprep.subr.mxu0 0.0
    %2916 = vmatpush1.msra.mxu0 0.0
    %2917 = vmatprep.subr.mxu0 0.0
    %2918 = vmatpush1.msra.mxu0 0.0
    %2919 = vmatprep.subr.mxu0 0.0
    %2920 = vmatpush1.msra.mxu0 0.0
    %2921 = vmatprep.subr.mxu0 0.0
    %2922 = vmatpush1.msra.mxu0 0.0
    %2923 = vmatprep.subr.mxu0 0.0
    %2924 = vmatpush1.msra.mxu0 0.0
    %2925 = vmatprep.subr.mxu0 0.0
    %2926 = vmatpush1.msra.mxu0 %v2890
    %2927 = vmatprep.subr.mxu0 0.0
    %2928 = vmatpush2.msra.mxu0 0.0
    %2929 = vmatprep.subr.mxu0 0.0
    %2930 = vmatpush2.msra.mxu0 0.0
    %2931 = vmatprep.subr.mxu0 0.0
    %2932 = vmatpush2.msra.mxu0 0.0
    %2933 = vmatprep.subr.mxu0 0.0
    %2934 = vmatpush2.msra.mxu0 0.0
    %2935 = vmatprep.subr.mxu0 0.0
    %2936 = vmatpush2.msra.mxu0 0.0
    %2937 = vmatprep.subr.mxu0 0.0
    %2938 = vmatpush2.msra.mxu0 0.0
    %2939 = vmatprep.subr.mxu0 0.0
    %2940 = vmatpush2.msra.mxu0 0.0
    %2941 = vmatprep.subr.mxu0 0.0
    %2942 = vmatpush2.msra.mxu0 0.0
    %2943 = vmatprep.subr.mxu0 0.0
    %2944 = vmatpush2.msra.mxu0 0.0
    %2945 = vmatprep.subr.mxu0 0.0
    %2946 = vmatpush2.msra.mxu0 0.0
    %2947 = vmatprep.subr.mxu0 0.0
    %2948 = vmatpush2.msra.mxu0 0.0
    %2949 = vmatprep.subr.mxu0 0.0
    %2950 = vmatpush2.msra.mxu0 0.0
    %2951 = vmatprep.subr.mxu0 0.0
    %2952 = vmatpush2.msra.mxu0 0.0
    %2953 = vmatprep.subr.mxu0 0.0
    %2954 = vmatpush2.msra.mxu0 0.0
    %2955 = vmatprep.subr.mxu0 0.0
    %2956 = vmatpush2.msra.mxu0 0.0
    %2957 = vmatprep.subr.mxu0 0.0
    %2958 = vmatpush2.msra.mxu0 0.0
    %2959 = vmatprep.mubr.f32.mxu0 0.0
    %2960 = vmatmul.mubr.f32.gmra.mxu0 %v2893
    %v2961 = vpop.f32.mrf.mxu0
    %v2962 = vadd.f32 0.0, %v2961
    %v2963 = vpop.f32.mrf.mxu0
    %2964 = vdwg.mxu0
    %2965 = vrot.lane.b32.xlu0 %v2050, 48
    %v2966 = vpop.permute.xlu0 %2965
    %v2969 = vsel %vm228, %v2888, 0
    %2971 = vmatprep.subr.mxu0 0.0
    %2972 = vmatpush1.msra.mxu0 0.0
    %2973 = vmatprep.subr.mxu0 0.0
    %2974 = vmatpush1.msra.mxu0 0.0
    %2975 = vmatprep.subr.mxu0 0.0
    %2976 = vmatpush1.msra.mxu0 0.0
    %2977 = vmatprep.subr.mxu0 0.0
    %2978 = vmatpush1.msra.mxu0 0.0
    %2979 = vmatprep.subr.mxu0 0.0
    %2980 = vmatpush1.msra.mxu0 0.0
    %2981 = vmatprep.subr.mxu0 0.0
    %2982 = vmatpush1.msra.mxu0 0.0
    %2983 = vmatprep.subr.mxu0 0.0
    %2984 = vmatpush1.msra.mxu0 0.0
    %2985 = vmatprep.subr.mxu0 0.0
    %2986 = vmatpush1.msra.mxu0 0.0
    %2987 = vmatprep.subr.mxu0 0.0
    %2988 = vmatpush1.msra.mxu0 0.0
    %2989 = vmatprep.subr.mxu0 0.0
    %2990 = vmatpush1.msra.mxu0 0.0
    %2991 = vmatprep.subr.mxu0 0.0
    %2992 = vmatpush1.msra.mxu0 0.0
    %2993 = vmatprep.subr.mxu0 0.0
    %2994 = vmatpush1.msra.mxu0 0.0
    %2995 = vmatprep.subr.mxu0 0.0
    %2996 = vmatpush1.msra.mxu0 0.0
    %2997 = vmatprep.subr.mxu0 0.0
    %2998 = vmatpush1.msra.mxu0 0.0
    %2999 = vmatprep.subr.mxu0 0.0
    %3000 = vmatpush1.msra.mxu0 0.0
    %3001 = vmatprep.subr.mxu0 0.0
    %3002 = vmatpush1.msra.mxu0 %v2966
    %3003 = vmatprep.subr.mxu0 0.0
    %3004 = vmatpush2.msra.mxu0 0.0
    %3005 = vmatprep.subr.mxu0 0.0
    %3006 = vmatpush2.msra.mxu0 0.0
    %3007 = vmatprep.subr.mxu0 0.0
    %3008 = vmatpush2.msra.mxu0 0.0
    %3009 = vmatprep.subr.mxu0 0.0
    %3010 = vmatpush2.msra.mxu0 0.0
    %3011 = vmatprep.subr.mxu0 0.0
    %3012 = vmatpush2.msra.mxu0 0.0
    %3013 = vmatprep.subr.mxu0 0.0
    %3014 = vmatpush2.msra.mxu0 0.0
    %3015 = vmatprep.subr.mxu0 0.0
    %3016 = vmatpush2.msra.mxu0 0.0
    %3017 = vmatprep.subr.mxu0 0.0
    %3018 = vmatpush2.msra.mxu0 0.0
    %3019 = vmatprep.subr.mxu0 0.0
    %3020 = vmatpush2.msra.mxu0 0.0
    %3021 = vmatprep.subr.mxu0 0.0
    %3022 = vmatpush2.msra.mxu0 0.0
    %3023 = vmatprep.subr.mxu0 0.0
    %3024 = vmatpush2.msra.mxu0 0.0
    %3025 = vmatprep.subr.mxu0 0.0
    %3026 = vmatpush2.msra.mxu0 0.0
    %3027 = vmatprep.subr.mxu0 0.0
    %3028 = vmatpush2.msra.mxu0 0.0
    %3029 = vmatprep.subr.mxu0 0.0
    %3030 = vmatpush2.msra.mxu0 0.0
    %3031 = vmatprep.subr.mxu0 0.0
    %3032 = vmatpush2.msra.mxu0 0.0
    %3033 = vmatprep.subr.mxu0 0.0
    %3034 = vmatpush2.msra.mxu0 0.0
    %3035 = vmatprep.mubr.f32.mxu0 0.0
    %3036 = vmatmul.mubr.f32.gmra.mxu0 %v2969
    %v3037 = vpop.f32.mrf.mxu0
    %v3038 = vadd.f32 0.0, %v3037
    %v3039 = vpop.f32.mrf.mxu0
    %3040 = vdwg.mxu0
    %3041 = vrot.lane.b32.xlu0 %v2045, 104
    %v3042 = vpop.permute.xlu0 %3041
    %3043 = vrot.lane.b32.xlu0 %v2045, 72
    %v3044 = vpop.permute.xlu0 %3043
    %v3045 = vsel %vm228, %v3042, 0
    %v3047 = vsel %vm228, %v3044, 0
    %3049 = vmatprep.subr.mxu0 0.0
    %3050 = vmatpush1.xpose.msra.mxu0 0.0
    %3051 = vmatprep.subr.mxu0 0.0
    %3052 = vmatpush1.xpose.msra.mxu0 0.0
    %3053 = vmatprep.subr.mxu0 0.0
    %3054 = vmatpush1.xpose.msra.mxu0 0.0
    %3055 = vmatprep.subr.mxu0 0.0
    %3056 = vmatpush1.xpose.msra.mxu0 0.0
    %3057 = vmatprep.subr.mxu0 0.0
    %3058 = vmatpush1.xpose.msra.mxu0 0.0
    %3059 = vmatprep.subr.mxu0 0.0
    %3060 = vmatpush1.xpose.msra.mxu0 0.0
    %3061 = vmatprep.subr.mxu0 0.0
    %3062 = vmatpush1.xpose.msra.mxu0 0.0
    %3063 = vmatprep.subr.mxu0 0.0
    %3064 = vmatpush1.xpose.msra.mxu0 0.0
    %3065 = vmatprep.subr.mxu0 0.0
    %3066 = vmatpush1.xpose.msra.mxu0 0.0
    %3067 = vmatprep.subr.mxu0 0.0
    %3068 = vmatpush1.xpose.msra.mxu0 0.0
    %3069 = vmatprep.subr.mxu0 0.0
    %3070 = vmatpush1.xpose.msra.mxu0 0.0
    %3071 = vmatprep.subr.mxu0 0.0
    %3072 = vmatpush1.xpose.msra.mxu0 0.0
    %3073 = vmatprep.subr.mxu0 0.0
    %3074 = vmatpush1.xpose.msra.mxu0 0.0
    %3075 = vmatprep.subr.mxu0 0.0
    %3076 = vmatpush1.xpose.msra.mxu0 0.0
    %3077 = vmatprep.subr.mxu0 0.0
    %3078 = vmatpush1.xpose.msra.mxu0 0.0
    %3079 = vmatprep.subr.mxu0 0.0
    %3080 = vmatpush1.xpose.msra.mxu0 %v3047
    %3081 = vmatprep.subr.mxu0 0.0
    %3082 = vmatpush2.xpose.msra.mxu0 0.0
    %3083 = vmatprep.subr.mxu0 0.0
    %3084 = vmatpush2.xpose.msra.mxu0 0.0
    %3085 = vmatprep.subr.mxu0 0.0
    %3086 = vmatpush2.xpose.msra.mxu0 0.0
    %3087 = vmatprep.subr.mxu0 0.0
    %3088 = vmatpush2.xpose.msra.mxu0 0.0
    %3089 = vmatprep.subr.mxu0 0.0
    %3090 = vmatpush2.xpose.msra.mxu0 0.0
    %3091 = vmatprep.subr.mxu0 0.0
    %3092 = vmatpush2.xpose.msra.mxu0 0.0
    %3093 = vmatprep.subr.mxu0 0.0
    %3094 = vmatpush2.xpose.msra.mxu0 0.0
    %3095 = vmatprep.subr.mxu0 0.0
    %3096 = vmatpush2.xpose.msra.mxu0 0.0
    %3097 = vmatprep.subr.mxu0 0.0
    %3098 = vmatpush2.xpose.msra.mxu0 0.0
    %3099 = vmatprep.subr.mxu0 0.0
    %3100 = vmatpush2.xpose.msra.mxu0 0.0
    %3101 = vmatprep.subr.mxu0 0.0
    %3102 = vmatpush2.xpose.msra.mxu0 0.0
    %3103 = vmatprep.subr.mxu0 0.0
    %3104 = vmatpush2.xpose.msra.mxu0 0.0
    %3105 = vmatprep.subr.mxu0 0.0
    %3106 = vmatpush2.xpose.msra.mxu0 0.0
    %3107 = vmatprep.subr.mxu0 0.0
    %3108 = vmatpush2.xpose.msra.mxu0 0.0
    %3109 = vmatprep.subr.mxu0 0.0
    %3110 = vmatpush2.xpose.msra.mxu0 0.0
    %3111 = vmatprep.subr.mxu0 0.0
    %3112 = vmatpush2.xpose.msra.mxu0 0.0
    %3113 = vmatprep.mubr.f32.mxu0 0.0
    %3114 = vmatmul.mubr.f32.gmra.mxu0 %v3045
    %v3115 = vpop.f32.mrf.mxu0
    %v3116 = vadd.f32 0.0, %v3115
    %v3117 = vpop.f32.mrf.mxu0
    %3118 = vdwg.mxu0
    %3119 = vrot.lane.b32.xlu0 %v2050, 104
    %v3120 = vpop.permute.xlu0 %3119
    %3121 = vrot.lane.b32.xlu0 %v2050, 72
    %v3122 = vpop.permute.xlu0 %3121
    %v3123 = vsel %vm228, %v3120, 0
    %v3125 = vsel %vm228, %v3122, 0
    %3127 = vmatprep.subr.mxu0 0.0
    %3128 = vmatpush1.xpose.msra.mxu0 0.0
    %3129 = vmatprep.subr.mxu0 0.0
    %3130 = vmatpush1.xpose.msra.mxu0 0.0
    %3131 = vmatprep.subr.mxu0 0.0
    %3132 = vmatpush1.xpose.msra.mxu0 0.0
    %3133 = vmatprep.subr.mxu0 0.0
    %3134 = vmatpush1.xpose.msra.mxu0 0.0
    %3135 = vmatprep.subr.mxu0 0.0
    %3136 = vmatpush1.xpose.msra.mxu0 0.0
    %3137 = vmatprep.subr.mxu0 0.0
    %3138 = vmatpush1.xpose.msra.mxu0 0.0
    %3139 = vmatprep.subr.mxu0 0.0
    %3140 = vmatpush1.xpose.msra.mxu0 0.0
    %3141 = vmatprep.subr.mxu0 0.0
    %3142 = vmatpush1.xpose.msra.mxu0 0.0
    %3143 = vmatprep.subr.mxu0 0.0
    %3144 = vmatpush1.xpose.msra.mxu0 0.0
    %3145 = vmatprep.subr.mxu0 0.0
    %3146 = vmatpush1.xpose.msra.mxu0 0.0
    %3147 = vmatprep.subr.mxu0 0.0
    %3148 = vmatpush1.xpose.msra.mxu0 0.0
    %3149 = vmatprep.subr.mxu0 0.0
    %3150 = vmatpush1.xpose.msra.mxu0 0.0
    %3151 = vmatprep.subr.mxu0 0.0
    %3152 = vmatpush1.xpose.msra.mxu0 0.0
    %3153 = vmatprep.subr.mxu0 0.0
    %3154 = vmatpush1.xpose.msra.mxu0 0.0
    %3155 = vmatprep.subr.mxu0 0.0
    %3156 = vmatpush1.xpose.msra.mxu0 0.0
    %3157 = vmatprep.subr.mxu0 0.0
    %3158 = vmatpush1.xpose.msra.mxu0 %v3125
    %3159 = vmatprep.subr.mxu0 0.0
    %3160 = vmatpush2.xpose.msra.mxu0 0.0
    %3161 = vmatprep.subr.mxu0 0.0
    %3162 = vmatpush2.xpose.msra.mxu0 0.0
    %3163 = vmatprep.subr.mxu0 0.0
    %3164 = vmatpush2.xpose.msra.mxu0 0.0
    %3165 = vmatprep.subr.mxu0 0.0
    %3166 = vmatpush2.xpose.msra.mxu0 0.0
    %3167 = vmatprep.subr.mxu0 0.0
    %3168 = vmatpush2.xpose.msra.mxu0 0.0
    %3169 = vmatprep.subr.mxu0 0.0
    %3170 = vmatpush2.xpose.msra.mxu0 0.0
    %3171 = vmatprep.subr.mxu0 0.0
    %3172 = vmatpush2.xpose.msra.mxu0 0.0
    %3173 = vmatprep.subr.mxu0 0.0
    %3174 = vmatpush2.xpose.msra.mxu0 0.0
    %3175 = vmatprep.subr.mxu0 0.0
    %3176 = vmatpush2.xpose.msra.mxu0 0.0
    %3177 = vmatprep.subr.mxu0 0.0
    %3178 = vmatpush2.xpose.msra.mxu0 0.0
    %3179 = vmatprep.subr.mxu0 0.0
    %3180 = vmatpush2.xpose.msra.mxu0 0.0
    %3181 = vmatprep.subr.mxu0 0.0
    %3182 = vmatpush2.xpose.msra.mxu0 0.0
    %3183 = vmatprep.subr.mxu0 0.0
    %3184 = vmatpush2.xpose.msra.mxu0 0.0
    %3185 = vmatprep.subr.mxu0 0.0
    %3186 = vmatpush2.xpose.msra.mxu0 0.0
    %3187 = vmatprep.subr.mxu0 0.0
    %3188 = vmatpush2.xpose.msra.mxu0 0.0
    %3189 = vmatprep.subr.mxu0 0.0
    %3190 = vmatpush2.xpose.msra.mxu0 0.0
    %3191 = vmatprep.mubr.f32.mxu0 0.0
    %3192 = vmatmul.mubr.f32.gmra.mxu0 %v3123
    %v3193 = vpop.f32.mrf.mxu0
    %v3194 = vadd.f32 0.0, %v3193
    %v3195 = vpop.f32.mrf.mxu0
    %3196 = vdwg.mxu0
    %v3197 = vsel %vm228, %v3116, -inf
    %3198 = vmax.xlane.f32.xlu0 %v3197
    %v3199 = vpop.xlane.xlu0 %3198
    %v3200 = vsel %vm228, %v3194, -inf
    %3201 = vmax.xlane.f32.xlu0 %v3200
    %v3202 = vpop.xlane.xlu0 %3201
    %v3203 = vsub.f32 %v3116, %v3199
    %v3204 = vsub.f32 %v3194, %v3202
    %v3205 = vmul.f32 %v3203, 1.442695
    %v3206 = vpow.pop %v3205
    %v3207 = vmul.f32 %v3204, 1.442695
    %v3208 = vpow.pop %v3207
    %v3209 = vsel %vm228, %v3206, 0.0
    %3210 = vadd.xlane.f32.xlu0 %v3209
    %v3211 = vpop.xlane.xlu0 %3210
    %v3212 = vsel %vm228, %v3208, 0.0
    %3213 = vadd.xlane.f32.xlu0 %v3212
    %v3214 = vpop.xlane.xlu0 %3213
    %v3215 = vrcp.pop %v3211
    %v3216 = vrcp.pop %v3214
    %v3217 = vmul.f32 %v3206, %v3215
    %v3218 = vmul.f32 %v3208, %v3216
    %3219 = vrot.lane.b32.xlu0 %v2045, 40
    %v3220 = vpop.permute.xlu0 %3219
    %v3223 = vsel %vm228, %v3217, 0
    %3225 = vmatprep.subr.mxu0 0.0
    %3226 = vmatpush1.msra.mxu0 0.0
    %3227 = vmatprep.subr.mxu0 0.0
    %3228 = vmatpush1.msra.mxu0 0.0
    %3229 = vmatprep.subr.mxu0 0.0
    %3230 = vmatpush1.msra.mxu0 0.0
    %3231 = vmatprep.subr.mxu0 0.0
    %3232 = vmatpush1.msra.mxu0 0.0
    %3233 = vmatprep.subr.mxu0 0.0
    %3234 = vmatpush1.msra.mxu0 0.0
    %3235 = vmatprep.subr.mxu0 0.0
    %3236 = vmatpush1.msra.mxu0 0.0
    %3237 = vmatprep.subr.mxu0 0.0
    %3238 = vmatpush1.msra.mxu0 0.0
    %3239 = vmatprep.subr.mxu0 0.0
    %3240 = vmatpush1.msra.mxu0 0.0
    %3241 = vmatprep.subr.mxu0 0.0
    %3242 = vmatpush1.msra.mxu0 0.0
    %3243 = vmatprep.subr.mxu0 0.0
    %3244 = vmatpush1.msra.mxu0 0.0
    %3245 = vmatprep.subr.mxu0 0.0
    %3246 = vmatpush1.msra.mxu0 0.0
    %3247 = vmatprep.subr.mxu0 0.0
    %3248 = vmatpush1.msra.mxu0 0.0
    %3249 = vmatprep.subr.mxu0 0.0
    %3250 = vmatpush1.msra.mxu0 0.0
    %3251 = vmatprep.subr.mxu0 0.0
    %3252 = vmatpush1.msra.mxu0 0.0
    %3253 = vmatprep.subr.mxu0 0.0
    %3254 = vmatpush1.msra.mxu0 0.0
    %3255 = vmatprep.subr.mxu0 0.0
    %3256 = vmatpush1.msra.mxu0 %v3220
    %3257 = vmatprep.subr.mxu0 0.0
    %3258 = vmatpush2.msra.mxu0 0.0
    %3259 = vmatprep.subr.mxu0 0.0
    %3260 = vmatpush2.msra.mxu0 0.0
    %3261 = vmatprep.subr.mxu0 0.0
    %3262 = vmatpush2.msra.mxu0 0.0
    %3263 = vmatprep.subr.mxu0 0.0
    %3264 = vmatpush2.msra.mxu0 0.0
    %3265 = vmatprep.subr.mxu0 0.0
    %3266 = vmatpush2.msra.mxu0 0.0
    %3267 = vmatprep.subr.mxu0 0.0
    %3268 = vmatpush2.msra.mxu0 0.0
    %3269 = vmatprep.subr.mxu0 0.0
    %3270 = vmatpush2.msra.mxu0 0.0
    %3271 = vmatprep.subr.mxu0 0.0
    %3272 = vmatpush2.msra.mxu0 0.0
    %3273 = vmatprep.subr.mxu0 0.0
    %3274 = vmatpush2.msra.mxu0 0.0
    %3275 = vmatprep.subr.mxu0 0.0
    %3276 = vmatpush2.msra.mxu0 0.0
    %3277 = vmatprep.subr.mxu0 0.0
    %3278 = vmatpush2.msra.mxu0 0.0
    %3279 = vmatprep.subr.mxu0 0.0
    %3280 = vmatpush2.msra.mxu0 0.0
    %3281 = vmatprep.subr.mxu0 0.0
    %3282 = vmatpush2.msra.mxu0 0.0
    %3283 = vmatprep.subr.mxu0 0.0
    %3284 = vmatpush2.msra.mxu0 0.0
    %3285 = vmatprep.subr.mxu0 0.0
    %3286 = vmatpush2.msra.mxu0 0.0
    %3287 = vmatprep.subr.mxu0 0.0
    %3288 = vmatpush2.msra.mxu0 0.0
    %3289 = vmatprep.mubr.f32.mxu0 0.0
    %3290 = vmatmul.mubr.f32.gmra.mxu0 %v3223
    %v3291 = vpop.f32.mrf.mxu0
    %v3292 = vadd.f32 0.0, %v3291
    %v3293 = vpop.f32.mrf.mxu0
    %3294 = vdwg.mxu0
    %3295 = vrot.lane.b32.xlu0 %v2050, 40
    %v3296 = vpop.permute.xlu0 %3295
    %v3299 = vsel %vm228, %v3218, 0
    %3301 = vmatprep.subr.mxu0 0.0
    %3302 = vmatpush1.msra.mxu0 0.0
    %3303 = vmatprep.subr.mxu0 0.0
    %3304 = vmatpush1.msra.mxu0 0.0
    %3305 = vmatprep.subr.mxu0 0.0
    %3306 = vmatpush1.msra.mxu0 0.0
    %3307 = vmatprep.subr.mxu0 0.0
    %3308 = vmatpush1.msra.mxu0 0.0
    %3309 = vmatprep.subr.mxu0 0.0
    %3310 = vmatpush1.msra.mxu0 0.0
    %3311 = vmatprep.subr.mxu0 0.0
    %3312 = vmatpush1.msra.mxu0 0.0
    %3313 = vmatprep.subr.mxu0 0.0
    %3314 = vmatpush1.msra.mxu0 0.0
    %3315 = vmatprep.subr.mxu0 0.0
    %3316 = vmatpush1.msra.mxu0 0.0
    %3317 = vmatprep.subr.mxu0 0.0
    %3318 = vmatpush1.msra.mxu0 0.0
    %3319 = vmatprep.subr.mxu0 0.0
    %3320 = vmatpush1.msra.mxu0 0.0
    %3321 = vmatprep.subr.mxu0 0.0
    %3322 = vmatpush1.msra.mxu0 0.0
    %3323 = vmatprep.subr.mxu0 0.0
    %3324 = vmatpush1.msra.mxu0 0.0
    %3325 = vmatprep.subr.mxu0 0.0
    %3326 = vmatpush1.msra.mxu0 0.0
    %3327 = vmatprep.subr.mxu0 0.0
    %3328 = vmatpush1.msra.mxu0 0.0
    %3329 = vmatprep.subr.mxu0 0.0
    %3330 = vmatpush1.msra.mxu0 0.0
    %3331 = vmatprep.subr.mxu0 0.0
    %3332 = vmatpush1.msra.mxu0 %v3296
    %3333 = vmatprep.subr.mxu0 0.0
    %3334 = vmatpush2.msra.mxu0 0.0
    %3335 = vmatprep.subr.mxu0 0.0
    %3336 = vmatpush2.msra.mxu0 0.0
    %3337 = vmatprep.subr.mxu0 0.0
    %3338 = vmatpush2.msra.mxu0 0.0
    %3339 = vmatprep.subr.mxu0 0.0
    %3340 = vmatpush2.msra.mxu0 0.0
    %3341 = vmatprep.subr.mxu0 0.0
    %3342 = vmatpush2.msra.mxu0 0.0
    %3343 = vmatprep.subr.mxu0 0.0
    %3344 = vmatpush2.msra.mxu0 0.0
    %3345 = vmatprep.subr.mxu0 0.0
    %3346 = vmatpush2.msra.mxu0 0.0
    %3347 = vmatprep.subr.mxu0 0.0
    %3348 = vmatpush2.msra.mxu0 0.0
    %3349 = vmatprep.subr.mxu0 0.0
    %3350 = vmatpush2.msra.mxu0 0.0
    %3351 = vmatprep.subr.mxu0 0.0
    %3352 = vmatpush2.msra.mxu0 0.0
    %3353 = vmatprep.subr.mxu0 0.0
    %3354 = vmatpush2.msra.mxu0 0.0
    %3355 = vmatprep.subr.mxu0 0.0
    %3356 = vmatpush2.msra.mxu0 0.0
    %3357 = vmatprep.subr.mxu0 0.0
    %3358 = vmatpush2.msra.mxu0 0.0
    %3359 = vmatprep.subr.mxu0 0.0
    %3360 = vmatpush2.msra.mxu0 0.0
    %3361 = vmatprep.subr.mxu0 0.0
    %3362 = vmatpush2.msra.mxu0 0.0
    %3363 = vmatprep.subr.mxu0 0.0
    %3364 = vmatpush2.msra.mxu0 0.0
    %3365 = vmatprep.mubr.f32.mxu0 0.0
    %3366 = vmatmul.mubr.f32.gmra.mxu0 %v3299
    %v3367 = vpop.f32.mrf.mxu0
    %v3368 = vadd.f32 0.0, %v3367
    %v3369 = vpop.f32.mrf.mxu0
    %3370 = vdwg.mxu0
    %3373 = vrot.lane.b32.xlu0 %v2632, 8
    %v3374 = vpop.permute.xlu0 %3373
    %3375 = vrot.lane.b32.xlu0 %v2708, 8
    %v3376 = vpop.permute.xlu0 %3375
    %3381 = vrot.lane.b32.xlu0 %v2962, 16
    %v3382 = vpop.permute.xlu0 %3381
    %3383 = vrot.lane.b32.xlu0 %v3038, 16
    %v3384 = vpop.permute.xlu0 %3383
    %3389 = vrot.lane.b32.xlu0 %v3292, 24
    %v3390 = vpop.permute.xlu0 %3389
    %3391 = vrot.lane.b32.xlu0 %v3368, 24
    %v3392 = vpop.permute.xlu0 %3391
    %v3395 = vsel %vm228, %v2302, %v3374
    %v3396 = vsel %vm228, %v2378, %v3376
    %v3397 = vsel %vm1570, %v3395, %v3382
    %v3398 = vsel %vm1570, %v3396, %v3384
    %v3399 = vsel %vm1573, %v3397, %v3390
    %v3400 = vsel %vm1573, %v3398, %v3392
    %s3401 = scalar_lea.vmem %s2, 32
    %v3402 = vld [vmem:[%s3401] sm:$0xff]
    %v3403 = vld [vmem:[%s3401 + $0x8] sm:$0xff]
    %v3404 = vld [vmem:[%s3401 + $0x10] sm:$0xff]
    %v3405 = vld [vmem:[%s3401 + $0x18] sm:$0xff]
    %v3407 = vsel %vm96, %v3399, 0
    %v3410 = vsel %vm96, %v3400, 0
    %3412 = vmatprep.subr.mxu0 0.0
    %3413 = vmatpush1.msra.mxu0 0.0
    %3414 = vmatprep.subr.mxu0 0.0
    %3415 = vmatpush1.msra.mxu0 0.0
    %3416 = vmatprep.subr.mxu0 0.0
    %3417 = vmatpush1.msra.mxu0 0.0
    %3418 = vmatprep.subr.mxu0 0.0
    %3419 = vmatpush1.msra.mxu0 0.0
    %3420 = vmatprep.subr.mxu0 0.0
    %3421 = vmatpush1.msra.mxu0 0.0
    %3422 = vmatprep.subr.mxu0 0.0
    %3423 = vmatpush1.msra.mxu0 0.0
    %3424 = vmatprep.subr.mxu0 0.0
    %3425 = vmatpush1.msra.mxu0 0.0
    %3426 = vmatprep.subr.mxu0 0.0
    %3427 = vmatpush1.msra.mxu0 0.0
    %3428 = vmatprep.subr.mxu0 0.0
    %3429 = vmatpush1.msra.mxu0 0.0
    %3430 = vmatprep.subr.mxu0 0.0
    %3431 = vmatpush1.msra.mxu0 0.0
    %3432 = vmatprep.subr.mxu0 0.0
    %3433 = vmatpush1.msra.mxu0 0.0
    %3434 = vmatprep.subr.mxu0 0.0
    %3435 = vmatpush1.msra.mxu0 0.0
    %3436 = vmatprep.subr.mxu0 0.0
    %3437 = vmatpush1.msra.mxu0 %v3405
    %3438 = vmatprep.subr.mxu0 0.0
    %3439 = vmatpush1.msra.mxu0 %v3404
    %3440 = vmatprep.subr.mxu0 0.0
    %3441 = vmatpush1.msra.mxu0 %v3403
    %3442 = vmatprep.subr.mxu0 0.0
    %3443 = vmatpush1.msra.mxu0 %v3402
    %3444 = vmatprep.subr.mxu0 0.0
    %3445 = vmatpush2.msra.mxu0 0.0
    %3446 = vmatprep.subr.mxu0 0.0
    %3447 = vmatpush2.msra.mxu0 0.0
    %3448 = vmatprep.subr.mxu0 0.0
    %3449 = vmatpush2.msra.mxu0 0.0
    %3450 = vmatprep.subr.mxu0 0.0
    %3451 = vmatpush2.msra.mxu0 0.0
    %3452 = vmatprep.subr.mxu0 0.0
    %3453 = vmatpush2.msra.mxu0 0.0
    %3454 = vmatprep.subr.mxu0 0.0
    %3455 = vmatpush2.msra.mxu0 0.0
    %3456 = vmatprep.subr.mxu0 0.0
    %3457 = vmatpush2.msra.mxu0 0.0
    %3458 = vmatprep.subr.mxu0 0.0
    %3459 = vmatpush2.msra.mxu0 0.0
    %3460 = vmatprep.subr.mxu0 0.0
    %3461 = vmatpush2.msra.mxu0 0.0
    %3462 = vmatprep.subr.mxu0 0.0
    %3463 = vmatpush2.msra.mxu0 0.0
    %3464 = vmatprep.subr.mxu0 0.0
    %3465 = vmatpush2.msra.mxu0 0.0
    %3466 = vmatprep.subr.mxu0 0.0
    %3467 = vmatpush2.msra.mxu0 0.0
    %3468 = vmatprep.subr.mxu0 0.0
    %3469 = vmatpush2.msra.mxu0 0.0
    %3470 = vmatprep.subr.mxu0 0.0
    %3471 = vmatpush2.msra.mxu0 0.0
    %3472 = vmatprep.subr.mxu0 0.0
    %3473 = vmatpush2.msra.mxu0 0.0
    %3474 = vmatprep.subr.mxu0 0.0
    %3475 = vmatpush2.msra.mxu0 0.0
    %3476 = vmatprep.mubr.f32.mxu0 0.0
    %3477 = vmatmul.mubr.f32.gmra.mxu0 %v3407
    %v3478 = vpop.f32.mrf.mxu0
    %v3479 = vadd.f32 0.0, %v3478
    %v3480 = vpop.f32.mrf.mxu0
    %3481 = vmatprep.mubr.f32.mxu0 0.0
    %3482 = vmatmul.mubr.f32.gmra.mxu0 %v3410
    %v3483 = vpop.f32.mrf.mxu0
    %v3484 = vadd.f32 0.0, %v3483
    %v3485 = vpop.f32.mrf.mxu0
    %3486 = vdwg.mxu0
    %v3487 = vadd.f32 %v1917, %v3479
    %v3488 = vadd.f32 %v1918, %v3484
    %s3489 = scalar_lea.vmem %s3, 1
    %v3490 = vld [vmem:[%s3489] sm:$0x1]
    %v3492 = vlaneseq
    %v3493 = vshrl.u32 %v3492, 7
    %v3494 = vsub.s32 0, %v3493
    %v3495 = vrot.slane %v3490, %v3494
    %v3497 = vadd.f32 %v3487, %v3495
    %v3498 = vadd.f32 %v3488, %v3495
    %s3499 = scalar_lea.vmem %s6, 1
    %v3500 = vld [vmem:[%s3499] sm:$0x1]
    %s3501 = scalar_lea.vmem [#allocation7], 1
    %v3502 = vld [vmem:[%s3501] sm:$0x1]
    %v3503 = vsel %vm96, %v3497, 0.0
    %3504 = vadd.xlane.f32.xlu0 %v3503
    %v3505 = vpop.xlane.xlu0 %3504
    %v3506 = vsel %vm96, %v3498, 0.0
    %3507 = vadd.xlane.f32.xlu0 %v3506
    %v3508 = vpop.xlane.xlu0 %3507
    %v3509 = vmul.f32 %v3505, %v103
    %v3510 = vmul.f32 %v3508, %v103
    %v3511 = vsub.f32 %v3497, %v3509
    %v3512 = vsub.f32 %v3498, %v3510
    %v3513 = vmul.f32 %v3511, %v3511
    %v3514 = vmul.f32 %v3512, %v3512
    %v3515 = vsel %vm96, %v3513, 0.0
    %3516 = vadd.xlane.f32.xlu0 %v3515
    %v3517 = vpop.xlane.xlu0 %3516
    %v3518 = vsel %vm96, %v3514, 0.0
    %3519 = vadd.xlane.f32.xlu0 %v3518
    %v3520 = vpop.xlane.xlu0 %3519
    %v3521 = vmul.f32 %v3517, %v103
    %v3522 = vmul.f32 %v3520, %v103
    %v3523 = vadd.f32 %v3521, 1e-05
    %v3524 = vadd.f32 %v3522, 1e-05
    %v3525 = vrsqrt.pop %v3523
    %v3526 = vrsqrt.pop %v3524
    %v3527 = vmul.f32 %v3511, %v3525
    %v3528 = vmul.f32 %v3512, %v3526
    %v3530 = vlaneseq
    %v3531 = vshrl.u32 %v3530, 7
    %v3532 = vsub.s32 0, %v3531
    %v3533 = vrot.slane %v3500, %v3532
    %v3535 = vmul.f32 %v3527, %v3533
    %v3536 = vmul.f32 %v3528, %v3533
    %v3538 = vlaneseq
    %v3539 = vshrl.u32 %v3538, 7
    %v3540 = vsub.s32 0, %v3539
    %v3541 = vrot.slane %v3502, %v3540
    %v3543 = vadd.f32 %v3535, %v3541
    %v3544 = vadd.f32 %v3536, %v3541
    %s3545 = scalar_lea.vmem %s8, 32
    %v3546 = vld [vmem:[%s3545] sm:$0xff]
    %v3547 = vld [vmem:[%s3545 + $0x8] sm:$0xff]
    %v3548 = vld [vmem:[%s3545 + $0x10] sm:$0xff]
    %v3549 = vld [vmem:[%s3545 + $0x18] sm:$0xff]
    %s3550 = scalar_lea.vmem %s9, 1
    %v3551 = vld [vmem:[%s3550] sm:$0x1]
    %v3553 = vlaneseq
    %v3554 = vshrl.u32 %v3553, 7
    %v3555 = vsub.s32 0, %v3554
    %v3556 = vrot.slane %v3551, %v3555
    %v3559 = vsel %vm96, %v3543, 0
    %v3562 = vsel %vm96, %v3544, 0
    %3564 = vmatprep.subr.mxu0 0.0
    %3565 = vmatpush1.msra.mxu0 0.0
    %3566 = vmatprep.subr.mxu0 0.0
    %3567 = vmatpush1.msra.mxu0 0.0
    %3568 = vmatprep.subr.mxu0 0.0
    %3569 = vmatpush1.msra.mxu0 0.0
    %3570 = vmatprep.subr.mxu0 0.0
    %3571 = vmatpush1.msra.mxu0 0.0
    %3572 = vmatprep.subr.mxu0 0.0
    %3573 = vmatpush1.msra.mxu0 0.0
    %3574 = vmatprep.subr.mxu0 0.0
    %3575 = vmatpush1.msra.mxu0 0.0
    %3576 = vmatprep.subr.mxu0 0.0
    %3577 = vmatpush1.msra.mxu0 0.0
    %3578 = vmatprep.subr.mxu0 0.0
    %3579 = vmatpush1.msra.mxu0 0.0
    %3580 = vmatprep.subr.mxu0 0.0
    %3581 = vmatpush1.msra.mxu0 0.0
    %3582 = vmatprep.subr.mxu0 0.0
    %3583 = vmatpush1.msra.mxu0 0.0
    %3584 = vmatprep.subr.mxu0 0.0
    %3585 = vmatpush1.msra.mxu0 0.0
    %3586 = vmatprep.subr.mxu0 0.0
    %3587 = vmatpush1.msra.mxu0 0.0
    %3588 = vmatprep.subr.mxu0 0.0
    %3589 = vmatpush1.msra.mxu0 %v3549
    %3590 = vmatprep.subr.mxu0 0.0
    %3591 = vmatpush1.msra.mxu0 %v3548
    %3592 = vmatprep.subr.mxu0 0.0
    %3593 = vmatpush1.msra.mxu0 %v3547
    %3594 = vmatprep.subr.mxu0 0.0
    %3595 = vmatpush1.msra.mxu0 %v3546
    %3596 = vmatprep.subr.mxu0 0.0
    %3597 = vmatpush2.msra.mxu0 0.0
    %3598 = vmatprep.subr.mxu0 0.0
    %3599 = vmatpush2.msra.mxu0 0.0
    %3600 = vmatprep.subr.mxu0 0.0
    %3601 = vmatpush2.msra.mxu0 0.0
    %3602 = vmatprep.subr.mxu0 0.0
    %3603 = vmatpush2.msra.mxu0 0.0
    %3604 = vmatprep.subr.mxu0 0.0
    %3605 = vmatpush2.msra.mxu0 0.0
    %3606 = vmatprep.subr.mxu0 0.0
    %3607 = vmatpush2.msra.mxu0 0.0
    %3608 = vmatprep.subr.mxu0 0.0
    %3609 = vmatpush2.msra.mxu0 0.0
    %3610 = vmatprep.subr.mxu0 0.0
    %3611 = vmatpush2.msra.mxu0 0.0
    %3612 = vmatprep.subr.mxu0 0.0
    %3613 = vmatpush2.msra.mxu0 0.0
    %3614 = vmatprep.subr.mxu0 0.0
    %3615 = vmatpush2.msra.mxu0 0.0
    %3616 = vmatprep.subr.mxu0 0.0
    %3617 = vmatpush2.msra.mxu0 0.0
    %3618 = vmatprep.subr.mxu0 0.0
    %3619 = vmatpush2.msra.mxu0 0.0
    %3620 = vmatprep.subr.mxu0 0.0
    %3621 = vmatpush2.msra.mxu0 0.0
    %3622 = vmatprep.subr.mxu0 0.0
    %3623 = vmatpush2.msra.mxu0 0.0
    %3624 = vmatprep.subr.mxu0 0.0
    %3625 = vmatpush2.msra.mxu0 0.0
    %3626 = vmatprep.subr.mxu0 0.0
    %3627 = vmatpush2.msra.mxu0 0.0
    %3628 = vmatprep.mubr.f32.mxu0 0.0
    %3629 = vmatmul.mubr.f32.gmra.mxu0 %v3559
    %v3630 = vpop.f32.mrf.mxu0
    %v3631 = vadd.f32 %v3556, %v3630
    %v3632 = vpop.f32.mrf.mxu0
    %3633 = vmatprep.mubr.f32.mxu0 0.0
    %3634 = vmatmul.mubr.f32.gmra.mxu0 %v3562
    %v3635 = vpop.f32.mrf.mxu0
    %v3636 = vadd.f32 %v3556, %v3635
    %v3637 = vpop.f32.mrf.mxu0
    %3638 = vdwg.mxu0
    %v3639 = vmul.f32 %v3631, 0.5
    %v3640 = vmul.f32 %v3636, 0.5
    %v3641 = vmul.f32 %v3631, 0.70710677
    %v3642 = vmul.f32 %v3636, 0.70710677
    %v3643 = verf.f32.pop %v3641
    %v3644 = verf.f32.pop %v3642
    %v3645 = vadd.f32 %v3643, 1.0
    %v3646 = vadd.f32 %v3644, 1.0
    %v3647 = vmul.f32 %v3639, %v3645
    %v3648 = vmul.f32 %v3640, %v3646
    %s3649 = scalar_lea.vmem %s10, 64
    %v3650 = vld [vmem:[%s3649] sm:$0xff]
    %v3651 = vld [vmem:[%s3649 + $0x8] sm:$0xff]
    %v3652 = vld [vmem:[%s3649 + $0x10] sm:$0xff]
    %v3653 = vld [vmem:[%s3649 + $0x18] sm:$0xff]
    %v3654 = vld [vmem:[%s3649 + $0x20] sm:$0xff]
    %v3655 = vld [vmem:[%s3649 + $0x28] sm:$0xff]
    %v3656 = vld [vmem:[%s3649 + $0x30] sm:$0xff]
    %v3657 = vld [vmem:[%s3649 + $0x38] sm:$0xff]
    %v3659 = vsel %vm1826, %v3647, 0
    %v3662 = vsel %vm1826, %v3648, 0
    %3664 = vmatprep.subr.mxu0 0.0
    %3665 = vmatpush1.msra.mxu0 0.0
    %3666 = vmatprep.subr.mxu0 0.0
    %3667 = vmatpush1.msra.mxu0 0.0
    %3668 = vmatprep.subr.mxu0 0.0
    %3669 = vmatpush1.msra.mxu0 0.0
    %3670 = vmatprep.subr.mxu0 0.0
    %3671 = vmatpush1.msra.mxu0 0.0
    %3672 = vmatprep.subr.mxu0 0.0
    %3673 = vmatpush1.msra.mxu0 0.0
    %3674 = vmatprep.subr.mxu0 0.0
    %3675 = vmatpush1.msra.mxu0 0.0
    %3676 = vmatprep.subr.mxu0 0.0
    %3677 = vmatpush1.msra.mxu0 0.0
    %3678 = vmatprep.subr.mxu0 0.0
    %3679 = vmatpush1.msra.mxu0 0.0
    %3680 = vmatprep.subr.mxu0 0.0
    %3681 = vmatpush1.msra.mxu0 %v3657
    %3682 = vmatprep.subr.mxu0 0.0
    %3683 = vmatpush1.msra.mxu0 %v3656
    %3684 = vmatprep.subr.mxu0 0.0
    %3685 = vmatpush1.msra.mxu0 %v3655
    %3686 = vmatprep.subr.mxu0 0.0
    %3687 = vmatpush1.msra.mxu0 %v3654
    %3688 = vmatprep.subr.mxu0 0.0
    %3689 = vmatpush1.msra.mxu0 %v3653
    %3690 = vmatprep.subr.mxu0 0.0
    %3691 = vmatpush1.msra.mxu0 %v3652
    %3692 = vmatprep.subr.mxu0 0.0
    %3693 = vmatpush1.msra.mxu0 %v3651
    %3694 = vmatprep.subr.mxu0 0.0
    %3695 = vmatpush1.msra.mxu0 %v3650
    %3696 = vmatprep.subr.mxu0 0.0
    %3697 = vmatpush2.msra.mxu0 0.0
    %3698 = vmatprep.subr.mxu0 0.0
    %3699 = vmatpush2.msra.mxu0 0.0
    %3700 = vmatprep.subr.mxu0 0.0
    %3701 = vmatpush2.msra.mxu0 0.0
    %3702 = vmatprep.subr.mxu0 0.0
    %3703 = vmatpush2.msra.mxu0 0.0
    %3704 = vmatprep.subr.mxu0 0.0
    %3705 = vmatpush2.msra.mxu0 0.0
    %3706 = vmatprep.subr.mxu0 0.0
    %3707 = vmatpush2.msra.mxu0 0.0
    %3708 = vmatprep.subr.mxu0 0.0
    %3709 = vmatpush2.msra.mxu0 0.0
    %3710 = vmatprep.subr.mxu0 0.0
    %3711 = vmatpush2.msra.mxu0 0.0
    %3712 = vmatprep.subr.mxu0 0.0
    %3713 = vmatpush2.msra.mxu0 0.0
    %3714 = vmatprep.subr.mxu0 0.0
    %3715 = vmatpush2.msra.mxu0 0.0
    %3716 = vmatprep.subr.mxu0 0.0
    %3717 = vmatpush2.msra.mxu0 0.0
    %3718 = vmatprep.subr.mxu0 0.0
    %3719 = vmatpush2.msra.mxu0 0.0
    %3720 = vmatprep.subr.mxu0 0.0
    %3721 = vmatpush2.msra.mxu0 0.0
    %3722 = vmatprep.subr.mxu0 0.0
    %3723 = vmatpush2.msra.mxu0 0.0
    %3724 = vmatprep.subr.mxu0 0.0
    %3725 = vmatpush2.msra.mxu0 0.0
    %3726 = vmatprep.subr.mxu0 0.0
    %3727 = vmatpush2.msra.mxu0 0.0
    %3728 = vmatprep.mubr.f32.mxu0 0.0
    %3729 = vmatmul.mubr.f32.gmra.mxu0 %v3659
    %v3730 = vpop.f32.mrf.mxu0
    %v3731 = vadd.f32 0.0, %v3730
    %v3732 = vpop.f32.mrf.mxu0
    %3733 = vmatprep.mubr.f32.mxu0 0.0
    %3734 = vmatmul.mubr.f32.gmra.mxu0 %v3662
    %v3735 = vpop.f32.mrf.mxu0
    %v3736 = vadd.f32 0.0, %v3735
    %v3737 = vpop.f32.mrf.mxu0
    %3738 = vdwg.mxu0
    %v3739 = vadd.f32 %v3497, %v3731
    %v3740 = vadd.f32 %v3498, %v3736
    %s3741 = scalar_lea.vmem %s11, 1
    %v3742 = vld [vmem:[%s3741] sm:$0x1]
    %v3744 = vlaneseq
    %v3745 = vshrl.u32 %v3744, 7
    %v3746 = vsub.s32 0, %v3745
    %v3747 = vrot.slane %v3742, %v3746
    %v3749 = vadd.f32 %v3739, %v3747
    %v3750 = vadd.f32 %v3740, %v3747
    %s3751 = scalar_lea.vmem [#allocation8], 8
    %3752 = vst.msk [vmem:[%s3751] sm:$0xff] %vm96, %v3749
    %3753 = vst.msk [vmem:[%s3751 + $0x18] sm:$0xff] %vm96, %v3750
    %s3754 = scalar_lea.vmem %s4, 2
    %v3755 = vld [vmem:[%s3754] sm:$0x1]
    %s3756 = scalar_lea.vmem [#allocation5], 2
    %v3757 = vld [vmem:[%s3756] sm:$0x1]
    %v3758 = vsel %vm96, %v3749, 0.0
    %3759 = vadd.xlane.f32.xlu0 %v3758
    %v3760 = vpop.xlane.xlu0 %3759
    %v3761 = vsel %vm96, %v3750, 0.0
    %3762 = vadd.xlane.f32.xlu0 %v3761
    %v3763 = vpop.xlane.xlu0 %3762
    %v3764 = vmul.f32 %v3760, %v103
    %v3765 = vmul.f32 %v3763, %v103
    %v3766 = vsub.f32 %v3749, %v3764
    %v3767 = vsub.f32 %v3750, %v3765
    %v3768 = vmul.f32 %v3766, %v3766
    %v3769 = vmul.f32 %v3767, %v3767
    %v3770 = vsel %vm96, %v3768, 0.0
    %3771 = vadd.xlane.f32.xlu0 %v3770
    %v3772 = vpop.xlane.xlu0 %3771
    %v3773 = vsel %vm96, %v3769, 0.0
    %3774 = vadd.xlane.f32.xlu0 %v3773
    %v3775 = vpop.xlane.xlu0 %3774
    %v3776 = vmul.f32 %v3772, %v103
    %v3777 = vmul.f32 %v3775, %v103
    %v3778 = vadd.f32 %v3776, 1e-05
    %v3779 = vadd.f32 %v3777, 1e-05
    %v3780 = vrsqrt.pop %v3778
    %v3781 = vrsqrt.pop %v3779
    %v3782 = vmul.f32 %v3766, %v3780
    %v3783 = vmul.f32 %v3767, %v3781
    %v3785 = vlaneseq
    %v3786 = vshrl.u32 %v3785, 7
    %v3787 = vsub.s32 0, %v3786
    %v3788 = vrot.slane %v3755, %v3787
    %v3790 = vmul.f32 %v3782, %v3788
    %v3791 = vmul.f32 %v3783, %v3788
    %v3793 = vlaneseq
    %v3794 = vshrl.u32 %v3793, 7
    %v3795 = vsub.s32 0, %v3794
    %v3796 = vrot.slane %v3757, %v3795
    %v3798 = vadd.f32 %v3790, %v3796
    %v3799 = vadd.f32 %v3791, %v3796
    %s3800 = scalar_lea.vmem %s1, 64
    %v3801 = vld [vmem:[%s3800] sm:$0xff]
    %v3802 = vld [vmem:[%s3800 + $0x8] sm:$0xff]
    %v3803 = vld [vmem:[%s3800 + $0x10] sm:$0xff]
    %v3804 = vld [vmem:[%s3800 + $0x18] sm:$0xff]
    %v3806 = vsel %vm96, %v3798, 0
    %v3809 = vsel %vm96, %v3799, 0
    %3811 = vmatprep.subr.mxu0 0.0
    %3812 = vmatpush1.msra.mxu0 0.0
    %3813 = vmatprep.subr.mxu0 0.0
    %3814 = vmatpush1.msra.mxu0 0.0
    %3815 = vmatprep.subr.mxu0 0.0
    %3816 = vmatpush1.msra.mxu0 0.0
    %3817 = vmatprep.subr.mxu0 0.0
    %3818 = vmatpush1.msra.mxu0 0.0
    %3819 = vmatprep.subr.mxu0 0.0
    %3820 = vmatpush1.msra.mxu0 0.0
    %3821 = vmatprep.subr.mxu0 0.0
    %3822 = vmatpush1.msra.mxu0 0.0
    %3823 = vmatprep.subr.mxu0 0.0
    %3824 = vmatpush1.msra.mxu0 0.0
    %3825 = vmatprep.subr.mxu0 0.0
    %3826 = vmatpush1.msra.mxu0 0.0
    %3827 = vmatprep.subr.mxu0 0.0
    %3828 = vmatpush1.msra.mxu0 0.0
    %3829 = vmatprep.subr.mxu0 0.0
    %3830 = vmatpush1.msra.mxu0 0.0
    %3831 = vmatprep.subr.mxu0 0.0
    %3832 = vmatpush1.msra.mxu0 0.0
    %3833 = vmatprep.subr.mxu0 0.0
    %3834 = vmatpush1.msra.mxu0 0.0
    %3835 = vmatprep.subr.mxu0 0.0
    %3836 = vmatpush1.msra.mxu0 %v3804
    %3837 = vmatprep.subr.mxu0 0.0
    %3838 = vmatpush1.msra.mxu0 %v3803
    %3839 = vmatprep.subr.mxu0 0.0
    %3840 = vmatpush1.msra.mxu0 %v3802
    %3841 = vmatprep.subr.mxu0 0.0
    %3842 = vmatpush1.msra.mxu0 %v3801
    %3843 = vmatprep.subr.mxu0 0.0
    %3844 = vmatpush2.msra.mxu0 0.0
    %3845 = vmatprep.subr.mxu0 0.0
    %3846 = vmatpush2.msra.mxu0 0.0
    %3847 = vmatprep.subr.mxu0 0.0
    %3848 = vmatpush2.msra.mxu0 0.0
    %3849 = vmatprep.subr.mxu0 0.0
    %3850 = vmatpush2.msra.mxu0 0.0
    %3851 = vmatprep.subr.mxu0 0.0
    %3852 = vmatpush2.msra.mxu0 0.0
    %3853 = vmatprep.subr.mxu0 0.0
    %3854 = vmatpush2.msra.mxu0 0.0
    %3855 = vmatprep.subr.mxu0 0.0
    %3856 = vmatpush2.msra.mxu0 0.0
    %3857 = vmatprep.subr.mxu0 0.0
    %3858 = vmatpush2.msra.mxu0 0.0
    %3859 = vmatprep.subr.mxu0 0.0
    %3860 = vmatpush2.msra.mxu0 0.0
    %3861 = vmatprep.subr.mxu0 0.0
    %3862 = vmatpush2.msra.mxu0 0.0
    %3863 = vmatprep.subr.mxu0 0.0
    %3864 = vmatpush2.msra.mxu0 0.0
    %3865 = vmatprep.subr.mxu0 0.0
    %3866 = vmatpush2.msra.mxu0 0.0
    %3867 = vmatprep.subr.mxu0 0.0
    %3868 = vmatpush2.msra.mxu0 0.0
    %3869 = vmatprep.subr.mxu0 0.0
    %3870 = vmatpush2.msra.mxu0 0.0
    %3871 = vmatprep.subr.mxu0 0.0
    %3872 = vmatpush2.msra.mxu0 0.0
    %3873 = vmatprep.subr.mxu0 0.0
    %3874 = vmatpush2.msra.mxu0 0.0
    %3875 = vmatprep.mubr.f32.mxu0 0.0
    %3876 = vmatmul.mubr.f32.gmra.mxu0 %v3806
    %v3877 = vpop.f32.mrf.mxu0
    %v3878 = vadd.f32 0.0, %v3877
    %v3879 = vpop.f32.mrf.mxu0
    %3880 = vmatprep.mubr.f32.mxu0 0.0
    %3881 = vmatmul.mubr.f32.gmra.mxu0 %v3809
    %v3882 = vpop.f32.mrf.mxu0
    %v3883 = vadd.f32 0.0, %v3882
    %v3884 = vpop.f32.mrf.mxu0
    %3885 = vdwg.mxu0
    %3887 = vrot.lane.b32.xlu0 %v3878, 96
    %v3888 = vpop.permute.xlu0 %3887
    %v3889 = vsel %vm228, %v3878, 0
    %v3891 = vsel %vm228, %v3888, 0
    %3893 = vmatprep.subr.mxu0 0.0
    %3894 = vmatpush1.xpose.msra.mxu0 0.0
    %3895 = vmatprep.subr.mxu0 0.0
    %3896 = vmatpush1.xpose.msra.mxu0 0.0
    %3897 = vmatprep.subr.mxu0 0.0
    %3898 = vmatpush1.xpose.msra.mxu0 0.0
    %3899 = vmatprep.subr.mxu0 0.0
    %3900 = vmatpush1.xpose.msra.mxu0 0.0
    %3901 = vmatprep.subr.mxu0 0.0
    %3902 = vmatpush1.xpose.msra.mxu0 0.0
    %3903 = vmatprep.subr.mxu0 0.0
    %3904 = vmatpush1.xpose.msra.mxu0 0.0
    %3905 = vmatprep.subr.mxu0 0.0
    %3906 = vmatpush1.xpose.msra.mxu0 0.0
    %3907 = vmatprep.subr.mxu0 0.0
    %3908 = vmatpush1.xpose.msra.mxu0 0.0
    %3909 = vmatprep.subr.mxu0 0.0
    %3910 = vmatpush1.xpose.msra.mxu0 0.0
    %3911 = vmatprep.subr.mxu0 0.0
    %3912 = vmatpush1.xpose.msra.mxu0 0.0
    %3913 = vmatprep.subr.mxu0 0.0
    %3914 = vmatpush1.xpose.msra.mxu0 0.0
    %3915 = vmatprep.subr.mxu0 0.0
    %3916 = vmatpush1.xpose.msra.mxu0 0.0
    %3917 = vmatprep.subr.mxu0 0.0
    %3918 = vmatpush1.xpose.msra.mxu0 0.0
    %3919 = vmatprep.subr.mxu0 0.0
    %3920 = vmatpush1.xpose.msra.mxu0 0.0
    %3921 = vmatprep.subr.mxu0 0.0
    %3922 = vmatpush1.xpose.msra.mxu0 0.0
    %3923 = vmatprep.subr.mxu0 0.0
    %3924 = vmatpush1.xpose.msra.mxu0 %v3891
    %3925 = vmatprep.subr.mxu0 0.0
    %3926 = vmatpush2.xpose.msra.mxu0 0.0
    %3927 = vmatprep.subr.mxu0 0.0
    %3928 = vmatpush2.xpose.msra.mxu0 0.0
    %3929 = vmatprep.subr.mxu0 0.0
    %3930 = vmatpush2.xpose.msra.mxu0 0.0
    %3931 = vmatprep.subr.mxu0 0.0
    %3932 = vmatpush2.xpose.msra.mxu0 0.0
    %3933 = vmatprep.subr.mxu0 0.0
    %3934 = vmatpush2.xpose.msra.mxu0 0.0
    %3935 = vmatprep.subr.mxu0 0.0
    %3936 = vmatpush2.xpose.msra.mxu0 0.0
    %3937 = vmatprep.subr.mxu0 0.0
    %3938 = vmatpush2.xpose.msra.mxu0 0.0
    %3939 = vmatprep.subr.mxu0 0.0
    %3940 = vmatpush2.xpose.msra.mxu0 0.0
    %3941 = vmatprep.subr.mxu0 0.0
    %3942 = vmatpush2.xpose.msra.mxu0 0.0
    %3943 = vmatprep.subr.mxu0 0.0
    %3944 = vmatpush2.xpose.msra.mxu0 0.0
    %3945 = vmatprep.subr.mxu0 0.0
    %3946 = vmatpush2.xpose.msra.mxu0 0.0
    %3947 = vmatprep.subr.mxu0 0.0
    %3948 = vmatpush2.xpose.msra.mxu0 0.0
    %3949 = vmatprep.subr.mxu0 0.0
    %3950 = vmatpush2.xpose.msra.mxu0 0.0
    %3951 = vmatprep.subr.mxu0 0.0
    %3952 = vmatpush2.xpose.msra.mxu0 0.0
    %3953 = vmatprep.subr.mxu0 0.0
    %3954 = vmatpush2.xpose.msra.mxu0 0.0
    %3955 = vmatprep.subr.mxu0 0.0
    %3956 = vmatpush2.xpose.msra.mxu0 0.0
    %3957 = vmatprep.mubr.f32.mxu0 0.0
    %3958 = vmatmul.mubr.f32.gmra.mxu0 %v3889
    %v3959 = vpop.f32.mrf.mxu0
    %v3960 = vadd.f32 0.0, %v3959
    %v3961 = vpop.f32.mrf.mxu0
    %3962 = vdwg.mxu0
    %3964 = vrot.lane.b32.xlu0 %v3883, 96
    %v3965 = vpop.permute.xlu0 %3964
    %v3966 = vsel %vm228, %v3883, 0
    %v3968 = vsel %vm228, %v3965, 0
    %3970 = vmatprep.subr.mxu0 0.0
    %3971 = vmatpush1.xpose.msra.mxu0 0.0
    %3972 = vmatprep.subr.mxu0 0.0
    %3973 = vmatpush1.xpose.msra.mxu0 0.0
    %3974 = vmatprep.subr.mxu0 0.0
    %3975 = vmatpush1.xpose.msra.mxu0 0.0
    %3976 = vmatprep.subr.mxu0 0.0
    %3977 = vmatpush1.xpose.msra.mxu0 0.0
    %3978 = vmatprep.subr.mxu0 0.0
    %3979 = vmatpush1.xpose.msra.mxu0 0.0
    %3980 = vmatprep.subr.mxu0 0.0
    %3981 = vmatpush1.xpose.msra.mxu0 0.0
    %3982 = vmatprep.subr.mxu0 0.0
    %3983 = vmatpush1.xpose.msra.mxu0 0.0
    %3984 = vmatprep.subr.mxu0 0.0
    %3985 = vmatpush1.xpose.msra.mxu0 0.0
    %3986 = vmatprep.subr.mxu0 0.0
    %3987 = vmatpush1.xpose.msra.mxu0 0.0
    %3988 = vmatprep.subr.mxu0 0.0
    %3989 = vmatpush1.xpose.msra.mxu0 0.0
    %3990 = vmatprep.subr.mxu0 0.0
    %3991 = vmatpush1.xpose.msra.mxu0 0.0
    %3992 = vmatprep.subr.mxu0 0.0
    %3993 = vmatpush1.xpose.msra.mxu0 0.0
    %3994 = vmatprep.subr.mxu0 0.0
    %3995 = vmatpush1.xpose.msra.mxu0 0.0
    %3996 = vmatprep.subr.mxu0 0.0
    %3997 = vmatpush1.xpose.msra.mxu0 0.0
    %3998 = vmatprep.subr.mxu0 0.0
    %3999 = vmatpush1.xpose.msra.mxu0 0.0
    %4000 = vmatprep.subr.mxu0 0.0
    %4001 = vmatpush1.xpose.msra.mxu0 %v3968
    %4002 = vmatprep.subr.mxu0 0.0
    %4003 = vmatpush2.xpose.msra.mxu0 0.0
    %4004 = vmatprep.subr.mxu0 0.0
    %4005 = vmatpush2.xpose.msra.mxu0 0.0
    %4006 = vmatprep.subr.mxu0 0.0
    %4007 = vmatpush2.xpose.msra.mxu0 0.0
    %4008 = vmatprep.subr.mxu0 0.0
    %4009 = vmatpush2.xpose.msra.mxu0 0.0
    %4010 = vmatprep.subr.mxu0 0.0
    %4011 = vmatpush2.xpose.msra.mxu0 0.0
    %4012 = vmatprep.subr.mxu0 0.0
    %4013 = vmatpush2.xpose.msra.mxu0 0.0
    %4014 = vmatprep.subr.mxu0 0.0
    %4015 = vmatpush2.xpose.msra.mxu0 0.0
    %4016 = vmatprep.subr.mxu0 0.0
    %4017 = vmatpush2.xpose.msra.mxu0 0.0
    %4018 = vmatprep.subr.mxu0 0.0
    %4019 = vmatpush2.xpose.msra.mxu0 0.0
    %4020 = vmatprep.subr.mxu0 0.0
    %4021 = vmatpush2.xpose.msra.mxu0 0.0
    %4022 = vmatprep.subr.mxu0 0.0
    %4023 = vmatpush2.xpose.msra.mxu0 0.0
    %4024 = vmatprep.subr.mxu0 0.0
    %4025 = vmatpush2.xpose.msra.mxu0 0.0
    %4026 = vmatprep.subr.mxu0 0.0
    %4027 = vmatpush2.xpose.msra.mxu0 0.0
    %4028 = vmatprep.subr.mxu0 0.0
    %4029 = vmatpush2.xpose.msra.mxu0 0.0
    %4030 = vmatprep.subr.mxu0 0.0
    %4031 = vmatpush2.xpose.msra.mxu0 0.0
    %4032 = vmatprep.subr.mxu0 0.0
    %4033 = vmatpush2.xpose.msra.mxu0 0.0
    %4034 = vmatprep.mubr.f32.mxu0 0.0
    %4035 = vmatmul.mubr.f32.gmra.mxu0 %v3966
    %v4036 = vpop.f32.mrf.mxu0
    %v4037 = vadd.f32 0.0, %v4036
    %v4038 = vpop.f32.mrf.mxu0
    %4039 = vdwg.mxu0
    %v4040 = vsel %vm228, %v3960, -inf
    %4041 = vmax.xlane.f32.xlu0 %v4040
    %v4042 = vpop.xlane.xlu0 %4041
    %v4043 = vsel %vm228, %v4037, -inf
    %4044 = vmax.xlane.f32.xlu0 %v4043
    %v4045 = vpop.xlane.xlu0 %4044
    %v4046 = vsub.f32 %v3960, %v4042
    %v4047 = vsub.f32 %v4037, %v4045
    %v4048 = vmul.f32 %v4046, 1.442695
    %v4049 = vpow.pop %v4048
    %v4050 = vmul.f32 %v4047, 1.442695
    %v4051 = vpow.pop %v4050
    %v4052 = vsel %vm228, %v4049, 0.0
    %4053 = vadd.xlane.f32.xlu0 %v4052
    %v4054 = vpop.xlane.xlu0 %4053
    %v4055 = vsel %vm228, %v4051, 0.0
    %4056 = vadd.xlane.f32.xlu0 %v4055
    %v4057 = vpop.xlane.xlu0 %4056
    %v4058 = vrcp.pop %v4054
    %v4059 = vrcp.pop %v4057
    %v4060 = vmul.f32 %v4049, %v4058
    %v4061 = vmul.f32 %v4051, %v4059
    %4062 = vrot.lane.b32.xlu0 %v3878, 64
    %v4063 = vpop.permute.xlu0 %4062
    %v4066 = vsel %vm228, %v4060, 0
    %4068 = vmatprep.subr.mxu0 0.0
    %4069 = vmatpush1.msra.mxu0 0.0
    %4070 = vmatprep.subr.mxu0 0.0
    %4071 = vmatpush1.msra.mxu0 0.0
    %4072 = vmatprep.subr.mxu0 0.0
    %4073 = vmatpush1.msra.mxu0 0.0
    %4074 = vmatprep.subr.mxu0 0.0
    %4075 = vmatpush1.msra.mxu0 0.0
    %4076 = vmatprep.subr.mxu0 0.0
    %4077 = vmatpush1.msra.mxu0 0.0
    %4078 = vmatprep.subr.mxu0 0.0
    %4079 = vmatpush1.msra.mxu0 0.0
    %4080 = vmatprep.subr.mxu0 0.0
    %4081 = vmatpush1.msra.mxu0 0.0
    %4082 = vmatprep.subr.mxu0 0.0
    %4083 = vmatpush1.msra.mxu0 0.0
    %4084 = vmatprep.subr.mxu0 0.0
    %4085 = vmatpush1.msra.mxu0 0.0
    %4086 = vmatprep.subr.mxu0 0.0
    %4087 = vmatpush1.msra.mxu0 0.0
    %4088 = vmatprep.subr.mxu0 0.0
    %4089 = vmatpush1.msra.mxu0 0.0
    %4090 = vmatprep.subr.mxu0 0.0
    %4091 = vmatpush1.msra.mxu0 0.0
    %4092 = vmatprep.subr.mxu0 0.0
    %4093 = vmatpush1.msra.mxu0 0.0
    %4094 = vmatprep.subr.mxu0 0.0
    %4095 = vmatpush1.msra.mxu0 0.0
    %4096 = vmatprep.subr.mxu0 0.0
    %4097 = vmatpush1.msra.mxu0 0.0
    %4098 = vmatprep.subr.mxu0 0.0
    %4099 = vmatpush1.msra.mxu0 %v4063
    %4100 = vmatprep.subr.mxu0 0.0
    %4101 = vmatpush2.msra.mxu0 0.0
    %4102 = vmatprep.subr.mxu0 0.0
    %4103 = vmatpush2.msra.mxu0 0.0
    %4104 = vmatprep.subr.mxu0 0.0
    %4105 = vmatpush2.msra.mxu0 0.0
    %4106 = vmatprep.subr.mxu0 0.0
    %4107 = vmatpush2.msra.mxu0 0.0
    %4108 = vmatprep.subr.mxu0 0.0
    %4109 = vmatpush2.msra.mxu0 0.0
    %4110 = vmatprep.subr.mxu0 0.0
    %4111 = vmatpush2.msra.mxu0 0.0
    %4112 = vmatprep.subr.mxu0 0.0
    %4113 = vmatpush2.msra.mxu0 0.0
    %4114 = vmatprep.subr.mxu0 0.0
    %4115 = vmatpush2.msra.mxu0 0.0
    %4116 = vmatprep.subr.mxu0 0.0
    %4117 = vmatpush2.msra.mxu0 0.0
    %4118 = vmatprep.subr.mxu0 0.0
    %4119 = vmatpush2.msra.mxu0 0.0
    %4120 = vmatprep.subr.mxu0 0.0
    %4121 = vmatpush2.msra.mxu0 0.0
    %4122 = vmatprep.subr.mxu0 0.0
    %4123 = vmatpush2.msra.mxu0 0.0
    %4124 = vmatprep.subr.mxu0 0.0
    %4125 = vmatpush2.msra.mxu0 0.0
    %4126 = vmatprep.subr.mxu0 0.0
    %4127 = vmatpush2.msra.mxu0 0.0
    %4128 = vmatprep.subr.mxu0 0.0
    %4129 = vmatpush2.msra.mxu0 0.0
    %4130 = vmatprep.subr.mxu0 0.0
    %4131 = vmatpush2.msra.mxu0 0.0
    %4132 = vmatprep.mubr.f32.mxu0 0.0
    %4133 = vmatmul.mubr.f32.gmra.mxu0 %v4066
    %v4134 = vpop.f32.mrf.mxu0
    %v4135 = vadd.f32 0.0, %v4134
    %v4136 = vpop.f32.mrf.mxu0
    %4137 = vdwg.mxu0
    %4138 = vrot.lane.b32.xlu0 %v3883, 64
    %v4139 = vpop.permute.xlu0 %4138
    %v4142 = vsel %vm228, %v4061, 0
    %4144 = vmatprep.subr.mxu0 0.0
    %4145 = vmatpush1.msra.mxu0 0.0
    %4146 = vmatprep.subr.mxu0 0.0
    %4147 = vmatpush1.msra.mxu0 0.0
    %4148 = vmatprep.subr.mxu0 0.0
    %4149 = vmatpush1.msra.mxu0 0.0
    %4150 = vmatprep.subr.mxu0 0.0
    %4151 = vmatpush1.msra.mxu0 0.0
    %4152 = vmatprep.subr.mxu0 0.0
    %4153 = vmatpush1.msra.mxu0 0.0
    %4154 = vmatprep.subr.mxu0 0.0
    %4155 = vmatpush1.msra.mxu0 0.0
    %4156 = vmatprep.subr.mxu0 0.0
    %4157 = vmatpush1.msra.mxu0 0.0
    %4158 = vmatprep.subr.mxu0 0.0
    %4159 = vmatpush1.msra.mxu0 0.0
    %4160 = vmatprep.subr.mxu0 0.0
    %4161 = vmatpush1.msra.mxu0 0.0
    %4162 = vmatprep.subr.mxu0 0.0
    %4163 = vmatpush1.msra.mxu0 0.0
    %4164 = vmatprep.subr.mxu0 0.0
    %4165 = vmatpush1.msra.mxu0 0.0
    %4166 = vmatprep.subr.mxu0 0.0
    %4167 = vmatpush1.msra.mxu0 0.0
    %4168 = vmatprep.subr.mxu0 0.0
    %4169 = vmatpush1.msra.mxu0 0.0
    %4170 = vmatprep.subr.mxu0 0.0
    %4171 = vmatpush1.msra.mxu0 0.0
    %4172 = vmatprep.subr.mxu0 0.0
    %4173 = vmatpush1.msra.mxu0 0.0
    %4174 = vmatprep.subr.mxu0 0.0
    %4175 = vmatpush1.msra.mxu0 %v4139
    %4176 = vmatprep.subr.mxu0 0.0
    %4177 = vmatpush2.msra.mxu0 0.0
    %4178 = vmatprep.subr.mxu0 0.0
    %4179 = vmatpush2.msra.mxu0 0.0
    %4180 = vmatprep.subr.mxu0 0.0
    %4181 = vmatpush2.msra.mxu0 0.0
    %4182 = vmatprep.subr.mxu0 0.0
    %4183 = vmatpush2.msra.mxu0 0.0
    %4184 = vmatprep.subr.mxu0 0.0
    %4185 = vmatpush2.msra.mxu0 0.0
    %4186 = vmatprep.subr.mxu0 0.0
    %4187 = vmatpush2.msra.mxu0 0.0
    %4188 = vmatprep.subr.mxu0 0.0
    %4189 = vmatpush2.msra.mxu0 0.0
    %4190 = vmatprep.subr.mxu0 0.0
    %4191 = vmatpush2.msra.mxu0 0.0
    %4192 = vmatprep.subr.mxu0 0.0
    %4193 = vmatpush2.msra.mxu0 0.0
    %4194 = vmatprep.subr.mxu0 0.0
    %4195 = vmatpush2.msra.mxu0 0.0
    %4196 = vmatprep.subr.mxu0 0.0
    %4197 = vmatpush2.msra.mxu0 0.0
    %4198 = vmatprep.subr.mxu0 0.0
    %4199 = vmatpush2.msra.mxu0 0.0
    %4200 = vmatprep.subr.mxu0 0.0
    %4201 = vmatpush2.msra.mxu0 0.0
    %4202 = vmatprep.subr.mxu0 0.0
    %4203 = vmatpush2.msra.mxu0 0.0
    %4204 = vmatprep.subr.mxu0 0.0
    %4205 = vmatpush2.msra.mxu0 0.0
    %4206 = vmatprep.subr.mxu0 0.0
    %4207 = vmatpush2.msra.mxu0 0.0
    %4208 = vmatprep.mubr.f32.mxu0 0.0
    %4209 = vmatmul.mubr.f32.gmra.mxu0 %v4142
    %v4210 = vpop.f32.mrf.mxu0
    %v4211 = vadd.f32 0.0, %v4210
    %v4212 = vpop.f32.mrf.mxu0
    %4213 = vdwg.mxu0
    %4214 = vrot.lane.b32.xlu0 %v3878, 120
    %v4215 = vpop.permute.xlu0 %4214
    %4216 = vrot.lane.b32.xlu0 %v3878, 88
    %v4217 = vpop.permute.xlu0 %4216
    %v4218 = vsel %vm228, %v4215, 0
    %v4220 = vsel %vm228, %v4217, 0
    %4222 = vmatprep.subr.mxu0 0.0
    %4223 = vmatpush1.xpose.msra.mxu0 0.0
    %4224 = vmatprep.subr.mxu0 0.0
    %4225 = vmatpush1.xpose.msra.mxu0 0.0
    %4226 = vmatprep.subr.mxu0 0.0
    %4227 = vmatpush1.xpose.msra.mxu0 0.0
    %4228 = vmatprep.subr.mxu0 0.0
    %4229 = vmatpush1.xpose.msra.mxu0 0.0
    %4230 = vmatprep.subr.mxu0 0.0
    %4231 = vmatpush1.xpose.msra.mxu0 0.0
    %4232 = vmatprep.subr.mxu0 0.0
    %4233 = vmatpush1.xpose.msra.mxu0 0.0
    %4234 = vmatprep.subr.mxu0 0.0
    %4235 = vmatpush1.xpose.msra.mxu0 0.0
    %4236 = vmatprep.subr.mxu0 0.0
    %4237 = vmatpush1.xpose.msra.mxu0 0.0
    %4238 = vmatprep.subr.mxu0 0.0
    %4239 = vmatpush1.xpose.msra.mxu0 0.0
    %4240 = vmatprep.subr.mxu0 0.0
    %4241 = vmatpush1.xpose.msra.mxu0 0.0
    %4242 = vmatprep.subr.mxu0 0.0
    %4243 = vmatpush1.xpose.msra.mxu0 0.0
    %4244 = vmatprep.subr.mxu0 0.0
    %4245 = vmatpush1.xpose.msra.mxu0 0.0
    %4246 = vmatprep.subr.mxu0 0.0
    %4247 = vmatpush1.xpose.msra.mxu0 0.0
    %4248 = vmatprep.subr.mxu0 0.0
    %4249 = vmatpush1.xpose.msra.mxu0 0.0
    %4250 = vmatprep.subr.mxu0 0.0
    %4251 = vmatpush1.xpose.msra.mxu0 0.0
    %4252 = vmatprep.subr.mxu0 0.0
    %4253 = vmatpush1.xpose.msra.mxu0 %v4220
    %4254 = vmatprep.subr.mxu0 0.0
    %4255 = vmatpush2.xpose.msra.mxu0 0.0
    %4256 = vmatprep.subr.mxu0 0.0
    %4257 = vmatpush2.xpose.msra.mxu0 0.0
    %4258 = vmatprep.subr.mxu0 0.0
    %4259 = vmatpush2.xpose.msra.mxu0 0.0
    %4260 = vmatprep.subr.mxu0 0.0
    %4261 = vmatpush2.xpose.msra.mxu0 0.0
    %4262 = vmatprep.subr.mxu0 0.0
    %4263 = vmatpush2.xpose.msra.mxu0 0.0
    %4264 = vmatprep.subr.mxu0 0.0
    %4265 = vmatpush2.xpose.msra.mxu0 0.0
    %4266 = vmatprep.subr.mxu0 0.0
    %4267 = vmatpush2.xpose.msra.mxu0 0.0
    %4268 = vmatprep.subr.mxu0 0.0
    %4269 = vmatpush2.xpose.msra.mxu0 0.0
    %4270 = vmatprep.subr.mxu0 0.0
    %4271 = vmatpush2.xpose.msra.mxu0 0.0
    %4272 = vmatprep.subr.mxu0 0.0
    %4273 = vmatpush2.xpose.msra.mxu0 0.0
    %4274 = vmatprep.subr.mxu0 0.0
    %4275 = vmatpush2.xpose.msra.mxu0 0.0
    %4276 = vmatprep.subr.mxu0 0.0
    %4277 = vmatpush2.xpose.msra.mxu0 0.0
    %4278 = vmatprep.subr.mxu0 0.0
    %4279 = vmatpush2.xpose.msra.mxu0 0.0
    %4280 = vmatprep.subr.mxu0 0.0
    %4281 = vmatpush2.xpose.msra.mxu0 0.0
    %4282 = vmatprep.subr.mxu0 0.0
    %4283 = vmatpush2.xpose.msra.mxu0 0.0
    %4284 = vmatprep.subr.mxu0 0.0
    %4285 = vmatpush2.xpose.msra.mxu0 0.0
    %4286 = vmatprep.mubr.f32.mxu0 0.0
    %4287 = vmatmul.mubr.f32.gmra.mxu0 %v4218
    %v4288 = vpop.f32.mrf.mxu0
    %v4289 = vadd.f32 0.0, %v4288
    %v4290 = vpop.f32.mrf.mxu0
    %4291 = vdwg.mxu0
    %4292 = vrot.lane.b32.xlu0 %v3883, 120
    %v4293 = vpop.permute.xlu0 %4292
    %4294 = vrot.lane.b32.xlu0 %v3883, 88
    %v4295 = vpop.permute.xlu0 %4294
    %v4296 = vsel %vm228, %v4293, 0
    %v4298 = vsel %vm228, %v4295, 0
    %4300 = vmatprep.subr.mxu0 0.0
    %4301 = vmatpush1.xpose.msra.mxu0 0.0
    %4302 = vmatprep.subr.mxu0 0.0
    %4303 = vmatpush1.xpose.msra.mxu0 0.0
    %4304 = vmatprep.subr.mxu0 0.0
    %4305 = vmatpush1.xpose.msra.mxu0 0.0
    %4306 = vmatprep.subr.mxu0 0.0
    %4307 = vmatpush1.xpose.msra.mxu0 0.0
    %4308 = vmatprep.subr.mxu0 0.0
    %4309 = vmatpush1.xpose.msra.mxu0 0.0
    %4310 = vmatprep.subr.mxu0 0.0
    %4311 = vmatpush1.xpose.msra.mxu0 0.0
    %4312 = vmatprep.subr.mxu0 0.0
    %4313 = vmatpush1.xpose.msra.mxu0 0.0
    %4314 = vmatprep.subr.mxu0 0.0
    %4315 = vmatpush1.xpose.msra.mxu0 0.0
    %4316 = vmatprep.subr.mxu0 0.0
    %4317 = vmatpush1.xpose.msra.mxu0 0.0
    %4318 = vmatprep.subr.mxu0 0.0
    %4319 = vmatpush1.xpose.msra.mxu0 0.0
    %4320 = vmatprep.subr.mxu0 0.0
    %4321 = vmatpush1.xpose.msra.mxu0 0.0
    %4322 = vmatprep.subr.mxu0 0.0
    %4323 = vmatpush1.xpose.msra.mxu0 0.0
    %4324 = vmatprep.subr.mxu0 0.0
    %4325 = vmatpush1.xpose.msra.mxu0 0.0
    %4326 = vmatprep.subr.mxu0 0.0
    %4327 = vmatpush1.xpose.msra.mxu0 0.0
    %4328 = vmatprep.subr.mxu0 0.0
    %4329 = vmatpush1.xpose.msra.mxu0 0.0
    %4330 = vmatprep.subr.mxu0 0.0
    %4331 = vmatpush1.xpose.msra.mxu0 %v4298
    %4332 = vmatprep.subr.mxu0 0.0
    %4333 = vmatpush2.xpose.msra.mxu0 0.0
    %4334 = vmatprep.subr.mxu0 0.0
    %4335 = vmatpush2.xpose.msra.mxu0 0.0
    %4336 = vmatprep.subr.mxu0 0.0
    %4337 = vmatpush2.xpose.msra.mxu0 0.0
    %4338 = vmatprep.subr.mxu0 0.0
    %4339 = vmatpush2.xpose.msra.mxu0 0.0
    %4340 = vmatprep.subr.mxu0 0.0
    %4341 = vmatpush2.xpose.msra.mxu0 0.0
    %4342 = vmatprep.subr.mxu0 0.0
    %4343 = vmatpush2.xpose.msra.mxu0 0.0
    %4344 = vmatprep.subr.mxu0 0.0
    %4345 = vmatpush2.xpose.msra.mxu0 0.0
    %4346 = vmatprep.subr.mxu0 0.0
    %4347 = vmatpush2.xpose.msra.mxu0 0.0
    %4348 = vmatprep.subr.mxu0 0.0
    %4349 = vmatpush2.xpose.msra.mxu0 0.0
    %4350 = vmatprep.subr.mxu0 0.0
    %4351 = vmatpush2.xpose.msra.mxu0 0.0
    %4352 = vmatprep.subr.mxu0 0.0
    %4353 = vmatpush2.xpose.msra.mxu0 0.0
    %4354 = vmatprep.subr.mxu0 0.0
    %4355 = vmatpush2.xpose.msra.mxu0 0.0
    %4356 = vmatprep.subr.mxu0 0.0
    %4357 = vmatpush2.xpose.msra.mxu0 0.0
    %4358 = vmatprep.subr.mxu0 0.0
    %4359 = vmatpush2.xpose.msra.mxu0 0.0
    %4360 = vmatprep.subr.mxu0 0.0
    %4361 = vmatpush2.xpose.msra.mxu0 0.0
    %4362 = vmatprep.subr.mxu0 0.0
    %4363 = vmatpush2.xpose.msra.mxu0 0.0
    %4364 = vmatprep.mubr.f32.mxu0 0.0
    %4365 = vmatmul.mubr.f32.gmra.mxu0 %v4296
    %v4366 = vpop.f32.mrf.mxu0
    %v4367 = vadd.f32 0.0, %v4366
    %v4368 = vpop.f32.mrf.mxu0
    %4369 = vdwg.mxu0
    %v4370 = vsel %vm228, %v4289, -inf
    %4371 = vmax.xlane.f32.xlu0 %v4370
    %v4372 = vpop.xlane.xlu0 %4371
    %v4373 = vsel %vm228, %v4367, -inf
    %4374 = vmax.xlane.f32.xlu0 %v4373
    %v4375 = vpop.xlane.xlu0 %4374
    %v4376 = vsub.f32 %v4289, %v4372
    %v4377 = vsub.f32 %v4367, %v4375
    %v4378 = vmul.f32 %v4376, 1.442695
    %v4379 = vpow.pop %v4378
    %v4380 = vmul.f32 %v4377, 1.442695
    %v4381 = vpow.pop %v4380
    %v4382 = vsel %vm228, %v4379, 0.0
    %4383 = vadd.xlane.f32.xlu0 %v4382
    %v4384 = vpop.xlane.xlu0 %4383
    %v4385 = vsel %vm228, %v4381, 0.0
    %4386 = vadd.xlane.f32.xlu0 %v4385
    %v4387 = vpop.xlane.xlu0 %4386
    %v4388 = vrcp.pop %v4384
    %v4389 = vrcp.pop %v4387
    %v4390 = vmul.f32 %v4379, %v4388
    %v4391 = vmul.f32 %v4381, %v4389
    %4392 = vrot.lane.b32.xlu0 %v3878, 56
    %v4393 = vpop.permute.xlu0 %4392
    %v4396 = vsel %vm228, %v4390, 0
    %4398 = vmatprep.subr.mxu0 0.0
    %4399 = vmatpush1.msra.mxu0 0.0
    %4400 = vmatprep.subr.mxu0 0.0
    %4401 = vmatpush1.msra.mxu0 0.0
    %4402 = vmatprep.subr.mxu0 0.0
    %4403 = vmatpush1.msra.mxu0 0.0
    %4404 = vmatprep.subr.mxu0 0.0
    %4405 = vmatpush1.msra.mxu0 0.0
    %4406 = vmatprep.subr.mxu0 0.0
    %4407 = vmatpush1.msra.mxu0 0.0
    %4408 = vmatprep.subr.mxu0 0.0
    %4409 = vmatpush1.msra.mxu0 0.0
    %4410 = vmatprep.subr.mxu0 0.0
    %4411 = vmatpush1.msra.mxu0 0.0
    %4412 = vmatprep.subr.mxu0 0.0
    %4413 = vmatpush1.msra.mxu0 0.0
    %4414 = vmatprep.subr.mxu0 0.0
    %4415 = vmatpush1.msra.mxu0 0.0
    %4416 = vmatprep.subr.mxu0 0.0
    %4417 = vmatpush1.msra.mxu0 0.0
    %4418 = vmatprep.subr.mxu0 0.0
    %4419 = vmatpush1.msra.mxu0 0.0
    %4420 = vmatprep.subr.mxu0 0.0
    %4421 = vmatpush1.msra.mxu0 0.0
    %4422 = vmatprep.subr.mxu0 0.0
    %4423 = vmatpush1.msra.mxu0 0.0
    %4424 = vmatprep.subr.mxu0 0.0
    %4425 = vmatpush1.msra.mxu0 0.0
    %4426 = vmatprep.subr.mxu0 0.0
    %4427 = vmatpush1.msra.mxu0 0.0
    %4428 = vmatprep.subr.mxu0 0.0
    %4429 = vmatpush1.msra.mxu0 %v4393
    %4430 = vmatprep.subr.mxu0 0.0
    %4431 = vmatpush2.msra.mxu0 0.0
    %4432 = vmatprep.subr.mxu0 0.0
    %4433 = vmatpush2.msra.mxu0 0.0
    %4434 = vmatprep.subr.mxu0 0.0
    %4435 = vmatpush2.msra.mxu0 0.0
    %4436 = vmatprep.subr.mxu0 0.0
    %4437 = vmatpush2.msra.mxu0 0.0
    %4438 = vmatprep.subr.mxu0 0.0
    %4439 = vmatpush2.msra.mxu0 0.0
    %4440 = vmatprep.subr.mxu0 0.0
    %4441 = vmatpush2.msra.mxu0 0.0
    %4442 = vmatprep.subr.mxu0 0.0
    %4443 = vmatpush2.msra.mxu0 0.0
    %4444 = vmatprep.subr.mxu0 0.0
    %4445 = vmatpush2.msra.mxu0 0.0
    %4446 = vmatprep.subr.mxu0 0.0
    %4447 = vmatpush2.msra.mxu0 0.0
    %4448 = vmatprep.subr.mxu0 0.0
    %4449 = vmatpush2.msra.mxu0 0.0
    %4450 = vmatprep.subr.mxu0 0.0
    %4451 = vmatpush2.msra.mxu0 0.0
    %4452 = vmatprep.subr.mxu0 0.0
    %4453 = vmatpush2.msra.mxu0 0.0
    %4454 = vmatprep.subr.mxu0 0.0
    %4455 = vmatpush2.msra.mxu0 0.0
    %4456 = vmatprep.subr.mxu0 0.0
    %4457 = vmatpush2.msra.mxu0 0.0
    %4458 = vmatprep.subr.mxu0 0.0
    %4459 = vmatpush2.msra.mxu0 0.0
    %4460 = vmatprep.subr.mxu0 0.0
    %4461 = vmatpush2.msra.mxu0 0.0
    %4462 = vmatprep.mubr.f32.mxu0 0.0
    %4463 = vmatmul.mubr.f32.gmra.mxu0 %v4396
    %v4464 = vpop.f32.mrf.mxu0
    %v4465 = vadd.f32 0.0, %v4464
    %v4466 = vpop.f32.mrf.mxu0
    %4467 = vdwg.mxu0
    %4468 = vrot.lane.b32.xlu0 %v3883, 56
    %v4469 = vpop.permute.xlu0 %4468
    %v4472 = vsel %vm228, %v4391, 0
    %4474 = vmatprep.subr.mxu0 0.0
    %4475 = vmatpush1.msra.mxu0 0.0
    %4476 = vmatprep.subr.mxu0 0.0
    %4477 = vmatpush1.msra.mxu0 0.0
    %4478 = vmatprep.subr.mxu0 0.0
    %4479 = vmatpush1.msra.mxu0 0.0
    %4480 = vmatprep.subr.mxu0 0.0
    %4481 = vmatpush1.msra.mxu0 0.0
    %4482 = vmatprep.subr.mxu0 0.0
    %4483 = vmatpush1.msra.mxu0 0.0
    %4484 = vmatprep.subr.mxu0 0.0
    %4485 = vmatpush1.msra.mxu0 0.0
    %4486 = vmatprep.subr.mxu0 0.0
    %4487 = vmatpush1.msra.mxu0 0.0
    %4488 = vmatprep.subr.mxu0 0.0
    %4489 = vmatpush1.msra.mxu0 0.0
    %4490 = vmatprep.subr.mxu0 0.0
    %4491 = vmatpush1.msra.mxu0 0.0
    %4492 = vmatprep.subr.mxu0 0.0
    %4493 = vmatpush1.msra.mxu0 0.0
    %4494 = vmatprep.subr.mxu0 0.0
    %4495 = vmatpush1.msra.mxu0 0.0
    %4496 = vmatprep.subr.mxu0 0.0
    %4497 = vmatpush1.msra.mxu0 0.0
    %4498 = vmatprep.subr.mxu0 0.0
    %4499 = vmatpush1.msra.mxu0 0.0
    %4500 = vmatprep.subr.mxu0 0.0
    %4501 = vmatpush1.msra.mxu0 0.0
    %4502 = vmatprep.subr.mxu0 0.0
    %4503 = vmatpush1.msra.mxu0 0.0
    %4504 = vmatprep.subr.mxu0 0.0
    %4505 = vmatpush1.msra.mxu0 %v4469
    %4506 = vmatprep.subr.mxu0 0.0
    %4507 = vmatpush2.msra.mxu0 0.0
    %4508 = vmatprep.subr.mxu0 0.0
    %4509 = vmatpush2.msra.mxu0 0.0
    %4510 = vmatprep.subr.mxu0 0.0
    %4511 = vmatpush2.msra.mxu0 0.0
    %4512 = vmatprep.subr.mxu0 0.0
    %4513 = vmatpush2.msra.mxu0 0.0
    %4514 = vmatprep.subr.mxu0 0.0
    %4515 = vmatpush2.msra.mxu0 0.0
    %4516 = vmatprep.subr.mxu0 0.0
    %4517 = vmatpush2.msra.mxu0 0.0
    %4518 = vmatprep.subr.mxu0 0.0
    %4519 = vmatpush2.msra.mxu0 0.0
    %4520 = vmatprep.subr.mxu0 0.0
    %4521 = vmatpush2.msra.mxu0 0.0
    %4522 = vmatprep.subr.mxu0 0.0
    %4523 = vmatpush2.msra.mxu0 0.0
    %4524 = vmatprep.subr.mxu0 0.0
    %4525 = vmatpush2.msra.mxu0 0.0
    %4526 = vmatprep.subr.mxu0 0.0
    %4527 = vmatpush2.msra.mxu0 0.0
    %4528 = vmatprep.subr.mxu0 0.0
    %4529 = vmatpush2.msra.mxu0 0.0
    %4530 = vmatprep.subr.mxu0 0.0
    %4531 = vmatpush2.msra.mxu0 0.0
    %4532 = vmatprep.subr.mxu0 0.0
    %4533 = vmatpush2.msra.mxu0 0.0
    %4534 = vmatprep.subr.mxu0 0.0
    %4535 = vmatpush2.msra.mxu0 0.0
    %4536 = vmatprep.subr.mxu0 0.0
    %4537 = vmatpush2.msra.mxu0 0.0
    %4538 = vmatprep.mubr.f32.mxu0 0.0
    %4539 = vmatmul.mubr.f32.gmra.mxu0 %v4472
    %v4540 = vpop.f32.mrf.mxu0
    %v4541 = vadd.f32 0.0, %v4540
    %v4542 = vpop.f32.mrf.mxu0
    %4543 = vdwg.mxu0
    %4544 = vrot.lane.b32.xlu0 %v3878, 112
    %v4545 = vpop.permute.xlu0 %4544
    %4546 = vrot.lane.b32.xlu0 %v3878, 80
    %v4547 = vpop.permute.xlu0 %4546
    %v4548 = vsel %vm228, %v4545, 0
    %v4550 = vsel %vm228, %v4547, 0
    %4552 = vmatprep.subr.mxu0 0.0
    %4553 = vmatpush1.xpose.msra.mxu0 0.0
    %4554 = vmatprep.subr.mxu0 0.0
    %4555 = vmatpush1.xpose.msra.mxu0 0.0
    %4556 = vmatprep.subr.mxu0 0.0
    %4557 = vmatpush1.xpose.msra.mxu0 0.0
    %4558 = vmatprep.subr.mxu0 0.0
    %4559 = vmatpush1.xpose.msra.mxu0 0.0
    %4560 = vmatprep.subr.mxu0 0.0
    %4561 = vmatpush1.xpose.msra.mxu0 0.0
    %4562 = vmatprep.subr.mxu0 0.0
    %4563 = vmatpush1.xpose.msra.mxu0 0.0
    %4564 = vmatprep.subr.mxu0 0.0
    %4565 = vmatpush1.xpose.msra.mxu0 0.0
    %4566 = vmatprep.subr.mxu0 0.0
    %4567 = vmatpush1.xpose.msra.mxu0 0.0
    %4568 = vmatprep.subr.mxu0 0.0
    %4569 = vmatpush1.xpose.msra.mxu0 0.0
    %4570 = vmatprep.subr.mxu0 0.0
    %4571 = vmatpush1.xpose.msra.mxu0 0.0
    %4572 = vmatprep.subr.mxu0 0.0
    %4573 = vmatpush1.xpose.msra.mxu0 0.0
    %4574 = vmatprep.subr.mxu0 0.0
    %4575 = vmatpush1.xpose.msra.mxu0 0.0
    %4576 = vmatprep.subr.mxu0 0.0
    %4577 = vmatpush1.xpose.msra.mxu0 0.0
    %4578 = vmatprep.subr.mxu0 0.0
    %4579 = vmatpush1.xpose.msra.mxu0 0.0
    %4580 = vmatprep.subr.mxu0 0.0
    %4581 = vmatpush1.xpose.msra.mxu0 0.0
    %4582 = vmatprep.subr.mxu0 0.0
    %4583 = vmatpush1.xpose.msra.mxu0 %v4550
    %4584 = vmatprep.subr.mxu0 0.0
    %4585 = vmatpush2.xpose.msra.mxu0 0.0
    %4586 = vmatprep.subr.mxu0 0.0
    %4587 = vmatpush2.xpose.msra.mxu0 0.0
    %4588 = vmatprep.subr.mxu0 0.0
    %4589 = vmatpush2.xpose.msra.mxu0 0.0
    %4590 = vmatprep.subr.mxu0 0.0
    %4591 = vmatpush2.xpose.msra.mxu0 0.0
    %4592 = vmatprep.subr.mxu0 0.0
    %4593 = vmatpush2.xpose.msra.mxu0 0.0
    %4594 = vmatprep.subr.mxu0 0.0
    %4595 = vmatpush2.xpose.msra.mxu0 0.0
    %4596 = vmatprep.subr.mxu0 0.0
    %4597 = vmatpush2.xpose.msra.mxu0 0.0
    %4598 = vmatprep.subr.mxu0 0.0
    %4599 = vmatpush2.xpose.msra.mxu0 0.0
    %4600 = vmatprep.subr.mxu0 0.0
    %4601 = vmatpush2.xpose.msra.mxu0 0.0
    %4602 = vmatprep.subr.mxu0 0.0
    %4603 = vmatpush2.xpose.msra.mxu0 0.0
    %4604 = vmatprep.subr.mxu0 0.0
    %4605 = vmatpush2.xpose.msra.mxu0 0.0
    %4606 = vmatprep.subr.mxu0 0.0
    %4607 = vmatpush2.xpose.msra.mxu0 0.0
    %4608 = vmatprep.subr.mxu0 0.0
    %4609 = vmatpush2.xpose.msra.mxu0 0.0
    %4610 = vmatprep.subr.mxu0 0.0
    %4611 = vmatpush2.xpose.msra.mxu0 0.0
    %4612 = vmatprep.subr.mxu0 0.0
    %4613 = vmatpush2.xpose.msra.mxu0 0.0
    %4614 = vmatprep.subr.mxu0 0.0
    %4615 = vmatpush2.xpose.msra.mxu0 0.0
    %4616 = vmatprep.mubr.f32.mxu0 0.0
    %4617 = vmatmul.mubr.f32.gmra.mxu0 %v4548
    %v4618 = vpop.f32.mrf.mxu0
    %v4619 = vadd.f32 0.0, %v4618
    %v4620 = vpop.f32.mrf.mxu0
    %4621 = vdwg.mxu0
    %4622 = vrot.lane.b32.xlu0 %v3883, 112
    %v4623 = vpop.permute.xlu0 %4622
    %4624 = vrot.lane.b32.xlu0 %v3883, 80
    %v4625 = vpop.permute.xlu0 %4624
    %v4626 = vsel %vm228, %v4623, 0
    %v4628 = vsel %vm228, %v4625, 0
    %4630 = vmatprep.subr.mxu0 0.0
    %4631 = vmatpush1.xpose.msra.mxu0 0.0
    %4632 = vmatprep.subr.mxu0 0.0
    %4633 = vmatpush1.xpose.msra.mxu0 0.0
    %4634 = vmatprep.subr.mxu0 0.0
    %4635 = vmatpush1.xpose.msra.mxu0 0.0
    %4636 = vmatprep.subr.mxu0 0.0
    %4637 = vmatpush1.xpose.msra.mxu0 0.0
    %4638 = vmatprep.subr.mxu0 0.0
    %4639 = vmatpush1.xpose.msra.mxu0 0.0
    %4640 = vmatprep.subr.mxu0 0.0
    %4641 = vmatpush1.xpose.msra.mxu0 0.0
    %4642 = vmatprep.subr.mxu0 0.0
    %4643 = vmatpush1.xpose.msra.mxu0 0.0
    %4644 = vmatprep.subr.mxu0 0.0
    %4645 = vmatpush1.xpose.msra.mxu0 0.0
    %4646 = vmatprep.subr.mxu0 0.0
    %4647 = vmatpush1.xpose.msra.mxu0 0.0
    %4648 = vmatprep.subr.mxu0 0.0
    %4649 = vmatpush1.xpose.msra.mxu0 0.0
    %4650 = vmatprep.subr.mxu0 0.0
    %4651 = vmatpush1.xpose.msra.mxu0 0.0
    %4652 = vmatprep.subr.mxu0 0.0
    %4653 = vmatpush1.xpose.msra.mxu0 0.0
    %4654 = vmatprep.subr.mxu0 0.0
    %4655 = vmatpush1.xpose.msra.mxu0 0.0
    %4656 = vmatprep.subr.mxu0 0.0
    %4657 = vmatpush1.xpose.msra.mxu0 0.0
    %4658 = vmatprep.subr.mxu0 0.0
    %4659 = vmatpush1.xpose.msra.mxu0 0.0
    %4660 = vmatprep.subr.mxu0 0.0
    %4661 = vmatpush1.xpose.msra.mxu0 %v4628
    %4662 = vmatprep.subr.mxu0 0.0
    %4663 = vmatpush2.xpose.msra.mxu0 0.0
    %4664 = vmatprep.subr.mxu0 0.0
    %4665 = vmatpush2.xpose.msra.mxu0 0.0
    %4666 = vmatprep.subr.mxu0 0.0
    %4667 = vmatpush2.xpose.msra.mxu0 0.0
    %4668 = vmatprep.subr.mxu0 0.0
    %4669 = vmatpush2.xpose.msra.mxu0 0.0
    %4670 = vmatprep.subr.mxu0 0.0
    %4671 = vmatpush2.xpose.msra.mxu0 0.0
    %4672 = vmatprep.subr.mxu0 0.0
    %4673 = vmatpush2.xpose.msra.mxu0 0.0
    %4674 = vmatprep.subr.mxu0 0.0
    %4675 = vmatpush2.xpose.msra.mxu0 0.0
    %4676 = vmatprep.subr.mxu0 0.0
    %4677 = vmatpush2.xpose.msra.mxu0 0.0
    %4678 = vmatprep.subr.mxu0 0.0
    %4679 = vmatpush2.xpose.msra.mxu0 0.0
    %4680 = vmatprep.subr.mxu0 0.0
    %4681 = vmatpush2.xpose.msra.mxu0 0.0
    %4682 = vmatprep.subr.mxu0 0.0
    %4683 = vmatpush2.xpose.msra.mxu0 0.0
    %4684 = vmatprep.subr.mxu0 0.0
    %4685 = vmatpush2.xpose.msra.mxu0 0.0
    %4686 = vmatprep.subr.mxu0 0.0
    %4687 = vmatpush2.xpose.msra.mxu0 0.0
    %4688 = vmatprep.subr.mxu0 0.0
    %4689 = vmatpush2.xpose.msra.mxu0 0.0
    %4690 = vmatprep.subr.mxu0 0.0
    %4691 = vmatpush2.xpose.msra.mxu0 0.0
    %4692 = vmatprep.subr.mxu0 0.0
    %4693 = vmatpush2.xpose.msra.mxu0 0.0
    %4694 = vmatprep.mubr.f32.mxu0 0.0
    %4695 = vmatmul.mubr.f32.gmra.mxu0 %v4626
    %v4696 = vpop.f32.mrf.mxu0
    %v4697 = vadd.f32 0.0, %v4696
    %v4698 = vpop.f32.mrf.mxu0
    %4699 = vdwg.mxu0
    %v4700 = vsel %vm228, %v4619, -inf
    %4701 = vmax.xlane.f32.xlu0 %v4700
    %v4702 = vpop.xlane.xlu0 %4701
    %v4703 = vsel %vm228, %v4697, -inf
    %4704 = vmax.xlane.f32.xlu0 %v4703
    %v4705 = vpop.xlane.xlu0 %4704
    %v4706 = vsub.f32 %v4619, %v4702
    %v4707 = vsub.f32 %v4697, %v4705
    %v4708 = vmul.f32 %v4706, 1.442695
    %v4709 = vpow.pop %v4708
    %v4710 = vmul.f32 %v4707, 1.442695
    %v4711 = vpow.pop %v4710
    %v4712 = vsel %vm228, %v4709, 0.0
    %4713 = vadd.xlane.f32.xlu0 %v4712
    %v4714 = vpop.xlane.xlu0 %4713
    %v4715 = vsel %vm228, %v4711, 0.0
    %4716 = vadd.xlane.f32.xlu0 %v4715
    %v4717 = vpop.xlane.xlu0 %4716
    %v4718 = vrcp.pop %v4714
    %v4719 = vrcp.pop %v4717
    %v4720 = vmul.f32 %v4709, %v4718
    %v4721 = vmul.f32 %v4711, %v4719
    %4722 = vrot.lane.b32.xlu0 %v3878, 48
    %v4723 = vpop.permute.xlu0 %4722
    %v4726 = vsel %vm228, %v4720, 0
    %4728 = vmatprep.subr.mxu0 0.0
    %4729 = vmatpush1.msra.mxu0 0.0
    %4730 = vmatprep.subr.mxu0 0.0
    %4731 = vmatpush1.msra.mxu0 0.0
    %4732 = vmatprep.subr.mxu0 0.0
    %4733 = vmatpush1.msra.mxu0 0.0
    %4734 = vmatprep.subr.mxu0 0.0
    %4735 = vmatpush1.msra.mxu0 0.0
    %4736 = vmatprep.subr.mxu0 0.0
    %4737 = vmatpush1.msra.mxu0 0.0
    %4738 = vmatprep.subr.mxu0 0.0
    %4739 = vmatpush1.msra.mxu0 0.0
    %4740 = vmatprep.subr.mxu0 0.0
    %4741 = vmatpush1.msra.mxu0 0.0
    %4742 = vmatprep.subr.mxu0 0.0
    %4743 = vmatpush1.msra.mxu0 0.0
    %4744 = vmatprep.subr.mxu0 0.0
    %4745 = vmatpush1.msra.mxu0 0.0
    %4746 = vmatprep.subr.mxu0 0.0
    %4747 = vmatpush1.msra.mxu0 0.0
    %4748 = vmatprep.subr.mxu0 0.0
    %4749 = vmatpush1.msra.mxu0 0.0
    %4750 = vmatprep.subr.mxu0 0.0
    %4751 = vmatpush1.msra.mxu0 0.0
    %4752 = vmatprep.subr.mxu0 0.0
    %4753 = vmatpush1.msra.mxu0 0.0
    %4754 = vmatprep.subr.mxu0 0.0
    %4755 = vmatpush1.msra.mxu0 0.0
    %4756 = vmatprep.subr.mxu0 0.0
    %4757 = vmatpush1.msra.mxu0 0.0
    %4758 = vmatprep.subr.mxu0 0.0
    %4759 = vmatpush1.msra.mxu0 %v4723
    %4760 = vmatprep.subr.mxu0 0.0
    %4761 = vmatpush2.msra.mxu0 0.0
    %4762 = vmatprep.subr.mxu0 0.0
    %4763 = vmatpush2.msra.mxu0 0.0
    %4764 = vmatprep.subr.mxu0 0.0
    %4765 = vmatpush2.msra.mxu0 0.0
    %4766 = vmatprep.subr.mxu0 0.0
    %4767 = vmatpush2.msra.mxu0 0.0
    %4768 = vmatprep.subr.mxu0 0.0
    %4769 = vmatpush2.msra.mxu0 0.0
    %4770 = vmatprep.subr.mxu0 0.0
    %4771 = vmatpush2.msra.mxu0 0.0
    %4772 = vmatprep.subr.mxu0 0.0
    %4773 = vmatpush2.msra.mxu0 0.0
    %4774 = vmatprep.subr.mxu0 0.0
    %4775 = vmatpush2.msra.mxu0 0.0
    %4776 = vmatprep.subr.mxu0 0.0
    %4777 = vmatpush2.msra.mxu0 0.0
    %4778 = vmatprep.subr.mxu0 0.0
    %4779 = vmatpush2.msra.mxu0 0.0
    %4780 = vmatprep.subr.mxu0 0.0
    %4781 = vmatpush2.msra.mxu0 0.0
    %4782 = vmatprep.subr.mxu0 0.0
    %4783 = vmatpush2.msra.mxu0 0.0
    %4784 = vmatprep.subr.mxu0 0.0
    %4785 = vmatpush2.msra.mxu0 0.0
    %4786 = vmatprep.subr.mxu0 0.0
    %4787 = vmatpush2.msra.mxu0 0.0
    %4788 = vmatprep.subr.mxu0 0.0
    %4789 = vmatpush2.msra.mxu0 0.0
    %4790 = vmatprep.subr.mxu0 0.0
    %4791 = vmatpush2.msra.mxu0 0.0
    %4792 = vmatprep.mubr.f32.mxu0 0.0
    %4793 = vmatmul.mubr.f32.gmra.mxu0 %v4726
    %v4794 = vpop.f32.mrf.mxu0
    %v4795 = vadd.f32 0.0, %v4794
    %v4796 = vpop.f32.mrf.mxu0
    %4797 = vdwg.mxu0
    %4798 = vrot.lane.b32.xlu0 %v3883, 48
    %v4799 = vpop.permute.xlu0 %4798
    %v4802 = vsel %vm228, %v4721, 0
    %4804 = vmatprep.subr.mxu0 0.0
    %4805 = vmatpush1.msra.mxu0 0.0
    %4806 = vmatprep.subr.mxu0 0.0
    %4807 = vmatpush1.msra.mxu0 0.0
    %4808 = vmatprep.subr.mxu0 0.0
    %4809 = vmatpush1.msra.mxu0 0.0
    %4810 = vmatprep.subr.mxu0 0.0
    %4811 = vmatpush1.msra.mxu0 0.0
    %4812 = vmatprep.subr.mxu0 0.0
    %4813 = vmatpush1.msra.mxu0 0.0
    %4814 = vmatprep.subr.mxu0 0.0
    %4815 = vmatpush1.msra.mxu0 0.0
    %4816 = vmatprep.subr.mxu0 0.0
    %4817 = vmatpush1.msra.mxu0 0.0
    %4818 = vmatprep.subr.mxu0 0.0
    %4819 = vmatpush1.msra.mxu0 0.0
    %4820 = vmatprep.subr.mxu0 0.0
    %4821 = vmatpush1.msra.mxu0 0.0
    %4822 = vmatprep.subr.mxu0 0.0
    %4823 = vmatpush1.msra.mxu0 0.0
    %4824 = vmatprep.subr.mxu0 0.0
    %4825 = vmatpush1.msra.mxu0 0.0
    %4826 = vmatprep.subr.mxu0 0.0
    %4827 = vmatpush1.msra.mxu0 0.0
    %4828 = vmatprep.subr.mxu0 0.0
    %4829 = vmatpush1.msra.mxu0 0.0
    %4830 = vmatprep.subr.mxu0 0.0
    %4831 = vmatpush1.msra.mxu0 0.0
    %4832 = vmatprep.subr.mxu0 0.0
    %4833 = vmatpush1.msra.mxu0 0.0
    %4834 = vmatprep.subr.mxu0 0.0
    %4835 = vmatpush1.msra.mxu0 %v4799
    %4836 = vmatprep.subr.mxu0 0.0
    %4837 = vmatpush2.msra.mxu0 0.0
    %4838 = vmatprep.subr.mxu0 0.0
    %4839 = vmatpush2.msra.mxu0 0.0
    %4840 = vmatprep.subr.mxu0 0.0
    %4841 = vmatpush2.msra.mxu0 0.0
    %4842 = vmatprep.subr.mxu0 0.0
    %4843 = vmatpush2.msra.mxu0 0.0
    %4844 = vmatprep.subr.mxu0 0.0
    %4845 = vmatpush2.msra.mxu0 0.0
    %4846 = vmatprep.subr.mxu0 0.0
    %4847 = vmatpush2.msra.mxu0 0.0
    %4848 = vmatprep.subr.mxu0 0.0
    %4849 = vmatpush2.msra.mxu0 0.0
    %4850 = vmatprep.subr.mxu0 0.0
    %4851 = vmatpush2.msra.mxu0 0.0
    %4852 = vmatprep.subr.mxu0 0.0
    %4853 = vmatpush2.msra.mxu0 0.0
    %4854 = vmatprep.subr.mxu0 0.0
    %4855 = vmatpush2.msra.mxu0 0.0
    %4856 = vmatprep.subr.mxu0 0.0
    %4857 = vmatpush2.msra.mxu0 0.0
    %4858 = vmatprep.subr.mxu0 0.0
    %4859 = vmatpush2.msra.mxu0 0.0
    %4860 = vmatprep.subr.mxu0 0.0
    %4861 = vmatpush2.msra.mxu0 0.0
    %4862 = vmatprep.subr.mxu0 0.0
    %4863 = vmatpush2.msra.mxu0 0.0
    %4864 = vmatprep.subr.mxu0 0.0
    %4865 = vmatpush2.msra.mxu0 0.0
    %4866 = vmatprep.subr.mxu0 0.0
    %4867 = vmatpush2.msra.mxu0 0.0
    %4868 = vmatprep.mubr.f32.mxu0 0.0
    %4869 = vmatmul.mubr.f32.gmra.mxu0 %v4802
    %v4870 = vpop.f32.mrf.mxu0
    %v4871 = vadd.f32 0.0, %v4870
    %v4872 = vpop.f32.mrf.mxu0
    %4873 = vdwg.mxu0
    %4874 = vrot.lane.b32.xlu0 %v3878, 104
    %v4875 = vpop.permute.xlu0 %4874
    %4876 = vrot.lane.b32.xlu0 %v3878, 72
    %v4877 = vpop.permute.xlu0 %4876
    %v4878 = vsel %vm228, %v4875, 0
    %v4880 = vsel %vm228, %v4877, 0
    %4882 = vmatprep.subr.mxu0 0.0
    %4883 = vmatpush1.xpose.msra.mxu0 0.0
    %4884 = vmatprep.subr.mxu0 0.0
    %4885 = vmatpush1.xpose.msra.mxu0 0.0
    %4886 = vmatprep.subr.mxu0 0.0
    %4887 = vmatpush1.xpose.msra.mxu0 0.0
    %4888 = vmatprep.subr.mxu0 0.0
    %4889 = vmatpush1.xpose.msra.mxu0 0.0
    %4890 = vmatprep.subr.mxu0 0.0
    %4891 = vmatpush1.xpose.msra.mxu0 0.0
    %4892 = vmatprep.subr.mxu0 0.0
    %4893 = vmatpush1.xpose.msra.mxu0 0.0
    %4894 = vmatprep.subr.mxu0 0.0
    %4895 = vmatpush1.xpose.msra.mxu0 0.0
    %4896 = vmatprep.subr.mxu0 0.0
    %4897 = vmatpush1.xpose.msra.mxu0 0.0
    %4898 = vmatprep.subr.mxu0 0.0
    %4899 = vmatpush1.xpose.msra.mxu0 0.0
    %4900 = vmatprep.subr.mxu0 0.0
    %4901 = vmatpush1.xpose.msra.mxu0 0.0
    %4902 = vmatprep.subr.mxu0 0.0
    %4903 = vmatpush1.xpose.msra.mxu0 0.0
    %4904 = vmatprep.subr.mxu0 0.0
    %4905 = vmatpush1.xpose.msra.mxu0 0.0
    %4906 = vmatprep.subr.mxu0 0.0
    %4907 = vmatpush1.xpose.msra.mxu0 0.0
    %4908 = vmatprep.subr.mxu0 0.0
    %4909 = vmatpush1.xpose.msra.mxu0 0.0
    %4910 = vmatprep.subr.mxu0 0.0
    %4911 = vmatpush1.xpose.msra.mxu0 0.0
    %4912 = vmatprep.subr.mxu0 0.0
    %4913 = vmatpush1.xpose.msra.mxu0 %v4880
    %4914 = vmatprep.subr.mxu0 0.0
    %4915 = vmatpush2.xpose.msra.mxu0 0.0
    %4916 = vmatprep.subr.mxu0 0.0
    %4917 = vmatpush2.xpose.msra.mxu0 0.0
    %4918 = vmatprep.subr.mxu0 0.0
    %4919 = vmatpush2.xpose.msra.mxu0 0.0
    %4920 = vmatprep.subr.mxu0 0.0
    %4921 = vmatpush2.xpose.msra.mxu0 0.0
    %4922 = vmatprep.subr.mxu0 0.0
    %4923 = vmatpush2.xpose.msra.mxu0 0.0
    %4924 = vmatprep.subr.mxu0 0.0
    %4925 = vmatpush2.xpose.msra.mxu0 0.0
    %4926 = vmatprep.subr.mxu0 0.0
    %4927 = vmatpush2.xpose.msra.mxu0 0.0
    %4928 = vmatprep.subr.mxu0 0.0
    %4929 = vmatpush2.xpose.msra.mxu0 0.0
    %4930 = vmatprep.subr.mxu0 0.0
    %4931 = vmatpush2.xpose.msra.mxu0 0.0
    %4932 = vmatprep.subr.mxu0 0.0
    %4933 = vmatpush2.xpose.msra.mxu0 0.0
    %4934 = vmatprep.subr.mxu0 0.0
    %4935 = vmatpush2.xpose.msra.mxu0 0.0
    %4936 = vmatprep.subr.mxu0 0.0
    %4937 = vmatpush2.xpose.msra.mxu0 0.0
    %4938 = vmatprep.subr.mxu0 0.0
    %4939 = vmatpush2.xpose.msra.mxu0 0.0
    %4940 = vmatprep.subr.mxu0 0.0
    %4941 = vmatpush2.xpose.msra.mxu0 0.0
    %4942 = vmatprep.subr.mxu0 0.0
    %4943 = vmatpush2.xpose.msra.mxu0 0.0
    %4944 = vmatprep.subr.mxu0 0.0
    %4945 = vmatpush2.xpose.msra.mxu0 0.0
    %4946 = vmatprep.mubr.f32.mxu0 0.0
    %4947 = vmatmul.mubr.f32.gmra.mxu0 %v4878
    %v4948 = vpop.f32.mrf.mxu0
    %v4949 = vadd.f32 0.0, %v4948
    %v4950 = vpop.f32.mrf.mxu0
    %4951 = vdwg.mxu0
    %4952 = vrot.lane.b32.xlu0 %v3883, 104
    %v4953 = vpop.permute.xlu0 %4952
    %4954 = vrot.lane.b32.xlu0 %v3883, 72
    %v4955 = vpop.permute.xlu0 %4954
    %v4956 = vsel %vm228, %v4953, 0
    %v4958 = vsel %vm228, %v4955, 0
    %4960 = vmatprep.subr.mxu0 0.0
    %4961 = vmatpush1.xpose.msra.mxu0 0.0
    %4962 = vmatprep.subr.mxu0 0.0
    %4963 = vmatpush1.xpose.msra.mxu0 0.0
    %4964 = vmatprep.subr.mxu0 0.0
    %4965 = vmatpush1.xpose.msra.mxu0 0.0
    %4966 = vmatprep.subr.mxu0 0.0
    %4967 = vmatpush1.xpose.msra.mxu0 0.0
    %4968 = vmatprep.subr.mxu0 0.0
    %4969 = vmatpush1.xpose.msra.mxu0 0.0
    %4970 = vmatprep.subr.mxu0 0.0
    %4971 = vmatpush1.xpose.msra.mxu0 0.0
    %4972 = vmatprep.subr.mxu0 0.0
    %4973 = vmatpush1.xpose.msra.mxu0 0.0
    %4974 = vmatprep.subr.mxu0 0.0
    %4975 = vmatpush1.xpose.msra.mxu0 0.0
    %4976 = vmatprep.subr.mxu0 0.0
    %4977 = vmatpush1.xpose.msra.mxu0 0.0
    %4978 = vmatprep.subr.mxu0 0.0
    %4979 = vmatpush1.xpose.msra.mxu0 0.0
    %4980 = vmatprep.subr.mxu0 0.0
    %4981 = vmatpush1.xpose.msra.mxu0 0.0
    %4982 = vmatprep.subr.mxu0 0.0
    %4983 = vmatpush1.xpose.msra.mxu0 0.0
    %4984 = vmatprep.subr.mxu0 0.0
    %4985 = vmatpush1.xpose.msra.mxu0 0.0
    %4986 = vmatprep.subr.mxu0 0.0
    %4987 = vmatpush1.xpose.msra.mxu0 0.0
    %4988 = vmatprep.subr.mxu0 0.0
    %4989 = vmatpush1.xpose.msra.mxu0 0.0
    %4990 = vmatprep.subr.mxu0 0.0
    %4991 = vmatpush1.xpose.msra.mxu0 %v4958
    %4992 = vmatprep.subr.mxu0 0.0
    %4993 = vmatpush2.xpose.msra.mxu0 0.0
    %4994 = vmatprep.subr.mxu0 0.0
    %4995 = vmatpush2.xpose.msra.mxu0 0.0
    %4996 = vmatprep.subr.mxu0 0.0
    %4997 = vmatpush2.xpose.msra.mxu0 0.0
    %4998 = vmatprep.subr.mxu0 0.0
    %4999 = vmatpush2.xpose.msra.mxu0 0.0
    %5000 = vmatprep.subr.mxu0 0.0
    %5001 = vmatpush2.xpose.msra.mxu0 0.0
    %5002 = vmatprep.subr.mxu0 0.0
    %5003 = vmatpush2.xpose.msra.mxu0 0.0
    %5004 = vmatprep.subr.mxu0 0.0
    %5005 = vmatpush2.xpose.msra.mxu0 0.0
    %5006 = vmatprep.subr.mxu0 0.0
    %5007 = vmatpush2.xpose.msra.mxu0 0.0
    %5008 = vmatprep.subr.mxu0 0.0
    %5009 = vmatpush2.xpose.msra.mxu0 0.0
    %5010 = vmatprep.subr.mxu0 0.0
    %5011 = vmatpush2.xpose.msra.mxu0 0.0
    %5012 = vmatprep.subr.mxu0 0.0
    %5013 = vmatpush2.xpose.msra.mxu0 0.0
    %5014 = vmatprep.subr.mxu0 0.0
    %5015 = vmatpush2.xpose.msra.mxu0 0.0
    %5016 = vmatprep.subr.mxu0 0.0
    %5017 = vmatpush2.xpose.msra.mxu0 0.0
    %5018 = vmatprep.subr.mxu0 0.0
    %5019 = vmatpush2.xpose.msra.mxu0 0.0
    %5020 = vmatprep.subr.mxu0 0.0
    %5021 = vmatpush2.xpose.msra.mxu0 0.0
    %5022 = vmatprep.subr.mxu0 0.0
    %5023 = vmatpush2.xpose.msra.mxu0 0.0
    %5024 = vmatprep.mubr.f32.mxu0 0.0
    %5025 = vmatmul.mubr.f32.gmra.mxu0 %v4956
    %v5026 = vpop.f32.mrf.mxu0
    %v5027 = vadd.f32 0.0, %v5026
    %v5028 = vpop.f32.mrf.mxu0
    %5029 = vdwg.mxu0
    %v5030 = vsel %vm228, %v4949, -inf
    %5031 = vmax.xlane.f32.xlu0 %v5030
    %v5032 = vpop.xlane.xlu0 %5031
    %v5033 = vsel %vm228, %v5027, -inf
    %5034 = vmax.xlane.f32.xlu0 %v5033
    %v5035 = vpop.xlane.xlu0 %5034
    %v5036 = vsub.f32 %v4949, %v5032
    %v5037 = vsub.f32 %v5027, %v5035
    %v5038 = vmul.f32 %v5036, 1.442695
    %v5039 = vpow.pop %v5038
    %v5040 = vmul.f32 %v5037, 1.442695
    %v5041 = vpow.pop %v5040
    %v5042 = vsel %vm228, %v5039, 0.0
    %5043 = vadd.xlane.f32.xlu0 %v5042
    %v5044 = vpop.xlane.xlu0 %5043
    %v5045 = vsel %vm228, %v5041, 0.0
    %5046 = vadd.xlane.f32.xlu0 %v5045
    %v5047 = vpop.xlane.xlu0 %5046
    %v5048 = vrcp.pop %v5044
    %v5049 = vrcp.pop %v5047
    %v5050 = vmul.f32 %v5039, %v5048
    %v5051 = vmul.f32 %v5041, %v5049
    %5052 = vrot.lane.b32.xlu0 %v3878, 40
    %v5053 = vpop.permute.xlu0 %5052
    %v5056 = vsel %vm228, %v5050, 0
    %5058 = vmatprep.subr.mxu0 0.0
    %5059 = vmatpush1.msra.mxu0 0.0
    %5060 = vmatprep.subr.mxu0 0.0
    %5061 = vmatpush1.msra.mxu0 0.0
    %5062 = vmatprep.subr.mxu0 0.0
    %5063 = vmatpush1.msra.mxu0 0.0
    %5064 = vmatprep.subr.mxu0 0.0
    %5065 = vmatpush1.msra.mxu0 0.0
    %5066 = vmatprep.subr.mxu0 0.0
    %5067 = vmatpush1.msra.mxu0 0.0
    %5068 = vmatprep.subr.mxu0 0.0
    %5069 = vmatpush1.msra.mxu0 0.0
    %5070 = vmatprep.subr.mxu0 0.0
    %5071 = vmatpush1.msra.mxu0 0.0
    %5072 = vmatprep.subr.mxu0 0.0
    %5073 = vmatpush1.msra.mxu0 0.0
    %5074 = vmatprep.subr.mxu0 0.0
    %5075 = vmatpush1.msra.mxu0 0.0
    %5076 = vmatprep.subr.mxu0 0.0
    %5077 = vmatpush1.msra.mxu0 0.0
    %5078 = vmatprep.subr.mxu0 0.0
    %5079 = vmatpush1.msra.mxu0 0.0
    %5080 = vmatprep.subr.mxu0 0.0
    %5081 = vmatpush1.msra.mxu0 0.0
    %5082 = vmatprep.subr.mxu0 0.0
    %5083 = vmatpush1.msra.mxu0 0.0
    %5084 = vmatprep.subr.mxu0 0.0
    %5085 = vmatpush1.msra.mxu0 0.0
    %5086 = vmatprep.subr.mxu0 0.0
    %5087 = vmatpush1.msra.mxu0 0.0
    %5088 = vmatprep.subr.mxu0 0.0
    %5089 = vmatpush1.msra.mxu0 %v5053
    %5090 = vmatprep.subr.mxu0 0.0
    %5091 = vmatpush2.msra.mxu0 0.0
    %5092 = vmatprep.subr.mxu0 0.0
    %5093 = vmatpush2.msra.mxu0 0.0
    %5094 = vmatprep.subr.mxu0 0.0
    %5095 = vmatpush2.msra.mxu0 0.0
    %5096 = vmatprep.subr.mxu0 0.0
    %5097 = vmatpush2.msra.mxu0 0.0
    %5098 = vmatprep.subr.mxu0 0.0
    %5099 = vmatpush2.msra.mxu0 0.0
    %5100 = vmatprep.subr.mxu0 0.0
    %5101 = vmatpush2.msra.mxu0 0.0
    %5102 = vmatprep.subr.mxu0 0.0
    %5103 = vmatpush2.msra.mxu0 0.0
    %5104 = vmatprep.subr.mxu0 0.0
    %5105 = vmatpush2.msra.mxu0 0.0
    %5106 = vmatprep.subr.mxu0 0.0
    %5107 = vmatpush2.msra.mxu0 0.0
    %5108 = vmatprep.subr.mxu0 0.0
    %5109 = vmatpush2.msra.mxu0 0.0
    %5110 = vmatprep.subr.mxu0 0.0
    %5111 = vmatpush2.msra.mxu0 0.0
    %5112 = vmatprep.subr.mxu0 0.0
    %5113 = vmatpush2.msra.mxu0 0.0
    %5114 = vmatprep.subr.mxu0 0.0
    %5115 = vmatpush2.msra.mxu0 0.0
    %5116 = vmatprep.subr.mxu0 0.0
    %5117 = vmatpush2.msra.mxu0 0.0
    %5118 = vmatprep.subr.mxu0 0.0
    %5119 = vmatpush2.msra.mxu0 0.0
    %5120 = vmatprep.subr.mxu0 0.0
    %5121 = vmatpush2.msra.mxu0 0.0
    %5122 = vmatprep.mubr.f32.mxu0 0.0
    %5123 = vmatmul.mubr.f32.gmra.mxu0 %v5056
    %v5124 = vpop.f32.mrf.mxu0
    %v5125 = vadd.f32 0.0, %v5124
    %v5126 = vpop.f32.mrf.mxu0
    %5127 = vdwg.mxu0
    %5128 = vrot.lane.b32.xlu0 %v3883, 40
    %v5129 = vpop.permute.xlu0 %5128
    %v5132 = vsel %vm228, %v5051, 0
    %5134 = vmatprep.subr.mxu0 0.0
    %5135 = vmatpush1.msra.mxu0 0.0
    %5136 = vmatprep.subr.mxu0 0.0
    %5137 = vmatpush1.msra.mxu0 0.0
    %5138 = vmatprep.subr.mxu0 0.0
    %5139 = vmatpush1.msra.mxu0 0.0
    %5140 = vmatprep.subr.mxu0 0.0
    %5141 = vmatpush1.msra.mxu0 0.0
    %5142 = vmatprep.subr.mxu0 0.0
    %5143 = vmatpush1.msra.mxu0 0.0
    %5144 = vmatprep.subr.mxu0 0.0
    %5145 = vmatpush1.msra.mxu0 0.0
    %5146 = vmatprep.subr.mxu0 0.0
    %5147 = vmatpush1.msra.mxu0 0.0
    %5148 = vmatprep.subr.mxu0 0.0
    %5149 = vmatpush1.msra.mxu0 0.0
    %5150 = vmatprep.subr.mxu0 0.0
    %5151 = vmatpush1.msra.mxu0 0.0
    %5152 = vmatprep.subr.mxu0 0.0
    %5153 = vmatpush1.msra.mxu0 0.0
    %5154 = vmatprep.subr.mxu0 0.0
    %5155 = vmatpush1.msra.mxu0 0.0
    %5156 = vmatprep.subr.mxu0 0.0
    %5157 = vmatpush1.msra.mxu0 0.0
    %5158 = vmatprep.subr.mxu0 0.0
    %5159 = vmatpush1.msra.mxu0 0.0
    %5160 = vmatprep.subr.mxu0 0.0
    %5161 = vmatpush1.msra.mxu0 0.0
    %5162 = vmatprep.subr.mxu0 0.0
    %5163 = vmatpush1.msra.mxu0 0.0
    %5164 = vmatprep.subr.mxu0 0.0
    %5165 = vmatpush1.msra.mxu0 %v5129
    %5166 = vmatprep.subr.mxu0 0.0
    %5167 = vmatpush2.msra.mxu0 0.0
    %5168 = vmatprep.subr.mxu0 0.0
    %5169 = vmatpush2.msra.mxu0 0.0
    %5170 = vmatprep.subr.mxu0 0.0
    %5171 = vmatpush2.msra.mxu0 0.0
    %5172 = vmatprep.subr.mxu0 0.0
    %5173 = vmatpush2.msra.mxu0 0.0
    %5174 = vmatprep.subr.mxu0 0.0
    %5175 = vmatpush2.msra.mxu0 0.0
    %5176 = vmatprep.subr.mxu0 0.0
    %5177 = vmatpush2.msra.mxu0 0.0
    %5178 = vmatprep.subr.mxu0 0.0
    %5179 = vmatpush2.msra.mxu0 0.0
    %5180 = vmatprep.subr.mxu0 0.0
    %5181 = vmatpush2.msra.mxu0 0.0
    %5182 = vmatprep.subr.mxu0 0.0
    %5183 = vmatpush2.msra.mxu0 0.0
    %5184 = vmatprep.subr.mxu0 0.0
    %5185 = vmatpush2.msra.mxu0 0.0
    %5186 = vmatprep.subr.mxu0 0.0
    %5187 = vmatpush2.msra.mxu0 0.0
    %5188 = vmatprep.subr.mxu0 0.0
    %5189 = vmatpush2.msra.mxu0 0.0
    %5190 = vmatprep.subr.mxu0 0.0
    %5191 = vmatpush2.msra.mxu0 0.0
    %5192 = vmatprep.subr.mxu0 0.0
    %5193 = vmatpush2.msra.mxu0 0.0
    %5194 = vmatprep.subr.mxu0 0.0
    %5195 = vmatpush2.msra.mxu0 0.0
    %5196 = vmatprep.subr.mxu0 0.0
    %5197 = vmatpush2.msra.mxu0 0.0
    %5198 = vmatprep.mubr.f32.mxu0 0.0
    %5199 = vmatmul.mubr.f32.gmra.mxu0 %v5132
    %v5200 = vpop.f32.mrf.mxu0
    %v5201 = vadd.f32 0.0, %v5200
    %v5202 = vpop.f32.mrf.mxu0
    %5203 = vdwg.mxu0
    %5206 = vrot.lane.b32.xlu0 %v4465, 8
    %v5207 = vpop.permute.xlu0 %5206
    %5208 = vrot.lane.b32.xlu0 %v4541, 8
    %v5209 = vpop.permute.xlu0 %5208
    %5214 = vrot.lane.b32.xlu0 %v4795, 16
    %v5215 = vpop.permute.xlu0 %5214
    %5216 = vrot.lane.b32.xlu0 %v4871, 16
    %v5217 = vpop.permute.xlu0 %5216
    %5222 = vrot.lane.b32.xlu0 %v5125, 24
    %v5223 = vpop.permute.xlu0 %5222
    %5224 = vrot.lane.b32.xlu0 %v5201, 24
    %v5225 = vpop.permute.xlu0 %5224
    %v5228 = vsel %vm228, %v4135, %v5207
    %v5229 = vsel %vm228, %v4211, %v5209
    %v5230 = vsel %vm1570, %v5228, %v5215
    %v5231 = vsel %vm1570, %v5229, %v5217
    %v5232 = vsel %vm1573, %v5230, %v5223
    %v5233 = vsel %vm1573, %v5231, %v5225
    %s5234 = scalar_lea.vmem %s2, 64
    %v5235 = vld [vmem:[%s5234] sm:$0xff]
    %v5236 = vld [vmem:[%s5234 + $0x8] sm:$0xff]
    %v5237 = vld [vmem:[%s5234 + $0x10] sm:$0xff]
    %v5238 = vld [vmem:[%s5234 + $0x18] sm:$0xff]
    %v5240 = vsel %vm96, %v5232, 0
    %v5243 = vsel %vm96, %v5233, 0
    %5245 = vmatprep.subr.mxu0 0.0
    %5246 = vmatpush1.msra.mxu0 0.0
    %5247 = vmatprep.subr.mxu0 0.0
    %5248 = vmatpush1.msra.mxu0 0.0
    %5249 = vmatprep.subr.mxu0 0.0
    %5250 = vmatpush1.msra.mxu0 0.0
    %5251 = vmatprep.subr.mxu0 0.0
    %5252 = vmatpush1.msra.mxu0 0.0
    %5253 = vmatprep.subr.mxu0 0.0
    %5254 = vmatpush1.msra.mxu0 0.0
    %5255 = vmatprep.subr.mxu0 0.0
    %5256 = vmatpush1.msra.mxu0 0.0
    %5257 = vmatprep.subr.mxu0 0.0
    %5258 = vmatpush1.msra.mxu0 0.0
    %5259 = vmatprep.subr.mxu0 0.0
    %5260 = vmatpush1.msra.mxu0 0.0
    %5261 = vmatprep.subr.mxu0 0.0
    %5262 = vmatpush1.msra.mxu0 0.0
    %5263 = vmatprep.subr.mxu0 0.0
    %5264 = vmatpush1.msra.mxu0 0.0
    %5265 = vmatprep.subr.mxu0 0.0
    %5266 = vmatpush1.msra.mxu0 0.0
    %5267 = vmatprep.subr.mxu0 0.0
    %5268 = vmatpush1.msra.mxu0 0.0
    %5269 = vmatprep.subr.mxu0 0.0
    %5270 = vmatpush1.msra.mxu0 %v5238
    %5271 = vmatprep.subr.mxu0 0.0
    %5272 = vmatpush1.msra.mxu0 %v5237
    %5273 = vmatprep.subr.mxu0 0.0
    %5274 = vmatpush1.msra.mxu0 %v5236
    %5275 = vmatprep.subr.mxu0 0.0
    %5276 = vmatpush1.msra.mxu0 %v5235
    %5277 = vmatprep.subr.mxu0 0.0
    %5278 = vmatpush2.msra.mxu0 0.0
    %5279 = vmatprep.subr.mxu0 0.0
    %5280 = vmatpush2.msra.mxu0 0.0
    %5281 = vmatprep.subr.mxu0 0.0
    %5282 = vmatpush2.msra.mxu0 0.0
    %5283 = vmatprep.subr.mxu0 0.0
    %5284 = vmatpush2.msra.mxu0 0.0
    %5285 = vmatprep.subr.mxu0 0.0
    %5286 = vmatpush2.msra.mxu0 0.0
    %5287 = vmatprep.subr.mxu0 0.0
    %5288 = vmatpush2.msra.mxu0 0.0
    %5289 = vmatprep.subr.mxu0 0.0
    %5290 = vmatpush2.msra.mxu0 0.0
    %5291 = vmatprep.subr.mxu0 0.0
    %5292 = vmatpush2.msra.mxu0 0.0
    %5293 = vmatprep.subr.mxu0 0.0
    %5294 = vmatpush2.msra.mxu0 0.0
    %5295 = vmatprep.subr.mxu0 0.0
    %5296 = vmatpush2.msra.mxu0 0.0
    %5297 = vmatprep.subr.mxu0 0.0
    %5298 = vmatpush2.msra.mxu0 0.0
    %5299 = vmatprep.subr.mxu0 0.0
    %5300 = vmatpush2.msra.mxu0 0.0
    %5301 = vmatprep.subr.mxu0 0.0
    %5302 = vmatpush2.msra.mxu0 0.0
    %5303 = vmatprep.subr.mxu0 0.0
    %5304 = vmatpush2.msra.mxu0 0.0
    %5305 = vmatprep.subr.mxu0 0.0
    %5306 = vmatpush2.msra.mxu0 0.0
    %5307 = vmatprep.subr.mxu0 0.0
    %5308 = vmatpush2.msra.mxu0 0.0
    %5309 = vmatprep.mubr.f32.mxu0 0.0
    %5310 = vmatmul.mubr.f32.gmra.mxu0 %v5240
    %v5311 = vpop.f32.mrf.mxu0
    %v5312 = vadd.f32 0.0, %v5311
    %v5313 = vpop.f32.mrf.mxu0
    %5314 = vmatprep.mubr.f32.mxu0 0.0
    %5315 = vmatmul.mubr.f32.gmra.mxu0 %v5243
    %v5316 = vpop.f32.mrf.mxu0
    %v5317 = vadd.f32 0.0, %v5316
    %v5318 = vpop.f32.mrf.mxu0
    %5319 = vdwg.mxu0
    %v5320 = vadd.f32 %v3749, %v5312
    %v5321 = vadd.f32 %v3750, %v5317
    %s5322 = scalar_lea.vmem %s3, 2
    %v5323 = vld [vmem:[%s5322] sm:$0x1]
    %v5325 = vlaneseq
    %v5326 = vshrl.u32 %v5325, 7
    %v5327 = vsub.s32 0, %v5326
    %v5328 = vrot.slane %v5323, %v5327
    %v5330 = vadd.f32 %v5320, %v5328
    %v5331 = vadd.f32 %v5321, %v5328
    %s5332 = scalar_lea.vmem %s6, 2
    %v5333 = vld [vmem:[%s5332] sm:$0x1]
    %s5334 = scalar_lea.vmem [#allocation7], 2
    %v5335 = vld [vmem:[%s5334] sm:$0x1]
    %v5336 = vsel %vm96, %v5330, 0.0
    %5337 = vadd.xlane.f32.xlu0 %v5336
    %v5338 = vpop.xlane.xlu0 %5337
    %v5339 = vsel %vm96, %v5331, 0.0
    %5340 = vadd.xlane.f32.xlu0 %v5339
    %v5341 = vpop.xlane.xlu0 %5340
    %v5342 = vmul.f32 %v5338, %v103
    %v5343 = vmul.f32 %v5341, %v103
    %v5344 = vsub.f32 %v5330, %v5342
    %v5345 = vsub.f32 %v5331, %v5343
    %v5346 = vmul.f32 %v5344, %v5344
    %v5347 = vmul.f32 %v5345, %v5345
    %v5348 = vsel %vm96, %v5346, 0.0
    %5349 = vadd.xlane.f32.xlu0 %v5348
    %v5350 = vpop.xlane.xlu0 %5349
    %v5351 = vsel %vm96, %v5347, 0.0
    %5352 = vadd.xlane.f32.xlu0 %v5351
    %v5353 = vpop.xlane.xlu0 %5352
    %v5354 = vmul.f32 %v5350, %v103
    %v5355 = vmul.f32 %v5353, %v103
    %v5356 = vadd.f32 %v5354, 1e-05
    %v5357 = vadd.f32 %v5355, 1e-05
    %v5358 = vrsqrt.pop %v5356
    %v5359 = vrsqrt.pop %v5357
    %v5360 = vmul.f32 %v5344, %v5358
    %v5361 = vmul.f32 %v5345, %v5359
    %v5363 = vlaneseq
    %v5364 = vshrl.u32 %v5363, 7
    %v5365 = vsub.s32 0, %v5364
    %v5366 = vrot.slane %v5333, %v5365
    %v5368 = vmul.f32 %v5360, %v5366
    %v5369 = vmul.f32 %v5361, %v5366
    %v5371 = vlaneseq
    %v5372 = vshrl.u32 %v5371, 7
    %v5373 = vsub.s32 0, %v5372
    %v5374 = vrot.slane %v5335, %v5373
    %v5376 = vadd.f32 %v5368, %v5374
    %v5377 = vadd.f32 %v5369, %v5374
    %s5378 = scalar_lea.vmem %s8, 64
    %v5379 = vld [vmem:[%s5378] sm:$0xff]
    %v5380 = vld [vmem:[%s5378 + $0x8] sm:$0xff]
    %v5381 = vld [vmem:[%s5378 + $0x10] sm:$0xff]
    %v5382 = vld [vmem:[%s5378 + $0x18] sm:$0xff]
    %s5383 = scalar_lea.vmem %s9, 2
    %v5384 = vld [vmem:[%s5383] sm:$0x1]
    %v5386 = vlaneseq
    %v5387 = vshrl.u32 %v5386, 7
    %v5388 = vsub.s32 0, %v5387
    %v5389 = vrot.slane %v5384, %v5388
    %v5392 = vsel %vm96, %v5376, 0
    %v5395 = vsel %vm96, %v5377, 0
    %5397 = vmatprep.subr.mxu0 0.0
    %5398 = vmatpush1.msra.mxu0 0.0
    %5399 = vmatprep.subr.mxu0 0.0
    %5400 = vmatpush1.msra.mxu0 0.0
    %5401 = vmatprep.subr.mxu0 0.0
    %5402 = vmatpush1.msra.mxu0 0.0
    %5403 = vmatprep.subr.mxu0 0.0
    %5404 = vmatpush1.msra.mxu0 0.0
    %5405 = vmatprep.subr.mxu0 0.0
    %5406 = vmatpush1.msra.mxu0 0.0
    %5407 = vmatprep.subr.mxu0 0.0
    %5408 = vmatpush1.msra.mxu0 0.0
    %5409 = vmatprep.subr.mxu0 0.0
    %5410 = vmatpush1.msra.mxu0 0.0
    %5411 = vmatprep.subr.mxu0 0.0
    %5412 = vmatpush1.msra.mxu0 0.0
    %5413 = vmatprep.subr.mxu0 0.0
    %5414 = vmatpush1.msra.mxu0 0.0
    %5415 = vmatprep.subr.mxu0 0.0
    %5416 = vmatpush1.msra.mxu0 0.0
    %5417 = vmatprep.subr.mxu0 0.0
    %5418 = vmatpush1.msra.mxu0 0.0
    %5419 = vmatprep.subr.mxu0 0.0
    %5420 = vmatpush1.msra.mxu0 0.0
    %5421 = vmatprep.subr.mxu0 0.0
    %5422 = vmatpush1.msra.mxu0 %v5382
    %5423 = vmatprep.subr.mxu0 0.0
    %5424 = vmatpush1.msra.mxu0 %v5381
    %5425 = vmatprep.subr.mxu0 0.0
    %5426 = vmatpush1.msra.mxu0 %v5380
    %5427 = vmatprep.subr.mxu0 0.0
    %5428 = vmatpush1.msra.mxu0 %v5379
    %5429 = vmatprep.subr.mxu0 0.0
    %5430 = vmatpush2.msra.mxu0 0.0
    %5431 = vmatprep.subr.mxu0 0.0
    %5432 = vmatpush2.msra.mxu0 0.0
    %5433 = vmatprep.subr.mxu0 0.0
    %5434 = vmatpush2.msra.mxu0 0.0
    %5435 = vmatprep.subr.mxu0 0.0
    %5436 = vmatpush2.msra.mxu0 0.0
    %5437 = vmatprep.subr.mxu0 0.0
    %5438 = vmatpush2.msra.mxu0 0.0
    %5439 = vmatprep.subr.mxu0 0.0
    %5440 = vmatpush2.msra.mxu0 0.0
    %5441 = vmatprep.subr.mxu0 0.0
    %5442 = vmatpush2.msra.mxu0 0.0
    %5443 = vmatprep.subr.mxu0 0.0
    %5444 = vmatpush2.msra.mxu0 0.0
    %5445 = vmatprep.subr.mxu0 0.0
    %5446 = vmatpush2.msra.mxu0 0.0
    %5447 = vmatprep.subr.mxu0 0.0
    %5448 = vmatpush2.msra.mxu0 0.0
    %5449 = vmatprep.subr.mxu0 0.0
    %5450 = vmatpush2.msra.mxu0 0.0
    %5451 = vmatprep.subr.mxu0 0.0
    %5452 = vmatpush2.msra.mxu0 0.0
    %5453 = vmatprep.subr.mxu0 0.0
    %5454 = vmatpush2.msra.mxu0 0.0
    %5455 = vmatprep.subr.mxu0 0.0
    %5456 = vmatpush2.msra.mxu0 0.0
    %5457 = vmatprep.subr.mxu0 0.0
    %5458 = vmatpush2.msra.mxu0 0.0
    %5459 = vmatprep.subr.mxu0 0.0
    %5460 = vmatpush2.msra.mxu0 0.0
    %5461 = vmatprep.mubr.f32.mxu0 0.0
    %5462 = vmatmul.mubr.f32.gmra.mxu0 %v5392
    %v5463 = vpop.f32.mrf.mxu0
    %v5464 = vadd.f32 %v5389, %v5463
    %v5465 = vpop.f32.mrf.mxu0
    %5466 = vmatprep.mubr.f32.mxu0 0.0
    %5467 = vmatmul.mubr.f32.gmra.mxu0 %v5395
    %v5468 = vpop.f32.mrf.mxu0
    %v5469 = vadd.f32 %v5389, %v5468
    %v5470 = vpop.f32.mrf.mxu0
    %5471 = vdwg.mxu0
    %v5472 = vmul.f32 %v5464, 0.5
    %v5473 = vmul.f32 %v5469, 0.5
    %v5474 = vmul.f32 %v5464, 0.70710677
    %v5475 = vmul.f32 %v5469, 0.70710677
    %v5476 = verf.f32.pop %v5474
    %v5477 = verf.f32.pop %v5475
    %v5478 = vadd.f32 %v5476, 1.0
    %v5479 = vadd.f32 %v5477, 1.0
    %v5480 = vmul.f32 %v5472, %v5478
    %v5481 = vmul.f32 %v5473, %v5479
    %s5482 = scalar_lea.vmem %s10, 128
    %v5483 = vld [vmem:[%s5482] sm:$0xff]
    %v5484 = vld [vmem:[%s5482 + $0x8] sm:$0xff]
    %v5485 = vld [vmem:[%s5482 + $0x10] sm:$0xff]
    %v5486 = vld [vmem:[%s5482 + $0x18] sm:$0xff]
    %v5487 = vld [vmem:[%s5482 + $0x20] sm:$0xff]
    %v5488 = vld [vmem:[%s5482 + $0x28] sm:$0xff]
    %v5489 = vld [vmem:[%s5482 + $0x30] sm:$0xff]
    %v5490 = vld [vmem:[%s5482 + $0x38] sm:$0xff]
    %v5492 = vsel %vm1826, %v5480, 0
    %v5495 = vsel %vm1826, %v5481, 0
    %5497 = vmatprep.subr.mxu0 0.0
    %5498 = vmatpush1.msra.mxu0 0.0
    %5499 = vmatprep.subr.mxu0 0.0
    %5500 = vmatpush1.msra.mxu0 0.0
    %5501 = vmatprep.subr.mxu0 0.0
    %5502 = vmatpush1.msra.mxu0 0.0
    %5503 = vmatprep.subr.mxu0 0.0
    %5504 = vmatpush1.msra.mxu0 0.0
    %5505 = vmatprep.subr.mxu0 0.0
    %5506 = vmatpush1.msra.mxu0 0.0
    %5507 = vmatprep.subr.mxu0 0.0
    %5508 = vmatpush1.msra.mxu0 0.0
    %5509 = vmatprep.subr.mxu0 0.0
    %5510 = vmatpush1.msra.mxu0 0.0
    %5511 = vmatprep.subr.mxu0 0.0
    %5512 = vmatpush1.msra.mxu0 0.0
    %5513 = vmatprep.subr.mxu0 0.0
    %5514 = vmatpush1.msra.mxu0 %v5490
    %5515 = vmatprep.subr.mxu0 0.0
    %5516 = vmatpush1.msra.mxu0 %v5489
    %5517 = vmatprep.subr.mxu0 0.0
    %5518 = vmatpush1.msra.mxu0 %v5488
    %5519 = vmatprep.subr.mxu0 0.0
    %5520 = vmatpush1.msra.mxu0 %v5487
    %5521 = vmatprep.subr.mxu0 0.0
    %5522 = vmatpush1.msra.mxu0 %v5486
    %5523 = vmatprep.subr.mxu0 0.0
    %5524 = vmatpush1.msra.mxu0 %v5485
    %5525 = vmatprep.subr.mxu0 0.0
    %5526 = vmatpush1.msra.mxu0 %v5484
    %5527 = vmatprep.subr.mxu0 0.0
    %5528 = vmatpush1.msra.mxu0 %v5483
    %5529 = vmatprep.subr.mxu0 0.0
    %5530 = vmatpush2.msra.mxu0 0.0
    %5531 = vmatprep.subr.mxu0 0.0
    %5532 = vmatpush2.msra.mxu0 0.0
    %5533 = vmatprep.subr.mxu0 0.0
    %5534 = vmatpush2.msra.mxu0 0.0
    %5535 = vmatprep.subr.mxu0 0.0
    %5536 = vmatpush2.msra.mxu0 0.0
    %5537 = vmatprep.subr.mxu0 0.0
    %5538 = vmatpush2.msra.mxu0 0.0
    %5539 = vmatprep.subr.mxu0 0.0
    %5540 = vmatpush2.msra.mxu0 0.0
    %5541 = vmatprep.subr.mxu0 0.0
    %5542 = vmatpush2.msra.mxu0 0.0
    %5543 = vmatprep.subr.mxu0 0.0
    %5544 = vmatpush2.msra.mxu0 0.0
    %5545 = vmatprep.subr.mxu0 0.0
    %5546 = vmatpush2.msra.mxu0 0.0
    %5547 = vmatprep.subr.mxu0 0.0
    %5548 = vmatpush2.msra.mxu0 0.0
    %5549 = vmatprep.subr.mxu0 0.0
    %5550 = vmatpush2.msra.mxu0 0.0
    %5551 = vmatprep.subr.mxu0 0.0
    %5552 = vmatpush2.msra.mxu0 0.0
    %5553 = vmatprep.subr.mxu0 0.0
    %5554 = vmatpush2.msra.mxu0 0.0
    %5555 = vmatprep.subr.mxu0 0.0
    %5556 = vmatpush2.msra.mxu0 0.0
    %5557 = vmatprep.subr.mxu0 0.0
    %5558 = vmatpush2.msra.mxu0 0.0
    %5559 = vmatprep.subr.mxu0 0.0
    %5560 = vmatpush2.msra.mxu0 0.0
    %5561 = vmatprep.mubr.f32.mxu0 0.0
    %5562 = vmatmul.mubr.f32.gmra.mxu0 %v5492
    %v5563 = vpop.f32.mrf.mxu0
    %v5564 = vadd.f32 0.0, %v5563
    %v5565 = vpop.f32.mrf.mxu0
    %5566 = vmatprep.mubr.f32.mxu0 0.0
    %5567 = vmatmul.mubr.f32.gmra.mxu0 %v5495
    %v5568 = vpop.f32.mrf.mxu0
    %v5569 = vadd.f32 0.0, %v5568
    %v5570 = vpop.f32.mrf.mxu0
    %5571 = vdwg.mxu0
    %v5572 = vadd.f32 %v5330, %v5564
    %v5573 = vadd.f32 %v5331, %v5569
    %s5574 = scalar_lea.vmem %s11, 2
    %v5575 = vld [vmem:[%s5574] sm:$0x1]
    %v5577 = vlaneseq
    %v5578 = vshrl.u32 %v5577, 7
    %v5579 = vsub.s32 0, %v5578
    %v5580 = vrot.slane %v5575, %v5579
    %v5582 = vadd.f32 %v5572, %v5580
    %v5583 = vadd.f32 %v5573, %v5580
    %s5584 = scalar_lea.vmem [#allocation8], 16
    %5585 = vst.msk [vmem:[%s5584] sm:$0xff] %vm96, %v5582
    %5586 = vst.msk [vmem:[%s5584 + $0x18] sm:$0xff] %vm96, %v5583
    %v5587 = vld [vmem:[%s12] sm:$0x1]
    %v5588 = vld [vmem:[%s13] sm:$0x1]
    %v5589 = vsel %vm96, %v5582, 0.0
    %5590 = vadd.xlane.f32.xlu0 %v5589
    %v5591 = vpop.xlane.xlu0 %5590
    %v5592 = vsel %vm96, %v5583, 0.0
    %5593 = vadd.xlane.f32.xlu0 %v5592
    %v5594 = vpop.xlane.xlu0 %5593
    %v5595 = vmul.f32 %v5591, %v103
    %v5596 = vmul.f32 %v5594, %v103
    %v5597 = vsub.f32 %v5582, %v5595
    %v5598 = vsub.f32 %v5583, %v5596
    %v5599 = vmul.f32 %v5597, %v5597
    %v5600 = vmul.f32 %v5598, %v5598
    %v5601 = vsel %vm96, %v5599, 0.0
    %5602 = vadd.xlane.f32.xlu0 %v5601
    %v5603 = vpop.xlane.xlu0 %5602
    %v5604 = vsel %vm96, %v5600, 0.0
    %5605 = vadd.xlane.f32.xlu0 %v5604
    %v5606 = vpop.xlane.xlu0 %5605
    %v5607 = vmul.f32 %v5603, %v103
    %v5608 = vmul.f32 %v5606, %v103
    %v5609 = vadd.f32 %v5607, 1e-05
    %v5610 = vadd.f32 %v5608, 1e-05
    %v5611 = vrsqrt.pop %v5609
    %v5612 = vrsqrt.pop %v5610
    %v5613 = vmul.f32 %v5597, %v5611
    %v5614 = vmul.f32 %v5598, %v5612
    %v5616 = vlaneseq
    %v5617 = vshrl.u32 %v5616, 7
    %v5618 = vsub.s32 0, %v5617
    %v5619 = vrot.slane %v5587, %v5618
    %v5621 = vmul.f32 %v5613, %v5619
    %v5622 = vmul.f32 %v5614, %v5619
    %v5624 = vlaneseq
    %v5625 = vshrl.u32 %v5624, 7
    %v5626 = vsub.s32 0, %v5625
    %v5627 = vrot.slane %v5588, %v5626
    %v5629 = vadd.f32 %v5621, %v5627
    %v5630 = vadd.f32 %v5622, %v5627
    %5631 = vst.msk [vmem:[#allocation9] sm:$0xff] %vm96, %v5629
    %5632 = vst.msk [vmem:[#allocation9 + $0x8] sm:$0xff] %vm96, %v5630
    // Predicated region
    $region70: #{tpu_custom_call.1} parent=1 // pred_check
      _
    $region71: #{tpu_custom_call.1} parent=1 // pred_check_branch
      %5634 = sbr.rel (0) target = $region73
    $region72: #{tpu_custom_call.1} parent=1 // pred_region
      %s5636 = ssub.s32 768, 768
      %5637 = vsyncadd [#allocation4], %s5636
      %s5638 = sshll.u32 [#allocation8], 4
      %s5639 = int_to_ptr.vmem [resolvable:$true] %s5638
      %5644 = dma.vmem_to_hbm [thread:$0]  %s5639, 768, %s14, [#allocation4], 128, 128, 8
    $region73: #{tpu_custom_call.1} parent=1 // pred_fallthru
      _
    // Predicated region
    $region74: #{tpu_custom_call.1} parent=1 // pred_check
      _
    $region75: #{tpu_custom_call.1} parent=1 // pred_check_branch
      %5646 = sbr.rel (0) target = $region77
    $region76: #{tpu_custom_call.1} parent=1 // pred_region
      %s5648 = ssub.s32 256, 256
      %5649 = vsyncadd [#allocation10], %s5648
      %s5650 = sshll.u32 [#allocation9], 4
      %s5651 = int_to_ptr.vmem [resolvable:$true] %s5650
      %5656 = dma.vmem_to_hbm [thread:$0]  %s5651, 256, %s15, [#allocation10], 128, 128, 8
    $region77: #{tpu_custom_call.1} parent=1 // pred_fallthru
      _
    // Predicated region
    $region78: #{tpu_custom_call.1} parent=1 // pred_check
      _
    $region79: #{tpu_custom_call.1} parent=1 // pred_check_branch
      %5658 = sbr.rel (0) target = $region81
    $region80: #{tpu_custom_call.1} parent=1 // pred_region
      %5659 = dma.done [#allocation4], 768
    $region81: #{tpu_custom_call.1} parent=1 // pred_fallthru
      _
    // Predicated region
    $region82: #{tpu_custom_call.1} parent=1 // pred_check
      _
    $region83: #{tpu_custom_call.1} parent=1 // pred_check_branch
      %5661 = sbr.rel (0) target = $region85
    $region84: #{tpu_custom_call.1} parent=1 // pred_region
      %5662 = dma.done [#allocation10], 256
    $region85: #{tpu_custom_call.1} parent=1 // pred_fallthru
      _
    %5663 = vsyncpa [#allocation3], 1
    %5664 = vsyncpa [#allocation6], 1
    %5665 = vsyncpa [#allocation4], 1
    %5666 = vsyncpa [#allocation10], 1

</llo_original>
